<compile_context>
chip_gen: v6e
topology: v6e:2x2x1
jax: 0.10.0
libtpu: 0.0.40
codegen_flags: <defaults>
</compile_context>

<pallas_src>
import functools

import jax
import jax.numpy as jnp
from jax.experimental import pallas as pl
from jax.experimental.pallas import tpu as pltpu

# ---------------- small synthetic TimeSformer config ----------------
BATCH = 2
NUM_FRAMES = 2
NUM_CHANNELS = 3
IMAGE_SIZE = 16
PATCH_SIZE = 8
# HIDDEN = 128 -> lane-dense outputs (128-lane vregs) and head_dim = 32.
HIDDEN = 128
NUM_HEADS = 4
NUM_LAYERS = 2
INTERMEDIATE = 4 * HIDDEN
LN_EPS = 1e-6
NUM_CLASSES = 2

MM_DTYPE = jnp.bfloat16  # MXU-native operand dtype; accumulation stays f32.


# ========================= in-kernel helper math ==========================

def _ln(x, g, b, eps=LN_EPS):
    """LayerNorm over the last dim (torch nn.LayerNorm semantics), f32."""
    mu = jnp.mean(x, axis=-1, keepdims=True)
    var = jnp.mean((x - mu) * (x - mu), axis=-1, keepdims=True)
    return (x - mu) * jax.lax.rsqrt(var + eps) * g + b


def _rep(shape):
    """Grid-invariant operand (weights / biases): block == whole array.
    TODO(synk): pipeline_mode=pl.Buffered(1) would halve VMEM for these
    invariant blocks; left at the default for lowering portability."""
    return pl.BlockSpec(shape, lambda i: tuple(0 for _ in shape))


# ============================= Pallas kernels =============================

def _linear_kernel(x_ref, w_ref, b_ref, o_ref):
    o_ref[...] = jnp.dot(x_ref[...].astype(MM_DTYPE), w_ref[...],
                         preferred_element_type=jnp.float32) + b_ref[...]


def linear(x, w, b, *, row_tile=8):
    """x: (M, K) f32, w: (K, N) bf16, b: (N,) f32 -> (M, N) f32 (patch embed).
    Row-tiled parallel grid so v7x can split rows across its two TCs."""
    M, K = x.shape
    N = w.shape[1]
    if M % row_tile != 0:
        row_tile = M
    grid = (M // row_tile,)
    return pl.pallas_call(
        _linear_kernel,
        out_shape=jax.ShapeDtypeStruct((M, N), jnp.float32),
        grid=grid,
        in_specs=[pl.BlockSpec((row_tile, K), lambda i: (i, 0)),
                  _rep((K, N)), _rep((1, N))],
        out_specs=pl.BlockSpec((row_tile, N), lambda i: (i, 0)),
        compiler_params=pltpu.CompilerParams(dimension_semantics=("parallel",)),
        cost_estimate=pl.CostEstimate(
            flops=2 * M * K * N, transcendentals=0,
            bytes_accessed=4 * (M * K + M * N) + 2 * K * N),
    )(x, w, b.reshape(1, N))


def _attn_block_kernel(*refs, num_heads, head_dim, use_dense, add_residual):
    """Fused: LN -> QKV -> multi-head softmax attention -> out dense
    (-> optional temporal dense) (-> optional +residual).
    One (G, S, D) block of G sequences (all heads) per grid step."""
    if use_dense:
        (x_ref, g_ref, b_ref, qkvw_ref, qkvb_ref, ow_ref, ob_ref,
         dw_ref, db_ref, o_ref) = refs
    else:
        (x_ref, g_ref, b_ref, qkvw_ref, qkvb_ref, ow_ref, ob_ref, o_ref) = refs
        dw_ref = db_ref = None

    G, S, D = x_ref.shape
    x = x_ref[...].reshape(G * S, D)                       # (G*S, D) f32
    xln = _ln(x, g_ref[...], b_ref[...])

    # One flattened (G*S, D) @ (D, 3D) QKV matmul covering all sequences/heads.
    qkv = jnp.dot(xln.astype(MM_DTYPE), qkvw_ref[...],
                  preferred_element_type=jnp.float32) + qkvb_ref[...]
    qkv = qkv.astype(MM_DTYPE).reshape(G, S, 3 * D)        # single bf16 cast

    scale = float(head_dim) ** -0.5
    ctx = []
    for h in range(num_heads):                             # heads unrolled (4)
        q = qkv[:, :, h * head_dim:(h + 1) * head_dim]
        k = qkv[:, :, D + h * head_dim:D + (h + 1) * head_dim]
        v = qkv[:, :, 2 * D + h * head_dim:2 * D + (h + 1) * head_dim]
        # scores / PV batched over the G sequences in one dot_general each.
        s = jnp.einsum("gqd,gkd->gqk", q, k,
                       preferred_element_type=jnp.float32) * scale
        s = s - jnp.max(s, axis=-1, keepdims=True)
        p = jnp.exp(s)                                     # f32 (v5e-safe)
        p = p / jnp.sum(p, axis=-1, keepdims=True)         # exact softmax
        ctx.append(jnp.einsum("gqk,gkd->gqd", p.astype(MM_DTYPE), v,
                              preferred_element_type=jnp.float32))

    # Single (G*S, D) @ (D, D) output projection for all heads (K=D, not Dh).
    ctx = jnp.concatenate(ctx, axis=-1).reshape(G * S, D).astype(MM_DTYPE)
    out = jnp.dot(ctx, ow_ref[...],
                  preferred_element_type=jnp.float32) + ob_ref[...]

    if use_dense:                                          # temporal_dense
        out = jnp.dot(out.astype(MM_DTYPE), dw_ref[...],
                      preferred_element_type=jnp.float32) + db_ref[...]
    if add_residual:
        out = out + x
    o_ref[...] = out.reshape(G, S, D)


def attention_block(x, ln_g, ln_b, qkv_w, qkv_b, out_w, out_b,
                    dense_w=None, dense_b=None, add_residual=False):
    """x: (BB, S, D) f32 -> (BB, S, D) f32. Fused LN+attention(+dense)(+res)."""
    BB, S, D = x.shape
    Dh = D // NUM_HEADS
    use_dense = dense_w is not None

    # Exactly 2 grid steps when possible: fat per-step work for v5e/v6e, and
    # both v7x TensorCores get a step via the "parallel" semantics.
    n_blocks = 2 if (BB % 2 == 0 and BB >= 2) else 1
    G = BB // n_blocks

    in_specs = [
        pl.BlockSpec((G, S, D), lambda i: (i, 0, 0)),
        _rep((1, D)), _rep((1, D)),
        _rep((D, 3 * D)), _rep((1, 3 * D)),
        _rep((D, D)), _rep((1, D)),
    ]
    args = [x, ln_g.reshape(1, D), ln_b.reshape(1, D),
            qkv_w, qkv_b.reshape(1, 3 * D), out_w, out_b.reshape(1, D)]
    if use_dense:
        in_specs += [_rep((D, D)), _rep((1, D))]
        args += [dense_w, dense_b.reshape(1, D)]

    flops = (2 * BB * S * D * 3 * D                  # QKV
             + 4 * BB * S * S * D                    # scores + PV (all heads)
             + 2 * BB * S * D * D                    # out proj
             + (2 * BB * S * D * D if use_dense else 0))
    w_bytes = 2 * (qkv_w.size + out_w.size + (dense_w.size if use_dense else 0))
    cost = pl.CostEstimate(flops=flops,
                           transcendentals=BB * NUM_HEADS * S * S,
                           bytes_accessed=2 * 4 * x.size + w_bytes)

    return pl.pallas_call(
        functools.partial(_attn_block_kernel, num_heads=NUM_HEADS, head_dim=Dh,
                          use_dense=use_dense, add_residual=add_residual),
        out_shape=jax.ShapeDtypeStruct((BB, S, D), jnp.float32),
        grid=(n_blocks,),
        in_specs=in_specs,
        out_specs=pl.BlockSpec((G, S, D), lambda i: (i, 0, 0)),
        compiler_params=pltpu.CompilerParams(dimension_semantics=("parallel",)),
        cost_estimate=cost,
    )(*args)


def _mlp_block_kernel(x_ref, g_ref, b_ref, w1_ref, b1_ref, w2_ref, b2_ref, o_ref):
    x = x_ref[0]                                           # (M, D) f32
    xln = _ln(x, g_ref[...], b_ref[...])
    h = jnp.dot(xln.astype(MM_DTYPE), w1_ref[...],
                preferred_element_type=jnp.float32) + b1_ref[...]
    # TODO(synk): HF Timesformer uses exact erf-GELU; tanh-approx used here.
    h = jax.nn.gelu(h, approximate=True)                   # f32 (v5e-safe)
    o_ref[0] = jnp.dot(h.astype(MM_DTYPE), w2_ref[...],
                       preferred_element_type=jnp.float32) + b2_ref[...] + x


def mlp_block(x, ln_g, ln_b, w1, b1, w2, b2):
    """x: (B, M, D) -> x + fc2(gelu(fc1(LN(x)))); one batch row per grid step
    (parallel grid for v7x's two TCs; intermediate stays in VMEM).
    TODO(synk): at real TimeSformer sizes tile the token dim as well and
    re-derive the tile for v7x's 64 MiB VMEM."""
    B, M, D = x.shape
    I = w1.shape[1]
    cost = pl.CostEstimate(flops=4 * B * M * D * I, transcendentals=B * M * I,
                           bytes_accessed=8 * B * M * D + 4 * D * I)
    return pl.pallas_call(
        _mlp_block_kernel,
        out_shape=jax.ShapeDtypeStruct((B, M, D), jnp.float32),
        grid=(B,),
        in_specs=[pl.BlockSpec((1, M, D), lambda i: (i, 0, 0)),
                  _rep((1, D)), _rep((1, D)),
                  _rep((D, I)), _rep((1, I)), _rep((I, D)), _rep((1, D))],
        out_specs=pl.BlockSpec((1, M, D), lambda i: (i, 0, 0)),
        compiler_params=pltpu.CompilerParams(dimension_semantics=("parallel",)),
        cost_estimate=cost,
    )(x, ln_g.reshape(1, D), ln_b.reshape(1, D),
      w1, b1.reshape(1, I), w2, b2.reshape(1, D))


def _final_kernel(x_ref, g_ref, b_ref, w_ref, cb_ref, o_ref):
    B, S, D = x_ref.shape
    xln = _ln(x_ref[...].reshape(B * S, D), g_ref[...], b_ref[...])
    pooled = jnp.mean(xln.reshape(B, S, D), axis=1)        # mean over tokens (torch dim=1)
    o_ref[...] = jnp.dot(pooled.astype(MM_DTYPE), w_ref[...],
                         preferred_element_type=jnp.float32) + cb_ref[...]


def final_pool_classifier(x, g, b, w, cb):
    """Fused final LayerNorm -> mean over sequence (spec: mean(dim=1)) ->
    classifier linear.  Tiny; single grid step."""
    B, S, D = x.shape
    C = w.shape[1]
    return pl.pallas_call(
        _final_kernel,
        out_shape=jax.ShapeDtypeStruct((B, C), jnp.float32),
        grid=(1,),
        in_specs=[_rep((B, S, D)), _rep((1, D)), _rep((1, D)),
                  _rep((D, C)), _rep((1, C))],
        out_specs=_rep((B, C)),
        cost_estimate=pl.CostEstimate(
            flops=2 * B * D * C + 8 * B * S * D, transcendentals=0,
            bytes_accessed=4 * (B * S * D + B * C) + 2 * D * C),
    )(x, g.reshape(1, D), b.reshape(1, D), w, cb.reshape(1, C))


# ============================ model building blocks ========================

def timesformer_layer(hidden_states, p, B, T, Hp, Wp, D):
    """Divided space-time attention layer (HF TimesformerLayer semantics)."""
    NP = Hp * Wp

    # ---- Temporal attention over frames, per spatial patch ----
    # Fused: LN -> attention -> temporal_dense -> +residual in one kernel.
    te = hidden_states[:, 1:, :].reshape(B * NP, T, D)
    temporal_embedding = attention_block(
        te, p["t_ln_g"], p["t_ln_b"], p["t_qkv_w"], p["t_qkv_b"],
        p["t_out_w"], p["t_out_b"],
        dense_w=p["t_dense_w"], dense_b=p["t_dense_b"],
        add_residual=True).reshape(B, NP * T, D)

    # ---- Spatial attention over patches (+cls), per frame ----
    init_cls_token = hidden_states[:, 0, :][:, None, :]                # (B, 1, D)
    cls_token = jnp.repeat(init_cls_token, T, axis=1).reshape(B * T, 1, D)
    # TODO(synk): this temporal->spatial token reorder (and the inverse below)
    # could be folded into the downstream kernel's BlockSpec index_map instead
    # of materializing a transposed copy in HBM between kernels.
    se = (temporal_embedding.reshape(B, Hp, Wp, T, D)
          .transpose(0, 3, 1, 2, 4)
          .reshape(B * T, NP, D))
    se = jnp.concatenate([cls_token, se], axis=1)                      # (B*T, 1+NP, D)
    residual_spatial = attention_block(
        se, p["ln1_g"], p["ln1_b"], p["s_qkv_w"], p["s_qkv_b"],
        p["s_out_w"], p["s_out_b"])                                    # (B*T, 1+NP, D)

    # cls token: average over frames
    cls_tok = jnp.mean(residual_spatial[:, 0, :].reshape(B, T, D),
                       axis=1, keepdims=True)                          # (B, 1, D)
    rs = (residual_spatial[:, 1:, :].reshape(B, T, Hp, Wp, D)
          .transpose(0, 2, 3, 1, 4)
          .reshape(B, NP * T, D))

    hidden_states = (jnp.concatenate([init_cls_token, temporal_embedding], axis=1)
                     + jnp.concatenate([cls_tok, rs], axis=1))         # (B, 1+NP*T, D)

    # ---- MLP (fused LN -> fc1 -> gelu -> fc2 -> +residual) ----
    return mlp_block(hidden_states, p["ln2_g"], p["ln2_b"],
                     p["fc1_w"], p["fc1_b"], p["fc2_w"], p["fc2_b"])


def deepfake_timesformer_forward(pixel_values, params):
    B, T, C, H, W = pixel_values.shape
    P = PATCH_SIZE
    Hp, Wp = H // P, W // P
    NP = Hp * Wp
    D = HIDDEN

    # ---- Patch embedding: stride-P conv == patch-unfold + matmul ----
    x = pixel_values.reshape(B * T, C, Hp, P, Wp, P)
    x = x.transpose(0, 2, 4, 1, 3, 5).reshape(B * T * NP, C * P * P)
    patch_w = params["patch_w"].reshape(D, C * P * P).T                # (C*P*P, D) bf16
    emb = linear(x, patch_w, params["patch_b"]).reshape(B * T, NP, D)

    # ---- cls token + position embeddings ----
    cls = jnp.broadcast_to(params["cls_token"], (B * T, 1, D))
    emb = jnp.concatenate([cls, emb], axis=1) + params["pos_embed"]    # (B*T, 1+NP, D)

    # ---- time embeddings (divided space-time) ----
    cls_tokens = emb[:B, 0, :][:, None, :]                             # (B, 1, D)
    emb = emb[:, 1:].reshape(B, T, NP, D).transpose(0, 2, 1, 3).reshape(B * NP, T, D)
    emb = emb + params["time_embed"]
    emb = emb.reshape(B, NP * T, D)
    hidden_states = jnp.concatenate([cls_tokens, emb], axis=1)         # (B, 1+NP*T, D)

    # ---- encoder ----
    for lp in params["layers"]:
        hidden_states = timesformer_layer(hidden_states, lp, B, T, Hp, Wp, D)

    # ---- final layernorm, mean over tokens (dim=1), classifier ----
    return final_pool_classifier(hidden_states, params["ln_f_g"], params["ln_f_b"],
                                 params["cls_w"], params["cls_b"])     # (B, 2)


# ============================ parameter init ===============================

def init_params(key):
    D = HIDDEN
    NP = (IMAGE_SIZE // PATCH_SIZE) ** 2
    keys = iter(jax.random.split(key, 512))

    def nrm(shape, s=0.02):
        return s * jax.random.normal(next(keys), shape, dtype=jnp.float32)

    def wgt(shape, s=0.02):
        # bf16 weights halve weight DMA; matmuls still accumulate in f32.
        return nrm(shape, s).astype(MM_DTYPE)

    params = {
        "patch_w": wgt((D, NUM_CHANNELS, PATCH_SIZE, PATCH_SIZE)),
        "patch_b": jnp.zeros((D,), jnp.float32),
        "cls_token": nrm((1, 1, D)),
        "pos_embed": nrm((1, 1 + NP, D)),
        "time_embed": nrm((1, NUM_FRAMES, D)),
        "ln_f_g": jnp.ones((D,), jnp.float32),
        "ln_f_b": jnp.zeros((D,), jnp.float32),
        "cls_w": wgt((D, NUM_CLASSES)),
        "cls_b": jnp.zeros((NUM_CLASSES,), jnp.float32),
        "layers": [],
    }
    for _ in range(NUM_LAYERS):
        params["layers"].append({
            "t_ln_g": jnp.ones((D,), jnp.float32), "t_ln_b": jnp.zeros((D,), jnp.float32),
            "t_qkv_w": wgt((D, 3 * D)), "t_qkv_b": jnp.zeros((3 * D,), jnp.float32),
            "t_out_w": wgt((D, D)), "t_out_b": jnp.zeros((D,), jnp.float32),
            "t_dense_w": wgt((D, D)), "t_dense_b": jnp.zeros((D,), jnp.float32),
            "ln1_g": jnp.ones((D,), jnp.float32), "ln1_b": jnp.zeros((D,), jnp.float32),
            "s_qkv_w": wgt((D, 3 * D)), "s_qkv_b": jnp.zeros((3 * D,), jnp.float32),
            "s_out_w": wgt((D, D)), "s_out_b": jnp.zeros((D,), jnp.float32),
            "ln2_g": jnp.ones((D,), jnp.float32), "ln2_b": jnp.zeros((D,), jnp.float32),
            "fc1_w": wgt((D, INTERMEDIATE)), "fc1_b": jnp.zeros((INTERMEDIATE,), jnp.float32),
            "fc2_w": wgt((INTERMEDIATE, D)), "fc2_b": jnp.zeros((D,), jnp.float32),
        })
    return params


# ================================== main ===================================

if __name__ == "__main__":
    key = jax.random.PRNGKey(0)
    pkey, xkey = jax.random.split(key)
    params = init_params(pkey)
    pixel_values = jax.random.normal(
        xkey, (BATCH, NUM_FRAMES, NUM_CHANNELS, IMAGE_SIZE, IMAGE_SIZE),
        dtype=jnp.float32)

    logits = jax.jit(deepfake_timesformer_forward)(pixel_values, params)
    logits = jax.block_until_ready(logits)
    assert logits.shape == (BATCH, NUM_CLASSES)
    assert bool(jnp.all(jnp.isfinite(logits)))
    print("KERNEL_OK")
</pallas_src>

<mosaic_0001>
module attributes {stable_mosaic.version = 11 : i64} {
  func.func @_linear_kernel(%arg0: i32, %arg1: memref<8x192xf32, #tpu.memory_space<vmem>>, %arg2: memref<192x128xbf16, #tpu.memory_space<vmem>>, %arg3: memref<1x128xf32, #tpu.memory_space<vmem>>, %arg4: memref<8x128xf32, #tpu.memory_space<vmem>>) attributes {dimension_semantics = [#tpu.dimension_semantics<parallel>], iteration_bounds = array<i64: 2>, scalar_prefetch = 0 : i64, scratch_operands = 0 : i64, tpu.core_type = #tpu.core_type<tc>, window_params = [{transform_indices = @transform_0, window_bounds = array<i64: 8, 192>}, {pipeline_mode = #tpu.pipeline_mode<synchronous>, transform_indices = @transform_1, window_bounds = array<i64: 192, 128>}, {pipeline_mode = #tpu.pipeline_mode<synchronous>, transform_indices = @transform_2, window_bounds = array<i64: 1, 128>}, {transform_indices = @transform_3, window_bounds = array<i64: 8, 128>}]} {
    %c0 = arith.constant 0 : index
    %c0_0 = arith.constant 0 : index
    %0 = vector.load %arg1[%c0, %c0_0] : memref<8x192xf32, #tpu.memory_space<vmem>>, vector<8x192xf32>
    %1 = arith.truncf %0 : vector<8x192xf32> to vector<8x192xbf16>
    %c0_1 = arith.constant 0 : index
    %c0_2 = arith.constant 0 : index
    %2 = vector.load %arg2[%c0_1, %c0_2] : memref<192x128xbf16, #tpu.memory_space<vmem>>, vector<192x128xbf16>
    %cst = arith.constant dense<0.000000e+00> : vector<8x128xf32>
    %3 = tpu.matmul %1, %2, %cst {dimension_numbers = #tpu.dot_dimension_numbers<[1], [0], [0], [1], [0, 0, 1, 1], [], []>} : vector<8x192xbf16>, vector<192x128xbf16>, vector<8x128xf32> -> vector<8x128xf32>
    %c0_3 = arith.constant 0 : index
    %c0_4 = arith.constant 0 : index
    %4 = vector.load %arg3[%c0_3, %c0_4] : memref<1x128xf32, #tpu.memory_space<vmem>>, vector<1x128xf32>
    %5 = vector.broadcast %4 : vector<1x128xf32> to vector<8x128xf32>
    %6 = arith.addf %3, %5 : vector<8x128xf32>
    %c0_5 = arith.constant 0 : index
    %c0_6 = arith.constant 0 : index
    %7 = vector.load %arg4[%c0_5, %c0_6] : memref<8x128xf32, #tpu.memory_space<vmem>>, vector<8x128xf32>
    tpu.vector_store %arg4[%c0_5, %c0_6], %6 {strides = array<i32>} : memref<8x128xf32, #tpu.memory_space<vmem>>, vector<8x128xf32>,
    return
  }
  func.func @transform_0(%arg0: i32) -> (i32, i32) {
    %c0_i32 = arith.constant 0 : i32
    %c0_i32_0 = arith.constant 0 : i32
    return %arg0, %c0_i32 : i32, i32
  }
  func.func @transform_1(%arg0: i32) -> (i32, i32) {
    %c0_i32 = arith.constant 0 : i32
    %c0_i32_0 = arith.constant 0 : i32
    %c0_i32_1 = arith.constant 0 : i32
    return %c0_i32, %c0_i32_0 : i32, i32
  }
  func.func @transform_2(%arg0: i32) -> (i32, i32) {
    %c0_i32 = arith.constant 0 : i32
    %c0_i32_0 = arith.constant 0 : i32
    %c0_i32_1 = arith.constant 0 : i32
    return %c0_i32, %c0_i32_0 : i32, i32
  }
  func.func @transform_3(%arg0: i32) -> (i32, i32) {
    %c0_i32 = arith.constant 0 : i32
    %c0_i32_0 = arith.constant 0 : i32
    return %arg0, %c0_i32 : i32, i32
  }
}

module attributes {stable_mosaic.version = 11 : i64} {
  func.func @_attn_block_kernel(%arg0: i32, %arg1: memref<2x5x128xf32, #tpu.memory_space<vmem>>, %arg2: memref<1x128xf32, #tpu.memory_space<vmem>>, %arg3: memref<1x128xf32, #tpu.memory_space<vmem>>, %arg4: memref<128x384xbf16, #tpu.memory_space<vmem>>, %arg5: memref<1x384xf32, #tpu.memory_space<vmem>>, %arg6: memref<128x128xbf16, #tpu.memory_space<vmem>>, %arg7: memref<1x128xf32, #tpu.memory_space<vmem>>, %arg8: memref<2x5x128xf32, #tpu.memory_space<vmem>>) attributes {dimension_semantics = [#tpu.dimension_semantics<parallel>], iteration_bounds = array<i64: 2>, scalar_prefetch = 0 : i64, scratch_operands = 0 : i64, tpu.core_type = #tpu.core_type<tc>, window_params = [{transform_indices = @transform_0, window_bounds = array<i64: 2, 5, 128>}, {pipeline_mode = #tpu.pipeline_mode<synchronous>, transform_indices = @transform_1, window_bounds = array<i64: 1, 128>}, {pipeline_mode = #tpu.pipeline_mode<synchronous>, transform_indices = @transform_2, window_bounds = array<i64: 1, 128>}, {pipeline_mode = #tpu.pipeline_mode<synchronous>, transform_indices = @transform_3, window_bounds = array<i64: 128, 384>}, {pipeline_mode = #tpu.pipeline_mode<synchronous>, transform_indices = @transform_4, window_bounds = array<i64: 1, 384>}, {pipeline_mode = #tpu.pipeline_mode<synchronous>, transform_indices = @transform_5, window_bounds = array<i64: 128, 128>}, {pipeline_mode = #tpu.pipeline_mode<synchronous>, transform_indices = @transform_6, window_bounds = array<i64: 1, 128>}, {transform_indices = @transform_7, window_bounds = array<i64: 2, 5, 128>}]} {
    %c0 = arith.constant 0 : index
    %c0_0 = arith.constant 0 : index
    %c0_1 = arith.constant 0 : index
    %0 = vector.load %arg1[%c0, %c0_0, %c0_1] : memref<2x5x128xf32, #tpu.memory_space<vmem>>, vector<2x5x128xf32>
    %1 = vector.shape_cast %0 : vector<2x5x128xf32> to vector<10x128xf32>
    %c0_2 = arith.constant 0 : index
    %c0_3 = arith.constant 0 : index
    %2 = vector.load %arg2[%c0_2, %c0_3] : memref<1x128xf32, #tpu.memory_space<vmem>>, vector<1x128xf32>
    %c0_4 = arith.constant 0 : index
    %c0_5 = arith.constant 0 : index
    %3 = vector.load %arg3[%c0_4, %c0_5] : memref<1x128xf32, #tpu.memory_space<vmem>>, vector<1x128xf32>
    %cst = arith.constant dense<0.000000e+00> : vector<10xf32>
    %4 = vector.multi_reduction <add>, %1, %cst [1] : vector<10x128xf32> to vector<10xf32>
    %5 = vector.shape_cast %4 : vector<10xf32> to vector<10x1xf32>
    %cst_6 = arith.constant 1.280000e+02 : f32
    %6 = vector.broadcast %cst_6 : f32 to vector<10x1xf32>
    %7 = arith.divf %5, %6 : vector<10x1xf32>
    %8 = vector.broadcast %7 : vector<10x1xf32> to vector<10x128xf32>
    %9 = arith.subf %1, %8 : vector<10x128xf32>
    %10 = vector.broadcast %7 : vector<10x1xf32> to vector<10x128xf32>
    %11 = arith.subf %1, %10 : vector<10x128xf32>
    %12 = arith.mulf %9, %11 : vector<10x128xf32>
    %cst_7 = arith.constant dense<0.000000e+00> : vector<10xf32>
    %13 = vector.multi_reduction <add>, %12, %cst_7 [1] : vector<10x128xf32> to vector<10xf32>
    %14 = vector.shape_cast %13 : vector<10xf32> to vector<10x1xf32>
    %cst_8 = arith.constant 1.280000e+02 : f32
    %15 = vector.broadcast %cst_8 : f32 to vector<10x1xf32>
    %16 = arith.divf %14, %15 : vector<10x1xf32>
    %17 = vector.broadcast %7 : vector<10x1xf32> to vector<10x128xf32>
    %18 = arith.subf %1, %17 : vector<10x128xf32>
    %cst_9 = arith.constant 9.99999997E-7 : f32
    %19 = vector.broadcast %cst_9 : f32 to vector<10x1xf32>
    %20 = arith.addf %16, %19 : vector<10x1xf32>
    %21 = math.rsqrt %20 : vector<10x1xf32>
    %22 = vector.broadcast %21 : vector<10x1xf32> to vector<10x128xf32>
    %23 = arith.mulf %18, %22 : vector<10x128xf32>
    %24 = vector.broadcast %2 : vector<1x128xf32> to vector<10x128xf32>
    %25 = arith.mulf %23, %24 : vector<10x128xf32>
    %26 = vector.broadcast %3 : vector<1x128xf32> to vector<10x128xf32>
    %27 = arith.addf %25, %26 : vector<10x128xf32>
    %28 = arith.truncf %27 : vector<10x128xf32> to vector<10x128xbf16>
    %c0_10 = arith.constant 0 : index
    %c0_11 = arith.constant 0 : index
    %29 = vector.load %arg4[%c0_10, %c0_11] : memref<128x384xbf16, #tpu.memory_space<vmem>>, vector<128x384xbf16>
    %cst_12 = arith.constant dense<0.000000e+00> : vector<10x384xf32>
    %30 = tpu.matmul %28, %29, %cst_12 {dimension_numbers = #tpu.dot_dimension_numbers<[1], [0], [0], [1], [0, 0, 1, 1], [], []>} : vector<10x128xbf16>, vector<128x384xbf16>, vector<10x384xf32> -> vector<10x384xf32>
    %c0_13 = arith.constant 0 : index
    %c0_14 = arith.constant 0 : index
    %31 = vector.load %arg5[%c0_13, %c0_14] : memref<1x384xf32, #tpu.memory_space<vmem>>, vector<1x384xf32>
    %32 = vector.broadcast %31 : vector<1x384xf32> to vector<10x384xf32>
    %33 = arith.addf %30, %32 : vector<10x384xf32>
    %34 = arith.truncf %33 : vector<10x384xf32> to vector<10x384xbf16>
    %35 = vector.shape_cast %34 : vector<10x384xbf16> to vector<2x5x384xbf16>
    %36 = vector.extract_strided_slice %35 {offsets = [0, 0, 0], sizes = [2, 5, 32], strides = [1, 1, 1]} : vector<2x5x384xbf16> to vector<2x5x32xbf16>
    %37 = vector.extract_strided_slice %35 {offsets = [0, 0, 128], sizes = [2, 5, 32], strides = [1, 1, 1]} : vector<2x5x384xbf16> to vector<2x5x32xbf16>
    %38 = vector.extract_strided_slice %35 {offsets = [0, 0, 256], sizes = [2, 5, 32], strides = [1, 1, 1]} : vector<2x5x384xbf16> to vector<2x5x32xbf16>
    "tpu.trace_start"() <{level = 10 : i32, message = "gqd,gkd->gqk"}> : () -> ()
    %cst_15 = arith.constant dense<0.000000e+00> : vector<2x5x5xf32>
    %39 = tpu.matmul %36, %37, %cst_15 {dimension_numbers = #tpu.dot_dimension_numbers<[2], [2], [1], [1], [0, 0, 0, 1, 1, 1], [0], [0]>} : vector<2x5x32xbf16>, vector<2x5x32xbf16>, vector<2x5x5xf32> -> vector<2x5x5xf32>
    "tpu.trace_stop"() : () -> ()
    %cst_16 = arith.constant 0.176776692 : f32
    %40 = vector.broadcast %cst_16 : f32 to vector<2x5x5xf32>
    %41 = arith.mulf %39, %40 : vector<2x5x5xf32>
    %cst_17 = arith.constant dense<0xFF800000> : vector<2x5xf32>
    %42 = vector.multi_reduction <maximumf>, %41, %cst_17 [2] : vector<2x5x5xf32> to vector<2x5xf32>
    %43 = vector.shape_cast %42 : vector<2x5xf32> to vector<2x5x1xf32>
    %44 = vector.broadcast %43 : vector<2x5x1xf32> to vector<2x5x5xf32>
    %45 = arith.subf %41, %44 : vector<2x5x5xf32>
    %46 = math.exp %45 : vector<2x5x5xf32>
    %cst_18 = arith.constant dense<0.000000e+00> : vector<2x5xf32>
    %47 = vector.multi_reduction <add>, %46, %cst_18 [2] : vector<2x5x5xf32> to vector<2x5xf32>
    %48 = vector.shape_cast %47 : vector<2x5xf32> to vector<2x5x1xf32>
    %49 = vector.broadcast %48 : vector<2x5x1xf32> to vector<2x5x5xf32>
    %50 = arith.divf %46, %49 : vector<2x5x5xf32>
    %51 = arith.truncf %50 : vector<2x5x5xf32> to vector<2x5x5xbf16>
    "tpu.trace_start"() <{level = 10 : i32, message = "gqk,gkd->gqd"}> : () -> ()
    %cst_19 = arith.constant dense<0.000000e+00> : vector<2x5x32xf32>
    %52 = tpu.matmul %51, %38, %cst_19 {dimension_numbers = #tpu.dot_dimension_numbers<[2], [1], [1], [2], [0, 0, 0, 1, 1, 2], [0], [0]>} : vector<2x5x5xbf16>, vector<2x5x32xbf16>, vector<2x5x32xf32> -> vector<2x5x32xf32>
    "tpu.trace_stop"() : () -> ()
    %53 = vector.extract_strided_slice %35 {offsets = [0, 0, 32], sizes = [2, 5, 32], strides = [1, 1, 1]} : vector<2x5x384xbf16> to vector<2x5x32xbf16>
    %54 = vector.extract_strided_slice %35 {offsets = [0, 0, 160], sizes = [2, 5, 32], strides = [1, 1, 1]} : vector<2x5x384xbf16> to vector<2x5x32xbf16>
    %55 = vector.extract_strided_slice %35 {offsets = [0, 0, 288], sizes = [2, 5, 32], strides = [1, 1, 1]} : vector<2x5x384xbf16> to vector<2x5x32xbf16>
    "tpu.trace_start"() <{level = 10 : i32, message = "gqd,gkd->gqk"}> : () -> ()
    %cst_20 = arith.constant dense<0.000000e+00> : vector<2x5x5xf32>
    %56 = tpu.matmul %53, %54, %cst_20 {dimension_numbers = #tpu.dot_dimension_numbers<[2], [2], [1], [1], [0, 0, 0, 1, 1, 1], [0], [0]>} : vector<2x5x32xbf16>, vector<2x5x32xbf16>, vector<2x5x5xf32> -> vector<2x5x5xf32>
    "tpu.trace_stop"() : () -> ()
    %cst_21 = arith.constant 0.176776692 : f32
    %57 = vector.broadcast %cst_21 : f32 to vector<2x5x5xf32>
    %58 = arith.mulf %56, %57 : vector<2x5x5xf32>
    %cst_22 = arith.constant dense<0xFF800000> : vector<2x5xf32>
    %59 = vector.multi_reduction <maximumf>, %58, %cst_22 [2] : vector<2x5x5xf32> to vector<2x5xf32>
    %60 = vector.shape_cast %59 : vector<2x5xf32> to vector<2x5x1xf32>
    %61 = vector.broadcast %60 : vector<2x5x1xf32> to vector<2x5x5xf32>
    %62 = arith.subf %58, %61 : vector<2x5x5xf32>
    %63 = math.exp %62 : vector<2x5x5xf32>
    %cst_23 = arith.constant dense<0.000000e+00> : vector<2x5xf32>
    %64 = vector.multi_reduction <add>, %63, %cst_23 [2] : vector<2x5x5xf32> to vector<2x5xf32>
    %65 = vector.shape_cast %64 : vector<2x5xf32> to vector<2x5x1xf32>
    %66 = vector.broadcast %65 : vector<2x5x1xf32> to vector<2x5x5xf32>
    %67 = arith.divf %63, %66 : vector<2x5x5xf32>
    %68 = arith.truncf %67 : vector<2x5x5xf32> to vector<2x5x5xbf16>
    "tpu.trace_start"() <{level = 10 : i32, message = "gqk,gkd->gqd"}> : () -> ()
    %cst_24 = arith.constant dense<0.000000e+00> : vector<2x5x32xf32>
    %69 = tpu.matmul %68, %55, %cst_24 {dimension_numbers = #tpu.dot_dimension_numbers<[2], [1], [1], [2], [0, 0, 0, 1, 1, 2], [0], [0]>} : vector<2x5x5xbf16>, vector<2x5x32xbf16>, vector<2x5x32xf32> -> vector<2x5x32xf32>
    "tpu.trace_stop"() : () -> ()
    %70 = vector.extract_strided_slice %35 {offsets = [0, 0, 64], sizes = [2, 5, 32], strides = [1, 1, 1]} : vector<2x5x384xbf16> to vector<2x5x32xbf16>
    %71 = vector.extract_strided_slice %35 {offsets = [0, 0, 192], sizes = [2, 5, 32], strides = [1, 1, 1]} : vector<2x5x384xbf16> to vector<2x5x32xbf16>
    %72 = vector.extract_strided_slice %35 {offsets = [0, 0, 320], sizes = [2, 5, 32], strides = [1, 1, 1]} : vector<2x5x384xbf16> to vector<2x5x32xbf16>
    "tpu.trace_start"() <{level = 10 : i32, message = "gqd,gkd->gqk"}> : () -> ()
    %cst_25 = arith.constant dense<0.000000e+00> : vector<2x5x5xf32>
    %73 = tpu.matmul %70, %71, %cst_25 {dimension_numbers = #tpu.dot_dimension_numbers<[2], [2], [1], [1], [0, 0, 0, 1, 1, 1], [0], [0]>} : vector<2x5x32xbf16>, vector<2x5x32xbf16>, vector<2x5x5xf32> -> vector<2x5x5xf32>
    "tpu.trace_stop"() : () -> ()
    %cst_26 = arith.constant 0.176776692 : f32
    %74 = vector.broadcast %cst_26 : f32 to vector<2x5x5xf32>
    %75 = arith.mulf %73, %74 : vector<2x5x5xf32>
    %cst_27 = arith.constant dense<0xFF800000> : vector<2x5xf32>
    %76 = vector.multi_reduction <maximumf>, %75, %cst_27 [2] : vector<2x5x5xf32> to vector<2x5xf32>
    %77 = vector.shape_cast %76 : vector<2x5xf32> to vector<2x5x1xf32>
    %78 = vector.broadcast %77 : vector<2x5x1xf32> to vector<2x5x5xf32>
    %79 = arith.subf %75, %78 : vector<2x5x5xf32>
    %80 = math.exp %79 : vector<2x5x5xf32>
    %cst_28 = arith.constant dense<0.000000e+00> : vector<2x5xf32>
    %81 = vector.multi_reduction <add>, %80, %cst_28 [2] : vector<2x5x5xf32> to vector<2x5xf32>
    %82 = vector.shape_cast %81 : vector<2x5xf32> to vector<2x5x1xf32>
    %83 = vector.broadcast %82 : vector<2x5x1xf32> to vector<2x5x5xf32>
    %84 = arith.divf %80, %83 : vector<2x5x5xf32>
    %85 = arith.truncf %84 : vector<2x5x5xf32> to vector<2x5x5xbf16>
    "tpu.trace_start"() <{level = 10 : i32, message = "gqk,gkd->gqd"}> : () -> ()
    %cst_29 = arith.constant dense<0.000000e+00> : vector<2x5x32xf32>
    %86 = tpu.matmul %85, %72, %cst_29 {dimension_numbers = #tpu.dot_dimension_numbers<[2], [1], [1], [2], [0, 0, 0, 1, 1, 2], [0], [0]>} : vector<2x5x5xbf16>, vector<2x5x32xbf16>, vector<2x5x32xf32> -> vector<2x5x32xf32>
    "tpu.trace_stop"() : () -> ()
    %87 = vector.extract_strided_slice %35 {offsets = [0, 0, 96], sizes = [2, 5, 32], strides = [1, 1, 1]} : vector<2x5x384xbf16> to vector<2x5x32xbf16>
    %88 = vector.extract_strided_slice %35 {offsets = [0, 0, 224], sizes = [2, 5, 32], strides = [1, 1, 1]} : vector<2x5x384xbf16> to vector<2x5x32xbf16>
    %89 = vector.extract_strided_slice %35 {offsets = [0, 0, 352], sizes = [2, 5, 32], strides = [1, 1, 1]} : vector<2x5x384xbf16> to vector<2x5x32xbf16>
    "tpu.trace_start"() <{level = 10 : i32, message = "gqd,gkd->gqk"}> : () -> ()
    %cst_30 = arith.constant dense<0.000000e+00> : vector<2x5x5xf32>
    %90 = tpu.matmul %87, %88, %cst_30 {dimension_numbers = #tpu.dot_dimension_numbers<[2], [2], [1], [1], [0, 0, 0, 1, 1, 1], [0], [0]>} : vector<2x5x32xbf16>, vector<2x5x32xbf16>, vector<2x5x5xf32> -> vector<2x5x5xf32>
    "tpu.trace_stop"() : () -> ()
    %cst_31 = arith.constant 0.176776692 : f32
    %91 = vector.broadcast %cst_31 : f32 to vector<2x5x5xf32>
    %92 = arith.mulf %90, %91 : vector<2x5x5xf32>
    %cst_32 = arith.constant dense<0xFF800000> : vector<2x5xf32>
    %93 = vector.multi_reduction <maximumf>, %92, %cst_32 [2] : vector<2x5x5xf32> to vector<2x5xf32>
    %94 = vector.shape_cast %93 : vector<2x5xf32> to vector<2x5x1xf32>
    %95 = vector.broadcast %94 : vector<2x5x1xf32> to vector<2x5x5xf32>
    %96 = arith.subf %92, %95 : vector<2x5x5xf32>
    %97 = math.exp %96 : vector<2x5x5xf32>
    %cst_33 = arith.constant dense<0.000000e+00> : vector<2x5xf32>
    %98 = vector.multi_reduction <add>, %97, %cst_33 [2] : vector<2x5x5xf32> to vector<2x5xf32>
    %99 = vector.shape_cast %98 : vector<2x5xf32> to vector<2x5x1xf32>
    %100 = vector.broadcast %99 : vector<2x5x1xf32> to vector<2x5x5xf32>
    %101 = arith.divf %97, %100 : vector<2x5x5xf32>
    %102 = arith.truncf %101 : vector<2x5x5xf32> to vector<2x5x5xbf16>
    "tpu.trace_start"() <{level = 10 : i32, message = "gqk,gkd->gqd"}> : () -> ()
    %cst_34 = arith.constant dense<0.000000e+00> : vector<2x5x32xf32>
    %103 = tpu.matmul %102, %89, %cst_34 {dimension_numbers = #tpu.dot_dimension_numbers<[2], [1], [1], [2], [0, 0, 0, 1, 1, 2], [0], [0]>} : vector<2x5x5xbf16>, vector<2x5x32xbf16>, vector<2x5x32xf32> -> vector<2x5x32xf32>
    "tpu.trace_stop"() : () -> ()
    %104 = tpu.concatenate %52, %69, %86, %103 in 2 : vector<2x5x32xf32>, vector<2x5x32xf32>, vector<2x5x32xf32>, vector<2x5x32xf32> -> vector<2x5x128xf32>
    %105 = vector.shape_cast %104 : vector<2x5x128xf32> to vector<10x128xf32>
    %106 = arith.truncf %105 : vector<10x128xf32> to vector<10x128xbf16>
    %c0_35 = arith.constant 0 : index
    %c0_36 = arith.constant 0 : index
    %107 = vector.load %arg6[%c0_35, %c0_36] : memref<128x128xbf16, #tpu.memory_space<vmem>>, vector<128x128xbf16>
    %cst_37 = arith.constant dense<0.000000e+00> : vector<10x128xf32>
    %108 = tpu.matmul %106, %107, %cst_37 {dimension_numbers = #tpu.dot_dimension_numbers<[1], [0], [0], [1], [0, 0, 1, 1], [], []>} : vector<10x128xbf16>, vector<128x128xbf16>, vector<10x128xf32> -> vector<10x128xf32>
    %c0_38 = arith.constant 0 : index
    %c0_39 = arith.constant 0 : index
    %109 = vector.load %arg7[%c0_38, %c0_39] : memref<1x128xf32, #tpu.memory_space<vmem>>, vector<1x128xf32>
    %110 = vector.broadcast %109 : vector<1x128xf32> to vector<10x128xf32>
    %111 = arith.addf %108, %110 : vector<10x128xf32>
    %112 = vector.shape_cast %111 : vector<10x128xf32> to vector<2x5x128xf32>
    %c0_40 = arith.constant 0 : index
    %c0_41 = arith.constant 0 : index
    %c0_42 = arith.constant 0 : index
    %113 = vector.load %arg8[%c0_40, %c0_41, %c0_42] : memref<2x5x128xf32, #tpu.memory_space<vmem>>, vector<2x5x128xf32>
    tpu.vector_store %arg8[%c0_40, %c0_41, %c0_42], %112 {strides = array<i32>} : memref<2x5x128xf32, #tpu.memory_space<vmem>>, vector<2x5x128xf32>,
    return
  }
  func.func @transform_0(%arg0: i32) -> (i32, i32, i32) {
    %c0_i32 = arith.constant 0 : i32
    %c0_i32_0 = arith.constant 0 : i32
    %c0_i32_1 = arith.constant 0 : i32
    return %arg0, %c0_i32, %c0_i32_0 : i32, i32, i32
  }
  func.func @transform_1(%arg0: i32) -> (i32, i32) {
    %c0_i32 = arith.constant 0 : i32
    %c0_i32_0 = arith.constant 0 : i32
    %c0_i32_1 = arith.constant 0 : i32
    return %c0_i32, %c0_i32_0 : i32, i32
  }
  func.func @transform_2(%arg0: i32) -> (i32, i32) {
    %c0_i32 = arith.constant 0 : i32
    %c0_i32_0 = arith.constant 0 : i32
    %c0_i32_1 = arith.constant 0 : i32
    return %c0_i32, %c0_i32_0 : i32, i32
  }
  func.func @transform_3(%arg0: i32) -> (i32, i32) {
    %c0_i32 = arith.constant 0 : i32
    %c0_i32_0 = arith.constant 0 : i32
    %c0_i32_1 = arith.constant 0 : i32
    return %c0_i32, %c0_i32_0 : i32, i32
  }
  func.func @transform_4(%arg0: i32) -> (i32, i32) {
    %c0_i32 = arith.constant 0 : i32
    %c0_i32_0 = arith.constant 0 : i32
    %c0_i32_1 = arith.constant 0 : i32
    return %c0_i32, %c0_i32_0 : i32, i32
  }
  func.func @transform_5(%arg0: i32) -> (i32, i32) {
    %c0_i32 = arith.constant 0 : i32
    %c0_i32_0 = arith.constant 0 : i32
    %c0_i32_1 = arith.constant 0 : i32
    return %c0_i32, %c0_i32_0 : i32, i32
  }
  func.func @transform_6(%arg0: i32) -> (i32, i32) {
    %c0_i32 = arith.constant 0 : i32
    %c0_i32_0 = arith.constant 0 : i32
    %c0_i32_1 = arith.constant 0 : i32
    return %c0_i32, %c0_i32_0 : i32, i32
  }
  func.func @transform_7(%arg0: i32) -> (i32, i32, i32) {
    %c0_i32 = arith.constant 0 : i32
    %c0_i32_0 = arith.constant 0 : i32
    %c0_i32_1 = arith.constant 0 : i32
    return %arg0, %c0_i32, %c0_i32_0 : i32, i32, i32
  }
}

module attributes {stable_mosaic.version = 11 : i64} {
  func.func @_attn_block_kernel(%arg0: i32, %arg1: memref<4x2x128xf32, #tpu.memory_space<vmem>>, %arg2: memref<1x128xf32, #tpu.memory_space<vmem>>, %arg3: memref<1x128xf32, #tpu.memory_space<vmem>>, %arg4: memref<128x384xbf16, #tpu.memory_space<vmem>>, %arg5: memref<1x384xf32, #tpu.memory_space<vmem>>, %arg6: memref<128x128xbf16, #tpu.memory_space<vmem>>, %arg7: memref<1x128xf32, #tpu.memory_space<vmem>>, %arg8: memref<128x128xbf16, #tpu.memory_space<vmem>>, %arg9: memref<1x128xf32, #tpu.memory_space<vmem>>, %arg10: memref<4x2x128xf32, #tpu.memory_space<vmem>>) attributes {dimension_semantics = [#tpu.dimension_semantics<parallel>], iteration_bounds = array<i64: 2>, scalar_prefetch = 0 : i64, scratch_operands = 0 : i64, tpu.core_type = #tpu.core_type<tc>, window_params = [{transform_indices = @transform_0, window_bounds = array<i64: 4, 2, 128>}, {pipeline_mode = #tpu.pipeline_mode<synchronous>, transform_indices = @transform_1, window_bounds = array<i64: 1, 128>}, {pipeline_mode = #tpu.pipeline_mode<synchronous>, transform_indices = @transform_2, window_bounds = array<i64: 1, 128>}, {pipeline_mode = #tpu.pipeline_mode<synchronous>, transform_indices = @transform_3, window_bounds = array<i64: 128, 384>}, {pipeline_mode = #tpu.pipeline_mode<synchronous>, transform_indices = @transform_4, window_bounds = array<i64: 1, 384>}, {pipeline_mode = #tpu.pipeline_mode<synchronous>, transform_indices = @transform_5, window_bounds = array<i64: 128, 128>}, {pipeline_mode = #tpu.pipeline_mode<synchronous>, transform_indices = @transform_6, window_bounds = array<i64: 1, 128>}, {pipeline_mode = #tpu.pipeline_mode<synchronous>, transform_indices = @transform_7, window_bounds = array<i64: 128, 128>}, {pipeline_mode = #tpu.pipeline_mode<synchronous>, transform_indices = @transform_8, window_bounds = array<i64: 1, 128>}, {transform_indices = @transform_9, window_bounds = array<i64: 4, 2, 128>}]} {
    %c0 = arith.constant 0 : index
    %c0_0 = arith.constant 0 : index
    %c0_1 = arith.constant 0 : index
    %0 = vector.load %arg1[%c0, %c0_0, %c0_1] : memref<4x2x128xf32, #tpu.memory_space<vmem>>, vector<4x2x128xf32>
    %1 = vector.shape_cast %0 : vector<4x2x128xf32> to vector<8x128xf32>
    %c0_2 = arith.constant 0 : index
    %c0_3 = arith.constant 0 : index
    %2 = vector.load %arg2[%c0_2, %c0_3] : memref<1x128xf32, #tpu.memory_space<vmem>>, vector<1x128xf32>
    %c0_4 = arith.constant 0 : index
    %c0_5 = arith.constant 0 : index
    %3 = vector.load %arg3[%c0_4, %c0_5] : memref<1x128xf32, #tpu.memory_space<vmem>>, vector<1x128xf32>
    %cst = arith.constant dense<0.000000e+00> : vector<8xf32>
    %4 = vector.multi_reduction <add>, %1, %cst [1] : vector<8x128xf32> to vector<8xf32>
    %5 = vector.shape_cast %4 : vector<8xf32> to vector<8x1xf32>
    %cst_6 = arith.constant 1.280000e+02 : f32
    %6 = vector.broadcast %cst_6 : f32 to vector<8x1xf32>
    %7 = arith.divf %5, %6 : vector<8x1xf32>
    %8 = vector.broadcast %7 : vector<8x1xf32> to vector<8x128xf32>
    %9 = arith.subf %1, %8 : vector<8x128xf32>
    %10 = vector.broadcast %7 : vector<8x1xf32> to vector<8x128xf32>
    %11 = arith.subf %1, %10 : vector<8x128xf32>
    %12 = arith.mulf %9, %11 : vector<8x128xf32>
    %cst_7 = arith.constant dense<0.000000e+00> : vector<8xf32>
    %13 = vector.multi_reduction <add>, %12, %cst_7 [1] : vector<8x128xf32> to vector<8xf32>
    %14 = vector.shape_cast %13 : vector<8xf32> to vector<8x1xf32>
    %cst_8 = arith.constant 1.280000e+02 : f32
    %15 = vector.broadcast %cst_8 : f32 to vector<8x1xf32>
    %16 = arith.divf %14, %15 : vector<8x1xf32>
    %17 = vector.broadcast %7 : vector<8x1xf32> to vector<8x128xf32>
    %18 = arith.subf %1, %17 : vector<8x128xf32>
    %cst_9 = arith.constant 9.99999997E-7 : f32
    %19 = vector.broadcast %cst_9 : f32 to vector<8x1xf32>
    %20 = arith.addf %16, %19 : vector<8x1xf32>
    %21 = math.rsqrt %20 : vector<8x1xf32>
    %22 = vector.broadcast %21 : vector<8x1xf32> to vector<8x128xf32>
    %23 = arith.mulf %18, %22 : vector<8x128xf32>
    %24 = vector.broadcast %2 : vector<1x128xf32> to vector<8x128xf32>
    %25 = arith.mulf %23, %24 : vector<8x128xf32>
    %26 = vector.broadcast %3 : vector<1x128xf32> to vector<8x128xf32>
    %27 = arith.addf %25, %26 : vector<8x128xf32>
    %28 = arith.truncf %27 : vector<8x128xf32> to vector<8x128xbf16>
    %c0_10 = arith.constant 0 : index
    %c0_11 = arith.constant 0 : index
    %29 = vector.load %arg4[%c0_10, %c0_11] : memref<128x384xbf16, #tpu.memory_space<vmem>>, vector<128x384xbf16>
    %cst_12 = arith.constant dense<0.000000e+00> : vector<8x384xf32>
    %30 = tpu.matmul %28, %29, %cst_12 {dimension_numbers = #tpu.dot_dimension_numbers<[1], [0], [0], [1], [0, 0, 1, 1], [], []>} : vector<8x128xbf16>, vector<128x384xbf16>, vector<8x384xf32> -> vector<8x384xf32>
    %c0_13 = arith.constant 0 : index
    %c0_14 = arith.constant 0 : index
    %31 = vector.load %arg5[%c0_13, %c0_14] : memref<1x384xf32, #tpu.memory_space<vmem>>, vector<1x384xf32>
    %32 = vector.broadcast %31 : vector<1x384xf32> to vector<8x384xf32>
    %33 = arith.addf %30, %32 : vector<8x384xf32>
    %34 = arith.truncf %33 : vector<8x384xf32> to vector<8x384xbf16>
    %35 = vector.shape_cast %34 : vector<8x384xbf16> to vector<4x2x384xbf16>
    %36 = vector.extract_strided_slice %35 {offsets = [0, 0, 0], sizes = [4, 2, 32], strides = [1, 1, 1]} : vector<4x2x384xbf16> to vector<4x2x32xbf16>
    %37 = vector.extract_strided_slice %35 {offsets = [0, 0, 128], sizes = [4, 2, 32], strides = [1, 1, 1]} : vector<4x2x384xbf16> to vector<4x2x32xbf16>
    %38 = vector.extract_strided_slice %35 {offsets = [0, 0, 256], sizes = [4, 2, 32], strides = [1, 1, 1]} : vector<4x2x384xbf16> to vector<4x2x32xbf16>
    "tpu.trace_start"() <{level = 10 : i32, message = "gqd,gkd->gqk"}> : () -> ()
    %cst_15 = arith.constant dense<0.000000e+00> : vector<4x2x2xf32>
    %39 = tpu.matmul %36, %37, %cst_15 {dimension_numbers = #tpu.dot_dimension_numbers<[2], [2], [1], [1], [0, 0, 0, 1, 1, 1], [0], [0]>} : vector<4x2x32xbf16>, vector<4x2x32xbf16>, vector<4x2x2xf32> -> vector<4x2x2xf32>
    "tpu.trace_stop"() : () -> ()
    %cst_16 = arith.constant 0.176776692 : f32
    %40 = vector.broadcast %cst_16 : f32 to vector<4x2x2xf32>
    %41 = arith.mulf %39, %40 : vector<4x2x2xf32>
    %cst_17 = arith.constant dense<0xFF800000> : vector<4x2xf32>
    %42 = vector.multi_reduction <maximumf>, %41, %cst_17 [2] : vector<4x2x2xf32> to vector<4x2xf32>
    %43 = vector.shape_cast %42 : vector<4x2xf32> to vector<4x2x1xf32>
    %44 = vector.broadcast %43 : vector<4x2x1xf32> to vector<4x2x2xf32>
    %45 = arith.subf %41, %44 : vector<4x2x2xf32>
    %46 = math.exp %45 : vector<4x2x2xf32>
    %cst_18 = arith.constant dense<0.000000e+00> : vector<4x2xf32>
    %47 = vector.multi_reduction <add>, %46, %cst_18 [2] : vector<4x2x2xf32> to vector<4x2xf32>
    %48 = vector.shape_cast %47 : vector<4x2xf32> to vector<4x2x1xf32>
    %49 = vector.broadcast %48 : vector<4x2x1xf32> to vector<4x2x2xf32>
    %50 = arith.divf %46, %49 : vector<4x2x2xf32>
    %51 = arith.truncf %50 : vector<4x2x2xf32> to vector<4x2x2xbf16>
    "tpu.trace_start"() <{level = 10 : i32, message = "gqk,gkd->gqd"}> : () -> ()
    %cst_19 = arith.constant dense<0.000000e+00> : vector<4x2x32xf32>
    %52 = tpu.matmul %51, %38, %cst_19 {dimension_numbers = #tpu.dot_dimension_numbers<[2], [1], [1], [2], [0, 0, 0, 1, 1, 2], [0], [0]>} : vector<4x2x2xbf16>, vector<4x2x32xbf16>, vector<4x2x32xf32> -> vector<4x2x32xf32>
    "tpu.trace_stop"() : () -> ()
    %53 = vector.extract_strided_slice %35 {offsets = [0, 0, 32], sizes = [4, 2, 32], strides = [1, 1, 1]} : vector<4x2x384xbf16> to vector<4x2x32xbf16>
    %54 = vector.extract_strided_slice %35 {offsets = [0, 0, 160], sizes = [4, 2, 32], strides = [1, 1, 1]} : vector<4x2x384xbf16> to vector<4x2x32xbf16>
    %55 = vector.extract_strided_slice %35 {offsets = [0, 0, 288], sizes = [4, 2, 32], strides = [1, 1, 1]} : vector<4x2x384xbf16> to vector<4x2x32xbf16>
    "tpu.trace_start"() <{level = 10 : i32, message = "gqd,gkd->gqk"}> : () -> ()
    %cst_20 = arith.constant dense<0.000000e+00> : vector<4x2x2xf32>
    %56 = tpu.matmul %53, %54, %cst_20 {dimension_numbers = #tpu.dot_dimension_numbers<[2], [2], [1], [1], [0, 0, 0, 1, 1, 1], [0], [0]>} : vector<4x2x32xbf16>, vector<4x2x32xbf16>, vector<4x2x2xf32> -> vector<4x2x2xf32>
    "tpu.trace_stop"() : () -> ()
    %cst_21 = arith.constant 0.176776692 : f32
    %57 = vector.broadcast %cst_21 : f32 to vector<4x2x2xf32>
    %58 = arith.mulf %56, %57 : vector<4x2x2xf32>
    %cst_22 = arith.constant dense<0xFF800000> : vector<4x2xf32>
    %59 = vector.multi_reduction <maximumf>, %58, %cst_22 [2] : vector<4x2x2xf32> to vector<4x2xf32>
    %60 = vector.shape_cast %59 : vector<4x2xf32> to vector<4x2x1xf32>
    %61 = vector.broadcast %60 : vector<4x2x1xf32> to vector<4x2x2xf32>
    %62 = arith.subf %58, %61 : vector<4x2x2xf32>
    %63 = math.exp %62 : vector<4x2x2xf32>
    %cst_23 = arith.constant dense<0.000000e+00> : vector<4x2xf32>
    %64 = vector.multi_reduction <add>, %63, %cst_23 [2] : vector<4x2x2xf32> to vector<4x2xf32>
    %65 = vector.shape_cast %64 : vector<4x2xf32> to vector<4x2x1xf32>
    %66 = vector.broadcast %65 : vector<4x2x1xf32> to vector<4x2x2xf32>
    %67 = arith.divf %63, %66 : vector<4x2x2xf32>
    %68 = arith.truncf %67 : vector<4x2x2xf32> to vector<4x2x2xbf16>
    "tpu.trace_start"() <{level = 10 : i32, message = "gqk,gkd->gqd"}> : () -> ()
    %cst_24 = arith.constant dense<0.000000e+00> : vector<4x2x32xf32>
    %69 = tpu.matmul %68, %55, %cst_24 {dimension_numbers = #tpu.dot_dimension_numbers<[2], [1], [1], [2], [0, 0, 0, 1, 1, 2], [0], [0]>} : vector<4x2x2xbf16>, vector<4x2x32xbf16>, vector<4x2x32xf32> -> vector<4x2x32xf32>
    "tpu.trace_stop"() : () -> ()
    %70 = vector.extract_strided_slice %35 {offsets = [0, 0, 64], sizes = [4, 2, 32], strides = [1, 1, 1]} : vector<4x2x384xbf16> to vector<4x2x32xbf16>
    %71 = vector.extract_strided_slice %35 {offsets = [0, 0, 192], sizes = [4, 2, 32], strides = [1, 1, 1]} : vector<4x2x384xbf16> to vector<4x2x32xbf16>
    %72 = vector.extract_strided_slice %35 {offsets = [0, 0, 320], sizes = [4, 2, 32], strides = [1, 1, 1]} : vector<4x2x384xbf16> to vector<4x2x32xbf16>
    "tpu.trace_start"() <{level = 10 : i32, message = "gqd,gkd->gqk"}> : () -> ()
    %cst_25 = arith.constant dense<0.000000e+00> : vector<4x2x2xf32>
    %73 = tpu.matmul %70, %71, %cst_25 {dimension_numbers = #tpu.dot_dimension_numbers<[2], [2], [1], [1], [0, 0, 0, 1, 1, 1], [0], [0]>} : vector<4x2x32xbf16>, vector<4x2x32xbf16>, vector<4x2x2xf32> -> vector<4x2x2xf32>
    "tpu.trace_stop"() : () -> ()
    %cst_26 = arith.constant 0.176776692 : f32
    %74 = vector.broadcast %cst_26 : f32 to vector<4x2x2xf32>
    %75 = arith.mulf %73, %74 : vector<4x2x2xf32>
    %cst_27 = arith.constant dense<0xFF800000> : vector<4x2xf32>
    %76 = vector.multi_reduction <maximumf>, %75, %cst_27 [2] : vector<4x2x2xf32> to vector<4x2xf32>
    %77 = vector.shape_cast %76 : vector<4x2xf32> to vector<4x2x1xf32>
    %78 = vector.broadcast %77 : vector<4x2x1xf32> to vector<4x2x2xf32>
    %79 = arith.subf %75, %78 : vector<4x2x2xf32>
    %80 = math.exp %79 : vector<4x2x2xf32>
    %cst_28 = arith.constant dense<0.000000e+00> : vector<4x2xf32>
    %81 = vector.multi_reduction <add>, %80, %cst_28 [2] : vector<4x2x2xf32> to vector<4x2xf32>
    %82 = vector.shape_cast %81 : vector<4x2xf32> to vector<4x2x1xf32>
    %83 = vector.broadcast %82 : vector<4x2x1xf32> to vector<4x2x2xf32>
    %84 = arith.divf %80, %83 : vector<4x2x2xf32>
    %85 = arith.truncf %84 : vector<4x2x2xf32> to vector<4x2x2xbf16>
    "tpu.trace_start"() <{level = 10 : i32, message = "gqk,gkd->gqd"}> : () -> ()
    %cst_29 = arith.constant dense<0.000000e+00> : vector<4x2x32xf32>
    %86 = tpu.matmul %85, %72, %cst_29 {dimension_numbers = #tpu.dot_dimension_numbers<[2], [1], [1], [2], [0, 0, 0, 1, 1, 2], [0], [0]>} : vector<4x2x2xbf16>, vector<4x2x32xbf16>, vector<4x2x32xf32> -> vector<4x2x32xf32>
    "tpu.trace_stop"() : () -> ()
    %87 = vector.extract_strided_slice %35 {offsets = [0, 0, 96], sizes = [4, 2, 32], strides = [1, 1, 1]} : vector<4x2x384xbf16> to vector<4x2x32xbf16>
    %88 = vector.extract_strided_slice %35 {offsets = [0, 0, 224], sizes = [4, 2, 32], strides = [1, 1, 1]} : vector<4x2x384xbf16> to vector<4x2x32xbf16>
    %89 = vector.extract_strided_slice %35 {offsets = [0, 0, 352], sizes = [4, 2, 32], strides = [1, 1, 1]} : vector<4x2x384xbf16> to vector<4x2x32xbf16>
    "tpu.trace_start"() <{level = 10 : i32, message = "gqd,gkd->gqk"}> : () -> ()
    %cst_30 = arith.constant dense<0.000000e+00> : vector<4x2x2xf32>
    %90 = tpu.matmul %87, %88, %cst_30 {dimension_numbers = #tpu.dot_dimension_numbers<[2], [2], [1], [1], [0, 0, 0, 1, 1, 1], [0], [0]>} : vector<4x2x32xbf16>, vector<4x2x32xbf16>, vector<4x2x2xf32> -> vector<4x2x2xf32>
    "tpu.trace_stop"() : () -> ()
    %cst_31 = arith.constant 0.176776692 : f32
    %91 = vector.broadcast %cst_31 : f32 to vector<4x2x2xf32>
    %92 = arith.mulf %90, %91 : vector<4x2x2xf32>
    %cst_32 = arith.constant dense<0xFF800000> : vector<4x2xf32>
    %93 = vector.multi_reduction <maximumf>, %92, %cst_32 [2] : vector<4x2x2xf32> to vector<4x2xf32>
    %94 = vector.shape_cast %93 : vector<4x2xf32> to vector<4x2x1xf32>
    %95 = vector.broadcast %94 : vector<4x2x1xf32> to vector<4x2x2xf32>
    %96 = arith.subf %92, %95 : vector<4x2x2xf32>
    %97 = math.exp %96 : vector<4x2x2xf32>
    %cst_33 = arith.constant dense<0.000000e+00> : vector<4x2xf32>
    %98 = vector.multi_reduction <add>, %97, %cst_33 [2] : vector<4x2x2xf32> to vector<4x2xf32>
    %99 = vector.shape_cast %98 : vector<4x2xf32> to vector<4x2x1xf32>
    %100 = vector.broadcast %99 : vector<4x2x1xf32> to vector<4x2x2xf32>
    %101 = arith.divf %97, %100 : vector<4x2x2xf32>
    %102 = arith.truncf %101 : vector<4x2x2xf32> to vector<4x2x2xbf16>
    "tpu.trace_start"() <{level = 10 : i32, message = "gqk,gkd->gqd"}> : () -> ()
    %cst_34 = arith.constant dense<0.000000e+00> : vector<4x2x32xf32>
    %103 = tpu.matmul %102, %89, %cst_34 {dimension_numbers = #tpu.dot_dimension_numbers<[2], [1], [1], [2], [0, 0, 0, 1, 1, 2], [0], [0]>} : vector<4x2x2xbf16>, vector<4x2x32xbf16>, vector<4x2x32xf32> -> vector<4x2x32xf32>
    "tpu.trace_stop"() : () -> ()
    %104 = tpu.concatenate %52, %69, %86, %103 in 2 : vector<4x2x32xf32>, vector<4x2x32xf32>, vector<4x2x32xf32>, vector<4x2x32xf32> -> vector<4x2x128xf32>
    %105 = vector.shape_cast %104 : vector<4x2x128xf32> to vector<8x128xf32>
    %106 = arith.truncf %105 : vector<8x128xf32> to vector<8x128xbf16>
    %c0_35 = arith.constant 0 : index
    %c0_36 = arith.constant 0 : index
    %107 = vector.load %arg6[%c0_35, %c0_36] : memref<128x128xbf16, #tpu.memory_space<vmem>>, vector<128x128xbf16>
    %cst_37 = arith.constant dense<0.000000e+00> : vector<8x128xf32>
    %108 = tpu.matmul %106, %107, %cst_37 {dimension_numbers = #tpu.dot_dimension_numbers<[1], [0], [0], [1], [0, 0, 1, 1], [], []>} : vector<8x128xbf16>, vector<128x128xbf16>, vector<8x128xf32> -> vector<8x128xf32>
    %c0_38 = arith.constant 0 : index
    %c0_39 = arith.constant 0 : index
    %109 = vector.load %arg7[%c0_38, %c0_39] : memref<1x128xf32, #tpu.memory_space<vmem>>, vector<1x128xf32>
    %110 = vector.broadcast %109 : vector<1x128xf32> to vector<8x128xf32>
    %111 = arith.addf %108, %110 : vector<8x128xf32>
    %112 = arith.truncf %111 : vector<8x128xf32> to vector<8x128xbf16>
    %c0_40 = arith.constant 0 : index
    %c0_41 = arith.constant 0 : index
    %113 = vector.load %arg8[%c0_40, %c0_41] : memref<128x128xbf16, #tpu.memory_space<vmem>>, vector<128x128xbf16>
    %cst_42 = arith.constant dense<0.000000e+00> : vector<8x128xf32>
    %114 = tpu.matmul %112, %113, %cst_42 {dimension_numbers = #tpu.dot_dimension_numbers<[1], [0], [0], [1], [0, 0, 1, 1], [], []>} : vector<8x128xbf16>, vector<128x128xbf16>, vector<8x128xf32> -> vector<8x128xf32>
    %c0_43 = arith.constant 0 : index
    %c0_44 = arith.constant 0 : index
    %115 = vector.load %arg9[%c0_43, %c0_44] : memref<1x128xf32, #tpu.memory_space<vmem>>, vector<1x128xf32>
    %116 = vector.broadcast %115 : vector<1x128xf32> to vector<8x128xf32>
    %117 = arith.addf %114, %116 : vector<8x128xf32>
    %118 = arith.addf %117, %1 : vector<8x128xf32>
    %119 = vector.shape_cast %118 : vector<8x128xf32> to vector<4x2x128xf32>
    %c0_45 = arith.constant 0 : index
    %c0_46 = arith.constant 0 : index
    %c0_47 = arith.constant 0 : index
    %120 = vector.load %arg10[%c0_45, %c0_46, %c0_47] : memref<4x2x128xf32, #tpu.memory_space<vmem>>, vector<4x2x128xf32>
    tpu.vector_store %arg10[%c0_45, %c0_46, %c0_47], %119 {strides = array<i32>} : memref<4x2x128xf32, #tpu.memory_space<vmem>>, vector<4x2x128xf32>,
    return
  }
  func.func @transform_0(%arg0: i32) -> (i32, i32, i32) {
    %c0_i32 = arith.constant 0 : i32
    %c0_i32_0 = arith.constant 0 : i32
    %c0_i32_1 = arith.constant 0 : i32
    return %arg0, %c0_i32, %c0_i32_0 : i32, i32, i32
  }
  func.func @transform_1(%arg0: i32) -> (i32, i32) {
    %c0_i32 = arith.constant 0 : i32
    %c0_i32_0 = arith.constant 0 : i32
    %c0_i32_1 = arith.constant 0 : i32
    return %c0_i32, %c0_i32_0 : i32, i32
  }
  func.func @transform_2(%arg0: i32) -> (i32, i32) {
    %c0_i32 = arith.constant 0 : i32
    %c0_i32_0 = arith.constant 0 : i32
    %c0_i32_1 = arith.constant 0 : i32
    return %c0_i32, %c0_i32_0 : i32, i32
  }
  func.func @transform_3(%arg0: i32) -> (i32, i32) {
    %c0_i32 = arith.constant 0 : i32
    %c0_i32_0 = arith.constant 0 : i32
    %c0_i32_1 = arith.constant 0 : i32
    return %c0_i32, %c0_i32_0 : i32, i32
  }
  func.func @transform_4(%arg0: i32) -> (i32, i32) {
    %c0_i32 = arith.constant 0 : i32
    %c0_i32_0 = arith.constant 0 : i32
    %c0_i32_1 = arith.constant 0 : i32
    return %c0_i32, %c0_i32_0 : i32, i32
  }
  func.func @transform_5(%arg0: i32) -> (i32, i32) {
    %c0_i32 = arith.constant 0 : i32
    %c0_i32_0 = arith.constant 0 : i32
    %c0_i32_1 = arith.constant 0 : i32
    return %c0_i32, %c0_i32_0 : i32, i32
  }
  func.func @transform_6(%arg0: i32) -> (i32, i32) {
    %c0_i32 = arith.constant 0 : i32
    %c0_i32_0 = arith.constant 0 : i32
    %c0_i32_1 = arith.constant 0 : i32
    return %c0_i32, %c0_i32_0 : i32, i32
  }
  func.func @transform_7(%arg0: i32) -> (i32, i32) {
    %c0_i32 = arith.constant 0 : i32
    %c0_i32_0 = arith.constant 0 : i32
    %c0_i32_1 = arith.constant 0 : i32
    return %c0_i32, %c0_i32_0 : i32, i32
  }
  func.func @transform_8(%arg0: i32) -> (i32, i32) {
    %c0_i32 = arith.constant 0 : i32
    %c0_i32_0 = arith.constant 0 : i32
    %c0_i32_1 = arith.constant 0 : i32
    return %c0_i32, %c0_i32_0 : i32, i32
  }
  func.func @transform_9(%arg0: i32) -> (i32, i32, i32) {
    %c0_i32 = arith.constant 0 : i32
    %c0_i32_0 = arith.constant 0 : i32
    %c0_i32_1 = arith.constant 0 : i32
    return %arg0, %c0_i32, %c0_i32_0 : i32, i32, i32
  }
}

module attributes {stable_mosaic.version = 11 : i64} {
  func.func @_mlp_block_kernel(%arg0: i32, %arg1: memref<1x9x128xf32, #tpu.memory_space<vmem>>, %arg2: memref<1x128xf32, #tpu.memory_space<vmem>>, %arg3: memref<1x128xf32, #tpu.memory_space<vmem>>, %arg4: memref<128x512xbf16, #tpu.memory_space<vmem>>, %arg5: memref<1x512xf32, #tpu.memory_space<vmem>>, %arg6: memref<512x128xbf16, #tpu.memory_space<vmem>>, %arg7: memref<1x128xf32, #tpu.memory_space<vmem>>, %arg8: memref<1x9x128xf32, #tpu.memory_space<vmem>>) attributes {dimension_semantics = [#tpu.dimension_semantics<parallel>], iteration_bounds = array<i64: 2>, scalar_prefetch = 0 : i64, scratch_operands = 0 : i64, tpu.core_type = #tpu.core_type<tc>, window_params = [{transform_indices = @transform_0, window_bounds = array<i64: 1, 9, 128>}, {pipeline_mode = #tpu.pipeline_mode<synchronous>, transform_indices = @transform_1, window_bounds = array<i64: 1, 128>}, {pipeline_mode = #tpu.pipeline_mode<synchronous>, transform_indices = @transform_2, window_bounds = array<i64: 1, 128>}, {pipeline_mode = #tpu.pipeline_mode<synchronous>, transform_indices = @transform_3, window_bounds = array<i64: 128, 512>}, {pipeline_mode = #tpu.pipeline_mode<synchronous>, transform_indices = @transform_4, window_bounds = array<i64: 1, 512>}, {pipeline_mode = #tpu.pipeline_mode<synchronous>, transform_indices = @transform_5, window_bounds = array<i64: 512, 128>}, {pipeline_mode = #tpu.pipeline_mode<synchronous>, transform_indices = @transform_6, window_bounds = array<i64: 1, 128>}, {transform_indices = @transform_7, window_bounds = array<i64: 1, 9, 128>}]} {
    %c0 = arith.constant 0 : index
    %c0_0 = arith.constant 0 : index
    %c0_1 = arith.constant 0 : index
    %0 = vector.load %arg1[%c0, %c0_0, %c0_1] : memref<1x9x128xf32, #tpu.memory_space<vmem>>, vector<1x9x128xf32>
    %1 = vector.shape_cast %0 : vector<1x9x128xf32> to vector<9x128xf32>
    %c0_2 = arith.constant 0 : index
    %c0_3 = arith.constant 0 : index
    %2 = vector.load %arg2[%c0_2, %c0_3] : memref<1x128xf32, #tpu.memory_space<vmem>>, vector<1x128xf32>
    %c0_4 = arith.constant 0 : index
    %c0_5 = arith.constant 0 : index
    %3 = vector.load %arg3[%c0_4, %c0_5] : memref<1x128xf32, #tpu.memory_space<vmem>>, vector<1x128xf32>
    %cst = arith.constant dense<0.000000e+00> : vector<9xf32>
    %4 = vector.multi_reduction <add>, %1, %cst [1] : vector<9x128xf32> to vector<9xf32>
    %5 = vector.shape_cast %4 : vector<9xf32> to vector<9x1xf32>
    %cst_6 = arith.constant 1.280000e+02 : f32
    %6 = vector.broadcast %cst_6 : f32 to vector<9x1xf32>
    %7 = arith.divf %5, %6 : vector<9x1xf32>
    %8 = vector.broadcast %7 : vector<9x1xf32> to vector<9x128xf32>
    %9 = arith.subf %1, %8 : vector<9x128xf32>
    %10 = vector.broadcast %7 : vector<9x1xf32> to vector<9x128xf32>
    %11 = arith.subf %1, %10 : vector<9x128xf32>
    %12 = arith.mulf %9, %11 : vector<9x128xf32>
    %cst_7 = arith.constant dense<0.000000e+00> : vector<9xf32>
    %13 = vector.multi_reduction <add>, %12, %cst_7 [1] : vector<9x128xf32> to vector<9xf32>
    %14 = vector.shape_cast %13 : vector<9xf32> to vector<9x1xf32>
    %cst_8 = arith.constant 1.280000e+02 : f32
    %15 = vector.broadcast %cst_8 : f32 to vector<9x1xf32>
    %16 = arith.divf %14, %15 : vector<9x1xf32>
    %17 = vector.broadcast %7 : vector<9x1xf32> to vector<9x128xf32>
    %18 = arith.subf %1, %17 : vector<9x128xf32>
    %cst_9 = arith.constant 9.99999997E-7 : f32
    %19 = vector.broadcast %cst_9 : f32 to vector<9x1xf32>
    %20 = arith.addf %16, %19 : vector<9x1xf32>
    %21 = math.rsqrt %20 : vector<9x1xf32>
    %22 = vector.broadcast %21 : vector<9x1xf32> to vector<9x128xf32>
    %23 = arith.mulf %18, %22 : vector<9x128xf32>
    %24 = vector.broadcast %2 : vector<1x128xf32> to vector<9x128xf32>
    %25 = arith.mulf %23, %24 : vector<9x128xf32>
    %26 = vector.broadcast %3 : vector<1x128xf32> to vector<9x128xf32>
    %27 = arith.addf %25, %26 : vector<9x128xf32>
    %28 = arith.truncf %27 : vector<9x128xf32> to vector<9x128xbf16>
    %c0_10 = arith.constant 0 : index
    %c0_11 = arith.constant 0 : index
    %29 = vector.load %arg4[%c0_10, %c0_11] : memref<128x512xbf16, #tpu.memory_space<vmem>>, vector<128x512xbf16>
    %cst_12 = arith.constant dense<0.000000e+00> : vector<9x512xf32>
    %30 = tpu.matmul %28, %29, %cst_12 {dimension_numbers = #tpu.dot_dimension_numbers<[1], [0], [0], [1], [0, 0, 1, 1], [], []>} : vector<9x128xbf16>, vector<128x512xbf16>, vector<9x512xf32> -> vector<9x512xf32>
    %c0_13 = arith.constant 0 : index
    %c0_14 = arith.constant 0 : index
    %31 = vector.load %arg5[%c0_13, %c0_14] : memref<1x512xf32, #tpu.memory_space<vmem>>, vector<1x512xf32>
    %32 = vector.broadcast %31 : vector<1x512xf32> to vector<9x512xf32>
    %33 = arith.addf %30, %32 : vector<9x512xf32>
    %34 = arith.mulf %33, %33 : vector<9x512xf32>
    %35 = arith.mulf %33, %34 : vector<9x512xf32>
    %cst_15 = arith.constant 4.471500e-02 : f32
    %36 = vector.broadcast %cst_15 : f32 to vector<9x512xf32>
    %37 = arith.mulf %36, %35 : vector<9x512xf32>
    %38 = arith.addf %33, %37 : vector<9x512xf32>
    %cst_16 = arith.constant 0.797884583 : f32
    %39 = vector.broadcast %cst_16 : f32 to vector<9x512xf32>
    %40 = arith.mulf %39, %38 : vector<9x512xf32>
    %41 = math.tanh %40 : vector<9x512xf32>
    %cst_17 = arith.constant 1.000000e+00 : f32
    %42 = vector.broadcast %cst_17 : f32 to vector<9x512xf32>
    %43 = arith.addf %42, %41 : vector<9x512xf32>
    %cst_18 = arith.constant 5.000000e-01 : f32
    %44 = vector.broadcast %cst_18 : f32 to vector<9x512xf32>
    %45 = arith.mulf %44, %43 : vector<9x512xf32>
    %46 = arith.mulf %33, %45 : vector<9x512xf32>
    %47 = arith.truncf %46 : vector<9x512xf32> to vector<9x512xbf16>
    %c0_19 = arith.constant 0 : index
    %c0_20 = arith.constant 0 : index
    %48 = vector.load %arg6[%c0_19, %c0_20] : memref<512x128xbf16, #tpu.memory_space<vmem>>, vector<512x128xbf16>
    %cst_21 = arith.constant dense<0.000000e+00> : vector<9x128xf32>
    %49 = tpu.matmul %47, %48, %cst_21 {dimension_numbers = #tpu.dot_dimension_numbers<[1], [0], [0], [1], [0, 0, 1, 1], [], []>} : vector<9x512xbf16>, vector<512x128xbf16>, vector<9x128xf32> -> vector<9x128xf32>
    %c0_22 = arith.constant 0 : index
    %c0_23 = arith.constant 0 : index
    %50 = vector.load %arg7[%c0_22, %c0_23] : memref<1x128xf32, #tpu.memory_space<vmem>>, vector<1x128xf32>
    %51 = vector.broadcast %50 : vector<1x128xf32> to vector<9x128xf32>
    %52 = arith.addf %49, %51 : vector<9x128xf32>
    %53 = arith.addf %52, %1 : vector<9x128xf32>
    %c0_24 = arith.constant 0 : index
    %c0_25 = arith.constant 0 : index
    %c0_26 = arith.constant 0 : index
    %54 = vector.load %arg8[%c0_24, %c0_25, %c0_26] : memref<1x9x128xf32, #tpu.memory_space<vmem>>, vector<1x9x128xf32>
    %55 = vector.shape_cast %54 : vector<1x9x128xf32> to vector<9x128xf32>
    %56 = vector.shape_cast %53 : vector<9x128xf32> to vector<1x9x128xf32>
    tpu.vector_store %arg8[%c0_24, %c0_25, %c0_26], %56 {strides = array<i32>} : memref<1x9x128xf32, #tpu.memory_space<vmem>>, vector<1x9x128xf32>,
    return
  }
  func.func @transform_0(%arg0: i32) -> (i32, i32, i32) {
    %c0_i32 = arith.constant 0 : i32
    %c0_i32_0 = arith.constant 0 : i32
    %c0_i32_1 = arith.constant 0 : i32
    return %arg0, %c0_i32, %c0_i32_0 : i32, i32, i32
  }
  func.func @transform_1(%arg0: i32) -> (i32, i32) {
    %c0_i32 = arith.constant 0 : i32
    %c0_i32_0 = arith.constant 0 : i32
    %c0_i32_1 = arith.constant 0 : i32
    return %c0_i32, %c0_i32_0 : i32, i32
  }
  func.func @transform_2(%arg0: i32) -> (i32, i32) {
    %c0_i32 = arith.constant 0 : i32
    %c0_i32_0 = arith.constant 0 : i32
    %c0_i32_1 = arith.constant 0 : i32
    return %c0_i32, %c0_i32_0 : i32, i32
  }
  func.func @transform_3(%arg0: i32) -> (i32, i32) {
    %c0_i32 = arith.constant 0 : i32
    %c0_i32_0 = arith.constant 0 : i32
    %c0_i32_1 = arith.constant 0 : i32
    return %c0_i32, %c0_i32_0 : i32, i32
  }
  func.func @transform_4(%arg0: i32) -> (i32, i32) {
    %c0_i32 = arith.constant 0 : i32
    %c0_i32_0 = arith.constant 0 : i32
    %c0_i32_1 = arith.constant 0 : i32
    return %c0_i32, %c0_i32_0 : i32, i32
  }
  func.func @transform_5(%arg0: i32) -> (i32, i32) {
    %c0_i32 = arith.constant 0 : i32
    %c0_i32_0 = arith.constant 0 : i32
    %c0_i32_1 = arith.constant 0 : i32
    return %c0_i32, %c0_i32_0 : i32, i32
  }
  func.func @transform_6(%arg0: i32) -> (i32, i32) {
    %c0_i32 = arith.constant 0 : i32
    %c0_i32_0 = arith.constant 0 : i32
    %c0_i32_1 = arith.constant 0 : i32
    return %c0_i32, %c0_i32_0 : i32, i32
  }
  func.func @transform_7(%arg0: i32) -> (i32, i32, i32) {
    %c0_i32 = arith.constant 0 : i32
    %c0_i32_0 = arith.constant 0 : i32
    %c0_i32_1 = arith.constant 0 : i32
    return %arg0, %c0_i32, %c0_i32_0 : i32, i32, i32
  }
}

module attributes {stable_mosaic.version = 11 : i64} {
  func.func @_final_kernel(%arg0: i32, %arg1: memref<2x9x128xf32, #tpu.memory_space<vmem>>, %arg2: memref<1x128xf32, #tpu.memory_space<vmem>>, %arg3: memref<1x128xf32, #tpu.memory_space<vmem>>, %arg4: memref<128x2xbf16, #tpu.memory_space<vmem>>, %arg5: memref<1x2xf32, #tpu.memory_space<vmem>>, %arg6: memref<2x2xf32, #tpu.memory_space<vmem>>) attributes {dimension_semantics = [#tpu.dimension_semantics<arbitrary>], iteration_bounds = array<i64: 1>, scalar_prefetch = 0 : i64, scratch_operands = 0 : i64, tpu.core_type = #tpu.core_type<tc>, window_params = [{pipeline_mode = #tpu.pipeline_mode<synchronous>, transform_indices = @transform_0, window_bounds = array<i64: 2, 9, 128>}, {pipeline_mode = #tpu.pipeline_mode<synchronous>, transform_indices = @transform_1, window_bounds = array<i64: 1, 128>}, {pipeline_mode = #tpu.pipeline_mode<synchronous>, transform_indices = @transform_2, window_bounds = array<i64: 1, 128>}, {pipeline_mode = #tpu.pipeline_mode<synchronous>, transform_indices = @transform_3, window_bounds = array<i64: 128, 2>}, {pipeline_mode = #tpu.pipeline_mode<synchronous>, transform_indices = @transform_4, window_bounds = array<i64: 1, 2>}, {pipeline_mode = #tpu.pipeline_mode<synchronous>, transform_indices = @transform_5, window_bounds = array<i64: 2, 2>}]} {
    %c0 = arith.constant 0 : index
    %c0_0 = arith.constant 0 : index
    %c0_1 = arith.constant 0 : index
    %0 = vector.load %arg1[%c0, %c0_0, %c0_1] : memref<2x9x128xf32, #tpu.memory_space<vmem>>, vector<2x9x128xf32>
    %1 = vector.shape_cast %0 : vector<2x9x128xf32> to vector<18x128xf32>
    %c0_2 = arith.constant 0 : index
    %c0_3 = arith.constant 0 : index
    %2 = vector.load %arg2[%c0_2, %c0_3] : memref<1x128xf32, #tpu.memory_space<vmem>>, vector<1x128xf32>
    %c0_4 = arith.constant 0 : index
    %c0_5 = arith.constant 0 : index
    %3 = vector.load %arg3[%c0_4, %c0_5] : memref<1x128xf32, #tpu.memory_space<vmem>>, vector<1x128xf32>
    %cst = arith.constant dense<0.000000e+00> : vector<18xf32>
    %4 = vector.multi_reduction <add>, %1, %cst [1] : vector<18x128xf32> to vector<18xf32>
    %5 = vector.shape_cast %4 : vector<18xf32> to vector<18x1xf32>
    %cst_6 = arith.constant 1.280000e+02 : f32
    %6 = vector.broadcast %cst_6 : f32 to vector<18x1xf32>
    %7 = arith.divf %5, %6 : vector<18x1xf32>
    %8 = vector.broadcast %7 : vector<18x1xf32> to vector<18x128xf32>
    %9 = arith.subf %1, %8 : vector<18x128xf32>
    %10 = vector.broadcast %7 : vector<18x1xf32> to vector<18x128xf32>
    %11 = arith.subf %1, %10 : vector<18x128xf32>
    %12 = arith.mulf %9, %11 : vector<18x128xf32>
    %cst_7 = arith.constant dense<0.000000e+00> : vector<18xf32>
    %13 = vector.multi_reduction <add>, %12, %cst_7 [1] : vector<18x128xf32> to vector<18xf32>
    %14 = vector.shape_cast %13 : vector<18xf32> to vector<18x1xf32>
    %cst_8 = arith.constant 1.280000e+02 : f32
    %15 = vector.broadcast %cst_8 : f32 to vector<18x1xf32>
    %16 = arith.divf %14, %15 : vector<18x1xf32>
    %17 = vector.broadcast %7 : vector<18x1xf32> to vector<18x128xf32>
    %18 = arith.subf %1, %17 : vector<18x128xf32>
    %cst_9 = arith.constant 9.99999997E-7 : f32
    %19 = vector.broadcast %cst_9 : f32 to vector<18x1xf32>
    %20 = arith.addf %16, %19 : vector<18x1xf32>
    %21 = math.rsqrt %20 : vector<18x1xf32>
    %22 = vector.broadcast %21 : vector<18x1xf32> to vector<18x128xf32>
    %23 = arith.mulf %18, %22 : vector<18x128xf32>
    %24 = vector.broadcast %2 : vector<1x128xf32> to vector<18x128xf32>
    %25 = arith.mulf %23, %24 : vector<18x128xf32>
    %26 = vector.broadcast %3 : vector<1x128xf32> to vector<18x128xf32>
    %27 = arith.addf %25, %26 : vector<18x128xf32>
    %28 = vector.shape_cast %27 : vector<18x128xf32> to vector<2x9x128xf32>
    %cst_10 = arith.constant dense<0.000000e+00> : vector<2x128xf32>
    %29 = vector.multi_reduction <add>, %28, %cst_10 [1] : vector<2x9x128xf32> to vector<2x128xf32>
    %cst_11 = arith.constant 9.000000e+00 : f32
    %30 = vector.broadcast %cst_11 : f32 to vector<2x128xf32>
    %31 = arith.divf %29, %30 : vector<2x128xf32>
    %32 = arith.truncf %31 : vector<2x128xf32> to vector<2x128xbf16>
    %c0_12 = arith.constant 0 : index
    %c0_13 = arith.constant 0 : index
    %33 = vector.load %arg4[%c0_12, %c0_13] : memref<128x2xbf16, #tpu.memory_space<vmem>>, vector<128x2xbf16>
    %cst_14 = arith.constant dense<0.000000e+00> : vector<2x2xf32>
    %34 = tpu.matmul %32, %33, %cst_14 {dimension_numbers = #tpu.dot_dimension_numbers<[1], [0], [0], [1], [0, 0, 1, 1], [], []>} : vector<2x128xbf16>, vector<128x2xbf16>, vector<2x2xf32> -> vector<2x2xf32>
    %c0_15 = arith.constant 0 : index
    %c0_16 = arith.constant 0 : index
    %35 = vector.load %arg5[%c0_15, %c0_16] : memref<1x2xf32, #tpu.memory_space<vmem>>, vector<1x2xf32>
    %36 = vector.broadcast %35 : vector<1x2xf32> to vector<2x2xf32>
    %37 = arith.addf %34, %36 : vector<2x2xf32>
    %c0_17 = arith.constant 0 : index
    %c0_18 = arith.constant 0 : index
    %38 = vector.load %arg6[%c0_17, %c0_18] : memref<2x2xf32, #tpu.memory_space<vmem>>, vector<2x2xf32>
    tpu.vector_store %arg6[%c0_17, %c0_18], %37 {strides = array<i32>} : memref<2x2xf32, #tpu.memory_space<vmem>>, vector<2x2xf32>,
    return
  }
  func.func @transform_0(%arg0: i32) -> (i32, i32, i32) {
    %c0_i32 = arith.constant 0 : i32
    %c0_i32_0 = arith.constant 0 : i32
    %c0_i32_1 = arith.constant 0 : i32
    %c0_i32_2 = arith.constant 0 : i32
    return %c0_i32, %c0_i32_0, %c0_i32_1 : i32, i32, i32
  }
  func.func @transform_1(%arg0: i32) -> (i32, i32) {
    %c0_i32 = arith.constant 0 : i32
    %c0_i32_0 = arith.constant 0 : i32
    %c0_i32_1 = arith.constant 0 : i32
    return %c0_i32, %c0_i32_0 : i32, i32
  }
  func.func @transform_2(%arg0: i32) -> (i32, i32) {
    %c0_i32 = arith.constant 0 : i32
    %c0_i32_0 = arith.constant 0 : i32
    %c0_i32_1 = arith.constant 0 : i32
    return %c0_i32, %c0_i32_0 : i32, i32
  }
  func.func @transform_3(%arg0: i32) -> (i32, i32) {
    %c0_i32 = arith.constant 0 : i32
    %c0_i32_0 = arith.constant 0 : i32
    %c0_i32_1 = arith.constant 0 : i32
    return %c0_i32, %c0_i32_0 : i32, i32
  }
  func.func @transform_4(%arg0: i32) -> (i32, i32) {
    %c0_i32 = arith.constant 0 : i32
    %c0_i32_0 = arith.constant 0 : i32
    %c0_i32_1 = arith.constant 0 : i32
    return %c0_i32, %c0_i32_0 : i32, i32
  }
  func.func @transform_5(%arg0: i32) -> (i32, i32) {
    %c0_i32 = arith.constant 0 : i32
    %c0_i32_0 = arith.constant 0 : i32
    %c0_i32_1 = arith.constant 0 : i32
    return %c0_i32, %c0_i32_0 : i32, i32
  }
}

</mosaic_0001>

<llo_original>
// kernel: deepfake_timesformer_forward.8
$region0: #{deepfake_timesformer_forward.8}
  #allocation0 [shape = 'u32[]', space=smem, size = 0x4, offset = 0x4, fixed_abs, tag = 'smem constant byte address 0x4 - core index']
  #allocation1 [shape = 'u32[144,128]{1,0:T(1,128)}', space=vmem, size = 0x12000, scoped, tag = 'internal scratch']
  %s0 = inlined_call_operand.vmem [shape: f32[16,192], index: 0, kind: input, shape index: {}]
  %s1 = inlined_call_operand.vmem [shape: bf16[192,128], index: 1, kind: input, shape index: {}]
  %s2 = inlined_call_operand.vmem [shape: f32[1,128], index: 2, kind: input, shape index: {}]
  %s3 = inlined_call_operand.vmem [shape: f32[16,128], index: 3, kind: output, shape index: {}]
  %s4 = sld [smem:[#allocation0]]
  $region45: #{deepfake_timesformer_forward.8} parent=0
    _
  %s6 = ssub.s32 1, %s4
  %s7 = scalar_select 0, %s6, %s4
  loop: start=0, step=1, limit=4
  $region2: #{deepfake_timesformer_forward.8} parent=0 // loop_pre_header
    _
  $region3: #{deepfake_timesformer_forward.8} parent=0 // loop_header
    %s9 = sphi 0, %s13
    %p10 = scmp.ge.s32.totalorder %s9, 4
    %s19 = sphi 0, %s21
    %s22 = sphi 0, %s19
    %s23 = sphi 0, %s22
    %s39 = sphi 0, %s23
    %s43 = sphi 0, %s43
    %s45 = sphi 0, %s43
    %s46 = sphi 0, %s45
    %s60 = sphi 0, %s46
    %s64 = sphi 0, %s64
    %s66 = sphi 0, %s64
    %s67 = sphi 0, %s66
    %s81 = sphi 0, %s67
    %s87 = sphi 0, %s89
    %s90 = sphi 0, %s87
    %s91 = sphi 0, %s90
    %s107 = sphi 0, %s91
  $region4: #{deepfake_timesformer_forward.8} parent=0 // loop_header_branch
    %12 = sbr.rel (%p10) target = $region8
  $region5: #{deepfake_timesformer_forward.8} parent=0 // loop_body
    %s14 = ssub.s32 %s9, 1
    %s15 = ssub.s32 %s9, 2
    %s16 = sadd.s32 %s9, 1
    %s17 = ssub.s32 %s9, %s16
    %p18 = scmp.eq.s32.totalorder %s17, 0
    %s20 = sadd.s32 %s19, 1
    %s21 = scalar_select %p18, %s19, %s20
    %p24 = pneg %p18
    %p25 = scmp.eq.s32.totalorder %s9, 1
    %p26 = por %p24, %p25
    %p27 = scmp.ne.s32.totalorder %s19, %s22
    %p28 = scmp.eq.s32.totalorder %s9, 0
    %p29 = por %p27, %p28
    %p30 = scmp.ne.s32.totalorder %s19, %s22
    %p31 = scmp.eq.s32.totalorder %s14, 1
    %p32 = por %p30, %p31
    %p33 = scmp.ne.s32.totalorder %s22, %s23
    %p34 = scmp.eq.s32.totalorder %s14, 0
    %p35 = por %p33, %p34
    %p36 = scmp.ne.s32.totalorder %s22, %s23
    %p37 = scmp.eq.s32.totalorder %s15, 1
    %p38 = por %p36, %p37
    %p40 = scmp.ne.s32.totalorder %s23, %s39
    %p41 = scmp.eq.s32.totalorder %s15, 0
    %p42 = por %p40, %p41
    %s44 = sadd.s32 %s43, 1
    %p47 = scmp.eq.s32.totalorder %s9, 1
    %p48 = scmp.ne.s32.totalorder %s43, %s45
    %p49 = scmp.eq.s32.totalorder %s9, 0
    %p50 = por %p48, %p49
    %p51 = scmp.ne.s32.totalorder %s43, %s45
    %p52 = scmp.eq.s32.totalorder %s14, 1
    %p53 = por %p51, %p52
    %p54 = scmp.ne.s32.totalorder %s45, %s46
    %p55 = scmp.eq.s32.totalorder %s14, 0
    %p56 = por %p54, %p55
    %p57 = scmp.ne.s32.totalorder %s45, %s46
    %p58 = scmp.eq.s32.totalorder %s15, 1
    %p59 = por %p57, %p58
    %p61 = scmp.ne.s32.totalorder %s46, %s60
    %p62 = scmp.eq.s32.totalorder %s15, 0
    %p63 = por %p61, %p62
    %s65 = sadd.s32 %s64, 1
    %p68 = scmp.eq.s32.totalorder %s9, 1
    %p69 = scmp.ne.s32.totalorder %s64, %s66
    %p70 = scmp.eq.s32.totalorder %s9, 0
    %p71 = por %p69, %p70
    %p72 = scmp.ne.s32.totalorder %s64, %s66
    %p73 = scmp.eq.s32.totalorder %s14, 1
    %p74 = por %p72, %p73
    %p75 = scmp.ne.s32.totalorder %s66, %s67
    %p76 = scmp.eq.s32.totalorder %s14, 0
    %p77 = por %p75, %p76
    %p78 = scmp.ne.s32.totalorder %s66, %s67
    %p79 = scmp.eq.s32.totalorder %s15, 1
    %p80 = por %p78, %p79
    %p82 = scmp.ne.s32.totalorder %s67, %s81
    %p83 = scmp.eq.s32.totalorder %s15, 0
    %p84 = por %p82, %p83
    %s85 = ssub.s32 %s9, %s16
    %p86 = scmp.eq.s32.totalorder %s85, 0
    %s88 = sadd.s32 %s87, 1
    %s89 = scalar_select %p86, %s87, %s88
    %p92 = pneg %p86
    %p93 = scmp.eq.s32.totalorder %s9, 1
    %p94 = por %p92, %p93
    %p95 = scmp.ne.s32.totalorder %s87, %s90
    %p96 = scmp.eq.s32.totalorder %s9, 0
    %p97 = por %p95, %p96
    %p98 = scmp.ne.s32.totalorder %s87, %s90
    %p99 = scmp.eq.s32.totalorder %s14, 1
    %p100 = por %p98, %p99
    %p101 = scmp.ne.s32.totalorder %s90, %s91
    %p102 = scmp.eq.s32.totalorder %s14, 0
    %p103 = por %p101, %p102
    %p104 = scmp.ne.s32.totalorder %s90, %s91
    %p105 = scmp.eq.s32.totalorder %s15, 1
    %p106 = por %p104, %p105
    %p108 = scmp.ne.s32.totalorder %s91, %s107
    %p109 = scmp.eq.s32.totalorder %s15, 0
    %p110 = por %p108, %p109
    %p111 = scmp.le.s32.totalorder 1, %s9
    %p112 = scmp.lt.s32.totalorder %s9, 3
    %p113 = pnand %p111, %p112
    %p114 = pneg %p113
    // Predicated region
    $region9: #{deepfake_timesformer_forward.8} parent=5 // pred_check
      _
    $region10: #{deepfake_timesformer_forward.8} parent=5 // pred_check_branch
      %116 = sbr.rel (%p113) target = $region12
    $region11: #{deepfake_timesformer_forward.8} parent=5 // pred_region
      %s117 = ssub.s32 %s9, 1
      // Predicated region
      $region13: #{deepfake_timesformer_forward.8} parent=11 // pred_check
        %p118 = pneg %p56
      $region14: #{deepfake_timesformer_forward.8} parent=11 // pred_check_branch
        %120 = sbr.rel (%p118) target = $region16
      $region15: #{deepfake_timesformer_forward.8} parent=11 // pred_region
        _
      $region16: #{deepfake_timesformer_forward.8} parent=11 // pred_fallthru
        _
      // Predicated region
      $region17: #{deepfake_timesformer_forward.8} parent=11 // pred_check
        %p121 = pneg %p77
      $region18: #{deepfake_timesformer_forward.8} parent=11 // pred_check_branch
        %123 = sbr.rel (%p121) target = $region20
      $region19: #{deepfake_timesformer_forward.8} parent=11 // pred_region
        _
      $region20: #{deepfake_timesformer_forward.8} parent=11 // pred_fallthru
        _
    $region12: #{deepfake_timesformer_forward.8} parent=5 // pred_fallthru
      _
    %p124 = scmp.lt.s32.totalorder %s9, 2
    // Predicated region
    $region21: #{deepfake_timesformer_forward.8} parent=5 // pred_check
      %p125 = pneg %p124
    $region22: #{deepfake_timesformer_forward.8} parent=5 // pred_check_branch
      %127 = sbr.rel (%p125) target = $region24
    $region23: #{deepfake_timesformer_forward.8} parent=5 // pred_region
      // Predicated region
      $region25: #{deepfake_timesformer_forward.8} parent=23 // pred_check
        %p128 = pneg %p29
      $region26: #{deepfake_timesformer_forward.8} parent=23 // pred_check_branch
        %130 = sbr.rel (%p128) target = $region28
      $region27: #{deepfake_timesformer_forward.8} parent=23 // pred_region
        %p131 = scmp.lt.s32.totalorder %s9, 1
        %s132 = scalar_select %p131, %s9, 1
        %s133 = smul.addr %s132, 2
        %s134 = smul.addr %s133, 8
        %s135 = scalar_lea.vmem %s0, %s134
      $region28: #{deepfake_timesformer_forward.8} parent=23 // pred_fallthru
        _
    $region24: #{deepfake_timesformer_forward.8} parent=5 // pred_fallthru
      _
    %p136 = scmp.le.s32.totalorder 1, %s9
    %p137 = scmp.lt.s32.totalorder %s9, 3
    %p138 = pnand %p136, %p137
    %p139 = pneg %p138
    // Predicated region
    $region29: #{deepfake_timesformer_forward.8} parent=5 // pred_check
      _
    $region30: #{deepfake_timesformer_forward.8} parent=5 // pred_check_branch
      %141 = sbr.rel (%p138) target = $region32
    $region31: #{deepfake_timesformer_forward.8} parent=5 // pred_region
      %s142 = ssub.s32 %s9, 1
      %p143 = scmp.lt.s32.totalorder %s14, 1
      %s144 = scalar_select %p143, %s14, 1
      %s145 = smul.addr %s144, 2
      %s146 = smul.addr %s145, 8
      %s147 = scalar_lea.vmem %s0, %s146
      %p148 = pneg %p35
      %p149 = pneg %p32
      %p150 = pneg %p56
      %p151 = pneg %p53
      %p152 = pneg %p77
      %p153 = pneg %p74
      %p154 = pneg %p103
      %p155 = pneg %p100
      %p156 = scmp.lt.s32.totalorder %s14, 1
      %s157 = scalar_select %p156, %s14, 1
      %s158 = smul.addr %s157, 8
      %s159 = scalar_lea.vmem %s3, %s158
      %p160 = scmp.lt.s32.totalorder %s14, 1
      %s161 = scalar_select %p160, %s14, 1
      %s162 = smul.addr %s161, 2
      %s163 = smul.addr %s162, 8
      %s164 = scalar_lea.vmem %s0, %s163
      %p165 = scmp.lt.s32.totalorder %s14, 1
      %s166 = scalar_select %p165, %s14, 1
      %s167 = smul.addr %s166, 8
      %s168 = scalar_lea.vmem %s3, %s167
      %v170 = vld [vmem:[%s164] sm:$0xff]
      %v171 = vld [vmem:[%s164 + $0x8] sm:$0xff]
      %v172 = vpack.c.bf16 %v170, %v170
      %v173 = vpack.c.bf16 %v171, %v171
      %v174 = vld [vmem:[%s1] sm:$0xf]
      %v175 = vld [vmem:[%s1 + $0x4] sm:$0xf]
      %v176 = vld [vmem:[%s1 + $0x8] sm:$0xf]
      %v177 = vld [vmem:[%s1 + $0xc] sm:$0xf]
      %v178 = vld [vmem:[%s1 + $0x10] sm:$0xf]
      %v179 = vld [vmem:[%s1 + $0x14] sm:$0xf]
      %v180 = vld [vmem:[%s1 + $0x18] sm:$0xf]
      %v181 = vld [vmem:[%s1 + $0x1c] sm:$0xf]
      %v182 = vld [vmem:[%s1 + $0x20] sm:$0xf]
      %v183 = vld [vmem:[%s1 + $0x24] sm:$0xf]
      %v184 = vld [vmem:[%s1 + $0x28] sm:$0xf]
      %v185 = vld [vmem:[%s1 + $0x2c] sm:$0xf]
      %v186 = vld [vmem:[%s1 + $0x30] sm:$0xf]
      %v187 = vld [vmem:[%s1 + $0x34] sm:$0xf]
      %v188 = vld [vmem:[%s1 + $0x38] sm:$0xf]
      %v189 = vld [vmem:[%s1 + $0x3c] sm:$0xf]
      %v190 = vld [vmem:[%s1 + $0x40] sm:$0xf]
      %v191 = vld [vmem:[%s1 + $0x44] sm:$0xf]
      %v192 = vld [vmem:[%s1 + $0x48] sm:$0xf]
      %v193 = vld [vmem:[%s1 + $0x4c] sm:$0xf]
      %v194 = vld [vmem:[%s1 + $0x50] sm:$0xf]
      %v195 = vld [vmem:[%s1 + $0x54] sm:$0xf]
      %v196 = vld [vmem:[%s1 + $0x58] sm:$0xf]
      %v197 = vld [vmem:[%s1 + $0x5c] sm:$0xf]
      %v198 = vld [vmem:[%s2] sm:$0x1]
      %v200 = vlaneseq
      %v201 = vshrl.u32 %v200, 7
      %v202 = vsub.s32 0, %v201
      %v203 = vrot.slane %v198, %v202
      %v229 = vunpack.c.l.b16 %v174
      %v230 = vunpack.c.l.b16 %v175
      %v231 = vunpack.c.l.b16 %v176
      %v232 = vunpack.c.l.b16 %v177
      %v233 = vunpack.c.l.b16 %v178
      %v234 = vunpack.c.l.b16 %v179
      %v235 = vunpack.c.l.b16 %v180
      %v236 = vunpack.c.l.b16 %v181
      %v237 = vunpack.c.l.b16 %v182
      %v238 = vunpack.c.l.b16 %v183
      %v239 = vunpack.c.l.b16 %v184
      %v240 = vunpack.c.l.b16 %v185
      %v241 = vunpack.c.l.b16 %v186
      %v242 = vunpack.c.l.b16 %v187
      %v243 = vunpack.c.l.b16 %v188
      %v244 = vunpack.c.l.b16 %v189
      %v245 = vunpack.c.l.b16 %v190
      %v246 = vunpack.c.l.b16 %v191
      %v247 = vunpack.c.l.b16 %v192
      %v248 = vunpack.c.l.b16 %v193
      %v249 = vunpack.c.l.b16 %v194
      %v250 = vunpack.c.l.b16 %v195
      %v251 = vunpack.c.l.b16 %v196
      %v252 = vunpack.c.l.b16 %v197
      %v253 = vpack.c.b16 %v230, %v229
      %v254 = vpack.c.b16 %v232, %v231
      %v255 = vpack.c.b16 %v234, %v233
      %v256 = vpack.c.b16 %v236, %v235
      %v257 = vpack.c.b16 %v238, %v237
      %v258 = vpack.c.b16 %v240, %v239
      %v259 = vpack.c.b16 %v242, %v241
      %v260 = vpack.c.b16 %v244, %v243
      %v261 = vpack.c.b16 %v246, %v245
      %v262 = vpack.c.b16 %v248, %v247
      %v263 = vpack.c.b16 %v250, %v249
      %v264 = vpack.c.b16 %v252, %v251
      %vm277 = vcmask 523264
      %v279 = vsel %vm277, %v173, 0
      %281 = vmatprep.subr.bf16.mxu0 0
      %282 = vmatpush1.bf16.msra.mxu0 %v260
      %283 = vmatprep.subr.bf16.mxu0 0
      %284 = vmatpush1.bf16.msra.mxu0 %v259
      %285 = vmatprep.subr.bf16.mxu0 0
      %286 = vmatpush1.bf16.msra.mxu0 %v258
      %287 = vmatprep.subr.bf16.mxu0 0
      %288 = vmatpush1.bf16.msra.mxu0 %v257
      %289 = vmatprep.subr.bf16.mxu0 0
      %290 = vmatpush1.bf16.msra.mxu0 %v256
      %291 = vmatprep.subr.bf16.mxu0 0
      %292 = vmatpush1.bf16.msra.mxu0 %v255
      %293 = vmatprep.subr.bf16.mxu0 0
      %294 = vmatpush1.bf16.msra.mxu0 %v254
      %295 = vmatprep.subr.bf16.mxu0 0
      %296 = vmatpush1.bf16.msra.mxu0 %v253
      %297 = vmatprep.subr.bf16.mxu0 0
      %298 = vmatpush2.bf16.msra.mxu0 0
      %299 = vmatprep.subr.bf16.mxu0 0
      %300 = vmatpush2.bf16.msra.mxu0 0
      %301 = vmatprep.subr.bf16.mxu0 0
      %302 = vmatpush2.bf16.msra.mxu0 0
      %303 = vmatprep.subr.bf16.mxu0 0
      %304 = vmatpush2.bf16.msra.mxu0 0
      %305 = vmatprep.subr.bf16.mxu0 0
      %306 = vmatpush2.bf16.msra.mxu0 %v264
      %307 = vmatprep.subr.bf16.mxu0 0
      %308 = vmatpush2.bf16.msra.mxu0 %v263
      %309 = vmatprep.subr.bf16.mxu0 0
      %310 = vmatpush2.bf16.msra.mxu0 %v262
      %311 = vmatprep.subr.bf16.mxu0 0
      %312 = vmatpush2.bf16.msra.mxu0 %v261
      %313 = vmatprep.mubr.bf16.mxu0 %v279
      %314 = vmatmul.mubr.bf16.gmra.mxu0 %v172
      %v315 = vpop.f32.mrf.mxu0
      %v316 = vadd.f32 %v203, %v315
      %v317 = vpop.f32.mrf.mxu0
      %v318 = vpop.f32.mrf.mxu0
      %v319 = vpop.f32.mrf.mxu0
      %320 = vdwg.mxu0
      %321 = vst [vmem:[%s168] sm:$0xff] %v316
      %p322 = scmp.lt.s32.totalorder %s14, 1
      %s323 = scalar_select %p322, %s14, 1
      %s324 = smul.addr %s323, 8
      %s325 = scalar_lea.vmem %s3, %s324
      // Predicated region
      $region33: #{deepfake_timesformer_forward.8} parent=31 // pred_check
        %p326 = pneg %p100
      $region34: #{deepfake_timesformer_forward.8} parent=31 // pred_check_branch
        %328 = sbr.rel (%p326) target = $region36
      $region35: #{deepfake_timesformer_forward.8} parent=31 // pred_region
        _
      $region36: #{deepfake_timesformer_forward.8} parent=31 // pred_fallthru
        _
    $region32: #{deepfake_timesformer_forward.8} parent=5 // pred_fallthru
      _
    %p329 = scmp.le.s32.totalorder 2, %s9
    // Predicated region
    $region37: #{deepfake_timesformer_forward.8} parent=5 // pred_check
      %p330 = pneg %p329
    $region38: #{deepfake_timesformer_forward.8} parent=5 // pred_check_branch
      %332 = sbr.rel (%p330) target = $region40
    $region39: #{deepfake_timesformer_forward.8} parent=5 // pred_region
      %s333 = ssub.s32 %s9, 2
      // Predicated region
      $region41: #{deepfake_timesformer_forward.8} parent=39 // pred_check
        %p334 = pneg %p106
      $region42: #{deepfake_timesformer_forward.8} parent=39 // pred_check_branch
        %336 = sbr.rel (%p334) target = $region44
      $region43: #{deepfake_timesformer_forward.8} parent=39 // pred_region
        %p337 = scmp.lt.s32.totalorder %s15, 1
        %s338 = scalar_select %p337, %s15, 1
        %s339 = smul.addr %s338, 8
        %s340 = scalar_lea.vmem %s3, %s339
      $region44: #{deepfake_timesformer_forward.8} parent=39 // pred_fallthru
        _
    $region40: #{deepfake_timesformer_forward.8} parent=5 // pred_fallthru
      _
  $region6: #{deepfake_timesformer_forward.8} parent=0 // loop_footer
    %s13 = sadd.s32 1, %s9
  $region7: #{deepfake_timesformer_forward.8} parent=0 // loop_footer_branch
    %8 = sbr.rel target = $region3
  $region8: #{deepfake_timesformer_forward.8} parent=0 // loop_exit
    _

// kernel: deepfake_timesformer_forward.11
$region0: #{deepfake_timesformer_forward.11}
  #allocation0 [shape = 'u32[]', space=smem, size = 0x4, offset = 0x4, fixed_abs, tag = 'smem constant byte address 0x4 - core index']
  #allocation1 [shape = 'u32[144,128]{1,0:T(1,128)}', space=vmem, size = 0x12000, scoped, tag = 'internal scratch']
  %s0 = inlined_call_operand.vmem [shape: f32[2,9,128], index: 0, kind: input, shape index: {}]
  %s1 = inlined_call_operand.vmem [shape: f32[1,128], index: 1, kind: input, shape index: {}]
  %s2 = inlined_call_operand.vmem [shape: f32[1,128], index: 2, kind: input, shape index: {}]
  %s3 = inlined_call_operand.vmem [shape: bf16[128,512], index: 3, kind: input, shape index: {}]
  %s4 = inlined_call_operand.vmem [shape: f32[1,512], index: 4, kind: input, shape index: {}]
  %s5 = inlined_call_operand.vmem [shape: bf16[512,128], index: 5, kind: input, shape index: {}]
  %s6 = inlined_call_operand.vmem [shape: f32[1,128], index: 6, kind: input, shape index: {}]
  %s7 = inlined_call_operand.vmem [shape: f32[2,9,128], index: 7, kind: output, shape index: {}]
  %s8 = sld [smem:[#allocation0]]
  $region61: #{deepfake_timesformer_forward.11} parent=0
    _
  %s10 = ssub.s32 1, %s8
  %s11 = scalar_select 0, %s10, %s8
  loop: start=0, step=1, limit=4
  $region2: #{deepfake_timesformer_forward.11} parent=0 // loop_pre_header
    _
  $region3: #{deepfake_timesformer_forward.11} parent=0 // loop_header
    %s13 = sphi 0, %s17
    %p14 = scmp.ge.s32.totalorder %s13, 4
    %s23 = sphi 0, %s25
    %s26 = sphi 0, %s23
    %s27 = sphi 0, %s26
    %s43 = sphi 0, %s27
    %s47 = sphi 0, %s47
    %s49 = sphi 0, %s47
    %s50 = sphi 0, %s49
    %s64 = sphi 0, %s50
    %s68 = sphi 0, %s68
    %s70 = sphi 0, %s68
    %s71 = sphi 0, %s70
    %s85 = sphi 0, %s71
    %s89 = sphi 0, %s89
    %s91 = sphi 0, %s89
    %s92 = sphi 0, %s91
    %s106 = sphi 0, %s92
    %s110 = sphi 0, %s110
    %s112 = sphi 0, %s110
    %s113 = sphi 0, %s112
    %s127 = sphi 0, %s113
    %s131 = sphi 0, %s131
    %s133 = sphi 0, %s131
    %s134 = sphi 0, %s133
    %s148 = sphi 0, %s134
    %s152 = sphi 0, %s152
    %s154 = sphi 0, %s152
    %s155 = sphi 0, %s154
    %s169 = sphi 0, %s155
    %s175 = sphi 0, %s177
    %s178 = sphi 0, %s175
    %s179 = sphi 0, %s178
    %s195 = sphi 0, %s179
  $region4: #{deepfake_timesformer_forward.11} parent=0 // loop_header_branch
    %16 = sbr.rel (%p14) target = $region8
  $region5: #{deepfake_timesformer_forward.11} parent=0 // loop_body
    %s18 = ssub.s32 %s13, 1
    %s19 = ssub.s32 %s13, 2
    %s20 = sadd.s32 %s13, 1
    %s21 = ssub.s32 %s13, %s20
    %p22 = scmp.eq.s32.totalorder %s21, 0
    %s24 = sadd.s32 %s23, 1
    %s25 = scalar_select %p22, %s23, %s24
    %p28 = pneg %p22
    %p29 = scmp.eq.s32.totalorder %s13, 1
    %p30 = por %p28, %p29
    %p31 = scmp.ne.s32.totalorder %s23, %s26
    %p32 = scmp.eq.s32.totalorder %s13, 0
    %p33 = por %p31, %p32
    %p34 = scmp.ne.s32.totalorder %s23, %s26
    %p35 = scmp.eq.s32.totalorder %s18, 1
    %p36 = por %p34, %p35
    %p37 = scmp.ne.s32.totalorder %s26, %s27
    %p38 = scmp.eq.s32.totalorder %s18, 0
    %p39 = por %p37, %p38
    %p40 = scmp.ne.s32.totalorder %s26, %s27
    %p41 = scmp.eq.s32.totalorder %s19, 1
    %p42 = por %p40, %p41
    %p44 = scmp.ne.s32.totalorder %s27, %s43
    %p45 = scmp.eq.s32.totalorder %s19, 0
    %p46 = por %p44, %p45
    %s48 = sadd.s32 %s47, 1
    %p51 = scmp.eq.s32.totalorder %s13, 1
    %p52 = scmp.ne.s32.totalorder %s47, %s49
    %p53 = scmp.eq.s32.totalorder %s13, 0
    %p54 = por %p52, %p53
    %p55 = scmp.ne.s32.totalorder %s47, %s49
    %p56 = scmp.eq.s32.totalorder %s18, 1
    %p57 = por %p55, %p56
    %p58 = scmp.ne.s32.totalorder %s49, %s50
    %p59 = scmp.eq.s32.totalorder %s18, 0
    %p60 = por %p58, %p59
    %p61 = scmp.ne.s32.totalorder %s49, %s50
    %p62 = scmp.eq.s32.totalorder %s19, 1
    %p63 = por %p61, %p62
    %p65 = scmp.ne.s32.totalorder %s50, %s64
    %p66 = scmp.eq.s32.totalorder %s19, 0
    %p67 = por %p65, %p66
    %s69 = sadd.s32 %s68, 1
    %p72 = scmp.eq.s32.totalorder %s13, 1
    %p73 = scmp.ne.s32.totalorder %s68, %s70
    %p74 = scmp.eq.s32.totalorder %s13, 0
    %p75 = por %p73, %p74
    %p76 = scmp.ne.s32.totalorder %s68, %s70
    %p77 = scmp.eq.s32.totalorder %s18, 1
    %p78 = por %p76, %p77
    %p79 = scmp.ne.s32.totalorder %s70, %s71
    %p80 = scmp.eq.s32.totalorder %s18, 0
    %p81 = por %p79, %p80
    %p82 = scmp.ne.s32.totalorder %s70, %s71
    %p83 = scmp.eq.s32.totalorder %s19, 1
    %p84 = por %p82, %p83
    %p86 = scmp.ne.s32.totalorder %s71, %s85
    %p87 = scmp.eq.s32.totalorder %s19, 0
    %p88 = por %p86, %p87
    %s90 = sadd.s32 %s89, 1
    %p93 = scmp.eq.s32.totalorder %s13, 1
    %p94 = scmp.ne.s32.totalorder %s89, %s91
    %p95 = scmp.eq.s32.totalorder %s13, 0
    %p96 = por %p94, %p95
    %p97 = scmp.ne.s32.totalorder %s89, %s91
    %p98 = scmp.eq.s32.totalorder %s18, 1
    %p99 = por %p97, %p98
    %p100 = scmp.ne.s32.totalorder %s91, %s92
    %p101 = scmp.eq.s32.totalorder %s18, 0
    %p102 = por %p100, %p101
    %p103 = scmp.ne.s32.totalorder %s91, %s92
    %p104 = scmp.eq.s32.totalorder %s19, 1
    %p105 = por %p103, %p104
    %p107 = scmp.ne.s32.totalorder %s92, %s106
    %p108 = scmp.eq.s32.totalorder %s19, 0
    %p109 = por %p107, %p108
    %s111 = sadd.s32 %s110, 1
    %p114 = scmp.eq.s32.totalorder %s13, 1
    %p115 = scmp.ne.s32.totalorder %s110, %s112
    %p116 = scmp.eq.s32.totalorder %s13, 0
    %p117 = por %p115, %p116
    %p118 = scmp.ne.s32.totalorder %s110, %s112
    %p119 = scmp.eq.s32.totalorder %s18, 1
    %p120 = por %p118, %p119
    %p121 = scmp.ne.s32.totalorder %s112, %s113
    %p122 = scmp.eq.s32.totalorder %s18, 0
    %p123 = por %p121, %p122
    %p124 = scmp.ne.s32.totalorder %s112, %s113
    %p125 = scmp.eq.s32.totalorder %s19, 1
    %p126 = por %p124, %p125
    %p128 = scmp.ne.s32.totalorder %s113, %s127
    %p129 = scmp.eq.s32.totalorder %s19, 0
    %p130 = por %p128, %p129
    %s132 = sadd.s32 %s131, 1
    %p135 = scmp.eq.s32.totalorder %s13, 1
    %p136 = scmp.ne.s32.totalorder %s131, %s133
    %p137 = scmp.eq.s32.totalorder %s13, 0
    %p138 = por %p136, %p137
    %p139 = scmp.ne.s32.totalorder %s131, %s133
    %p140 = scmp.eq.s32.totalorder %s18, 1
    %p141 = por %p139, %p140
    %p142 = scmp.ne.s32.totalorder %s133, %s134
    %p143 = scmp.eq.s32.totalorder %s18, 0
    %p144 = por %p142, %p143
    %p145 = scmp.ne.s32.totalorder %s133, %s134
    %p146 = scmp.eq.s32.totalorder %s19, 1
    %p147 = por %p145, %p146
    %p149 = scmp.ne.s32.totalorder %s134, %s148
    %p150 = scmp.eq.s32.totalorder %s19, 0
    %p151 = por %p149, %p150
    %s153 = sadd.s32 %s152, 1
    %p156 = scmp.eq.s32.totalorder %s13, 1
    %p157 = scmp.ne.s32.totalorder %s152, %s154
    %p158 = scmp.eq.s32.totalorder %s13, 0
    %p159 = por %p157, %p158
    %p160 = scmp.ne.s32.totalorder %s152, %s154
    %p161 = scmp.eq.s32.totalorder %s18, 1
    %p162 = por %p160, %p161
    %p163 = scmp.ne.s32.totalorder %s154, %s155
    %p164 = scmp.eq.s32.totalorder %s18, 0
    %p165 = por %p163, %p164
    %p166 = scmp.ne.s32.totalorder %s154, %s155
    %p167 = scmp.eq.s32.totalorder %s19, 1
    %p168 = por %p166, %p167
    %p170 = scmp.ne.s32.totalorder %s155, %s169
    %p171 = scmp.eq.s32.totalorder %s19, 0
    %p172 = por %p170, %p171
    %s173 = ssub.s32 %s13, %s20
    %p174 = scmp.eq.s32.totalorder %s173, 0
    %s176 = sadd.s32 %s175, 1
    %s177 = scalar_select %p174, %s175, %s176
    %p180 = pneg %p174
    %p181 = scmp.eq.s32.totalorder %s13, 1
    %p182 = por %p180, %p181
    %p183 = scmp.ne.s32.totalorder %s175, %s178
    %p184 = scmp.eq.s32.totalorder %s13, 0
    %p185 = por %p183, %p184
    %p186 = scmp.ne.s32.totalorder %s175, %s178
    %p187 = scmp.eq.s32.totalorder %s18, 1
    %p188 = por %p186, %p187
    %p189 = scmp.ne.s32.totalorder %s178, %s179
    %p190 = scmp.eq.s32.totalorder %s18, 0
    %p191 = por %p189, %p190
    %p192 = scmp.ne.s32.totalorder %s178, %s179
    %p193 = scmp.eq.s32.totalorder %s19, 1
    %p194 = por %p192, %p193
    %p196 = scmp.ne.s32.totalorder %s179, %s195
    %p197 = scmp.eq.s32.totalorder %s19, 0
    %p198 = por %p196, %p197
    %p199 = scmp.le.s32.totalorder 1, %s13
    %p200 = scmp.lt.s32.totalorder %s13, 3
    %p201 = pnand %p199, %p200
    %p202 = pneg %p201
    // Predicated region
    $region9: #{deepfake_timesformer_forward.11} parent=5 // pred_check
      _
    $region10: #{deepfake_timesformer_forward.11} parent=5 // pred_check_branch
      %204 = sbr.rel (%p201) target = $region12
    $region11: #{deepfake_timesformer_forward.11} parent=5 // pred_region
      %s205 = ssub.s32 %s13, 1
      // Predicated region
      $region13: #{deepfake_timesformer_forward.11} parent=11 // pred_check
        %p206 = pneg %p60
      $region14: #{deepfake_timesformer_forward.11} parent=11 // pred_check_branch
        %208 = sbr.rel (%p206) target = $region16
      $region15: #{deepfake_timesformer_forward.11} parent=11 // pred_region
        _
      $region16: #{deepfake_timesformer_forward.11} parent=11 // pred_fallthru
        _
      // Predicated region
      $region17: #{deepfake_timesformer_forward.11} parent=11 // pred_check
        %p209 = pneg %p81
      $region18: #{deepfake_timesformer_forward.11} parent=11 // pred_check_branch
        %211 = sbr.rel (%p209) target = $region20
      $region19: #{deepfake_timesformer_forward.11} parent=11 // pred_region
        _
      $region20: #{deepfake_timesformer_forward.11} parent=11 // pred_fallthru
        _
      // Predicated region
      $region21: #{deepfake_timesformer_forward.11} parent=11 // pred_check
        %p212 = pneg %p102
      $region22: #{deepfake_timesformer_forward.11} parent=11 // pred_check_branch
        %214 = sbr.rel (%p212) target = $region24
      $region23: #{deepfake_timesformer_forward.11} parent=11 // pred_region
        _
      $region24: #{deepfake_timesformer_forward.11} parent=11 // pred_fallthru
        _
      // Predicated region
      $region25: #{deepfake_timesformer_forward.11} parent=11 // pred_check
        %p215 = pneg %p123
      $region26: #{deepfake_timesformer_forward.11} parent=11 // pred_check_branch
        %217 = sbr.rel (%p215) target = $region28
      $region27: #{deepfake_timesformer_forward.11} parent=11 // pred_region
        _
      $region28: #{deepfake_timesformer_forward.11} parent=11 // pred_fallthru
        _
      // Predicated region
      $region29: #{deepfake_timesformer_forward.11} parent=11 // pred_check
        %p218 = pneg %p144
      $region30: #{deepfake_timesformer_forward.11} parent=11 // pred_check_branch
        %220 = sbr.rel (%p218) target = $region32
      $region31: #{deepfake_timesformer_forward.11} parent=11 // pred_region
        _
      $region32: #{deepfake_timesformer_forward.11} parent=11 // pred_fallthru
        _
      // Predicated region
      $region33: #{deepfake_timesformer_forward.11} parent=11 // pred_check
        %p221 = pneg %p165
      $region34: #{deepfake_timesformer_forward.11} parent=11 // pred_check_branch
        %223 = sbr.rel (%p221) target = $region36
      $region35: #{deepfake_timesformer_forward.11} parent=11 // pred_region
        _
      $region36: #{deepfake_timesformer_forward.11} parent=11 // pred_fallthru
        _
    $region12: #{deepfake_timesformer_forward.11} parent=5 // pred_fallthru
      _
    %p224 = scmp.lt.s32.totalorder %s13, 2
    // Predicated region
    $region37: #{deepfake_timesformer_forward.11} parent=5 // pred_check
      %p225 = pneg %p224
    $region38: #{deepfake_timesformer_forward.11} parent=5 // pred_check_branch
      %227 = sbr.rel (%p225) target = $region40
    $region39: #{deepfake_timesformer_forward.11} parent=5 // pred_region
      // Predicated region
      $region41: #{deepfake_timesformer_forward.11} parent=39 // pred_check
        %p228 = pneg %p33
      $region42: #{deepfake_timesformer_forward.11} parent=39 // pred_check_branch
        %230 = sbr.rel (%p228) target = $region44
      $region43: #{deepfake_timesformer_forward.11} parent=39 // pred_region
        %p231 = scmp.lt.s32.totalorder %s13, 1
        %s232 = scalar_select %p231, %s13, 1
        %s233 = smul.addr %s232, 2
        %s234 = smul.addr %s233, 8
        %s235 = scalar_lea.vmem %s0, %s234
      $region44: #{deepfake_timesformer_forward.11} parent=39 // pred_fallthru
        _
    $region40: #{deepfake_timesformer_forward.11} parent=5 // pred_fallthru
      _
    %p236 = scmp.le.s32.totalorder 1, %s13
    %p237 = scmp.lt.s32.totalorder %s13, 3
    %p238 = pnand %p236, %p237
    %p239 = pneg %p238
    // Predicated region
    $region45: #{deepfake_timesformer_forward.11} parent=5 // pred_check
      _
    $region46: #{deepfake_timesformer_forward.11} parent=5 // pred_check_branch
      %241 = sbr.rel (%p238) target = $region48
    $region47: #{deepfake_timesformer_forward.11} parent=5 // pred_region
      %s242 = ssub.s32 %s13, 1
      %p243 = scmp.lt.s32.totalorder %s18, 1
      %s244 = scalar_select %p243, %s18, 1
      %s245 = smul.addr %s244, 2
      %s246 = smul.addr %s245, 8
      %s247 = scalar_lea.vmem %s0, %s246
      %p248 = pneg %p39
      %p249 = pneg %p36
      %p250 = pneg %p60
      %p251 = pneg %p57
      %p252 = pneg %p81
      %p253 = pneg %p78
      %p254 = pneg %p102
      %p255 = pneg %p99
      %p256 = pneg %p123
      %p257 = pneg %p120
      %p258 = pneg %p144
      %p259 = pneg %p141
      %p260 = pneg %p165
      %p261 = pneg %p162
      %p262 = pneg %p191
      %p263 = pneg %p188
      %p264 = scmp.lt.s32.totalorder %s18, 1
      %s265 = scalar_select %p264, %s18, 1
      %s266 = smul.addr %s265, 2
      %s267 = smul.addr %s266, 8
      %s268 = scalar_lea.vmem %s7, %s267
      %p269 = scmp.lt.s32.totalorder %s18, 1
      %s270 = scalar_select %p269, %s18, 1
      %s271 = smul.addr %s270, 2
      %s272 = smul.addr %s271, 8
      %s273 = scalar_lea.vmem %s0, %s272
      %p274 = scmp.lt.s32.totalorder %s18, 1
      %s275 = scalar_select %p274, %s18, 1
      %s276 = smul.addr %s275, 2
      %s277 = smul.addr %s276, 8
      %s278 = scalar_lea.vmem %s7, %s277
      %v280 = vld [vmem:[%s273] sm:$0xff]
      %v281 = vld [vmem:[%s273 + $0x8] sm:$0x1]
      %v282 = vld [vmem:[%s1] sm:$0x1]
      %v283 = vld [vmem:[%s2] sm:$0x1]
      %284 = vadd.xlane.f32.xlu0 %v280
      %v285 = vpop.xlane.xlu0 %284
      %vm286 = vcmask 1040384
      %v287 = vsel %vm286, %v281, 0.0
      %288 = vadd.xlane.f32.xlu0 %v287
      %v289 = vpop.xlane.xlu0 %288
      %v290 = vrcp.pop 128.0
      %v291 = vmul.f32 %v285, %v290
      %v292 = vmul.f32 %v289, %v290
      %v293 = vsub.f32 %v280, %v291
      %v294 = vsub.f32 %v281, %v292
      %v295 = vmul.f32 %v293, %v293
      %v296 = vmul.f32 %v294, %v294
      %297 = vadd.xlane.f32.xlu0 %v295
      %v298 = vpop.xlane.xlu0 %297
      %v299 = vsel %vm286, %v296, 0.0
      %300 = vadd.xlane.f32.xlu0 %v299
      %v301 = vpop.xlane.xlu0 %300
      %v302 = vmul.f32 %v298, %v290
      %v303 = vmul.f32 %v301, %v290
      %v304 = vadd.f32 %v302, 1e-06
      %v305 = vadd.f32 %v303, 1e-06
      %v306 = vrsqrt.pop %v304
      %v307 = vrsqrt.pop %v305
      %v308 = vmul.f32 %v293, %v306
      %v309 = vmul.f32 %v294, %v307
      %v311 = vlaneseq
      %v312 = vshrl.u32 %v311, 7
      %v313 = vsub.s32 0, %v312
      %v314 = vrot.slane %v282, %v313
      %v316 = vmul.f32 %v308, %v314
      %v317 = vmul.f32 %v309, %v314
      %v319 = vlaneseq
      %v320 = vshrl.u32 %v319, 7
      %v321 = vsub.s32 0, %v320
      %v322 = vrot.slane %v283, %v321
      %v324 = vadd.f32 %v316, %v322
      %v325 = vadd.f32 %v317, %v322
      %v326 = vpack.c.bf16 %v325, %v324
      %v327 = vld [vmem:[%s3] sm:$0xff]
      %v328 = vld [vmem:[%s3 + $0x8] sm:$0xff]
      %v329 = vld [vmem:[%s3 + $0x10] sm:$0xff]
      %v330 = vld [vmem:[%s3 + $0x18] sm:$0xff]
      %v331 = vld [vmem:[%s3 + $0x20] sm:$0xff]
      %v332 = vld [vmem:[%s3 + $0x28] sm:$0xff]
      %v333 = vld [vmem:[%s3 + $0x30] sm:$0xff]
      %v334 = vld [vmem:[%s3 + $0x38] sm:$0xff]
      %v335 = vld [vmem:[%s3 + $0x40] sm:$0xff]
      %v336 = vld [vmem:[%s3 + $0x48] sm:$0xff]
      %v337 = vld [vmem:[%s3 + $0x50] sm:$0xff]
      %v338 = vld [vmem:[%s3 + $0x58] sm:$0xff]
      %v339 = vld [vmem:[%s3 + $0x60] sm:$0xff]
      %v340 = vld [vmem:[%s3 + $0x68] sm:$0xff]
      %v341 = vld [vmem:[%s3 + $0x70] sm:$0xff]
      %v342 = vld [vmem:[%s3 + $0x78] sm:$0xff]
      %v343 = vld [vmem:[%s3 + $0x80] sm:$0xff]
      %v344 = vld [vmem:[%s3 + $0x88] sm:$0xff]
      %v345 = vld [vmem:[%s3 + $0x90] sm:$0xff]
      %v346 = vld [vmem:[%s3 + $0x98] sm:$0xff]
      %v347 = vld [vmem:[%s3 + $0xa0] sm:$0xff]
      %v348 = vld [vmem:[%s3 + $0xa8] sm:$0xff]
      %v349 = vld [vmem:[%s3 + $0xb0] sm:$0xff]
      %v350 = vld [vmem:[%s3 + $0xb8] sm:$0xff]
      %v351 = vld [vmem:[%s3 + $0xc0] sm:$0xff]
      %v352 = vld [vmem:[%s3 + $0xc8] sm:$0xff]
      %v353 = vld [vmem:[%s3 + $0xd0] sm:$0xff]
      %v354 = vld [vmem:[%s3 + $0xd8] sm:$0xff]
      %v355 = vld [vmem:[%s3 + $0xe0] sm:$0xff]
      %v356 = vld [vmem:[%s3 + $0xe8] sm:$0xff]
      %v357 = vld [vmem:[%s3 + $0xf0] sm:$0xff]
      %v358 = vld [vmem:[%s3 + $0xf8] sm:$0xff]
      %v359 = vld [vmem:[%s4] sm:$0xf]
      %v361 = vlaneseq
      %v362 = vshrl.u32 %v361, 7
      %v363 = vsub.s32 0, %v362
      %v364 = vrot.slane %v359, %v363
      %v365 = vlaneseq
      %v366 = vshrl.u32 %v365, 7
      %v367 = vsub.s32 1, %v366
      %v368 = vrot.slane %v359, %v367
      %v369 = vlaneseq
      %v370 = vshrl.u32 %v369, 7
      %v371 = vsub.s32 2, %v370
      %v372 = vrot.slane %v359, %v371
      %v373 = vlaneseq
      %v374 = vshrl.u32 %v373, 7
      %v375 = vsub.s32 3, %v374
      %v376 = vrot.slane %v359, %v375
      %v413 = vunpack.c.l.b16 %v327
      %v414 = vunpack.c.h.b16 %v327
      %v415 = vunpack.c.l.b16 %v328
      %v416 = vunpack.c.h.b16 %v328
      %v417 = vunpack.c.l.b16 %v329
      %v418 = vunpack.c.h.b16 %v329
      %v419 = vunpack.c.l.b16 %v330
      %v420 = vunpack.c.h.b16 %v330
      %v421 = vunpack.c.l.b16 %v331
      %v422 = vunpack.c.h.b16 %v331
      %v423 = vunpack.c.l.b16 %v332
      %v424 = vunpack.c.h.b16 %v332
      %v425 = vunpack.c.l.b16 %v333
      %v426 = vunpack.c.h.b16 %v333
      %v427 = vunpack.c.l.b16 %v334
      %v428 = vunpack.c.h.b16 %v334
      %v429 = vunpack.c.l.b16 %v335
      %v430 = vunpack.c.h.b16 %v335
      %v431 = vunpack.c.l.b16 %v336
      %v432 = vunpack.c.h.b16 %v336
      %v433 = vunpack.c.l.b16 %v337
      %v434 = vunpack.c.h.b16 %v337
      %v435 = vunpack.c.l.b16 %v338
      %v436 = vunpack.c.h.b16 %v338
      %v437 = vunpack.c.l.b16 %v339
      %v438 = vunpack.c.h.b16 %v339
      %v439 = vunpack.c.l.b16 %v340
      %v440 = vunpack.c.h.b16 %v340
      %v441 = vunpack.c.l.b16 %v341
      %v442 = vunpack.c.h.b16 %v341
      %v443 = vunpack.c.l.b16 %v342
      %v444 = vunpack.c.h.b16 %v342
      %v445 = vunpack.c.l.b16 %v343
      %v446 = vunpack.c.h.b16 %v343
      %v447 = vunpack.c.l.b16 %v344
      %v448 = vunpack.c.h.b16 %v344
      %v449 = vunpack.c.l.b16 %v345
      %v450 = vunpack.c.h.b16 %v345
      %v451 = vunpack.c.l.b16 %v346
      %v452 = vunpack.c.h.b16 %v346
      %v453 = vunpack.c.l.b16 %v347
      %v454 = vunpack.c.h.b16 %v347
      %v455 = vunpack.c.l.b16 %v348
      %v456 = vunpack.c.h.b16 %v348
      %v457 = vunpack.c.l.b16 %v349
      %v458 = vunpack.c.h.b16 %v349
      %v459 = vunpack.c.l.b16 %v350
      %v460 = vunpack.c.h.b16 %v350
      %v461 = vunpack.c.l.b16 %v351
      %v462 = vunpack.c.h.b16 %v351
      %v463 = vunpack.c.l.b16 %v352
      %v464 = vunpack.c.h.b16 %v352
      %v465 = vunpack.c.l.b16 %v353
      %v466 = vunpack.c.h.b16 %v353
      %v467 = vunpack.c.l.b16 %v354
      %v468 = vunpack.c.h.b16 %v354
      %v469 = vunpack.c.l.b16 %v355
      %v470 = vunpack.c.h.b16 %v355
      %v471 = vunpack.c.l.b16 %v356
      %v472 = vunpack.c.h.b16 %v356
      %v473 = vunpack.c.l.b16 %v357
      %v474 = vunpack.c.h.b16 %v357
      %v475 = vunpack.c.l.b16 %v358
      %v476 = vunpack.c.h.b16 %v358
      %v477 = vpack.c.b16 %v417, %v413
      %v478 = vpack.c.b16 %v418, %v414
      %v479 = vpack.c.b16 %v419, %v415
      %v480 = vpack.c.b16 %v420, %v416
      %v481 = vpack.c.b16 %v425, %v421
      %v482 = vpack.c.b16 %v426, %v422
      %v483 = vpack.c.b16 %v427, %v423
      %v484 = vpack.c.b16 %v428, %v424
      %v485 = vpack.c.b16 %v433, %v429
      %v486 = vpack.c.b16 %v434, %v430
      %v487 = vpack.c.b16 %v435, %v431
      %v488 = vpack.c.b16 %v436, %v432
      %v489 = vpack.c.b16 %v441, %v437
      %v490 = vpack.c.b16 %v442, %v438
      %v491 = vpack.c.b16 %v443, %v439
      %v492 = vpack.c.b16 %v444, %v440
      %v493 = vpack.c.b16 %v449, %v445
      %v494 = vpack.c.b16 %v450, %v446
      %v495 = vpack.c.b16 %v451, %v447
      %v496 = vpack.c.b16 %v452, %v448
      %v497 = vpack.c.b16 %v457, %v453
      %v498 = vpack.c.b16 %v458, %v454
      %v499 = vpack.c.b16 %v459, %v455
      %v500 = vpack.c.b16 %v460, %v456
      %v501 = vpack.c.b16 %v465, %v461
      %v502 = vpack.c.b16 %v466, %v462
      %v503 = vpack.c.b16 %v467, %v463
      %v504 = vpack.c.b16 %v468, %v464
      %v505 = vpack.c.b16 %v473, %v469
      %v506 = vpack.c.b16 %v474, %v470
      %v507 = vpack.c.b16 %v475, %v471
      %v508 = vpack.c.b16 %v476, %v472
      %541 = vmatprep.subr.bf16.mxu0 %v506
      %542 = vmatpush1.bf16.msra.mxu0 %v505
      %543 = vmatprep.subr.bf16.mxu0 %v502
      %544 = vmatpush1.bf16.msra.mxu0 %v501
      %545 = vmatprep.subr.bf16.mxu0 %v498
      %546 = vmatpush1.bf16.msra.mxu0 %v497
      %547 = vmatprep.subr.bf16.mxu0 %v494
      %548 = vmatpush1.bf16.msra.mxu0 %v493
      %549 = vmatprep.subr.bf16.mxu0 %v490
      %550 = vmatpush1.bf16.msra.mxu0 %v489
      %551 = vmatprep.subr.bf16.mxu0 %v486
      %552 = vmatpush1.bf16.msra.mxu0 %v485
      %553 = vmatprep.subr.bf16.mxu0 %v482
      %554 = vmatpush1.bf16.msra.mxu0 %v481
      %555 = vmatprep.subr.bf16.mxu0 %v478
      %556 = vmatpush1.bf16.msra.mxu0 %v477
      %557 = vmatprep.subr.bf16.mxu0 0
      %558 = vmatpush2.bf16.msra.mxu0 0
      %559 = vmatprep.subr.bf16.mxu0 0
      %560 = vmatpush2.bf16.msra.mxu0 0
      %561 = vmatprep.subr.bf16.mxu0 0
      %562 = vmatpush2.bf16.msra.mxu0 0
      %563 = vmatprep.subr.bf16.mxu0 0
      %564 = vmatpush2.bf16.msra.mxu0 0
      %565 = vmatprep.subr.bf16.mxu0 0
      %566 = vmatpush2.bf16.msra.mxu0 0
      %567 = vmatprep.subr.bf16.mxu0 0
      %568 = vmatpush2.bf16.msra.mxu0 0
      %569 = vmatprep.subr.bf16.mxu0 0
      %570 = vmatpush2.bf16.msra.mxu0 0
      %571 = vmatprep.subr.bf16.mxu0 0
      %572 = vmatpush2.bf16.msra.mxu0 0
      %573 = vmatprep.mubr.bf16.mxu0 0
      %574 = vmatmul.mubr.bf16.gmra.mxu0 %v326
      %v575 = vpop.f32.mrf.mxu0
      %v576 = vadd.f32 %v364, %v575
      %v577 = vpop.f32.mrf.mxu0
      %v578 = vadd.f32 %v368, %v577
      %v579 = vpop.f32.mrf.mxu0
      %v580 = vadd.f32 %v364, %v579
      %v581 = vpop.f32.mrf.mxu0
      %v582 = vadd.f32 %v368, %v581
      %583 = vdwg.mxu0
      %584 = vmatprep.subr.bf16.mxu0 %v508
      %585 = vmatpush1.bf16.msra.mxu0 %v507
      %586 = vmatprep.subr.bf16.mxu0 %v504
      %587 = vmatpush1.bf16.msra.mxu0 %v503
      %588 = vmatprep.subr.bf16.mxu0 %v500
      %589 = vmatpush1.bf16.msra.mxu0 %v499
      %590 = vmatprep.subr.bf16.mxu0 %v496
      %591 = vmatpush1.bf16.msra.mxu0 %v495
      %592 = vmatprep.subr.bf16.mxu0 %v492
      %593 = vmatpush1.bf16.msra.mxu0 %v491
      %594 = vmatprep.subr.bf16.mxu0 %v488
      %595 = vmatpush1.bf16.msra.mxu0 %v487
      %596 = vmatprep.subr.bf16.mxu0 %v484
      %597 = vmatpush1.bf16.msra.mxu0 %v483
      %598 = vmatprep.subr.bf16.mxu0 %v480
      %599 = vmatpush1.bf16.msra.mxu0 %v479
      %600 = vmatprep.subr.bf16.mxu0 0
      %601 = vmatpush2.bf16.msra.mxu0 0
      %602 = vmatprep.subr.bf16.mxu0 0
      %603 = vmatpush2.bf16.msra.mxu0 0
      %604 = vmatprep.subr.bf16.mxu0 0
      %605 = vmatpush2.bf16.msra.mxu0 0
      %606 = vmatprep.subr.bf16.mxu0 0
      %607 = vmatpush2.bf16.msra.mxu0 0
      %608 = vmatprep.subr.bf16.mxu0 0
      %609 = vmatpush2.bf16.msra.mxu0 0
      %610 = vmatprep.subr.bf16.mxu0 0
      %611 = vmatpush2.bf16.msra.mxu0 0
      %612 = vmatprep.subr.bf16.mxu0 0
      %613 = vmatpush2.bf16.msra.mxu0 0
      %614 = vmatprep.subr.bf16.mxu0 0
      %615 = vmatpush2.bf16.msra.mxu0 0
      %616 = vmatprep.mubr.bf16.mxu0 0
      %617 = vmatmul.mubr.bf16.gmra.mxu0 %v326
      %v618 = vpop.f32.mrf.mxu0
      %v619 = vadd.f32 %v372, %v618
      %v620 = vpop.f32.mrf.mxu0
      %v621 = vadd.f32 %v376, %v620
      %v622 = vpop.f32.mrf.mxu0
      %v623 = vadd.f32 %v372, %v622
      %v624 = vpop.f32.mrf.mxu0
      %v625 = vadd.f32 %v376, %v624
      %626 = vdwg.mxu0
      %v627 = vmul.f32 %v576, %v576
      %v628 = vmul.f32 %v578, %v578
      %v629 = vmul.f32 %v619, %v619
      %v630 = vmul.f32 %v621, %v621
      %v631 = vmul.f32 %v580, %v580
      %v632 = vmul.f32 %v582, %v582
      %v633 = vmul.f32 %v623, %v623
      %v634 = vmul.f32 %v625, %v625
      %v635 = vmul.f32 %v576, %v627
      %v636 = vmul.f32 %v578, %v628
      %v637 = vmul.f32 %v619, %v629
      %v638 = vmul.f32 %v621, %v630
      %v639 = vmul.f32 %v580, %v631
      %v640 = vmul.f32 %v582, %v632
      %v641 = vmul.f32 %v623, %v633
      %v642 = vmul.f32 %v625, %v634
      %v643 = vmul.f32 %v635, 0.044715
      %v644 = vmul.f32 %v636, 0.044715
      %v645 = vmul.f32 %v637, 0.044715
      %v646 = vmul.f32 %v638, 0.044715
      %v647 = vmul.f32 %v639, 0.044715
      %v648 = vmul.f32 %v640, 0.044715
      %v649 = vmul.f32 %v641, 0.044715
      %v650 = vmul.f32 %v642, 0.044715
      %v651 = vadd.f32 %v576, %v643
      %v652 = vadd.f32 %v578, %v644
      %v653 = vadd.f32 %v619, %v645
      %v654 = vadd.f32 %v621, %v646
      %v655 = vadd.f32 %v580, %v647
      %v656 = vadd.f32 %v582, %v648
      %v657 = vadd.f32 %v623, %v649
      %v658 = vadd.f32 %v625, %v650
      %v659 = vmul.f32 %v651, 0.7978846
      %v660 = vmul.f32 %v652, 0.7978846
      %v661 = vmul.f32 %v653, 0.7978846
      %v662 = vmul.f32 %v654, 0.7978846
      %v663 = vmul.f32 %v655, 0.7978846
      %v664 = vmul.f32 %v656, 0.7978846
      %v665 = vmul.f32 %v657, 0.7978846
      %v666 = vmul.f32 %v658, 0.7978846
      %v667 = vtanh.pop %v659
      %v668 = vtanh.pop %v660
      %v669 = vtanh.pop %v661
      %v670 = vtanh.pop %v662
      %v671 = vtanh.pop %v663
      %v672 = vtanh.pop %v664
      %v673 = vtanh.pop %v665
      %v674 = vtanh.pop %v666
      %v675 = vadd.f32 %v667, 1.0
      %v676 = vadd.f32 %v668, 1.0
      %v677 = vadd.f32 %v669, 1.0
      %v678 = vadd.f32 %v670, 1.0
      %v679 = vadd.f32 %v671, 1.0
      %v680 = vadd.f32 %v672, 1.0
      %v681 = vadd.f32 %v673, 1.0
      %v682 = vadd.f32 %v674, 1.0
      %v683 = vmul.f32 %v675, 0.5
      %v684 = vmul.f32 %v676, 0.5
      %v685 = vmul.f32 %v677, 0.5
      %v686 = vmul.f32 %v678, 0.5
      %v687 = vmul.f32 %v679, 0.5
      %v688 = vmul.f32 %v680, 0.5
      %v689 = vmul.f32 %v681, 0.5
      %v690 = vmul.f32 %v682, 0.5
      %v691 = vmul.f32 %v576, %v683
      %v692 = vmul.f32 %v578, %v684
      %v693 = vmul.f32 %v619, %v685
      %v694 = vmul.f32 %v621, %v686
      %v695 = vmul.f32 %v580, %v687
      %v696 = vmul.f32 %v582, %v688
      %v697 = vmul.f32 %v623, %v689
      %v698 = vmul.f32 %v625, %v690
      %v699 = vpack.c.bf16 %v695, %v691
      %v700 = vpack.c.bf16 %v696, %v692
      %v701 = vpack.c.bf16 %v697, %v693
      %v702 = vpack.c.bf16 %v698, %v694
      %v703 = vld [vmem:[%s5] sm:$0xf]
      %v704 = vld [vmem:[%s5 + $0x4] sm:$0xf]
      %v705 = vld [vmem:[%s5 + $0x8] sm:$0xf]
      %v706 = vld [vmem:[%s5 + $0xc] sm:$0xf]
      %v707 = vld [vmem:[%s5 + $0x10] sm:$0xf]
      %v708 = vld [vmem:[%s5 + $0x14] sm:$0xf]
      %v709 = vld [vmem:[%s5 + $0x18] sm:$0xf]
      %v710 = vld [vmem:[%s5 + $0x1c] sm:$0xf]
      %v711 = vld [vmem:[%s5 + $0x20] sm:$0xf]
      %v712 = vld [vmem:[%s5 + $0x24] sm:$0xf]
      %v713 = vld [vmem:[%s5 + $0x28] sm:$0xf]
      %v714 = vld [vmem:[%s5 + $0x2c] sm:$0xf]
      %v715 = vld [vmem:[%s5 + $0x30] sm:$0xf]
      %v716 = vld [vmem:[%s5 + $0x34] sm:$0xf]
      %v717 = vld [vmem:[%s5 + $0x38] sm:$0xf]
      %v718 = vld [vmem:[%s5 + $0x3c] sm:$0xf]
      %v719 = vld [vmem:[%s5 + $0x40] sm:$0xf]
      %v720 = vld [vmem:[%s5 + $0x44] sm:$0xf]
      %v721 = vld [vmem:[%s5 + $0x48] sm:$0xf]
      %v722 = vld [vmem:[%s5 + $0x4c] sm:$0xf]
      %v723 = vld [vmem:[%s5 + $0x50] sm:$0xf]
      %v724 = vld [vmem:[%s5 + $0x54] sm:$0xf]
      %v725 = vld [vmem:[%s5 + $0x58] sm:$0xf]
      %v726 = vld [vmem:[%s5 + $0x5c] sm:$0xf]
      %v727 = vld [vmem:[%s5 + $0x60] sm:$0xf]
      %v728 = vld [vmem:[%s5 + $0x64] sm:$0xf]
      %v729 = vld [vmem:[%s5 + $0x68] sm:$0xf]
      %v730 = vld [vmem:[%s5 + $0x6c] sm:$0xf]
      %v731 = vld [vmem:[%s5 + $0x70] sm:$0xf]
      %v732 = vld [vmem:[%s5 + $0x74] sm:$0xf]
      %v733 = vld [vmem:[%s5 + $0x78] sm:$0xf]
      %v734 = vld [vmem:[%s5 + $0x7c] sm:$0xf]
      %v735 = vld [vmem:[%s5 + $0x80] sm:$0xf]
      %v736 = vld [vmem:[%s5 + $0x84] sm:$0xf]
      %v737 = vld [vmem:[%s5 + $0x88] sm:$0xf]
      %v738 = vld [vmem:[%s5 + $0x8c] sm:$0xf]
      %v739 = vld [vmem:[%s5 + $0x90] sm:$0xf]
      %v740 = vld [vmem:[%s5 + $0x94] sm:$0xf]
      %v741 = vld [vmem:[%s5 + $0x98] sm:$0xf]
      %v742 = vld [vmem:[%s5 + $0x9c] sm:$0xf]
      %v743 = vld [vmem:[%s5 + $0xa0] sm:$0xf]
      %v744 = vld [vmem:[%s5 + $0xa4] sm:$0xf]
      %v745 = vld [vmem:[%s5 + $0xa8] sm:$0xf]
      %v746 = vld [vmem:[%s5 + $0xac] sm:$0xf]
      %v747 = vld [vmem:[%s5 + $0xb0] sm:$0xf]
      %v748 = vld [vmem:[%s5 + $0xb4] sm:$0xf]
      %v749 = vld [vmem:[%s5 + $0xb8] sm:$0xf]
      %v750 = vld [vmem:[%s5 + $0xbc] sm:$0xf]
      %v751 = vld [vmem:[%s5 + $0xc0] sm:$0xf]
      %v752 = vld [vmem:[%s5 + $0xc4] sm:$0xf]
      %v753 = vld [vmem:[%s5 + $0xc8] sm:$0xf]
      %v754 = vld [vmem:[%s5 + $0xcc] sm:$0xf]
      %v755 = vld [vmem:[%s5 + $0xd0] sm:$0xf]
      %v756 = vld [vmem:[%s5 + $0xd4] sm:$0xf]
      %v757 = vld [vmem:[%s5 + $0xd8] sm:$0xf]
      %v758 = vld [vmem:[%s5 + $0xdc] sm:$0xf]
      %v759 = vld [vmem:[%s5 + $0xe0] sm:$0xf]
      %v760 = vld [vmem:[%s5 + $0xe4] sm:$0xf]
      %v761 = vld [vmem:[%s5 + $0xe8] sm:$0xf]
      %v762 = vld [vmem:[%s5 + $0xec] sm:$0xf]
      %v763 = vld [vmem:[%s5 + $0xf0] sm:$0xf]
      %v764 = vld [vmem:[%s5 + $0xf4] sm:$0xf]
      %v765 = vld [vmem:[%s5 + $0xf8] sm:$0xf]
      %v766 = vld [vmem:[%s5 + $0xfc] sm:$0xf]
      %v767 = vld [vmem:[%s6] sm:$0x1]
      %v769 = vlaneseq
      %v770 = vshrl.u32 %v769, 7
      %v771 = vsub.s32 0, %v770
      %v772 = vrot.slane %v767, %v771
      %v838 = vunpack.c.l.b16 %v703
      %v839 = vunpack.c.l.b16 %v704
      %v840 = vunpack.c.l.b16 %v705
      %v841 = vunpack.c.l.b16 %v706
      %v842 = vunpack.c.l.b16 %v707
      %v843 = vunpack.c.l.b16 %v708
      %v844 = vunpack.c.l.b16 %v709
      %v845 = vunpack.c.l.b16 %v710
      %v846 = vunpack.c.l.b16 %v711
      %v847 = vunpack.c.l.b16 %v712
      %v848 = vunpack.c.l.b16 %v713
      %v849 = vunpack.c.l.b16 %v714
      %v850 = vunpack.c.l.b16 %v715
      %v851 = vunpack.c.l.b16 %v716
      %v852 = vunpack.c.l.b16 %v717
      %v853 = vunpack.c.l.b16 %v718
      %v854 = vunpack.c.l.b16 %v719
      %v855 = vunpack.c.l.b16 %v720
      %v856 = vunpack.c.l.b16 %v721
      %v857 = vunpack.c.l.b16 %v722
      %v858 = vunpack.c.l.b16 %v723
      %v859 = vunpack.c.l.b16 %v724
      %v860 = vunpack.c.l.b16 %v725
      %v861 = vunpack.c.l.b16 %v726
      %v862 = vunpack.c.l.b16 %v727
      %v863 = vunpack.c.l.b16 %v728
      %v864 = vunpack.c.l.b16 %v729
      %v865 = vunpack.c.l.b16 %v730
      %v866 = vunpack.c.l.b16 %v731
      %v867 = vunpack.c.l.b16 %v732
      %v868 = vunpack.c.l.b16 %v733
      %v869 = vunpack.c.l.b16 %v734
      %v870 = vunpack.c.l.b16 %v735
      %v871 = vunpack.c.l.b16 %v736
      %v872 = vunpack.c.l.b16 %v737
      %v873 = vunpack.c.l.b16 %v738
      %v874 = vunpack.c.l.b16 %v739
      %v875 = vunpack.c.l.b16 %v740
      %v876 = vunpack.c.l.b16 %v741
      %v877 = vunpack.c.l.b16 %v742
      %v878 = vunpack.c.l.b16 %v743
      %v879 = vunpack.c.l.b16 %v744
      %v880 = vunpack.c.l.b16 %v745
      %v881 = vunpack.c.l.b16 %v746
      %v882 = vunpack.c.l.b16 %v747
      %v883 = vunpack.c.l.b16 %v748
      %v884 = vunpack.c.l.b16 %v749
      %v885 = vunpack.c.l.b16 %v750
      %v886 = vunpack.c.l.b16 %v751
      %v887 = vunpack.c.l.b16 %v752
      %v888 = vunpack.c.l.b16 %v753
      %v889 = vunpack.c.l.b16 %v754
      %v890 = vunpack.c.l.b16 %v755
      %v891 = vunpack.c.l.b16 %v756
      %v892 = vunpack.c.l.b16 %v757
      %v893 = vunpack.c.l.b16 %v758
      %v894 = vunpack.c.l.b16 %v759
      %v895 = vunpack.c.l.b16 %v760
      %v896 = vunpack.c.l.b16 %v761
      %v897 = vunpack.c.l.b16 %v762
      %v898 = vunpack.c.l.b16 %v763
      %v899 = vunpack.c.l.b16 %v764
      %v900 = vunpack.c.l.b16 %v765
      %v901 = vunpack.c.l.b16 %v766
      %v902 = vpack.c.b16 %v839, %v838
      %v903 = vpack.c.b16 %v841, %v840
      %v904 = vpack.c.b16 %v843, %v842
      %v905 = vpack.c.b16 %v845, %v844
      %v906 = vpack.c.b16 %v847, %v846
      %v907 = vpack.c.b16 %v849, %v848
      %v908 = vpack.c.b16 %v851, %v850
      %v909 = vpack.c.b16 %v853, %v852
      %v910 = vpack.c.b16 %v855, %v854
      %v911 = vpack.c.b16 %v857, %v856
      %v912 = vpack.c.b16 %v859, %v858
      %v913 = vpack.c.b16 %v861, %v860
      %v914 = vpack.c.b16 %v863, %v862
      %v915 = vpack.c.b16 %v865, %v864
      %v916 = vpack.c.b16 %v867, %v866
      %v917 = vpack.c.b16 %v869, %v868
      %v918 = vpack.c.b16 %v871, %v870
      %v919 = vpack.c.b16 %v873, %v872
      %v920 = vpack.c.b16 %v875, %v874
      %v921 = vpack.c.b16 %v877, %v876
      %v922 = vpack.c.b16 %v879, %v878
      %v923 = vpack.c.b16 %v881, %v880
      %v924 = vpack.c.b16 %v883, %v882
      %v925 = vpack.c.b16 %v885, %v884
      %v926 = vpack.c.b16 %v887, %v886
      %v927 = vpack.c.b16 %v889, %v888
      %v928 = vpack.c.b16 %v891, %v890
      %v929 = vpack.c.b16 %v893, %v892
      %v930 = vpack.c.b16 %v895, %v894
      %v931 = vpack.c.b16 %v897, %v896
      %v932 = vpack.c.b16 %v899, %v898
      %v933 = vpack.c.b16 %v901, %v900
      %966 = vmatprep.subr.bf16.mxu0 0
      %967 = vmatpush1.bf16.msra.mxu0 %v909
      %968 = vmatprep.subr.bf16.mxu0 0
      %969 = vmatpush1.bf16.msra.mxu0 %v908
      %970 = vmatprep.subr.bf16.mxu0 0
      %971 = vmatpush1.bf16.msra.mxu0 %v907
      %972 = vmatprep.subr.bf16.mxu0 0
      %973 = vmatpush1.bf16.msra.mxu0 %v906
      %974 = vmatprep.subr.bf16.mxu0 0
      %975 = vmatpush1.bf16.msra.mxu0 %v905
      %976 = vmatprep.subr.bf16.mxu0 0
      %977 = vmatpush1.bf16.msra.mxu0 %v904
      %978 = vmatprep.subr.bf16.mxu0 0
      %979 = vmatpush1.bf16.msra.mxu0 %v903
      %980 = vmatprep.subr.bf16.mxu0 0
      %981 = vmatpush1.bf16.msra.mxu0 %v902
      %982 = vmatprep.subr.bf16.mxu0 0
      %983 = vmatpush2.bf16.msra.mxu0 %v917
      %984 = vmatprep.subr.bf16.mxu0 0
      %985 = vmatpush2.bf16.msra.mxu0 %v916
      %986 = vmatprep.subr.bf16.mxu0 0
      %987 = vmatpush2.bf16.msra.mxu0 %v915
      %988 = vmatprep.subr.bf16.mxu0 0
      %989 = vmatpush2.bf16.msra.mxu0 %v914
      %990 = vmatprep.subr.bf16.mxu0 0
      %991 = vmatpush2.bf16.msra.mxu0 %v913
      %992 = vmatprep.subr.bf16.mxu0 0
      %993 = vmatpush2.bf16.msra.mxu0 %v912
      %994 = vmatprep.subr.bf16.mxu0 0
      %995 = vmatpush2.bf16.msra.mxu0 %v911
      %996 = vmatprep.subr.bf16.mxu0 0
      %997 = vmatpush2.bf16.msra.mxu0 %v910
      %998 = vmatprep.mubr.bf16.mxu0 %v700
      %999 = vmatmul.mubr.bf16.gmra.mxu0 %v699
      %v1000 = vpop.f32.mrf.mxu0
      %v1001 = vadd.f32 %v772, %v1000
      %v1002 = vpop.f32.mrf.mxu0
      %v1003 = vpop.f32.mrf.mxu0
      %v1004 = vadd.f32 %v772, %v1003
      %v1005 = vpop.f32.mrf.mxu0
      %1006 = vdwg.mxu0
      %1007 = vmatprep.subr.bf16.mxu0 0
      %1008 = vmatpush1.bf16.msra.mxu0 %v925
      %1009 = vmatprep.subr.bf16.mxu0 0
      %1010 = vmatpush1.bf16.msra.mxu0 %v924
      %1011 = vmatprep.subr.bf16.mxu0 0
      %1012 = vmatpush1.bf16.msra.mxu0 %v923
      %1013 = vmatprep.subr.bf16.mxu0 0
      %1014 = vmatpush1.bf16.msra.mxu0 %v922
      %1015 = vmatprep.subr.bf16.mxu0 0
      %1016 = vmatpush1.bf16.msra.mxu0 %v921
      %1017 = vmatprep.subr.bf16.mxu0 0
      %1018 = vmatpush1.bf16.msra.mxu0 %v920
      %1019 = vmatprep.subr.bf16.mxu0 0
      %1020 = vmatpush1.bf16.msra.mxu0 %v919
      %1021 = vmatprep.subr.bf16.mxu0 0
      %1022 = vmatpush1.bf16.msra.mxu0 %v918
      %1023 = vmatprep.subr.bf16.mxu0 0
      %1024 = vmatpush2.bf16.msra.mxu0 %v933
      %1025 = vmatprep.subr.bf16.mxu0 0
      %1026 = vmatpush2.bf16.msra.mxu0 %v932
      %1027 = vmatprep.subr.bf16.mxu0 0
      %1028 = vmatpush2.bf16.msra.mxu0 %v931
      %1029 = vmatprep.subr.bf16.mxu0 0
      %1030 = vmatpush2.bf16.msra.mxu0 %v930
      %1031 = vmatprep.subr.bf16.mxu0 0
      %1032 = vmatpush2.bf16.msra.mxu0 %v929
      %1033 = vmatprep.subr.bf16.mxu0 0
      %1034 = vmatpush2.bf16.msra.mxu0 %v928
      %1035 = vmatprep.subr.bf16.mxu0 0
      %1036 = vmatpush2.bf16.msra.mxu0 %v927
      %1037 = vmatprep.subr.bf16.mxu0 0
      %1038 = vmatpush2.bf16.msra.mxu0 %v926
      %1039 = vmatprep.mubr.bf16.mxu0 %v702
      %1040 = vmatmul.mubr.bf16.gmra.mxu0 %v701
      %v1041 = vpop.f32.mrf.mxu0
      %v1042 = vadd.f32 %v1001, %v1041
      %v1043 = vpop.f32.mrf.mxu0
      %v1044 = vpop.f32.mrf.mxu0
      %v1045 = vadd.f32 %v1004, %v1044
      %v1046 = vpop.f32.mrf.mxu0
      %1047 = vdwg.mxu0
      %v1048 = vadd.f32 %v1042, %v280
      %v1049 = vadd.f32 %v1045, %v281
      %1050 = vst [vmem:[%s278] sm:$0xff] %v1048
      %1051 = vst [vmem:[%s278 + $0x8] sm:$0x1] %v1049
      %p1052 = scmp.lt.s32.totalorder %s18, 1
      %s1053 = scalar_select %p1052, %s18, 1
      %s1054 = smul.addr %s1053, 2
      %s1055 = smul.addr %s1054, 8
      %s1056 = scalar_lea.vmem %s7, %s1055
      // Predicated region
      $region49: #{deepfake_timesformer_forward.11} parent=47 // pred_check
        %p1057 = pneg %p188
      $region50: #{deepfake_timesformer_forward.11} parent=47 // pred_check_branch
        %1059 = sbr.rel (%p1057) target = $region52
      $region51: #{deepfake_timesformer_forward.11} parent=47 // pred_region
        _
      $region52: #{deepfake_timesformer_forward.11} parent=47 // pred_fallthru
        _
    $region48: #{deepfake_timesformer_forward.11} parent=5 // pred_fallthru
      _
    %p1060 = scmp.le.s32.totalorder 2, %s13
    // Predicated region
    $region53: #{deepfake_timesformer_forward.11} parent=5 // pred_check
      %p1061 = pneg %p1060
    $region54: #{deepfake_timesformer_forward.11} parent=5 // pred_check_branch
      %1063 = sbr.rel (%p1061) target = $region56
    $region55: #{deepfake_timesformer_forward.11} parent=5 // pred_region
      %s1064 = ssub.s32 %s13, 2
      // Predicated region
      $region57: #{deepfake_timesformer_forward.11} parent=55 // pred_check
        %p1065 = pneg %p194
      $region58: #{deepfake_timesformer_forward.11} parent=55 // pred_check_branch
        %1067 = sbr.rel (%p1065) target = $region60
      $region59: #{deepfake_timesformer_forward.11} parent=55 // pred_region
        %p1068 = scmp.lt.s32.totalorder %s19, 1
        %s1069 = scalar_select %p1068, %s19, 1
        %s1070 = smul.addr %s1069, 2
        %s1071 = smul.addr %s1070, 8
        %s1072 = scalar_lea.vmem %s7, %s1071
      $region60: #{deepfake_timesformer_forward.11} parent=55 // pred_fallthru
        _
    $region56: #{deepfake_timesformer_forward.11} parent=5 // pred_fallthru
      _
  $region6: #{deepfake_timesformer_forward.11} parent=0 // loop_footer
    %s17 = sadd.s32 1, %s13
  $region7: #{deepfake_timesformer_forward.11} parent=0 // loop_footer_branch
    %12 = sbr.rel target = $region3
  $region8: #{deepfake_timesformer_forward.11} parent=0 // loop_exit
    _

// kernel: deepfake_timesformer_forward.9
$region0: #{deepfake_timesformer_forward.9}
  #allocation0 [shape = 'u32[]', space=smem, size = 0x4, offset = 0x4, fixed_abs, tag = 'smem constant byte address 0x4 - core index']
  #allocation1 [shape = 'u32[144,128]{1,0:T(1,128)}', space=vmem, size = 0x12000, scoped, tag = 'internal scratch']
  %s0 = inlined_call_operand.vmem [shape: f32[8,2,128], index: 0, kind: input, shape index: {}]
  %s1 = inlined_call_operand.vmem [shape: f32[1,128], index: 1, kind: input, shape index: {}]
  %s2 = inlined_call_operand.vmem [shape: f32[1,128], index: 2, kind: input, shape index: {}]
  %s3 = inlined_call_operand.vmem [shape: bf16[128,384], index: 3, kind: input, shape index: {}]
  %s4 = inlined_call_operand.vmem [shape: f32[1,384], index: 4, kind: input, shape index: {}]
  %s5 = inlined_call_operand.vmem [shape: bf16[128,128], index: 5, kind: input, shape index: {}]
  %s6 = inlined_call_operand.vmem [shape: f32[1,128], index: 6, kind: input, shape index: {}]
  %s7 = inlined_call_operand.vmem [shape: bf16[128,128], index: 7, kind: input, shape index: {}]
  %s8 = inlined_call_operand.vmem [shape: f32[1,128], index: 8, kind: input, shape index: {}]
  %s9 = inlined_call_operand.vmem [shape: f32[8,2,128], index: 9, kind: output, shape index: {}]
  %s10 = sld [smem:[#allocation0]]
  $region69: #{deepfake_timesformer_forward.9} parent=0
    _
  %s12 = ssub.s32 1, %s10
  %s13 = scalar_select 0, %s12, %s10
  loop: start=0, step=1, limit=4
  $region2: #{deepfake_timesformer_forward.9} parent=0 // loop_pre_header
    _
  $region3: #{deepfake_timesformer_forward.9} parent=0 // loop_header
    %s15 = sphi 0, %s19
    %p16 = scmp.ge.s32.totalorder %s15, 4
    %s25 = sphi 0, %s27
    %s28 = sphi 0, %s25
    %s29 = sphi 0, %s28
    %s45 = sphi 0, %s29
    %s49 = sphi 0, %s49
    %s51 = sphi 0, %s49
    %s52 = sphi 0, %s51
    %s66 = sphi 0, %s52
    %s70 = sphi 0, %s70
    %s72 = sphi 0, %s70
    %s73 = sphi 0, %s72
    %s87 = sphi 0, %s73
    %s91 = sphi 0, %s91
    %s93 = sphi 0, %s91
    %s94 = sphi 0, %s93
    %s108 = sphi 0, %s94
    %s112 = sphi 0, %s112
    %s114 = sphi 0, %s112
    %s115 = sphi 0, %s114
    %s129 = sphi 0, %s115
    %s133 = sphi 0, %s133
    %s135 = sphi 0, %s133
    %s136 = sphi 0, %s135
    %s150 = sphi 0, %s136
    %s154 = sphi 0, %s154
    %s156 = sphi 0, %s154
    %s157 = sphi 0, %s156
    %s171 = sphi 0, %s157
    %s175 = sphi 0, %s175
    %s177 = sphi 0, %s175
    %s178 = sphi 0, %s177
    %s192 = sphi 0, %s178
    %s196 = sphi 0, %s196
    %s198 = sphi 0, %s196
    %s199 = sphi 0, %s198
    %s213 = sphi 0, %s199
    %s219 = sphi 0, %s221
    %s222 = sphi 0, %s219
    %s223 = sphi 0, %s222
    %s239 = sphi 0, %s223
  $region4: #{deepfake_timesformer_forward.9} parent=0 // loop_header_branch
    %18 = sbr.rel (%p16) target = $region8
  $region5: #{deepfake_timesformer_forward.9} parent=0 // loop_body
    %s20 = ssub.s32 %s15, 1
    %s21 = ssub.s32 %s15, 2
    %s22 = sadd.s32 %s15, 1
    %s23 = ssub.s32 %s15, %s22
    %p24 = scmp.eq.s32.totalorder %s23, 0
    %s26 = sadd.s32 %s25, 1
    %s27 = scalar_select %p24, %s25, %s26
    %p30 = pneg %p24
    %p31 = scmp.eq.s32.totalorder %s15, 1
    %p32 = por %p30, %p31
    %p33 = scmp.ne.s32.totalorder %s25, %s28
    %p34 = scmp.eq.s32.totalorder %s15, 0
    %p35 = por %p33, %p34
    %p36 = scmp.ne.s32.totalorder %s25, %s28
    %p37 = scmp.eq.s32.totalorder %s20, 1
    %p38 = por %p36, %p37
    %p39 = scmp.ne.s32.totalorder %s28, %s29
    %p40 = scmp.eq.s32.totalorder %s20, 0
    %p41 = por %p39, %p40
    %p42 = scmp.ne.s32.totalorder %s28, %s29
    %p43 = scmp.eq.s32.totalorder %s21, 1
    %p44 = por %p42, %p43
    %p46 = scmp.ne.s32.totalorder %s29, %s45
    %p47 = scmp.eq.s32.totalorder %s21, 0
    %p48 = por %p46, %p47
    %s50 = sadd.s32 %s49, 1
    %p53 = scmp.eq.s32.totalorder %s15, 1
    %p54 = scmp.ne.s32.totalorder %s49, %s51
    %p55 = scmp.eq.s32.totalorder %s15, 0
    %p56 = por %p54, %p55
    %p57 = scmp.ne.s32.totalorder %s49, %s51
    %p58 = scmp.eq.s32.totalorder %s20, 1
    %p59 = por %p57, %p58
    %p60 = scmp.ne.s32.totalorder %s51, %s52
    %p61 = scmp.eq.s32.totalorder %s20, 0
    %p62 = por %p60, %p61
    %p63 = scmp.ne.s32.totalorder %s51, %s52
    %p64 = scmp.eq.s32.totalorder %s21, 1
    %p65 = por %p63, %p64
    %p67 = scmp.ne.s32.totalorder %s52, %s66
    %p68 = scmp.eq.s32.totalorder %s21, 0
    %p69 = por %p67, %p68
    %s71 = sadd.s32 %s70, 1
    %p74 = scmp.eq.s32.totalorder %s15, 1
    %p75 = scmp.ne.s32.totalorder %s70, %s72
    %p76 = scmp.eq.s32.totalorder %s15, 0
    %p77 = por %p75, %p76
    %p78 = scmp.ne.s32.totalorder %s70, %s72
    %p79 = scmp.eq.s32.totalorder %s20, 1
    %p80 = por %p78, %p79
    %p81 = scmp.ne.s32.totalorder %s72, %s73
    %p82 = scmp.eq.s32.totalorder %s20, 0
    %p83 = por %p81, %p82
    %p84 = scmp.ne.s32.totalorder %s72, %s73
    %p85 = scmp.eq.s32.totalorder %s21, 1
    %p86 = por %p84, %p85
    %p88 = scmp.ne.s32.totalorder %s73, %s87
    %p89 = scmp.eq.s32.totalorder %s21, 0
    %p90 = por %p88, %p89
    %s92 = sadd.s32 %s91, 1
    %p95 = scmp.eq.s32.totalorder %s15, 1
    %p96 = scmp.ne.s32.totalorder %s91, %s93
    %p97 = scmp.eq.s32.totalorder %s15, 0
    %p98 = por %p96, %p97
    %p99 = scmp.ne.s32.totalorder %s91, %s93
    %p100 = scmp.eq.s32.totalorder %s20, 1
    %p101 = por %p99, %p100
    %p102 = scmp.ne.s32.totalorder %s93, %s94
    %p103 = scmp.eq.s32.totalorder %s20, 0
    %p104 = por %p102, %p103
    %p105 = scmp.ne.s32.totalorder %s93, %s94
    %p106 = scmp.eq.s32.totalorder %s21, 1
    %p107 = por %p105, %p106
    %p109 = scmp.ne.s32.totalorder %s94, %s108
    %p110 = scmp.eq.s32.totalorder %s21, 0
    %p111 = por %p109, %p110
    %s113 = sadd.s32 %s112, 1
    %p116 = scmp.eq.s32.totalorder %s15, 1
    %p117 = scmp.ne.s32.totalorder %s112, %s114
    %p118 = scmp.eq.s32.totalorder %s15, 0
    %p119 = por %p117, %p118
    %p120 = scmp.ne.s32.totalorder %s112, %s114
    %p121 = scmp.eq.s32.totalorder %s20, 1
    %p122 = por %p120, %p121
    %p123 = scmp.ne.s32.totalorder %s114, %s115
    %p124 = scmp.eq.s32.totalorder %s20, 0
    %p125 = por %p123, %p124
    %p126 = scmp.ne.s32.totalorder %s114, %s115
    %p127 = scmp.eq.s32.totalorder %s21, 1
    %p128 = por %p126, %p127
    %p130 = scmp.ne.s32.totalorder %s115, %s129
    %p131 = scmp.eq.s32.totalorder %s21, 0
    %p132 = por %p130, %p131
    %s134 = sadd.s32 %s133, 1
    %p137 = scmp.eq.s32.totalorder %s15, 1
    %p138 = scmp.ne.s32.totalorder %s133, %s135
    %p139 = scmp.eq.s32.totalorder %s15, 0
    %p140 = por %p138, %p139
    %p141 = scmp.ne.s32.totalorder %s133, %s135
    %p142 = scmp.eq.s32.totalorder %s20, 1
    %p143 = por %p141, %p142
    %p144 = scmp.ne.s32.totalorder %s135, %s136
    %p145 = scmp.eq.s32.totalorder %s20, 0
    %p146 = por %p144, %p145
    %p147 = scmp.ne.s32.totalorder %s135, %s136
    %p148 = scmp.eq.s32.totalorder %s21, 1
    %p149 = por %p147, %p148
    %p151 = scmp.ne.s32.totalorder %s136, %s150
    %p152 = scmp.eq.s32.totalorder %s21, 0
    %p153 = por %p151, %p152
    %s155 = sadd.s32 %s154, 1
    %p158 = scmp.eq.s32.totalorder %s15, 1
    %p159 = scmp.ne.s32.totalorder %s154, %s156
    %p160 = scmp.eq.s32.totalorder %s15, 0
    %p161 = por %p159, %p160
    %p162 = scmp.ne.s32.totalorder %s154, %s156
    %p163 = scmp.eq.s32.totalorder %s20, 1
    %p164 = por %p162, %p163
    %p165 = scmp.ne.s32.totalorder %s156, %s157
    %p166 = scmp.eq.s32.totalorder %s20, 0
    %p167 = por %p165, %p166
    %p168 = scmp.ne.s32.totalorder %s156, %s157
    %p169 = scmp.eq.s32.totalorder %s21, 1
    %p170 = por %p168, %p169
    %p172 = scmp.ne.s32.totalorder %s157, %s171
    %p173 = scmp.eq.s32.totalorder %s21, 0
    %p174 = por %p172, %p173
    %s176 = sadd.s32 %s175, 1
    %p179 = scmp.eq.s32.totalorder %s15, 1
    %p180 = scmp.ne.s32.totalorder %s175, %s177
    %p181 = scmp.eq.s32.totalorder %s15, 0
    %p182 = por %p180, %p181
    %p183 = scmp.ne.s32.totalorder %s175, %s177
    %p184 = scmp.eq.s32.totalorder %s20, 1
    %p185 = por %p183, %p184
    %p186 = scmp.ne.s32.totalorder %s177, %s178
    %p187 = scmp.eq.s32.totalorder %s20, 0
    %p188 = por %p186, %p187
    %p189 = scmp.ne.s32.totalorder %s177, %s178
    %p190 = scmp.eq.s32.totalorder %s21, 1
    %p191 = por %p189, %p190
    %p193 = scmp.ne.s32.totalorder %s178, %s192
    %p194 = scmp.eq.s32.totalorder %s21, 0
    %p195 = por %p193, %p194
    %s197 = sadd.s32 %s196, 1
    %p200 = scmp.eq.s32.totalorder %s15, 1
    %p201 = scmp.ne.s32.totalorder %s196, %s198
    %p202 = scmp.eq.s32.totalorder %s15, 0
    %p203 = por %p201, %p202
    %p204 = scmp.ne.s32.totalorder %s196, %s198
    %p205 = scmp.eq.s32.totalorder %s20, 1
    %p206 = por %p204, %p205
    %p207 = scmp.ne.s32.totalorder %s198, %s199
    %p208 = scmp.eq.s32.totalorder %s20, 0
    %p209 = por %p207, %p208
    %p210 = scmp.ne.s32.totalorder %s198, %s199
    %p211 = scmp.eq.s32.totalorder %s21, 1
    %p212 = por %p210, %p211
    %p214 = scmp.ne.s32.totalorder %s199, %s213
    %p215 = scmp.eq.s32.totalorder %s21, 0
    %p216 = por %p214, %p215
    %s217 = ssub.s32 %s15, %s22
    %p218 = scmp.eq.s32.totalorder %s217, 0
    %s220 = sadd.s32 %s219, 1
    %s221 = scalar_select %p218, %s219, %s220
    %p224 = pneg %p218
    %p225 = scmp.eq.s32.totalorder %s15, 1
    %p226 = por %p224, %p225
    %p227 = scmp.ne.s32.totalorder %s219, %s222
    %p228 = scmp.eq.s32.totalorder %s15, 0
    %p229 = por %p227, %p228
    %p230 = scmp.ne.s32.totalorder %s219, %s222
    %p231 = scmp.eq.s32.totalorder %s20, 1
    %p232 = por %p230, %p231
    %p233 = scmp.ne.s32.totalorder %s222, %s223
    %p234 = scmp.eq.s32.totalorder %s20, 0
    %p235 = por %p233, %p234
    %p236 = scmp.ne.s32.totalorder %s222, %s223
    %p237 = scmp.eq.s32.totalorder %s21, 1
    %p238 = por %p236, %p237
    %p240 = scmp.ne.s32.totalorder %s223, %s239
    %p241 = scmp.eq.s32.totalorder %s21, 0
    %p242 = por %p240, %p241
    %p243 = scmp.le.s32.totalorder 1, %s15
    %p244 = scmp.lt.s32.totalorder %s15, 3
    %p245 = pnand %p243, %p244
    %p246 = pneg %p245
    // Predicated region
    $region9: #{deepfake_timesformer_forward.9} parent=5 // pred_check
      _
    $region10: #{deepfake_timesformer_forward.9} parent=5 // pred_check_branch
      %248 = sbr.rel (%p245) target = $region12
    $region11: #{deepfake_timesformer_forward.9} parent=5 // pred_region
      %s249 = ssub.s32 %s15, 1
      // Predicated region
      $region13: #{deepfake_timesformer_forward.9} parent=11 // pred_check
        %p250 = pneg %p62
      $region14: #{deepfake_timesformer_forward.9} parent=11 // pred_check_branch
        %252 = sbr.rel (%p250) target = $region16
      $region15: #{deepfake_timesformer_forward.9} parent=11 // pred_region
        _
      $region16: #{deepfake_timesformer_forward.9} parent=11 // pred_fallthru
        _
      // Predicated region
      $region17: #{deepfake_timesformer_forward.9} parent=11 // pred_check
        %p253 = pneg %p83
      $region18: #{deepfake_timesformer_forward.9} parent=11 // pred_check_branch
        %255 = sbr.rel (%p253) target = $region20
      $region19: #{deepfake_timesformer_forward.9} parent=11 // pred_region
        _
      $region20: #{deepfake_timesformer_forward.9} parent=11 // pred_fallthru
        _
      // Predicated region
      $region21: #{deepfake_timesformer_forward.9} parent=11 // pred_check
        %p256 = pneg %p104
      $region22: #{deepfake_timesformer_forward.9} parent=11 // pred_check_branch
        %258 = sbr.rel (%p256) target = $region24
      $region23: #{deepfake_timesformer_forward.9} parent=11 // pred_region
        _
      $region24: #{deepfake_timesformer_forward.9} parent=11 // pred_fallthru
        _
      // Predicated region
      $region25: #{deepfake_timesformer_forward.9} parent=11 // pred_check
        %p259 = pneg %p125
      $region26: #{deepfake_timesformer_forward.9} parent=11 // pred_check_branch
        %261 = sbr.rel (%p259) target = $region28
      $region27: #{deepfake_timesformer_forward.9} parent=11 // pred_region
        _
      $region28: #{deepfake_timesformer_forward.9} parent=11 // pred_fallthru
        _
      // Predicated region
      $region29: #{deepfake_timesformer_forward.9} parent=11 // pred_check
        %p262 = pneg %p146
      $region30: #{deepfake_timesformer_forward.9} parent=11 // pred_check_branch
        %264 = sbr.rel (%p262) target = $region32
      $region31: #{deepfake_timesformer_forward.9} parent=11 // pred_region
        _
      $region32: #{deepfake_timesformer_forward.9} parent=11 // pred_fallthru
        _
      // Predicated region
      $region33: #{deepfake_timesformer_forward.9} parent=11 // pred_check
        %p265 = pneg %p167
      $region34: #{deepfake_timesformer_forward.9} parent=11 // pred_check_branch
        %267 = sbr.rel (%p265) target = $region36
      $region35: #{deepfake_timesformer_forward.9} parent=11 // pred_region
        _
      $region36: #{deepfake_timesformer_forward.9} parent=11 // pred_fallthru
        _
      // Predicated region
      $region37: #{deepfake_timesformer_forward.9} parent=11 // pred_check
        %p268 = pneg %p188
      $region38: #{deepfake_timesformer_forward.9} parent=11 // pred_check_branch
        %270 = sbr.rel (%p268) target = $region40
      $region39: #{deepfake_timesformer_forward.9} parent=11 // pred_region
        _
      $region40: #{deepfake_timesformer_forward.9} parent=11 // pred_fallthru
        _
      // Predicated region
      $region41: #{deepfake_timesformer_forward.9} parent=11 // pred_check
        %p271 = pneg %p209
      $region42: #{deepfake_timesformer_forward.9} parent=11 // pred_check_branch
        %273 = sbr.rel (%p271) target = $region44
      $region43: #{deepfake_timesformer_forward.9} parent=11 // pred_region
        _
      $region44: #{deepfake_timesformer_forward.9} parent=11 // pred_fallthru
        _
    $region12: #{deepfake_timesformer_forward.9} parent=5 // pred_fallthru
      _
    %p274 = scmp.lt.s32.totalorder %s15, 2
    // Predicated region
    $region45: #{deepfake_timesformer_forward.9} parent=5 // pred_check
      %p275 = pneg %p274
    $region46: #{deepfake_timesformer_forward.9} parent=5 // pred_check_branch
      %277 = sbr.rel (%p275) target = $region48
    $region47: #{deepfake_timesformer_forward.9} parent=5 // pred_region
      // Predicated region
      $region49: #{deepfake_timesformer_forward.9} parent=47 // pred_check
        %p278 = pneg %p35
      $region50: #{deepfake_timesformer_forward.9} parent=47 // pred_check_branch
        %280 = sbr.rel (%p278) target = $region52
      $region51: #{deepfake_timesformer_forward.9} parent=47 // pred_region
        %s281 = smul.u32 4, %s15
        %p282 = scmp.lt.s32.totalorder %s281, 7
        %s283 = scalar_select %p282, %s281, 7
        %s284 = smul.addr %s283, 2
        %s285 = scalar_lea.vmem %s0, %s284
        %s286 = smul.u32 4, %s15
      $region52: #{deepfake_timesformer_forward.9} parent=47 // pred_fallthru
        _
    $region48: #{deepfake_timesformer_forward.9} parent=5 // pred_fallthru
      _
    %p287 = scmp.le.s32.totalorder 1, %s15
    %p288 = scmp.lt.s32.totalorder %s15, 3
    %p289 = pnand %p287, %p288
    %p290 = pneg %p289
    // Predicated region
    $region53: #{deepfake_timesformer_forward.9} parent=5 // pred_check
      _
    $region54: #{deepfake_timesformer_forward.9} parent=5 // pred_check_branch
      %292 = sbr.rel (%p289) target = $region56
    $region55: #{deepfake_timesformer_forward.9} parent=5 // pred_region
      %s293 = ssub.s32 %s15, 1
      %s294 = smul.u32 4, %s20
      %p295 = scmp.lt.s32.totalorder %s294, 7
      %s296 = scalar_select %p295, %s294, 7
      %s297 = smul.addr %s296, 2
      %s298 = scalar_lea.vmem %s0, %s297
      %p299 = pneg %p41
      %p300 = pneg %p38
      %p301 = pneg %p62
      %p302 = pneg %p59
      %p303 = pneg %p83
      %p304 = pneg %p80
      %p305 = pneg %p104
      %p306 = pneg %p101
      %p307 = pneg %p125
      %p308 = pneg %p122
      %p309 = pneg %p146
      %p310 = pneg %p143
      %p311 = pneg %p167
      %p312 = pneg %p164
      %p313 = pneg %p188
      %p314 = pneg %p185
      %p315 = pneg %p209
      %p316 = pneg %p206
      %p317 = pneg %p235
      %p318 = pneg %p232
      %s319 = smul.u32 4, %s20
      %p320 = scmp.lt.s32.totalorder %s319, 7
      %s321 = scalar_select %p320, %s319, 7
      %s322 = smul.addr %s321, 2
      %s323 = scalar_lea.vmem %s9, %s322
      %s324 = smul.u32 4, %s20
      %p325 = scmp.lt.s32.totalorder %s324, 7
      %s326 = scalar_select %p325, %s324, 7
      %s327 = smul.addr %s326, 2
      %s328 = scalar_lea.vmem %s0, %s327
      %s329 = smul.u32 4, %s20
      %s330 = smul.u32 4, %s20
      %p331 = scmp.lt.s32.totalorder %s330, 7
      %s332 = scalar_select %p331, %s330, 7
      %s333 = smul.addr %s332, 2
      %s334 = scalar_lea.vmem %s9, %s333
      %s335 = smul.u32 4, %s20
      %v337 = vld [vmem:[%s328] sm:$0x3]
      %v338 = vld [vmem:[%s328 + $0x2] sm:$0x3]
      %v339 = vld [vmem:[%s328 + $0x4] sm:$0x3]
      %v340 = vld [vmem:[%s328 + $0x6] sm:$0x3]
      %v341 = vld [vmem:[%s1] sm:$0x1]
      %v342 = vld [vmem:[%s2] sm:$0x1]
      %v347 = vcombine.low %v337, %v338
      %v348 = vcombine.low %v339, %v340
      %v350 = vunpack.c.l.s4 1983009808
      %v351 = vunpack.c.0.s8 %v350
      %v352 = vlaneseq
      %v353 = vshrl.u32 %v352, 7
      %v354 = vsub.s32 %v351, %v353
      %v355 = vrot.slane %v347, %v354
      %v357 = vunpack.c.l.s4 1983009808
      %v358 = vunpack.c.0.s8 %v357
      %v359 = vlaneseq
      %v360 = vshrl.u32 %v359, 7
      %v361 = vsub.s32 %v358, %v360
      %v362 = vrot.slane %v348, %v361
      %v363 = vcombine.low %v355, %v362
      %365 = vadd.xlane.f32.xlu0 %v363
      %v366 = vpop.xlane.xlu0 %365
      %v367 = vrcp.pop 128.0
      %v368 = vmul.f32 %v366, %v367
      %v371 = vunpack.c.l.s4 269488144
      %v372 = vunpack.c.0.s8 %v371
      %v373 = vlaneseq
      %v374 = vshrl.u32 %v373, 7
      %v375 = vsub.s32 %v372, %v374
      %v376 = vrot.slane %v368, %v375
      %v378 = vunpack.c.l.s4 842150450
      %v379 = vunpack.c.0.s8 %v378
      %v380 = vlaneseq
      %v381 = vshrl.u32 %v380, 7
      %v382 = vsub.s32 %v379, %v381
      %v383 = vrot.slane %v368, %v382
      %v385 = vunpack.c.l.s4 1414812756
      %v386 = vunpack.c.0.s8 %v385
      %v387 = vlaneseq
      %v388 = vshrl.u32 %v387, 7
      %v389 = vsub.s32 %v386, %v388
      %v390 = vrot.slane %v368, %v389
      %v392 = vunpack.c.l.s4 1987475062
      %v393 = vunpack.c.0.s8 %v392
      %v394 = vlaneseq
      %v395 = vshrl.u32 %v394, 7
      %v396 = vsub.s32 %v393, %v395
      %v397 = vrot.slane %v368, %v396
      %v402 = vsub.f32 %v337, %v376
      %v403 = vsub.f32 %v338, %v383
      %v404 = vsub.f32 %v339, %v390
      %v405 = vsub.f32 %v340, %v397
      %v406 = vmul.f32 %v402, %v402
      %v407 = vmul.f32 %v403, %v403
      %v408 = vmul.f32 %v404, %v404
      %v409 = vmul.f32 %v405, %v405
      %v414 = vcombine.low %v406, %v407
      %v415 = vcombine.low %v408, %v409
      %v417 = vunpack.c.l.s4 1983009808
      %v418 = vunpack.c.0.s8 %v417
      %v419 = vlaneseq
      %v420 = vshrl.u32 %v419, 7
      %v421 = vsub.s32 %v418, %v420
      %v422 = vrot.slane %v414, %v421
      %v424 = vunpack.c.l.s4 1983009808
      %v425 = vunpack.c.0.s8 %v424
      %v426 = vlaneseq
      %v427 = vshrl.u32 %v426, 7
      %v428 = vsub.s32 %v425, %v427
      %v429 = vrot.slane %v415, %v428
      %v430 = vcombine.low %v422, %v429
      %432 = vadd.xlane.f32.xlu0 %v430
      %v433 = vpop.xlane.xlu0 %432
      %v434 = vmul.f32 %v433, %v367
      %v435 = vadd.f32 %v434, 1e-06
      %v436 = vrsqrt.pop %v435
      %v439 = vunpack.c.l.s4 269488144
      %v440 = vunpack.c.0.s8 %v439
      %v441 = vlaneseq
      %v442 = vshrl.u32 %v441, 7
      %v443 = vsub.s32 %v440, %v442
      %v444 = vrot.slane %v436, %v443
      %v446 = vunpack.c.l.s4 842150450
      %v447 = vunpack.c.0.s8 %v446
      %v448 = vlaneseq
      %v449 = vshrl.u32 %v448, 7
      %v450 = vsub.s32 %v447, %v449
      %v451 = vrot.slane %v436, %v450
      %v453 = vunpack.c.l.s4 1414812756
      %v454 = vunpack.c.0.s8 %v453
      %v455 = vlaneseq
      %v456 = vshrl.u32 %v455, 7
      %v457 = vsub.s32 %v454, %v456
      %v458 = vrot.slane %v436, %v457
      %v460 = vunpack.c.l.s4 1987475062
      %v461 = vunpack.c.0.s8 %v460
      %v462 = vlaneseq
      %v463 = vshrl.u32 %v462, 7
      %v464 = vsub.s32 %v461, %v463
      %v465 = vrot.slane %v436, %v464
      %v470 = vmul.f32 %v402, %v444
      %v471 = vmul.f32 %v403, %v451
      %v472 = vmul.f32 %v404, %v458
      %v473 = vmul.f32 %v405, %v465
      %v475 = vlaneseq
      %v476 = vshrl.u32 %v475, 7
      %v477 = vsub.s32 0, %v476
      %v478 = vrot.slane %v341, %v477
      %v479 = vcombine.high %v478, %v478
      %v481 = vunpack.c.l.s4 1983009808
      %v482 = vunpack.c.0.s8 %v481
      %v483 = vlaneseq
      %v484 = vshrl.u32 %v483, 7
      %v485 = vsub.s32 %v482, %v484
      %v486 = vrot.slane %v478, %v485
      %v488 = vunpack.c.l.s4 1983009808
      %v489 = vunpack.c.0.s8 %v488
      %v490 = vlaneseq
      %v491 = vshrl.u32 %v490, 7
      %v492 = vsub.s32 %v489, %v491
      %v493 = vrot.slane %v479, %v492
      %v494 = vcombine.high %v486, %v486
      %v495 = vcombine.high %v493, %v493
      %v500 = vmul.f32 %v470, %v486
      %v501 = vmul.f32 %v471, %v494
      %v502 = vmul.f32 %v472, %v493
      %v503 = vmul.f32 %v473, %v495
      %v505 = vlaneseq
      %v506 = vshrl.u32 %v505, 7
      %v507 = vsub.s32 0, %v506
      %v508 = vrot.slane %v342, %v507
      %v509 = vcombine.high %v508, %v508
      %v511 = vunpack.c.l.s4 1983009808
      %v512 = vunpack.c.0.s8 %v511
      %v513 = vlaneseq
      %v514 = vshrl.u32 %v513, 7
      %v515 = vsub.s32 %v512, %v514
      %v516 = vrot.slane %v508, %v515
      %v518 = vunpack.c.l.s4 1983009808
      %v519 = vunpack.c.0.s8 %v518
      %v520 = vlaneseq
      %v521 = vshrl.u32 %v520, 7
      %v522 = vsub.s32 %v519, %v521
      %v523 = vrot.slane %v509, %v522
      %v524 = vcombine.high %v516, %v516
      %v525 = vcombine.high %v523, %v523
      %v530 = vadd.f32 %v500, %v516
      %v531 = vadd.f32 %v501, %v524
      %v532 = vadd.f32 %v502, %v523
      %v533 = vadd.f32 %v503, %v525
      %v538 = vcombine.low %v530, %v531
      %v539 = vcombine.low %v532, %v533
      %v541 = vunpack.c.l.s4 1983009808
      %v542 = vunpack.c.0.s8 %v541
      %v543 = vlaneseq
      %v544 = vshrl.u32 %v543, 7
      %v545 = vsub.s32 %v542, %v544
      %v546 = vrot.slane %v538, %v545
      %v548 = vunpack.c.l.s4 1983009808
      %v549 = vunpack.c.0.s8 %v548
      %v550 = vlaneseq
      %v551 = vshrl.u32 %v550, 7
      %v552 = vsub.s32 %v549, %v551
      %v553 = vrot.slane %v539, %v552
      %v554 = vcombine.low %v546, %v553
      %v556 = vpack.c.bf16 %v554, %v554
      %v557 = vld [vmem:[%s3] sm:$0xff]
      %v558 = vld [vmem:[%s3 + $0x8] sm:$0xf]
      %v559 = vld [vmem:[%s3 + $0xc] sm:$0xff]
      %v560 = vld [vmem:[%s3 + $0x14] sm:$0xf]
      %v561 = vld [vmem:[%s3 + $0x18] sm:$0xff]
      %v562 = vld [vmem:[%s3 + $0x20] sm:$0xf]
      %v563 = vld [vmem:[%s3 + $0x24] sm:$0xff]
      %v564 = vld [vmem:[%s3 + $0x2c] sm:$0xf]
      %v565 = vld [vmem:[%s3 + $0x30] sm:$0xff]
      %v566 = vld [vmem:[%s3 + $0x38] sm:$0xf]
      %v567 = vld [vmem:[%s3 + $0x3c] sm:$0xff]
      %v568 = vld [vmem:[%s3 + $0x44] sm:$0xf]
      %v569 = vld [vmem:[%s3 + $0x48] sm:$0xff]
      %v570 = vld [vmem:[%s3 + $0x50] sm:$0xf]
      %v571 = vld [vmem:[%s3 + $0x54] sm:$0xff]
      %v572 = vld [vmem:[%s3 + $0x5c] sm:$0xf]
      %v573 = vld [vmem:[%s3 + $0x60] sm:$0xff]
      %v574 = vld [vmem:[%s3 + $0x68] sm:$0xf]
      %v575 = vld [vmem:[%s3 + $0x6c] sm:$0xff]
      %v576 = vld [vmem:[%s3 + $0x74] sm:$0xf]
      %v577 = vld [vmem:[%s3 + $0x78] sm:$0xff]
      %v578 = vld [vmem:[%s3 + $0x80] sm:$0xf]
      %v579 = vld [vmem:[%s3 + $0x84] sm:$0xff]
      %v580 = vld [vmem:[%s3 + $0x8c] sm:$0xf]
      %v581 = vld [vmem:[%s3 + $0x90] sm:$0xff]
      %v582 = vld [vmem:[%s3 + $0x98] sm:$0xf]
      %v583 = vld [vmem:[%s3 + $0x9c] sm:$0xff]
      %v584 = vld [vmem:[%s3 + $0xa4] sm:$0xf]
      %v585 = vld [vmem:[%s3 + $0xa8] sm:$0xff]
      %v586 = vld [vmem:[%s3 + $0xb0] sm:$0xf]
      %v587 = vld [vmem:[%s3 + $0xb4] sm:$0xff]
      %v588 = vld [vmem:[%s3 + $0xbc] sm:$0xf]
      %v589 = vld [vmem:[%s4] sm:$0x7]
      %v591 = vlaneseq
      %v592 = vshrl.u32 %v591, 7
      %v593 = vsub.s32 0, %v592
      %v594 = vrot.slane %v589, %v593
      %v595 = vlaneseq
      %v596 = vshrl.u32 %v595, 7
      %v597 = vsub.s32 1, %v596
      %v598 = vrot.slane %v589, %v597
      %v599 = vlaneseq
      %v600 = vshrl.u32 %v599, 7
      %v601 = vsub.s32 2, %v600
      %v602 = vrot.slane %v589, %v601
      %v638 = vunpack.c.l.b16 %v557
      %v639 = vunpack.c.h.b16 %v557
      %v640 = vunpack.c.l.b16 %v558
      %v641 = vunpack.c.l.b16 %v559
      %v642 = vunpack.c.h.b16 %v559
      %v643 = vunpack.c.l.b16 %v560
      %v644 = vunpack.c.l.b16 %v561
      %v645 = vunpack.c.h.b16 %v561
      %v646 = vunpack.c.l.b16 %v562
      %v647 = vunpack.c.l.b16 %v563
      %v648 = vunpack.c.h.b16 %v563
      %v649 = vunpack.c.l.b16 %v564
      %v650 = vunpack.c.l.b16 %v565
      %v651 = vunpack.c.h.b16 %v565
      %v652 = vunpack.c.l.b16 %v566
      %v653 = vunpack.c.l.b16 %v567
      %v654 = vunpack.c.h.b16 %v567
      %v655 = vunpack.c.l.b16 %v568
      %v656 = vunpack.c.l.b16 %v569
      %v657 = vunpack.c.h.b16 %v569
      %v658 = vunpack.c.l.b16 %v570
      %v659 = vunpack.c.l.b16 %v571
      %v660 = vunpack.c.h.b16 %v571
      %v661 = vunpack.c.l.b16 %v572
      %v662 = vunpack.c.l.b16 %v573
      %v663 = vunpack.c.h.b16 %v573
      %v664 = vunpack.c.l.b16 %v574
      %v665 = vunpack.c.l.b16 %v575
      %v666 = vunpack.c.h.b16 %v575
      %v667 = vunpack.c.l.b16 %v576
      %v668 = vunpack.c.l.b16 %v577
      %v669 = vunpack.c.h.b16 %v577
      %v670 = vunpack.c.l.b16 %v578
      %v671 = vunpack.c.l.b16 %v579
      %v672 = vunpack.c.h.b16 %v579
      %v673 = vunpack.c.l.b16 %v580
      %v674 = vunpack.c.l.b16 %v581
      %v675 = vunpack.c.h.b16 %v581
      %v676 = vunpack.c.l.b16 %v582
      %v677 = vunpack.c.l.b16 %v583
      %v678 = vunpack.c.h.b16 %v583
      %v679 = vunpack.c.l.b16 %v584
      %v680 = vunpack.c.l.b16 %v585
      %v681 = vunpack.c.h.b16 %v585
      %v682 = vunpack.c.l.b16 %v586
      %v683 = vunpack.c.l.b16 %v587
      %v684 = vunpack.c.h.b16 %v587
      %v685 = vunpack.c.l.b16 %v588
      %v686 = vpack.c.b16 %v641, %v638
      %v687 = vpack.c.b16 %v642, %v639
      %v688 = vpack.c.b16 %v643, %v640
      %v689 = vpack.c.b16 %v647, %v644
      %v690 = vpack.c.b16 %v648, %v645
      %v691 = vpack.c.b16 %v649, %v646
      %v692 = vpack.c.b16 %v653, %v650
      %v693 = vpack.c.b16 %v654, %v651
      %v694 = vpack.c.b16 %v655, %v652
      %v695 = vpack.c.b16 %v659, %v656
      %v696 = vpack.c.b16 %v660, %v657
      %v697 = vpack.c.b16 %v661, %v658
      %v698 = vpack.c.b16 %v665, %v662
      %v699 = vpack.c.b16 %v666, %v663
      %v700 = vpack.c.b16 %v667, %v664
      %v701 = vpack.c.b16 %v671, %v668
      %v702 = vpack.c.b16 %v672, %v669
      %v703 = vpack.c.b16 %v673, %v670
      %v704 = vpack.c.b16 %v677, %v674
      %v705 = vpack.c.b16 %v678, %v675
      %v706 = vpack.c.b16 %v679, %v676
      %v707 = vpack.c.b16 %v683, %v680
      %v708 = vpack.c.b16 %v684, %v681
      %v709 = vpack.c.b16 %v685, %v682
      %734 = vmatprep.subr.bf16.mxu0 %v708
      %735 = vmatpush1.bf16.msra.mxu0 %v707
      %736 = vmatprep.subr.bf16.mxu0 %v705
      %737 = vmatpush1.bf16.msra.mxu0 %v704
      %738 = vmatprep.subr.bf16.mxu0 %v702
      %739 = vmatpush1.bf16.msra.mxu0 %v701
      %740 = vmatprep.subr.bf16.mxu0 %v699
      %741 = vmatpush1.bf16.msra.mxu0 %v698
      %742 = vmatprep.subr.bf16.mxu0 %v696
      %743 = vmatpush1.bf16.msra.mxu0 %v695
      %744 = vmatprep.subr.bf16.mxu0 %v693
      %745 = vmatpush1.bf16.msra.mxu0 %v692
      %746 = vmatprep.subr.bf16.mxu0 %v690
      %747 = vmatpush1.bf16.msra.mxu0 %v689
      %748 = vmatprep.subr.bf16.mxu0 %v687
      %749 = vmatpush1.bf16.msra.mxu0 %v686
      %750 = vmatprep.subr.bf16.mxu0 0
      %751 = vmatpush2.bf16.msra.mxu0 0
      %752 = vmatprep.subr.bf16.mxu0 0
      %753 = vmatpush2.bf16.msra.mxu0 0
      %754 = vmatprep.subr.bf16.mxu0 0
      %755 = vmatpush2.bf16.msra.mxu0 0
      %756 = vmatprep.subr.bf16.mxu0 0
      %757 = vmatpush2.bf16.msra.mxu0 0
      %758 = vmatprep.subr.bf16.mxu0 0
      %759 = vmatpush2.bf16.msra.mxu0 0
      %760 = vmatprep.subr.bf16.mxu0 0
      %761 = vmatpush2.bf16.msra.mxu0 0
      %762 = vmatprep.subr.bf16.mxu0 0
      %763 = vmatpush2.bf16.msra.mxu0 0
      %764 = vmatprep.subr.bf16.mxu0 0
      %765 = vmatpush2.bf16.msra.mxu0 0
      %766 = vmatprep.mubr.bf16.mxu0 0
      %767 = vmatmul.mubr.bf16.gmra.mxu0 %v556
      %v768 = vpop.f32.mrf.mxu0
      %v769 = vadd.f32 %v594, %v768
      %v770 = vpop.f32.mrf.mxu0
      %v771 = vadd.f32 %v598, %v770
      %v772 = vpop.f32.mrf.mxu0
      %v773 = vpop.f32.mrf.mxu0
      %774 = vdwg.mxu0
      %775 = vmatprep.subr.bf16.mxu0 0
      %776 = vmatpush1.bf16.msra.mxu0 %v709
      %777 = vmatprep.subr.bf16.mxu0 0
      %778 = vmatpush1.bf16.msra.mxu0 %v706
      %779 = vmatprep.subr.bf16.mxu0 0
      %780 = vmatpush1.bf16.msra.mxu0 %v703
      %781 = vmatprep.subr.bf16.mxu0 0
      %782 = vmatpush1.bf16.msra.mxu0 %v700
      %783 = vmatprep.subr.bf16.mxu0 0
      %784 = vmatpush1.bf16.msra.mxu0 %v697
      %785 = vmatprep.subr.bf16.mxu0 0
      %786 = vmatpush1.bf16.msra.mxu0 %v694
      %787 = vmatprep.subr.bf16.mxu0 0
      %788 = vmatpush1.bf16.msra.mxu0 %v691
      %789 = vmatprep.subr.bf16.mxu0 0
      %790 = vmatpush1.bf16.msra.mxu0 %v688
      %791 = vmatprep.subr.bf16.mxu0 0
      %792 = vmatpush2.bf16.msra.mxu0 0
      %793 = vmatprep.subr.bf16.mxu0 0
      %794 = vmatpush2.bf16.msra.mxu0 0
      %795 = vmatprep.subr.bf16.mxu0 0
      %796 = vmatpush2.bf16.msra.mxu0 0
      %797 = vmatprep.subr.bf16.mxu0 0
      %798 = vmatpush2.bf16.msra.mxu0 0
      %799 = vmatprep.subr.bf16.mxu0 0
      %800 = vmatpush2.bf16.msra.mxu0 0
      %801 = vmatprep.subr.bf16.mxu0 0
      %802 = vmatpush2.bf16.msra.mxu0 0
      %803 = vmatprep.subr.bf16.mxu0 0
      %804 = vmatpush2.bf16.msra.mxu0 0
      %805 = vmatprep.subr.bf16.mxu0 0
      %806 = vmatpush2.bf16.msra.mxu0 0
      %807 = vmatprep.mubr.bf16.mxu0 0
      %808 = vmatmul.mubr.bf16.gmra.mxu0 %v556
      %v809 = vpop.f32.mrf.mxu0
      %v810 = vadd.f32 %v602, %v809
      %v811 = vpop.f32.mrf.mxu0
      %v812 = vpop.f32.mrf.mxu0
      %v813 = vpop.f32.mrf.mxu0
      %814 = vdwg.mxu0
      %v815 = vpack.c.bf16 %v769, %v769
      %v816 = vpack.c.bf16 %v771, %v771
      %v817 = vpack.c.bf16 %v810, %v810
      %v821 = vcombine.low %v815, %v816
      %v823 = vunpack.c.l.s4 1966171168
      %v824 = vunpack.c.0.s8 %v823
      %v825 = vlaneseq
      %v826 = vshrl.u32 %v825, 7
      %v827 = vsub.s32 %v824, %v826
      %v828 = vrot.slane %v821, %v827
      %v830 = vunpack.c.l.s4 1966171168
      %v831 = vunpack.c.0.s8 %v830
      %v832 = vlaneseq
      %v833 = vshrl.u32 %v832, 7
      %v834 = vsub.s32 %v831, %v833
      %v835 = vrot.slane %v817, %v834
      %v836 = vcombine.low %v828, %v835
      %v837 = vcombine.high %v828, %v835
      %v839 = vunpack.c.l.s4 1966171168
      %v840 = vunpack.c.0.s8 %v839
      %v841 = vlaneseq
      %v842 = vshrl.u32 %v841, 7
      %v843 = vsub.s32 %v840, %v842
      %v844 = vrot.slane %v836, %v843
      %v846 = vunpack.c.l.s4 1966171168
      %v847 = vunpack.c.0.s8 %v846
      %v848 = vlaneseq
      %v849 = vshrl.u32 %v848, 7
      %v850 = vsub.s32 %v847, %v849
      %v851 = vrot.slane %v837, %v850
      %v852 = vcombine.high %v844, %v844
      %v853 = vcombine.high %v851, %v851
      %v854 = vrot.slane %v844, 1
      %vm855 = vcmask 261120
      %v857 = vsel %vm855, %v844, 0
      %v860 = vsel %vm855, %v854, 0
      %862 = vmatprep.subr.bf16.mxu0 0
      %863 = vmatpush1.bf16.xpose.msra.mxu0 0
      %864 = vmatprep.subr.bf16.mxu0 0
      %865 = vmatpush1.bf16.xpose.msra.mxu0 0
      %866 = vmatprep.subr.bf16.mxu0 0
      %867 = vmatpush1.bf16.xpose.msra.mxu0 0
      %868 = vmatprep.subr.bf16.mxu0 0
      %869 = vmatpush1.bf16.xpose.msra.mxu0 0
      %870 = vmatprep.subr.bf16.mxu0 0
      %871 = vmatpush1.bf16.xpose.msra.mxu0 0
      %872 = vmatprep.subr.bf16.mxu0 0
      %873 = vmatpush1.bf16.xpose.msra.mxu0 0
      %874 = vmatprep.subr.bf16.mxu0 0
      %875 = vmatpush1.bf16.xpose.msra.mxu0 0
      %876 = vmatprep.subr.bf16.mxu0 0
      %877 = vmatpush1.bf16.xpose.msra.mxu0 %v860
      %878 = vmatprep.subr.bf16.mxu0 0
      %879 = vmatpush2.bf16.xpose.msra.mxu0 0
      %880 = vmatprep.subr.bf16.mxu0 0
      %881 = vmatpush2.bf16.xpose.msra.mxu0 0
      %882 = vmatprep.subr.bf16.mxu0 0
      %883 = vmatpush2.bf16.xpose.msra.mxu0 0
      %884 = vmatprep.subr.bf16.mxu0 0
      %885 = vmatpush2.bf16.xpose.msra.mxu0 0
      %886 = vmatprep.subr.bf16.mxu0 0
      %887 = vmatpush2.bf16.xpose.msra.mxu0 0
      %888 = vmatprep.subr.bf16.mxu0 0
      %889 = vmatpush2.bf16.xpose.msra.mxu0 0
      %890 = vmatprep.subr.bf16.mxu0 0
      %891 = vmatpush2.bf16.xpose.msra.mxu0 0
      %892 = vmatprep.subr.bf16.mxu0 0
      %893 = vmatpush2.bf16.xpose.msra.mxu0 0
      %894 = vmatprep.mubr.bf16.mxu0 0
      %895 = vmatmul.mubr.bf16.gmra.mxu0 %v857
      %v896 = vpop.f32.mrf.mxu0
      %v897 = vadd.f32 0.0, %v896
      %v898 = vpop.f32.mrf.mxu0
      %v899 = vpop.f32.mrf.mxu0
      %v900 = vpop.f32.mrf.mxu0
      %901 = vdwg.mxu0
      %v902 = vrot.slane %v851, 1
      %v904 = vsel %vm855, %v851, 0
      %v907 = vsel %vm855, %v902, 0
      %909 = vmatprep.subr.bf16.mxu0 0
      %910 = vmatpush1.bf16.xpose.msra.mxu0 0
      %911 = vmatprep.subr.bf16.mxu0 0
      %912 = vmatpush1.bf16.xpose.msra.mxu0 0
      %913 = vmatprep.subr.bf16.mxu0 0
      %914 = vmatpush1.bf16.xpose.msra.mxu0 0
      %915 = vmatprep.subr.bf16.mxu0 0
      %916 = vmatpush1.bf16.xpose.msra.mxu0 0
      %917 = vmatprep.subr.bf16.mxu0 0
      %918 = vmatpush1.bf16.xpose.msra.mxu0 0
      %919 = vmatprep.subr.bf16.mxu0 0
      %920 = vmatpush1.bf16.xpose.msra.mxu0 0
      %921 = vmatprep.subr.bf16.mxu0 0
      %922 = vmatpush1.bf16.xpose.msra.mxu0 0
      %923 = vmatprep.subr.bf16.mxu0 0
      %924 = vmatpush1.bf16.xpose.msra.mxu0 %v907
      %925 = vmatprep.subr.bf16.mxu0 0
      %926 = vmatpush2.bf16.xpose.msra.mxu0 0
      %927 = vmatprep.subr.bf16.mxu0 0
      %928 = vmatpush2.bf16.xpose.msra.mxu0 0
      %929 = vmatprep.subr.bf16.mxu0 0
      %930 = vmatpush2.bf16.xpose.msra.mxu0 0
      %931 = vmatprep.subr.bf16.mxu0 0
      %932 = vmatpush2.bf16.xpose.msra.mxu0 0
      %933 = vmatprep.subr.bf16.mxu0 0
      %934 = vmatpush2.bf16.xpose.msra.mxu0 0
      %935 = vmatprep.subr.bf16.mxu0 0
      %936 = vmatpush2.bf16.xpose.msra.mxu0 0
      %937 = vmatprep.subr.bf16.mxu0 0
      %938 = vmatpush2.bf16.xpose.msra.mxu0 0
      %939 = vmatprep.subr.bf16.mxu0 0
      %940 = vmatpush2.bf16.xpose.msra.mxu0 0
      %941 = vmatprep.mubr.bf16.mxu0 0
      %942 = vmatmul.mubr.bf16.gmra.mxu0 %v904
      %v943 = vpop.f32.mrf.mxu0
      %v944 = vadd.f32 0.0, %v943
      %v945 = vpop.f32.mrf.mxu0
      %v946 = vpop.f32.mrf.mxu0
      %v947 = vpop.f32.mrf.mxu0
      %948 = vdwg.mxu0
      %v949 = vrot.slane %v852, 1
      %v951 = vsel %vm855, %v852, 0
      %v954 = vsel %vm855, %v949, 0
      %956 = vmatprep.subr.bf16.mxu0 0
      %957 = vmatpush1.bf16.xpose.msra.mxu0 0
      %958 = vmatprep.subr.bf16.mxu0 0
      %959 = vmatpush1.bf16.xpose.msra.mxu0 0
      %960 = vmatprep.subr.bf16.mxu0 0
      %961 = vmatpush1.bf16.xpose.msra.mxu0 0
      %962 = vmatprep.subr.bf16.mxu0 0
      %963 = vmatpush1.bf16.xpose.msra.mxu0 0
      %964 = vmatprep.subr.bf16.mxu0 0
      %965 = vmatpush1.bf16.xpose.msra.mxu0 0
      %966 = vmatprep.subr.bf16.mxu0 0
      %967 = vmatpush1.bf16.xpose.msra.mxu0 0
      %968 = vmatprep.subr.bf16.mxu0 0
      %969 = vmatpush1.bf16.xpose.msra.mxu0 0
      %970 = vmatprep.subr.bf16.mxu0 0
      %971 = vmatpush1.bf16.xpose.msra.mxu0 %v954
      %972 = vmatprep.subr.bf16.mxu0 0
      %973 = vmatpush2.bf16.xpose.msra.mxu0 0
      %974 = vmatprep.subr.bf16.mxu0 0
      %975 = vmatpush2.bf16.xpose.msra.mxu0 0
      %976 = vmatprep.subr.bf16.mxu0 0
      %977 = vmatpush2.bf16.xpose.msra.mxu0 0
      %978 = vmatprep.subr.bf16.mxu0 0
      %979 = vmatpush2.bf16.xpose.msra.mxu0 0
      %980 = vmatprep.subr.bf16.mxu0 0
      %981 = vmatpush2.bf16.xpose.msra.mxu0 0
      %982 = vmatprep.subr.bf16.mxu0 0
      %983 = vmatpush2.bf16.xpose.msra.mxu0 0
      %984 = vmatprep.subr.bf16.mxu0 0
      %985 = vmatpush2.bf16.xpose.msra.mxu0 0
      %986 = vmatprep.subr.bf16.mxu0 0
      %987 = vmatpush2.bf16.xpose.msra.mxu0 0
      %988 = vmatprep.mubr.bf16.mxu0 0
      %989 = vmatmul.mubr.bf16.gmra.mxu0 %v951
      %v990 = vpop.f32.mrf.mxu0
      %v991 = vadd.f32 0.0, %v990
      %v992 = vpop.f32.mrf.mxu0
      %v993 = vpop.f32.mrf.mxu0
      %v994 = vpop.f32.mrf.mxu0
      %995 = vdwg.mxu0
      %v996 = vrot.slane %v853, 1
      %v998 = vsel %vm855, %v853, 0
      %v1001 = vsel %vm855, %v996, 0
      %1003 = vmatprep.subr.bf16.mxu0 0
      %1004 = vmatpush1.bf16.xpose.msra.mxu0 0
      %1005 = vmatprep.subr.bf16.mxu0 0
      %1006 = vmatpush1.bf16.xpose.msra.mxu0 0
      %1007 = vmatprep.subr.bf16.mxu0 0
      %1008 = vmatpush1.bf16.xpose.msra.mxu0 0
      %1009 = vmatprep.subr.bf16.mxu0 0
      %1010 = vmatpush1.bf16.xpose.msra.mxu0 0
      %1011 = vmatprep.subr.bf16.mxu0 0
      %1012 = vmatpush1.bf16.xpose.msra.mxu0 0
      %1013 = vmatprep.subr.bf16.mxu0 0
      %1014 = vmatpush1.bf16.xpose.msra.mxu0 0
      %1015 = vmatprep.subr.bf16.mxu0 0
      %1016 = vmatpush1.bf16.xpose.msra.mxu0 0
      %1017 = vmatprep.subr.bf16.mxu0 0
      %1018 = vmatpush1.bf16.xpose.msra.mxu0 %v1001
      %1019 = vmatprep.subr.bf16.mxu0 0
      %1020 = vmatpush2.bf16.xpose.msra.mxu0 0
      %1021 = vmatprep.subr.bf16.mxu0 0
      %1022 = vmatpush2.bf16.xpose.msra.mxu0 0
      %1023 = vmatprep.subr.bf16.mxu0 0
      %1024 = vmatpush2.bf16.xpose.msra.mxu0 0
      %1025 = vmatprep.subr.bf16.mxu0 0
      %1026 = vmatpush2.bf16.xpose.msra.mxu0 0
      %1027 = vmatprep.subr.bf16.mxu0 0
      %1028 = vmatpush2.bf16.xpose.msra.mxu0 0
      %1029 = vmatprep.subr.bf16.mxu0 0
      %1030 = vmatpush2.bf16.xpose.msra.mxu0 0
      %1031 = vmatprep.subr.bf16.mxu0 0
      %1032 = vmatpush2.bf16.xpose.msra.mxu0 0
      %1033 = vmatprep.subr.bf16.mxu0 0
      %1034 = vmatpush2.bf16.xpose.msra.mxu0 0
      %1035 = vmatprep.mubr.bf16.mxu0 0
      %1036 = vmatmul.mubr.bf16.gmra.mxu0 %v998
      %v1037 = vpop.f32.mrf.mxu0
      %v1038 = vadd.f32 0.0, %v1037
      %v1039 = vpop.f32.mrf.mxu0
      %v1040 = vpop.f32.mrf.mxu0
      %v1041 = vpop.f32.mrf.mxu0
      %1042 = vdwg.mxu0
      %v1043 = vmul.f32 %v897, 0.17677669
      %v1044 = vmul.f32 %v944, 0.17677669
      %v1045 = vmul.f32 %v991, 0.17677669
      %v1046 = vmul.f32 %v1038, 0.17677669
      %vm1047 = vcmask 9216
      %v1048 = vsel %vm1047, %v1043, -inf
      %1049 = vmax.xlane.f32.xlu0 %v1048
      %v1050 = vpop.xlane.xlu0 %1049
      %v1051 = vsel %vm1047, %v1044, -inf
      %1052 = vmax.xlane.f32.xlu0 %v1051
      %v1053 = vpop.xlane.xlu0 %1052
      %v1054 = vsel %vm1047, %v1045, -inf
      %1055 = vmax.xlane.f32.xlu0 %v1054
      %v1056 = vpop.xlane.xlu0 %1055
      %v1057 = vsel %vm1047, %v1046, -inf
      %1058 = vmax.xlane.f32.xlu0 %v1057
      %v1059 = vpop.xlane.xlu0 %1058
      %v1060 = vsub.f32 %v1043, %v1050
      %v1061 = vsub.f32 %v1044, %v1053
      %v1062 = vsub.f32 %v1045, %v1056
      %v1063 = vsub.f32 %v1046, %v1059
      %v1064 = vmul.f32 %v1060, 1.442695
      %v1065 = vpow.pop %v1064
      %v1066 = vmul.f32 %v1061, 1.442695
      %v1067 = vpow.pop %v1066
      %v1068 = vmul.f32 %v1062, 1.442695
      %v1069 = vpow.pop %v1068
      %v1070 = vmul.f32 %v1063, 1.442695
      %v1071 = vpow.pop %v1070
      %v1072 = vsel %vm1047, %v1065, 0.0
      %1073 = vadd.xlane.f32.xlu0 %v1072
      %v1074 = vpop.xlane.xlu0 %1073
      %v1075 = vsel %vm1047, %v1067, 0.0
      %1076 = vadd.xlane.f32.xlu0 %v1075
      %v1077 = vpop.xlane.xlu0 %1076
      %v1078 = vsel %vm1047, %v1069, 0.0
      %1079 = vadd.xlane.f32.xlu0 %v1078
      %v1080 = vpop.xlane.xlu0 %1079
      %v1081 = vsel %vm1047, %v1071, 0.0
      %1082 = vadd.xlane.f32.xlu0 %v1081
      %v1083 = vpop.xlane.xlu0 %1082
      %v1084 = vrcp.pop %v1074
      %v1085 = vmul.f32 %v1065, %v1084
      %v1086 = vrcp.pop %v1077
      %v1087 = vmul.f32 %v1067, %v1086
      %v1088 = vrcp.pop %v1080
      %v1089 = vmul.f32 %v1069, %v1088
      %v1090 = vrcp.pop %v1083
      %v1091 = vmul.f32 %v1071, %v1090
      %v1092 = vpack.c.bf16 %v1085, %v1085
      %v1093 = vpack.c.bf16 %v1087, %v1087
      %v1094 = vpack.c.bf16 %v1089, %v1089
      %v1095 = vpack.c.bf16 %v1091, %v1091
      %v1096 = vrot.slane %v844, 2
      %vm1097 = vcmask 15360
      %v1099 = vsel %vm1097, %v1092, 0
      %vm1101 = vcmask 1040384
      %v1103 = vsel %vm1101, %v1096, 0
      %1105 = vmatprep.subr.bf16.mxu0 0
      %1106 = vmatpush1.bf16.msra.mxu0 0
      %1107 = vmatprep.subr.bf16.mxu0 0
      %1108 = vmatpush1.bf16.msra.mxu0 0
      %1109 = vmatprep.subr.bf16.mxu0 0
      %1110 = vmatpush1.bf16.msra.mxu0 0
      %1111 = vmatprep.subr.bf16.mxu0 0
      %1112 = vmatpush1.bf16.msra.mxu0 0
      %1113 = vmatprep.subr.bf16.mxu0 0
      %1114 = vmatpush1.bf16.msra.mxu0 0
      %1115 = vmatprep.subr.bf16.mxu0 0
      %1116 = vmatpush1.bf16.msra.mxu0 0
      %1117 = vmatprep.subr.bf16.mxu0 0
      %1118 = vmatpush1.bf16.msra.mxu0 0
      %1119 = vmatprep.subr.bf16.mxu0 0
      %1120 = vmatpush1.bf16.msra.mxu0 %v1103
      %1121 = vmatprep.subr.bf16.mxu0 0
      %1122 = vmatpush2.bf16.msra.mxu0 0
      %1123 = vmatprep.subr.bf16.mxu0 0
      %1124 = vmatpush2.bf16.msra.mxu0 0
      %1125 = vmatprep.subr.bf16.mxu0 0
      %1126 = vmatpush2.bf16.msra.mxu0 0
      %1127 = vmatprep.subr.bf16.mxu0 0
      %1128 = vmatpush2.bf16.msra.mxu0 0
      %1129 = vmatprep.subr.bf16.mxu0 0
      %1130 = vmatpush2.bf16.msra.mxu0 0
      %1131 = vmatprep.subr.bf16.mxu0 0
      %1132 = vmatpush2.bf16.msra.mxu0 0
      %1133 = vmatprep.subr.bf16.mxu0 0
      %1134 = vmatpush2.bf16.msra.mxu0 0
      %1135 = vmatprep.subr.bf16.mxu0 0
      %1136 = vmatpush2.bf16.msra.mxu0 0
      %1137 = vmatprep.mubr.bf16.mxu0 0
      %1138 = vmatmul.mubr.bf16.gmra.mxu0 %v1099
      %v1139 = vpop.f32.mrf.mxu0
      %v1140 = vadd.f32 0.0, %v1139
      %v1141 = vpop.f32.mrf.mxu0
      %v1142 = vpop.f32.mrf.mxu0
      %v1143 = vpop.f32.mrf.mxu0
      %1144 = vdwg.mxu0
      %v1145 = vrot.slane %v851, 2
      %v1147 = vsel %vm1097, %v1093, 0
      %v1150 = vsel %vm1101, %v1145, 0
      %1152 = vmatprep.subr.bf16.mxu0 0
      %1153 = vmatpush1.bf16.msra.mxu0 0
      %1154 = vmatprep.subr.bf16.mxu0 0
      %1155 = vmatpush1.bf16.msra.mxu0 0
      %1156 = vmatprep.subr.bf16.mxu0 0
      %1157 = vmatpush1.bf16.msra.mxu0 0
      %1158 = vmatprep.subr.bf16.mxu0 0
      %1159 = vmatpush1.bf16.msra.mxu0 0
      %1160 = vmatprep.subr.bf16.mxu0 0
      %1161 = vmatpush1.bf16.msra.mxu0 0
      %1162 = vmatprep.subr.bf16.mxu0 0
      %1163 = vmatpush1.bf16.msra.mxu0 0
      %1164 = vmatprep.subr.bf16.mxu0 0
      %1165 = vmatpush1.bf16.msra.mxu0 0
      %1166 = vmatprep.subr.bf16.mxu0 0
      %1167 = vmatpush1.bf16.msra.mxu0 %v1150
      %1168 = vmatprep.subr.bf16.mxu0 0
      %1169 = vmatpush2.bf16.msra.mxu0 0
      %1170 = vmatprep.subr.bf16.mxu0 0
      %1171 = vmatpush2.bf16.msra.mxu0 0
      %1172 = vmatprep.subr.bf16.mxu0 0
      %1173 = vmatpush2.bf16.msra.mxu0 0
      %1174 = vmatprep.subr.bf16.mxu0 0
      %1175 = vmatpush2.bf16.msra.mxu0 0
      %1176 = vmatprep.subr.bf16.mxu0 0
      %1177 = vmatpush2.bf16.msra.mxu0 0
      %1178 = vmatprep.subr.bf16.mxu0 0
      %1179 = vmatpush2.bf16.msra.mxu0 0
      %1180 = vmatprep.subr.bf16.mxu0 0
      %1181 = vmatpush2.bf16.msra.mxu0 0
      %1182 = vmatprep.subr.bf16.mxu0 0
      %1183 = vmatpush2.bf16.msra.mxu0 0
      %1184 = vmatprep.mubr.bf16.mxu0 0
      %1185 = vmatmul.mubr.bf16.gmra.mxu0 %v1147
      %v1186 = vpop.f32.mrf.mxu0
      %v1187 = vadd.f32 0.0, %v1186
      %v1188 = vpop.f32.mrf.mxu0
      %v1189 = vpop.f32.mrf.mxu0
      %v1190 = vpop.f32.mrf.mxu0
      %1191 = vdwg.mxu0
      %v1192 = vrot.slane %v852, 2
      %v1194 = vsel %vm1097, %v1094, 0
      %v1197 = vsel %vm1101, %v1192, 0
      %1199 = vmatprep.subr.bf16.mxu0 0
      %1200 = vmatpush1.bf16.msra.mxu0 0
      %1201 = vmatprep.subr.bf16.mxu0 0
      %1202 = vmatpush1.bf16.msra.mxu0 0
      %1203 = vmatprep.subr.bf16.mxu0 0
      %1204 = vmatpush1.bf16.msra.mxu0 0
      %1205 = vmatprep.subr.bf16.mxu0 0
      %1206 = vmatpush1.bf16.msra.mxu0 0
      %1207 = vmatprep.subr.bf16.mxu0 0
      %1208 = vmatpush1.bf16.msra.mxu0 0
      %1209 = vmatprep.subr.bf16.mxu0 0
      %1210 = vmatpush1.bf16.msra.mxu0 0
      %1211 = vmatprep.subr.bf16.mxu0 0
      %1212 = vmatpush1.bf16.msra.mxu0 0
      %1213 = vmatprep.subr.bf16.mxu0 0
      %1214 = vmatpush1.bf16.msra.mxu0 %v1197
      %1215 = vmatprep.subr.bf16.mxu0 0
      %1216 = vmatpush2.bf16.msra.mxu0 0
      %1217 = vmatprep.subr.bf16.mxu0 0
      %1218 = vmatpush2.bf16.msra.mxu0 0
      %1219 = vmatprep.subr.bf16.mxu0 0
      %1220 = vmatpush2.bf16.msra.mxu0 0
      %1221 = vmatprep.subr.bf16.mxu0 0
      %1222 = vmatpush2.bf16.msra.mxu0 0
      %1223 = vmatprep.subr.bf16.mxu0 0
      %1224 = vmatpush2.bf16.msra.mxu0 0
      %1225 = vmatprep.subr.bf16.mxu0 0
      %1226 = vmatpush2.bf16.msra.mxu0 0
      %1227 = vmatprep.subr.bf16.mxu0 0
      %1228 = vmatpush2.bf16.msra.mxu0 0
      %1229 = vmatprep.subr.bf16.mxu0 0
      %1230 = vmatpush2.bf16.msra.mxu0 0
      %1231 = vmatprep.mubr.bf16.mxu0 0
      %1232 = vmatmul.mubr.bf16.gmra.mxu0 %v1194
      %v1233 = vpop.f32.mrf.mxu0
      %v1234 = vadd.f32 0.0, %v1233
      %v1235 = vpop.f32.mrf.mxu0
      %v1236 = vpop.f32.mrf.mxu0
      %v1237 = vpop.f32.mrf.mxu0
      %1238 = vdwg.mxu0
      %v1239 = vrot.slane %v853, 2
      %v1241 = vsel %vm1097, %v1095, 0
      %v1244 = vsel %vm1101, %v1239, 0
      %1246 = vmatprep.subr.bf16.mxu0 0
      %1247 = vmatpush1.bf16.msra.mxu0 0
      %1248 = vmatprep.subr.bf16.mxu0 0
      %1249 = vmatpush1.bf16.msra.mxu0 0
      %1250 = vmatprep.subr.bf16.mxu0 0
      %1251 = vmatpush1.bf16.msra.mxu0 0
      %1252 = vmatprep.subr.bf16.mxu0 0
      %1253 = vmatpush1.bf16.msra.mxu0 0
      %1254 = vmatprep.subr.bf16.mxu0 0
      %1255 = vmatpush1.bf16.msra.mxu0 0
      %1256 = vmatprep.subr.bf16.mxu0 0
      %1257 = vmatpush1.bf16.msra.mxu0 0
      %1258 = vmatprep.subr.bf16.mxu0 0
      %1259 = vmatpush1.bf16.msra.mxu0 0
      %1260 = vmatprep.subr.bf16.mxu0 0
      %1261 = vmatpush1.bf16.msra.mxu0 %v1244
      %1262 = vmatprep.subr.bf16.mxu0 0
      %1263 = vmatpush2.bf16.msra.mxu0 0
      %1264 = vmatprep.subr.bf16.mxu0 0
      %1265 = vmatpush2.bf16.msra.mxu0 0
      %1266 = vmatprep.subr.bf16.mxu0 0
      %1267 = vmatpush2.bf16.msra.mxu0 0
      %1268 = vmatprep.subr.bf16.mxu0 0
      %1269 = vmatpush2.bf16.msra.mxu0 0
      %1270 = vmatprep.subr.bf16.mxu0 0
      %1271 = vmatpush2.bf16.msra.mxu0 0
      %1272 = vmatprep.subr.bf16.mxu0 0
      %1273 = vmatpush2.bf16.msra.mxu0 0
      %1274 = vmatprep.subr.bf16.mxu0 0
      %1275 = vmatpush2.bf16.msra.mxu0 0
      %1276 = vmatprep.subr.bf16.mxu0 0
      %1277 = vmatpush2.bf16.msra.mxu0 0
      %1278 = vmatprep.mubr.bf16.mxu0 0
      %1279 = vmatmul.mubr.bf16.gmra.mxu0 %v1241
      %v1280 = vpop.f32.mrf.mxu0
      %v1281 = vadd.f32 0.0, %v1280
      %v1282 = vpop.f32.mrf.mxu0
      %v1283 = vpop.f32.mrf.mxu0
      %v1284 = vpop.f32.mrf.mxu0
      %1285 = vdwg.mxu0
      %1286 = vrot.lane.b32.xlu0 %v844, 96
      %v1287 = vpop.permute.xlu0 %1286
      %v1288 = vrot.slane %v1287, 1
      %v1290 = vunpack.c.l.s4 1966171168
      %v1291 = vunpack.c.0.s8 %v1290
      %v1292 = vlaneseq
      %v1293 = vshrl.u32 %v1292, 7
      %v1294 = vsub.s32 %v1291, %v1293
      %v1295 = vrot.slane %v844, %v1294
      %v1297 = vunpack.c.l.s4 1966171168
      %v1298 = vunpack.c.0.s8 %v1297
      %v1299 = vlaneseq
      %v1300 = vshrl.u32 %v1299, 7
      %v1301 = vsub.s32 %v1298, %v1300
      %v1302 = vrot.slane %v1295, %v1301
      %1303 = vrot.lane.b32.xlu0 %v1302, 96
      %v1304 = vpop.permute.xlu0 %1303
      %v1306 = vsel %vm855, %v1304, 0
      %v1309 = vsel %vm855, %v1288, 0
      %1311 = vmatprep.subr.bf16.mxu0 0
      %1312 = vmatpush1.bf16.xpose.msra.mxu0 0
      %1313 = vmatprep.subr.bf16.mxu0 0
      %1314 = vmatpush1.bf16.xpose.msra.mxu0 0
      %1315 = vmatprep.subr.bf16.mxu0 0
      %1316 = vmatpush1.bf16.xpose.msra.mxu0 0
      %1317 = vmatprep.subr.bf16.mxu0 0
      %1318 = vmatpush1.bf16.xpose.msra.mxu0 0
      %1319 = vmatprep.subr.bf16.mxu0 0
      %1320 = vmatpush1.bf16.xpose.msra.mxu0 0
      %1321 = vmatprep.subr.bf16.mxu0 0
      %1322 = vmatpush1.bf16.xpose.msra.mxu0 0
      %1323 = vmatprep.subr.bf16.mxu0 0
      %1324 = vmatpush1.bf16.xpose.msra.mxu0 0
      %1325 = vmatprep.subr.bf16.mxu0 0
      %1326 = vmatpush1.bf16.xpose.msra.mxu0 %v1309
      %1327 = vmatprep.subr.bf16.mxu0 0
      %1328 = vmatpush2.bf16.xpose.msra.mxu0 0
      %1329 = vmatprep.subr.bf16.mxu0 0
      %1330 = vmatpush2.bf16.xpose.msra.mxu0 0
      %1331 = vmatprep.subr.bf16.mxu0 0
      %1332 = vmatpush2.bf16.xpose.msra.mxu0 0
      %1333 = vmatprep.subr.bf16.mxu0 0
      %1334 = vmatpush2.bf16.xpose.msra.mxu0 0
      %1335 = vmatprep.subr.bf16.mxu0 0
      %1336 = vmatpush2.bf16.xpose.msra.mxu0 0
      %1337 = vmatprep.subr.bf16.mxu0 0
      %1338 = vmatpush2.bf16.xpose.msra.mxu0 0
      %1339 = vmatprep.subr.bf16.mxu0 0
      %1340 = vmatpush2.bf16.xpose.msra.mxu0 0
      %1341 = vmatprep.subr.bf16.mxu0 0
      %1342 = vmatpush2.bf16.xpose.msra.mxu0 0
      %1343 = vmatprep.mubr.bf16.mxu0 0
      %1344 = vmatmul.mubr.bf16.gmra.mxu0 %v1306
      %v1345 = vpop.f32.mrf.mxu0
      %v1346 = vadd.f32 0.0, %v1345
      %v1347 = vpop.f32.mrf.mxu0
      %v1348 = vpop.f32.mrf.mxu0
      %v1349 = vpop.f32.mrf.mxu0
      %1350 = vdwg.mxu0
      %1351 = vrot.lane.b32.xlu0 %v851, 96
      %v1352 = vpop.permute.xlu0 %1351
      %v1353 = vrot.slane %v1352, 1
      %v1355 = vunpack.c.l.s4 1966171168
      %v1356 = vunpack.c.0.s8 %v1355
      %v1357 = vlaneseq
      %v1358 = vshrl.u32 %v1357, 7
      %v1359 = vsub.s32 %v1356, %v1358
      %v1360 = vrot.slane %v851, %v1359
      %v1362 = vunpack.c.l.s4 1966171168
      %v1363 = vunpack.c.0.s8 %v1362
      %v1364 = vlaneseq
      %v1365 = vshrl.u32 %v1364, 7
      %v1366 = vsub.s32 %v1363, %v1365
      %v1367 = vrot.slane %v1360, %v1366
      %1368 = vrot.lane.b32.xlu0 %v1367, 96
      %v1369 = vpop.permute.xlu0 %1368
      %v1371 = vsel %vm855, %v1369, 0
      %v1374 = vsel %vm855, %v1353, 0
      %1376 = vmatprep.subr.bf16.mxu0 0
      %1377 = vmatpush1.bf16.xpose.msra.mxu0 0
      %1378 = vmatprep.subr.bf16.mxu0 0
      %1379 = vmatpush1.bf16.xpose.msra.mxu0 0
      %1380 = vmatprep.subr.bf16.mxu0 0
      %1381 = vmatpush1.bf16.xpose.msra.mxu0 0
      %1382 = vmatprep.subr.bf16.mxu0 0
      %1383 = vmatpush1.bf16.xpose.msra.mxu0 0
      %1384 = vmatprep.subr.bf16.mxu0 0
      %1385 = vmatpush1.bf16.xpose.msra.mxu0 0
      %1386 = vmatprep.subr.bf16.mxu0 0
      %1387 = vmatpush1.bf16.xpose.msra.mxu0 0
      %1388 = vmatprep.subr.bf16.mxu0 0
      %1389 = vmatpush1.bf16.xpose.msra.mxu0 0
      %1390 = vmatprep.subr.bf16.mxu0 0
      %1391 = vmatpush1.bf16.xpose.msra.mxu0 %v1374
      %1392 = vmatprep.subr.bf16.mxu0 0
      %1393 = vmatpush2.bf16.xpose.msra.mxu0 0
      %1394 = vmatprep.subr.bf16.mxu0 0
      %1395 = vmatpush2.bf16.xpose.msra.mxu0 0
      %1396 = vmatprep.subr.bf16.mxu0 0
      %1397 = vmatpush2.bf16.xpose.msra.mxu0 0
      %1398 = vmatprep.subr.bf16.mxu0 0
      %1399 = vmatpush2.bf16.xpose.msra.mxu0 0
      %1400 = vmatprep.subr.bf16.mxu0 0
      %1401 = vmatpush2.bf16.xpose.msra.mxu0 0
      %1402 = vmatprep.subr.bf16.mxu0 0
      %1403 = vmatpush2.bf16.xpose.msra.mxu0 0
      %1404 = vmatprep.subr.bf16.mxu0 0
      %1405 = vmatpush2.bf16.xpose.msra.mxu0 0
      %1406 = vmatprep.subr.bf16.mxu0 0
      %1407 = vmatpush2.bf16.xpose.msra.mxu0 0
      %1408 = vmatprep.mubr.bf16.mxu0 0
      %1409 = vmatmul.mubr.bf16.gmra.mxu0 %v1371
      %v1410 = vpop.f32.mrf.mxu0
      %v1411 = vadd.f32 0.0, %v1410
      %v1412 = vpop.f32.mrf.mxu0
      %v1413 = vpop.f32.mrf.mxu0
      %v1414 = vpop.f32.mrf.mxu0
      %1415 = vdwg.mxu0
      %1416 = vrot.lane.b32.xlu0 %v852, 96
      %v1417 = vpop.permute.xlu0 %1416
      %v1418 = vrot.slane %v1417, 1
      %v1420 = vunpack.c.l.s4 1966171168
      %v1421 = vunpack.c.0.s8 %v1420
      %v1422 = vlaneseq
      %v1423 = vshrl.u32 %v1422, 7
      %v1424 = vsub.s32 %v1421, %v1423
      %v1425 = vrot.slane %v852, %v1424
      %v1427 = vunpack.c.l.s4 1966171168
      %v1428 = vunpack.c.0.s8 %v1427
      %v1429 = vlaneseq
      %v1430 = vshrl.u32 %v1429, 7
      %v1431 = vsub.s32 %v1428, %v1430
      %v1432 = vrot.slane %v1425, %v1431
      %1433 = vrot.lane.b32.xlu0 %v1432, 96
      %v1434 = vpop.permute.xlu0 %1433
      %v1436 = vsel %vm855, %v1434, 0
      %v1439 = vsel %vm855, %v1418, 0
      %1441 = vmatprep.subr.bf16.mxu0 0
      %1442 = vmatpush1.bf16.xpose.msra.mxu0 0
      %1443 = vmatprep.subr.bf16.mxu0 0
      %1444 = vmatpush1.bf16.xpose.msra.mxu0 0
      %1445 = vmatprep.subr.bf16.mxu0 0
      %1446 = vmatpush1.bf16.xpose.msra.mxu0 0
      %1447 = vmatprep.subr.bf16.mxu0 0
      %1448 = vmatpush1.bf16.xpose.msra.mxu0 0
      %1449 = vmatprep.subr.bf16.mxu0 0
      %1450 = vmatpush1.bf16.xpose.msra.mxu0 0
      %1451 = vmatprep.subr.bf16.mxu0 0
      %1452 = vmatpush1.bf16.xpose.msra.mxu0 0
      %1453 = vmatprep.subr.bf16.mxu0 0
      %1454 = vmatpush1.bf16.xpose.msra.mxu0 0
      %1455 = vmatprep.subr.bf16.mxu0 0
      %1456 = vmatpush1.bf16.xpose.msra.mxu0 %v1439
      %1457 = vmatprep.subr.bf16.mxu0 0
      %1458 = vmatpush2.bf16.xpose.msra.mxu0 0
      %1459 = vmatprep.subr.bf16.mxu0 0
      %1460 = vmatpush2.bf16.xpose.msra.mxu0 0
      %1461 = vmatprep.subr.bf16.mxu0 0
      %1462 = vmatpush2.bf16.xpose.msra.mxu0 0
      %1463 = vmatprep.subr.bf16.mxu0 0
      %1464 = vmatpush2.bf16.xpose.msra.mxu0 0
      %1465 = vmatprep.subr.bf16.mxu0 0
      %1466 = vmatpush2.bf16.xpose.msra.mxu0 0
      %1467 = vmatprep.subr.bf16.mxu0 0
      %1468 = vmatpush2.bf16.xpose.msra.mxu0 0
      %1469 = vmatprep.subr.bf16.mxu0 0
      %1470 = vmatpush2.bf16.xpose.msra.mxu0 0
      %1471 = vmatprep.subr.bf16.mxu0 0
      %1472 = vmatpush2.bf16.xpose.msra.mxu0 0
      %1473 = vmatprep.mubr.bf16.mxu0 0
      %1474 = vmatmul.mubr.bf16.gmra.mxu0 %v1436
      %v1475 = vpop.f32.mrf.mxu0
      %v1476 = vadd.f32 0.0, %v1475
      %v1477 = vpop.f32.mrf.mxu0
      %v1478 = vpop.f32.mrf.mxu0
      %v1479 = vpop.f32.mrf.mxu0
      %1480 = vdwg.mxu0
      %1481 = vrot.lane.b32.xlu0 %v853, 96
      %v1482 = vpop.permute.xlu0 %1481
      %v1483 = vrot.slane %v1482, 1
      %v1485 = vunpack.c.l.s4 1966171168
      %v1486 = vunpack.c.0.s8 %v1485
      %v1487 = vlaneseq
      %v1488 = vshrl.u32 %v1487, 7
      %v1489 = vsub.s32 %v1486, %v1488
      %v1490 = vrot.slane %v853, %v1489
      %v1492 = vunpack.c.l.s4 1966171168
      %v1493 = vunpack.c.0.s8 %v1492
      %v1494 = vlaneseq
      %v1495 = vshrl.u32 %v1494, 7
      %v1496 = vsub.s32 %v1493, %v1495
      %v1497 = vrot.slane %v1490, %v1496
      %1498 = vrot.lane.b32.xlu0 %v1497, 96
      %v1499 = vpop.permute.xlu0 %1498
      %v1501 = vsel %vm855, %v1499, 0
      %v1504 = vsel %vm855, %v1483, 0
      %1506 = vmatprep.subr.bf16.mxu0 0
      %1507 = vmatpush1.bf16.xpose.msra.mxu0 0
      %1508 = vmatprep.subr.bf16.mxu0 0
      %1509 = vmatpush1.bf16.xpose.msra.mxu0 0
      %1510 = vmatprep.subr.bf16.mxu0 0
      %1511 = vmatpush1.bf16.xpose.msra.mxu0 0
      %1512 = vmatprep.subr.bf16.mxu0 0
      %1513 = vmatpush1.bf16.xpose.msra.mxu0 0
      %1514 = vmatprep.subr.bf16.mxu0 0
      %1515 = vmatpush1.bf16.xpose.msra.mxu0 0
      %1516 = vmatprep.subr.bf16.mxu0 0
      %1517 = vmatpush1.bf16.xpose.msra.mxu0 0
      %1518 = vmatprep.subr.bf16.mxu0 0
      %1519 = vmatpush1.bf16.xpose.msra.mxu0 0
      %1520 = vmatprep.subr.bf16.mxu0 0
      %1521 = vmatpush1.bf16.xpose.msra.mxu0 %v1504
      %1522 = vmatprep.subr.bf16.mxu0 0
      %1523 = vmatpush2.bf16.xpose.msra.mxu0 0
      %1524 = vmatprep.subr.bf16.mxu0 0
      %1525 = vmatpush2.bf16.xpose.msra.mxu0 0
      %1526 = vmatprep.subr.bf16.mxu0 0
      %1527 = vmatpush2.bf16.xpose.msra.mxu0 0
      %1528 = vmatprep.subr.bf16.mxu0 0
      %1529 = vmatpush2.bf16.xpose.msra.mxu0 0
      %1530 = vmatprep.subr.bf16.mxu0 0
      %1531 = vmatpush2.bf16.xpose.msra.mxu0 0
      %1532 = vmatprep.subr.bf16.mxu0 0
      %1533 = vmatpush2.bf16.xpose.msra.mxu0 0
      %1534 = vmatprep.subr.bf16.mxu0 0
      %1535 = vmatpush2.bf16.xpose.msra.mxu0 0
      %1536 = vmatprep.subr.bf16.mxu0 0
      %1537 = vmatpush2.bf16.xpose.msra.mxu0 0
      %1538 = vmatprep.mubr.bf16.mxu0 0
      %1539 = vmatmul.mubr.bf16.gmra.mxu0 %v1501
      %v1540 = vpop.f32.mrf.mxu0
      %v1541 = vadd.f32 0.0, %v1540
      %v1542 = vpop.f32.mrf.mxu0
      %v1543 = vpop.f32.mrf.mxu0
      %v1544 = vpop.f32.mrf.mxu0
      %1545 = vdwg.mxu0
      %v1546 = vmul.f32 %v1346, 0.17677669
      %v1547 = vmul.f32 %v1411, 0.17677669
      %v1548 = vmul.f32 %v1476, 0.17677669
      %v1549 = vmul.f32 %v1541, 0.17677669
      %v1550 = vsel %vm1047, %v1546, -inf
      %1551 = vmax.xlane.f32.xlu0 %v1550
      %v1552 = vpop.xlane.xlu0 %1551
      %v1553 = vsel %vm1047, %v1547, -inf
      %1554 = vmax.xlane.f32.xlu0 %v1553
      %v1555 = vpop.xlane.xlu0 %1554
      %v1556 = vsel %vm1047, %v1548, -inf
      %1557 = vmax.xlane.f32.xlu0 %v1556
      %v1558 = vpop.xlane.xlu0 %1557
      %v1559 = vsel %vm1047, %v1549, -inf
      %1560 = vmax.xlane.f32.xlu0 %v1559
      %v1561 = vpop.xlane.xlu0 %1560
      %v1562 = vsub.f32 %v1546, %v1552
      %v1563 = vsub.f32 %v1547, %v1555
      %v1564 = vsub.f32 %v1548, %v1558
      %v1565 = vsub.f32 %v1549, %v1561
      %v1566 = vmul.f32 %v1562, 1.442695
      %v1567 = vpow.pop %v1566
      %v1568 = vmul.f32 %v1563, 1.442695
      %v1569 = vpow.pop %v1568
      %v1570 = vmul.f32 %v1564, 1.442695
      %v1571 = vpow.pop %v1570
      %v1572 = vmul.f32 %v1565, 1.442695
      %v1573 = vpow.pop %v1572
      %v1574 = vsel %vm1047, %v1567, 0.0
      %1575 = vadd.xlane.f32.xlu0 %v1574
      %v1576 = vpop.xlane.xlu0 %1575
      %v1577 = vsel %vm1047, %v1569, 0.0
      %1578 = vadd.xlane.f32.xlu0 %v1577
      %v1579 = vpop.xlane.xlu0 %1578
      %v1580 = vsel %vm1047, %v1571, 0.0
      %1581 = vadd.xlane.f32.xlu0 %v1580
      %v1582 = vpop.xlane.xlu0 %1581
      %v1583 = vsel %vm1047, %v1573, 0.0
      %1584 = vadd.xlane.f32.xlu0 %v1583
      %v1585 = vpop.xlane.xlu0 %1584
      %v1586 = vrcp.pop %v1576
      %v1587 = vmul.f32 %v1567, %v1586
      %v1588 = vrcp.pop %v1579
      %v1589 = vmul.f32 %v1569, %v1588
      %v1590 = vrcp.pop %v1582
      %v1591 = vmul.f32 %v1571, %v1590
      %v1592 = vrcp.pop %v1585
      %v1593 = vmul.f32 %v1573, %v1592
      %v1594 = vpack.c.bf16 %v1587, %v1587
      %v1595 = vpack.c.bf16 %v1589, %v1589
      %v1596 = vpack.c.bf16 %v1591, %v1591
      %v1597 = vpack.c.bf16 %v1593, %v1593
      %v1598 = vrot.slane %v1287, 2
      %v1600 = vsel %vm1097, %v1594, 0
      %v1603 = vsel %vm1101, %v1598, 0
      %1605 = vmatprep.subr.bf16.mxu0 0
      %1606 = vmatpush1.bf16.msra.mxu0 0
      %1607 = vmatprep.subr.bf16.mxu0 0
      %1608 = vmatpush1.bf16.msra.mxu0 0
      %1609 = vmatprep.subr.bf16.mxu0 0
      %1610 = vmatpush1.bf16.msra.mxu0 0
      %1611 = vmatprep.subr.bf16.mxu0 0
      %1612 = vmatpush1.bf16.msra.mxu0 0
      %1613 = vmatprep.subr.bf16.mxu0 0
      %1614 = vmatpush1.bf16.msra.mxu0 0
      %1615 = vmatprep.subr.bf16.mxu0 0
      %1616 = vmatpush1.bf16.msra.mxu0 0
      %1617 = vmatprep.subr.bf16.mxu0 0
      %1618 = vmatpush1.bf16.msra.mxu0 0
      %1619 = vmatprep.subr.bf16.mxu0 0
      %1620 = vmatpush1.bf16.msra.mxu0 %v1603
      %1621 = vmatprep.subr.bf16.mxu0 0
      %1622 = vmatpush2.bf16.msra.mxu0 0
      %1623 = vmatprep.subr.bf16.mxu0 0
      %1624 = vmatpush2.bf16.msra.mxu0 0
      %1625 = vmatprep.subr.bf16.mxu0 0
      %1626 = vmatpush2.bf16.msra.mxu0 0
      %1627 = vmatprep.subr.bf16.mxu0 0
      %1628 = vmatpush2.bf16.msra.mxu0 0
      %1629 = vmatprep.subr.bf16.mxu0 0
      %1630 = vmatpush2.bf16.msra.mxu0 0
      %1631 = vmatprep.subr.bf16.mxu0 0
      %1632 = vmatpush2.bf16.msra.mxu0 0
      %1633 = vmatprep.subr.bf16.mxu0 0
      %1634 = vmatpush2.bf16.msra.mxu0 0
      %1635 = vmatprep.subr.bf16.mxu0 0
      %1636 = vmatpush2.bf16.msra.mxu0 0
      %1637 = vmatprep.mubr.bf16.mxu0 0
      %1638 = vmatmul.mubr.bf16.gmra.mxu0 %v1600
      %v1639 = vpop.f32.mrf.mxu0
      %v1640 = vadd.f32 0.0, %v1639
      %v1641 = vpop.f32.mrf.mxu0
      %v1642 = vpop.f32.mrf.mxu0
      %v1643 = vpop.f32.mrf.mxu0
      %1644 = vdwg.mxu0
      %v1645 = vrot.slane %v1352, 2
      %v1647 = vsel %vm1097, %v1595, 0
      %v1650 = vsel %vm1101, %v1645, 0
      %1652 = vmatprep.subr.bf16.mxu0 0
      %1653 = vmatpush1.bf16.msra.mxu0 0
      %1654 = vmatprep.subr.bf16.mxu0 0
      %1655 = vmatpush1.bf16.msra.mxu0 0
      %1656 = vmatprep.subr.bf16.mxu0 0
      %1657 = vmatpush1.bf16.msra.mxu0 0
      %1658 = vmatprep.subr.bf16.mxu0 0
      %1659 = vmatpush1.bf16.msra.mxu0 0
      %1660 = vmatprep.subr.bf16.mxu0 0
      %1661 = vmatpush1.bf16.msra.mxu0 0
      %1662 = vmatprep.subr.bf16.mxu0 0
      %1663 = vmatpush1.bf16.msra.mxu0 0
      %1664 = vmatprep.subr.bf16.mxu0 0
      %1665 = vmatpush1.bf16.msra.mxu0 0
      %1666 = vmatprep.subr.bf16.mxu0 0
      %1667 = vmatpush1.bf16.msra.mxu0 %v1650
      %1668 = vmatprep.subr.bf16.mxu0 0
      %1669 = vmatpush2.bf16.msra.mxu0 0
      %1670 = vmatprep.subr.bf16.mxu0 0
      %1671 = vmatpush2.bf16.msra.mxu0 0
      %1672 = vmatprep.subr.bf16.mxu0 0
      %1673 = vmatpush2.bf16.msra.mxu0 0
      %1674 = vmatprep.subr.bf16.mxu0 0
      %1675 = vmatpush2.bf16.msra.mxu0 0
      %1676 = vmatprep.subr.bf16.mxu0 0
      %1677 = vmatpush2.bf16.msra.mxu0 0
      %1678 = vmatprep.subr.bf16.mxu0 0
      %1679 = vmatpush2.bf16.msra.mxu0 0
      %1680 = vmatprep.subr.bf16.mxu0 0
      %1681 = vmatpush2.bf16.msra.mxu0 0
      %1682 = vmatprep.subr.bf16.mxu0 0
      %1683 = vmatpush2.bf16.msra.mxu0 0
      %1684 = vmatprep.mubr.bf16.mxu0 0
      %1685 = vmatmul.mubr.bf16.gmra.mxu0 %v1647
      %v1686 = vpop.f32.mrf.mxu0
      %v1687 = vadd.f32 0.0, %v1686
      %v1688 = vpop.f32.mrf.mxu0
      %v1689 = vpop.f32.mrf.mxu0
      %v1690 = vpop.f32.mrf.mxu0
      %1691 = vdwg.mxu0
      %v1692 = vrot.slane %v1417, 2
      %v1694 = vsel %vm1097, %v1596, 0
      %v1697 = vsel %vm1101, %v1692, 0
      %1699 = vmatprep.subr.bf16.mxu0 0
      %1700 = vmatpush1.bf16.msra.mxu0 0
      %1701 = vmatprep.subr.bf16.mxu0 0
      %1702 = vmatpush1.bf16.msra.mxu0 0
      %1703 = vmatprep.subr.bf16.mxu0 0
      %1704 = vmatpush1.bf16.msra.mxu0 0
      %1705 = vmatprep.subr.bf16.mxu0 0
      %1706 = vmatpush1.bf16.msra.mxu0 0
      %1707 = vmatprep.subr.bf16.mxu0 0
      %1708 = vmatpush1.bf16.msra.mxu0 0
      %1709 = vmatprep.subr.bf16.mxu0 0
      %1710 = vmatpush1.bf16.msra.mxu0 0
      %1711 = vmatprep.subr.bf16.mxu0 0
      %1712 = vmatpush1.bf16.msra.mxu0 0
      %1713 = vmatprep.subr.bf16.mxu0 0
      %1714 = vmatpush1.bf16.msra.mxu0 %v1697
      %1715 = vmatprep.subr.bf16.mxu0 0
      %1716 = vmatpush2.bf16.msra.mxu0 0
      %1717 = vmatprep.subr.bf16.mxu0 0
      %1718 = vmatpush2.bf16.msra.mxu0 0
      %1719 = vmatprep.subr.bf16.mxu0 0
      %1720 = vmatpush2.bf16.msra.mxu0 0
      %1721 = vmatprep.subr.bf16.mxu0 0
      %1722 = vmatpush2.bf16.msra.mxu0 0
      %1723 = vmatprep.subr.bf16.mxu0 0
      %1724 = vmatpush2.bf16.msra.mxu0 0
      %1725 = vmatprep.subr.bf16.mxu0 0
      %1726 = vmatpush2.bf16.msra.mxu0 0
      %1727 = vmatprep.subr.bf16.mxu0 0
      %1728 = vmatpush2.bf16.msra.mxu0 0
      %1729 = vmatprep.subr.bf16.mxu0 0
      %1730 = vmatpush2.bf16.msra.mxu0 0
      %1731 = vmatprep.mubr.bf16.mxu0 0
      %1732 = vmatmul.mubr.bf16.gmra.mxu0 %v1694
      %v1733 = vpop.f32.mrf.mxu0
      %v1734 = vadd.f32 0.0, %v1733
      %v1735 = vpop.f32.mrf.mxu0
      %v1736 = vpop.f32.mrf.mxu0
      %v1737 = vpop.f32.mrf.mxu0
      %1738 = vdwg.mxu0
      %v1739 = vrot.slane %v1482, 2
      %v1741 = vsel %vm1097, %v1597, 0
      %v1744 = vsel %vm1101, %v1739, 0
      %1746 = vmatprep.subr.bf16.mxu0 0
      %1747 = vmatpush1.bf16.msra.mxu0 0
      %1748 = vmatprep.subr.bf16.mxu0 0
      %1749 = vmatpush1.bf16.msra.mxu0 0
      %1750 = vmatprep.subr.bf16.mxu0 0
      %1751 = vmatpush1.bf16.msra.mxu0 0
      %1752 = vmatprep.subr.bf16.mxu0 0
      %1753 = vmatpush1.bf16.msra.mxu0 0
      %1754 = vmatprep.subr.bf16.mxu0 0
      %1755 = vmatpush1.bf16.msra.mxu0 0
      %1756 = vmatprep.subr.bf16.mxu0 0
      %1757 = vmatpush1.bf16.msra.mxu0 0
      %1758 = vmatprep.subr.bf16.mxu0 0
      %1759 = vmatpush1.bf16.msra.mxu0 0
      %1760 = vmatprep.subr.bf16.mxu0 0
      %1761 = vmatpush1.bf16.msra.mxu0 %v1744
      %1762 = vmatprep.subr.bf16.mxu0 0
      %1763 = vmatpush2.bf16.msra.mxu0 0
      %1764 = vmatprep.subr.bf16.mxu0 0
      %1765 = vmatpush2.bf16.msra.mxu0 0
      %1766 = vmatprep.subr.bf16.mxu0 0
      %1767 = vmatpush2.bf16.msra.mxu0 0
      %1768 = vmatprep.subr.bf16.mxu0 0
      %1769 = vmatpush2.bf16.msra.mxu0 0
      %1770 = vmatprep.subr.bf16.mxu0 0
      %1771 = vmatpush2.bf16.msra.mxu0 0
      %1772 = vmatprep.subr.bf16.mxu0 0
      %1773 = vmatpush2.bf16.msra.mxu0 0
      %1774 = vmatprep.subr.bf16.mxu0 0
      %1775 = vmatpush2.bf16.msra.mxu0 0
      %1776 = vmatprep.subr.bf16.mxu0 0
      %1777 = vmatpush2.bf16.msra.mxu0 0
      %1778 = vmatprep.mubr.bf16.mxu0 0
      %1779 = vmatmul.mubr.bf16.gmra.mxu0 %v1741
      %v1780 = vpop.f32.mrf.mxu0
      %v1781 = vadd.f32 0.0, %v1780
      %v1782 = vpop.f32.mrf.mxu0
      %v1783 = vpop.f32.mrf.mxu0
      %v1784 = vpop.f32.mrf.mxu0
      %1785 = vdwg.mxu0
      %1786 = vrot.lane.b32.xlu0 %v844, 64
      %v1787 = vpop.permute.xlu0 %1786
      %v1788 = vrot.slane %v1787, 1
      %1789 = vrot.lane.b32.xlu0 %v1302, 64
      %v1790 = vpop.permute.xlu0 %1789
      %v1792 = vsel %vm855, %v1790, 0
      %v1795 = vsel %vm855, %v1788, 0
      %1797 = vmatprep.subr.bf16.mxu0 0
      %1798 = vmatpush1.bf16.xpose.msra.mxu0 0
      %1799 = vmatprep.subr.bf16.mxu0 0
      %1800 = vmatpush1.bf16.xpose.msra.mxu0 0
      %1801 = vmatprep.subr.bf16.mxu0 0
      %1802 = vmatpush1.bf16.xpose.msra.mxu0 0
      %1803 = vmatprep.subr.bf16.mxu0 0
      %1804 = vmatpush1.bf16.xpose.msra.mxu0 0
      %1805 = vmatprep.subr.bf16.mxu0 0
      %1806 = vmatpush1.bf16.xpose.msra.mxu0 0
      %1807 = vmatprep.subr.bf16.mxu0 0
      %1808 = vmatpush1.bf16.xpose.msra.mxu0 0
      %1809 = vmatprep.subr.bf16.mxu0 0
      %1810 = vmatpush1.bf16.xpose.msra.mxu0 0
      %1811 = vmatprep.subr.bf16.mxu0 0
      %1812 = vmatpush1.bf16.xpose.msra.mxu0 %v1795
      %1813 = vmatprep.subr.bf16.mxu0 0
      %1814 = vmatpush2.bf16.xpose.msra.mxu0 0
      %1815 = vmatprep.subr.bf16.mxu0 0
      %1816 = vmatpush2.bf16.xpose.msra.mxu0 0
      %1817 = vmatprep.subr.bf16.mxu0 0
      %1818 = vmatpush2.bf16.xpose.msra.mxu0 0
      %1819 = vmatprep.subr.bf16.mxu0 0
      %1820 = vmatpush2.bf16.xpose.msra.mxu0 0
      %1821 = vmatprep.subr.bf16.mxu0 0
      %1822 = vmatpush2.bf16.xpose.msra.mxu0 0
      %1823 = vmatprep.subr.bf16.mxu0 0
      %1824 = vmatpush2.bf16.xpose.msra.mxu0 0
      %1825 = vmatprep.subr.bf16.mxu0 0
      %1826 = vmatpush2.bf16.xpose.msra.mxu0 0
      %1827 = vmatprep.subr.bf16.mxu0 0
      %1828 = vmatpush2.bf16.xpose.msra.mxu0 0
      %1829 = vmatprep.mubr.bf16.mxu0 0
      %1830 = vmatmul.mubr.bf16.gmra.mxu0 %v1792
      %v1831 = vpop.f32.mrf.mxu0
      %v1832 = vadd.f32 0.0, %v1831
      %v1833 = vpop.f32.mrf.mxu0
      %v1834 = vpop.f32.mrf.mxu0
      %v1835 = vpop.f32.mrf.mxu0
      %1836 = vdwg.mxu0
      %1837 = vrot.lane.b32.xlu0 %v851, 64
      %v1838 = vpop.permute.xlu0 %1837
      %v1839 = vrot.slane %v1838, 1
      %1840 = vrot.lane.b32.xlu0 %v1367, 64
      %v1841 = vpop.permute.xlu0 %1840
      %v1843 = vsel %vm855, %v1841, 0
      %v1846 = vsel %vm855, %v1839, 0
      %1848 = vmatprep.subr.bf16.mxu0 0
      %1849 = vmatpush1.bf16.xpose.msra.mxu0 0
      %1850 = vmatprep.subr.bf16.mxu0 0
      %1851 = vmatpush1.bf16.xpose.msra.mxu0 0
      %1852 = vmatprep.subr.bf16.mxu0 0
      %1853 = vmatpush1.bf16.xpose.msra.mxu0 0
      %1854 = vmatprep.subr.bf16.mxu0 0
      %1855 = vmatpush1.bf16.xpose.msra.mxu0 0
      %1856 = vmatprep.subr.bf16.mxu0 0
      %1857 = vmatpush1.bf16.xpose.msra.mxu0 0
      %1858 = vmatprep.subr.bf16.mxu0 0
      %1859 = vmatpush1.bf16.xpose.msra.mxu0 0
      %1860 = vmatprep.subr.bf16.mxu0 0
      %1861 = vmatpush1.bf16.xpose.msra.mxu0 0
      %1862 = vmatprep.subr.bf16.mxu0 0
      %1863 = vmatpush1.bf16.xpose.msra.mxu0 %v1846
      %1864 = vmatprep.subr.bf16.mxu0 0
      %1865 = vmatpush2.bf16.xpose.msra.mxu0 0
      %1866 = vmatprep.subr.bf16.mxu0 0
      %1867 = vmatpush2.bf16.xpose.msra.mxu0 0
      %1868 = vmatprep.subr.bf16.mxu0 0
      %1869 = vmatpush2.bf16.xpose.msra.mxu0 0
      %1870 = vmatprep.subr.bf16.mxu0 0
      %1871 = vmatpush2.bf16.xpose.msra.mxu0 0
      %1872 = vmatprep.subr.bf16.mxu0 0
      %1873 = vmatpush2.bf16.xpose.msra.mxu0 0
      %1874 = vmatprep.subr.bf16.mxu0 0
      %1875 = vmatpush2.bf16.xpose.msra.mxu0 0
      %1876 = vmatprep.subr.bf16.mxu0 0
      %1877 = vmatpush2.bf16.xpose.msra.mxu0 0
      %1878 = vmatprep.subr.bf16.mxu0 0
      %1879 = vmatpush2.bf16.xpose.msra.mxu0 0
      %1880 = vmatprep.mubr.bf16.mxu0 0
      %1881 = vmatmul.mubr.bf16.gmra.mxu0 %v1843
      %v1882 = vpop.f32.mrf.mxu0
      %v1883 = vadd.f32 0.0, %v1882
      %v1884 = vpop.f32.mrf.mxu0
      %v1885 = vpop.f32.mrf.mxu0
      %v1886 = vpop.f32.mrf.mxu0
      %1887 = vdwg.mxu0
      %1888 = vrot.lane.b32.xlu0 %v852, 64
      %v1889 = vpop.permute.xlu0 %1888
      %v1890 = vrot.slane %v1889, 1
      %1891 = vrot.lane.b32.xlu0 %v1432, 64
      %v1892 = vpop.permute.xlu0 %1891
      %v1894 = vsel %vm855, %v1892, 0
      %v1897 = vsel %vm855, %v1890, 0
      %1899 = vmatprep.subr.bf16.mxu0 0
      %1900 = vmatpush1.bf16.xpose.msra.mxu0 0
      %1901 = vmatprep.subr.bf16.mxu0 0
      %1902 = vmatpush1.bf16.xpose.msra.mxu0 0
      %1903 = vmatprep.subr.bf16.mxu0 0
      %1904 = vmatpush1.bf16.xpose.msra.mxu0 0
      %1905 = vmatprep.subr.bf16.mxu0 0
      %1906 = vmatpush1.bf16.xpose.msra.mxu0 0
      %1907 = vmatprep.subr.bf16.mxu0 0
      %1908 = vmatpush1.bf16.xpose.msra.mxu0 0
      %1909 = vmatprep.subr.bf16.mxu0 0
      %1910 = vmatpush1.bf16.xpose.msra.mxu0 0
      %1911 = vmatprep.subr.bf16.mxu0 0
      %1912 = vmatpush1.bf16.xpose.msra.mxu0 0
      %1913 = vmatprep.subr.bf16.mxu0 0
      %1914 = vmatpush1.bf16.xpose.msra.mxu0 %v1897
      %1915 = vmatprep.subr.bf16.mxu0 0
      %1916 = vmatpush2.bf16.xpose.msra.mxu0 0
      %1917 = vmatprep.subr.bf16.mxu0 0
      %1918 = vmatpush2.bf16.xpose.msra.mxu0 0
      %1919 = vmatprep.subr.bf16.mxu0 0
      %1920 = vmatpush2.bf16.xpose.msra.mxu0 0
      %1921 = vmatprep.subr.bf16.mxu0 0
      %1922 = vmatpush2.bf16.xpose.msra.mxu0 0
      %1923 = vmatprep.subr.bf16.mxu0 0
      %1924 = vmatpush2.bf16.xpose.msra.mxu0 0
      %1925 = vmatprep.subr.bf16.mxu0 0
      %1926 = vmatpush2.bf16.xpose.msra.mxu0 0
      %1927 = vmatprep.subr.bf16.mxu0 0
      %1928 = vmatpush2.bf16.xpose.msra.mxu0 0
      %1929 = vmatprep.subr.bf16.mxu0 0
      %1930 = vmatpush2.bf16.xpose.msra.mxu0 0
      %1931 = vmatprep.mubr.bf16.mxu0 0
      %1932 = vmatmul.mubr.bf16.gmra.mxu0 %v1894
      %v1933 = vpop.f32.mrf.mxu0
      %v1934 = vadd.f32 0.0, %v1933
      %v1935 = vpop.f32.mrf.mxu0
      %v1936 = vpop.f32.mrf.mxu0
      %v1937 = vpop.f32.mrf.mxu0
      %1938 = vdwg.mxu0
      %1939 = vrot.lane.b32.xlu0 %v853, 64
      %v1940 = vpop.permute.xlu0 %1939
      %v1941 = vrot.slane %v1940, 1
      %1942 = vrot.lane.b32.xlu0 %v1497, 64
      %v1943 = vpop.permute.xlu0 %1942
      %v1945 = vsel %vm855, %v1943, 0
      %v1948 = vsel %vm855, %v1941, 0
      %1950 = vmatprep.subr.bf16.mxu0 0
      %1951 = vmatpush1.bf16.xpose.msra.mxu0 0
      %1952 = vmatprep.subr.bf16.mxu0 0
      %1953 = vmatpush1.bf16.xpose.msra.mxu0 0
      %1954 = vmatprep.subr.bf16.mxu0 0
      %1955 = vmatpush1.bf16.xpose.msra.mxu0 0
      %1956 = vmatprep.subr.bf16.mxu0 0
      %1957 = vmatpush1.bf16.xpose.msra.mxu0 0
      %1958 = vmatprep.subr.bf16.mxu0 0
      %1959 = vmatpush1.bf16.xpose.msra.mxu0 0
      %1960 = vmatprep.subr.bf16.mxu0 0
      %1961 = vmatpush1.bf16.xpose.msra.mxu0 0
      %1962 = vmatprep.subr.bf16.mxu0 0
      %1963 = vmatpush1.bf16.xpose.msra.mxu0 0
      %1964 = vmatprep.subr.bf16.mxu0 0
      %1965 = vmatpush1.bf16.xpose.msra.mxu0 %v1948
      %1966 = vmatprep.subr.bf16.mxu0 0
      %1967 = vmatpush2.bf16.xpose.msra.mxu0 0
      %1968 = vmatprep.subr.bf16.mxu0 0
      %1969 = vmatpush2.bf16.xpose.msra.mxu0 0
      %1970 = vmatprep.subr.bf16.mxu0 0
      %1971 = vmatpush2.bf16.xpose.msra.mxu0 0
      %1972 = vmatprep.subr.bf16.mxu0 0
      %1973 = vmatpush2.bf16.xpose.msra.mxu0 0
      %1974 = vmatprep.subr.bf16.mxu0 0
      %1975 = vmatpush2.bf16.xpose.msra.mxu0 0
      %1976 = vmatprep.subr.bf16.mxu0 0
      %1977 = vmatpush2.bf16.xpose.msra.mxu0 0
      %1978 = vmatprep.subr.bf16.mxu0 0
      %1979 = vmatpush2.bf16.xpose.msra.mxu0 0
      %1980 = vmatprep.subr.bf16.mxu0 0
      %1981 = vmatpush2.bf16.xpose.msra.mxu0 0
      %1982 = vmatprep.mubr.bf16.mxu0 0
      %1983 = vmatmul.mubr.bf16.gmra.mxu0 %v1945
      %v1984 = vpop.f32.mrf.mxu0
      %v1985 = vadd.f32 0.0, %v1984
      %v1986 = vpop.f32.mrf.mxu0
      %v1987 = vpop.f32.mrf.mxu0
      %v1988 = vpop.f32.mrf.mxu0
      %1989 = vdwg.mxu0
      %v1990 = vmul.f32 %v1832, 0.17677669
      %v1991 = vmul.f32 %v1883, 0.17677669
      %v1992 = vmul.f32 %v1934, 0.17677669
      %v1993 = vmul.f32 %v1985, 0.17677669
      %v1994 = vsel %vm1047, %v1990, -inf
      %1995 = vmax.xlane.f32.xlu0 %v1994
      %v1996 = vpop.xlane.xlu0 %1995
      %v1997 = vsel %vm1047, %v1991, -inf
      %1998 = vmax.xlane.f32.xlu0 %v1997
      %v1999 = vpop.xlane.xlu0 %1998
      %v2000 = vsel %vm1047, %v1992, -inf
      %2001 = vmax.xlane.f32.xlu0 %v2000
      %v2002 = vpop.xlane.xlu0 %2001
      %v2003 = vsel %vm1047, %v1993, -inf
      %2004 = vmax.xlane.f32.xlu0 %v2003
      %v2005 = vpop.xlane.xlu0 %2004
      %v2006 = vsub.f32 %v1990, %v1996
      %v2007 = vsub.f32 %v1991, %v1999
      %v2008 = vsub.f32 %v1992, %v2002
      %v2009 = vsub.f32 %v1993, %v2005
      %v2010 = vmul.f32 %v2006, 1.442695
      %v2011 = vpow.pop %v2010
      %v2012 = vmul.f32 %v2007, 1.442695
      %v2013 = vpow.pop %v2012
      %v2014 = vmul.f32 %v2008, 1.442695
      %v2015 = vpow.pop %v2014
      %v2016 = vmul.f32 %v2009, 1.442695
      %v2017 = vpow.pop %v2016
      %v2018 = vsel %vm1047, %v2011, 0.0
      %2019 = vadd.xlane.f32.xlu0 %v2018
      %v2020 = vpop.xlane.xlu0 %2019
      %v2021 = vsel %vm1047, %v2013, 0.0
      %2022 = vadd.xlane.f32.xlu0 %v2021
      %v2023 = vpop.xlane.xlu0 %2022
      %v2024 = vsel %vm1047, %v2015, 0.0
      %2025 = vadd.xlane.f32.xlu0 %v2024
      %v2026 = vpop.xlane.xlu0 %2025
      %v2027 = vsel %vm1047, %v2017, 0.0
      %2028 = vadd.xlane.f32.xlu0 %v2027
      %v2029 = vpop.xlane.xlu0 %2028
      %v2030 = vrcp.pop %v2020
      %v2031 = vmul.f32 %v2011, %v2030
      %v2032 = vrcp.pop %v2023
      %v2033 = vmul.f32 %v2013, %v2032
      %v2034 = vrcp.pop %v2026
      %v2035 = vmul.f32 %v2015, %v2034
      %v2036 = vrcp.pop %v2029
      %v2037 = vmul.f32 %v2017, %v2036
      %v2038 = vpack.c.bf16 %v2031, %v2031
      %v2039 = vpack.c.bf16 %v2033, %v2033
      %v2040 = vpack.c.bf16 %v2035, %v2035
      %v2041 = vpack.c.bf16 %v2037, %v2037
      %v2042 = vrot.slane %v1787, 2
      %v2044 = vsel %vm1097, %v2038, 0
      %v2047 = vsel %vm1101, %v2042, 0
      %2049 = vmatprep.subr.bf16.mxu0 0
      %2050 = vmatpush1.bf16.msra.mxu0 0
      %2051 = vmatprep.subr.bf16.mxu0 0
      %2052 = vmatpush1.bf16.msra.mxu0 0
      %2053 = vmatprep.subr.bf16.mxu0 0
      %2054 = vmatpush1.bf16.msra.mxu0 0
      %2055 = vmatprep.subr.bf16.mxu0 0
      %2056 = vmatpush1.bf16.msra.mxu0 0
      %2057 = vmatprep.subr.bf16.mxu0 0
      %2058 = vmatpush1.bf16.msra.mxu0 0
      %2059 = vmatprep.subr.bf16.mxu0 0
      %2060 = vmatpush1.bf16.msra.mxu0 0
      %2061 = vmatprep.subr.bf16.mxu0 0
      %2062 = vmatpush1.bf16.msra.mxu0 0
      %2063 = vmatprep.subr.bf16.mxu0 0
      %2064 = vmatpush1.bf16.msra.mxu0 %v2047
      %2065 = vmatprep.subr.bf16.mxu0 0
      %2066 = vmatpush2.bf16.msra.mxu0 0
      %2067 = vmatprep.subr.bf16.mxu0 0
      %2068 = vmatpush2.bf16.msra.mxu0 0
      %2069 = vmatprep.subr.bf16.mxu0 0
      %2070 = vmatpush2.bf16.msra.mxu0 0
      %2071 = vmatprep.subr.bf16.mxu0 0
      %2072 = vmatpush2.bf16.msra.mxu0 0
      %2073 = vmatprep.subr.bf16.mxu0 0
      %2074 = vmatpush2.bf16.msra.mxu0 0
      %2075 = vmatprep.subr.bf16.mxu0 0
      %2076 = vmatpush2.bf16.msra.mxu0 0
      %2077 = vmatprep.subr.bf16.mxu0 0
      %2078 = vmatpush2.bf16.msra.mxu0 0
      %2079 = vmatprep.subr.bf16.mxu0 0
      %2080 = vmatpush2.bf16.msra.mxu0 0
      %2081 = vmatprep.mubr.bf16.mxu0 0
      %2082 = vmatmul.mubr.bf16.gmra.mxu0 %v2044
      %v2083 = vpop.f32.mrf.mxu0
      %v2084 = vadd.f32 0.0, %v2083
      %v2085 = vpop.f32.mrf.mxu0
      %v2086 = vpop.f32.mrf.mxu0
      %v2087 = vpop.f32.mrf.mxu0
      %2088 = vdwg.mxu0
      %v2089 = vrot.slane %v1838, 2
      %v2091 = vsel %vm1097, %v2039, 0
      %v2094 = vsel %vm1101, %v2089, 0
      %2096 = vmatprep.subr.bf16.mxu0 0
      %2097 = vmatpush1.bf16.msra.mxu0 0
      %2098 = vmatprep.subr.bf16.mxu0 0
      %2099 = vmatpush1.bf16.msra.mxu0 0
      %2100 = vmatprep.subr.bf16.mxu0 0
      %2101 = vmatpush1.bf16.msra.mxu0 0
      %2102 = vmatprep.subr.bf16.mxu0 0
      %2103 = vmatpush1.bf16.msra.mxu0 0
      %2104 = vmatprep.subr.bf16.mxu0 0
      %2105 = vmatpush1.bf16.msra.mxu0 0
      %2106 = vmatprep.subr.bf16.mxu0 0
      %2107 = vmatpush1.bf16.msra.mxu0 0
      %2108 = vmatprep.subr.bf16.mxu0 0
      %2109 = vmatpush1.bf16.msra.mxu0 0
      %2110 = vmatprep.subr.bf16.mxu0 0
      %2111 = vmatpush1.bf16.msra.mxu0 %v2094
      %2112 = vmatprep.subr.bf16.mxu0 0
      %2113 = vmatpush2.bf16.msra.mxu0 0
      %2114 = vmatprep.subr.bf16.mxu0 0
      %2115 = vmatpush2.bf16.msra.mxu0 0
      %2116 = vmatprep.subr.bf16.mxu0 0
      %2117 = vmatpush2.bf16.msra.mxu0 0
      %2118 = vmatprep.subr.bf16.mxu0 0
      %2119 = vmatpush2.bf16.msra.mxu0 0
      %2120 = vmatprep.subr.bf16.mxu0 0
      %2121 = vmatpush2.bf16.msra.mxu0 0
      %2122 = vmatprep.subr.bf16.mxu0 0
      %2123 = vmatpush2.bf16.msra.mxu0 0
      %2124 = vmatprep.subr.bf16.mxu0 0
      %2125 = vmatpush2.bf16.msra.mxu0 0
      %2126 = vmatprep.subr.bf16.mxu0 0
      %2127 = vmatpush2.bf16.msra.mxu0 0
      %2128 = vmatprep.mubr.bf16.mxu0 0
      %2129 = vmatmul.mubr.bf16.gmra.mxu0 %v2091
      %v2130 = vpop.f32.mrf.mxu0
      %v2131 = vadd.f32 0.0, %v2130
      %v2132 = vpop.f32.mrf.mxu0
      %v2133 = vpop.f32.mrf.mxu0
      %v2134 = vpop.f32.mrf.mxu0
      %2135 = vdwg.mxu0
      %v2136 = vrot.slane %v1889, 2
      %v2138 = vsel %vm1097, %v2040, 0
      %v2141 = vsel %vm1101, %v2136, 0
      %2143 = vmatprep.subr.bf16.mxu0 0
      %2144 = vmatpush1.bf16.msra.mxu0 0
      %2145 = vmatprep.subr.bf16.mxu0 0
      %2146 = vmatpush1.bf16.msra.mxu0 0
      %2147 = vmatprep.subr.bf16.mxu0 0
      %2148 = vmatpush1.bf16.msra.mxu0 0
      %2149 = vmatprep.subr.bf16.mxu0 0
      %2150 = vmatpush1.bf16.msra.mxu0 0
      %2151 = vmatprep.subr.bf16.mxu0 0
      %2152 = vmatpush1.bf16.msra.mxu0 0
      %2153 = vmatprep.subr.bf16.mxu0 0
      %2154 = vmatpush1.bf16.msra.mxu0 0
      %2155 = vmatprep.subr.bf16.mxu0 0
      %2156 = vmatpush1.bf16.msra.mxu0 0
      %2157 = vmatprep.subr.bf16.mxu0 0
      %2158 = vmatpush1.bf16.msra.mxu0 %v2141
      %2159 = vmatprep.subr.bf16.mxu0 0
      %2160 = vmatpush2.bf16.msra.mxu0 0
      %2161 = vmatprep.subr.bf16.mxu0 0
      %2162 = vmatpush2.bf16.msra.mxu0 0
      %2163 = vmatprep.subr.bf16.mxu0 0
      %2164 = vmatpush2.bf16.msra.mxu0 0
      %2165 = vmatprep.subr.bf16.mxu0 0
      %2166 = vmatpush2.bf16.msra.mxu0 0
      %2167 = vmatprep.subr.bf16.mxu0 0
      %2168 = vmatpush2.bf16.msra.mxu0 0
      %2169 = vmatprep.subr.bf16.mxu0 0
      %2170 = vmatpush2.bf16.msra.mxu0 0
      %2171 = vmatprep.subr.bf16.mxu0 0
      %2172 = vmatpush2.bf16.msra.mxu0 0
      %2173 = vmatprep.subr.bf16.mxu0 0
      %2174 = vmatpush2.bf16.msra.mxu0 0
      %2175 = vmatprep.mubr.bf16.mxu0 0
      %2176 = vmatmul.mubr.bf16.gmra.mxu0 %v2138
      %v2177 = vpop.f32.mrf.mxu0
      %v2178 = vadd.f32 0.0, %v2177
      %v2179 = vpop.f32.mrf.mxu0
      %v2180 = vpop.f32.mrf.mxu0
      %v2181 = vpop.f32.mrf.mxu0
      %2182 = vdwg.mxu0
      %v2183 = vrot.slane %v1940, 2
      %v2185 = vsel %vm1097, %v2041, 0
      %v2188 = vsel %vm1101, %v2183, 0
      %2190 = vmatprep.subr.bf16.mxu0 0
      %2191 = vmatpush1.bf16.msra.mxu0 0
      %2192 = vmatprep.subr.bf16.mxu0 0
      %2193 = vmatpush1.bf16.msra.mxu0 0
      %2194 = vmatprep.subr.bf16.mxu0 0
      %2195 = vmatpush1.bf16.msra.mxu0 0
      %2196 = vmatprep.subr.bf16.mxu0 0
      %2197 = vmatpush1.bf16.msra.mxu0 0
      %2198 = vmatprep.subr.bf16.mxu0 0
      %2199 = vmatpush1.bf16.msra.mxu0 0
      %2200 = vmatprep.subr.bf16.mxu0 0
      %2201 = vmatpush1.bf16.msra.mxu0 0
      %2202 = vmatprep.subr.bf16.mxu0 0
      %2203 = vmatpush1.bf16.msra.mxu0 0
      %2204 = vmatprep.subr.bf16.mxu0 0
      %2205 = vmatpush1.bf16.msra.mxu0 %v2188
      %2206 = vmatprep.subr.bf16.mxu0 0
      %2207 = vmatpush2.bf16.msra.mxu0 0
      %2208 = vmatprep.subr.bf16.mxu0 0
      %2209 = vmatpush2.bf16.msra.mxu0 0
      %2210 = vmatprep.subr.bf16.mxu0 0
      %2211 = vmatpush2.bf16.msra.mxu0 0
      %2212 = vmatprep.subr.bf16.mxu0 0
      %2213 = vmatpush2.bf16.msra.mxu0 0
      %2214 = vmatprep.subr.bf16.mxu0 0
      %2215 = vmatpush2.bf16.msra.mxu0 0
      %2216 = vmatprep.subr.bf16.mxu0 0
      %2217 = vmatpush2.bf16.msra.mxu0 0
      %2218 = vmatprep.subr.bf16.mxu0 0
      %2219 = vmatpush2.bf16.msra.mxu0 0
      %2220 = vmatprep.subr.bf16.mxu0 0
      %2221 = vmatpush2.bf16.msra.mxu0 0
      %2222 = vmatprep.mubr.bf16.mxu0 0
      %2223 = vmatmul.mubr.bf16.gmra.mxu0 %v2185
      %v2224 = vpop.f32.mrf.mxu0
      %v2225 = vadd.f32 0.0, %v2224
      %v2226 = vpop.f32.mrf.mxu0
      %v2227 = vpop.f32.mrf.mxu0
      %v2228 = vpop.f32.mrf.mxu0
      %2229 = vdwg.mxu0
      %2230 = vrot.lane.b32.xlu0 %v844, 32
      %v2231 = vpop.permute.xlu0 %2230
      %v2232 = vrot.slane %v2231, 1
      %2233 = vrot.lane.b32.xlu0 %v1302, 32
      %v2234 = vpop.permute.xlu0 %2233
      %v2236 = vsel %vm855, %v2234, 0
      %v2239 = vsel %vm855, %v2232, 0
      %2241 = vmatprep.subr.bf16.mxu0 0
      %2242 = vmatpush1.bf16.xpose.msra.mxu0 0
      %2243 = vmatprep.subr.bf16.mxu0 0
      %2244 = vmatpush1.bf16.xpose.msra.mxu0 0
      %2245 = vmatprep.subr.bf16.mxu0 0
      %2246 = vmatpush1.bf16.xpose.msra.mxu0 0
      %2247 = vmatprep.subr.bf16.mxu0 0
      %2248 = vmatpush1.bf16.xpose.msra.mxu0 0
      %2249 = vmatprep.subr.bf16.mxu0 0
      %2250 = vmatpush1.bf16.xpose.msra.mxu0 0
      %2251 = vmatprep.subr.bf16.mxu0 0
      %2252 = vmatpush1.bf16.xpose.msra.mxu0 0
      %2253 = vmatprep.subr.bf16.mxu0 0
      %2254 = vmatpush1.bf16.xpose.msra.mxu0 0
      %2255 = vmatprep.subr.bf16.mxu0 0
      %2256 = vmatpush1.bf16.xpose.msra.mxu0 %v2239
      %2257 = vmatprep.subr.bf16.mxu0 0
      %2258 = vmatpush2.bf16.xpose.msra.mxu0 0
      %2259 = vmatprep.subr.bf16.mxu0 0
      %2260 = vmatpush2.bf16.xpose.msra.mxu0 0
      %2261 = vmatprep.subr.bf16.mxu0 0
      %2262 = vmatpush2.bf16.xpose.msra.mxu0 0
      %2263 = vmatprep.subr.bf16.mxu0 0
      %2264 = vmatpush2.bf16.xpose.msra.mxu0 0
      %2265 = vmatprep.subr.bf16.mxu0 0
      %2266 = vmatpush2.bf16.xpose.msra.mxu0 0
      %2267 = vmatprep.subr.bf16.mxu0 0
      %2268 = vmatpush2.bf16.xpose.msra.mxu0 0
      %2269 = vmatprep.subr.bf16.mxu0 0
      %2270 = vmatpush2.bf16.xpose.msra.mxu0 0
      %2271 = vmatprep.subr.bf16.mxu0 0
      %2272 = vmatpush2.bf16.xpose.msra.mxu0 0
      %2273 = vmatprep.mubr.bf16.mxu0 0
      %2274 = vmatmul.mubr.bf16.gmra.mxu0 %v2236
      %v2275 = vpop.f32.mrf.mxu0
      %v2276 = vadd.f32 0.0, %v2275
      %v2277 = vpop.f32.mrf.mxu0
      %v2278 = vpop.f32.mrf.mxu0
      %v2279 = vpop.f32.mrf.mxu0
      %2280 = vdwg.mxu0
      %2281 = vrot.lane.b32.xlu0 %v851, 32
      %v2282 = vpop.permute.xlu0 %2281
      %v2283 = vrot.slane %v2282, 1
      %2284 = vrot.lane.b32.xlu0 %v1367, 32
      %v2285 = vpop.permute.xlu0 %2284
      %v2287 = vsel %vm855, %v2285, 0
      %v2290 = vsel %vm855, %v2283, 0
      %2292 = vmatprep.subr.bf16.mxu0 0
      %2293 = vmatpush1.bf16.xpose.msra.mxu0 0
      %2294 = vmatprep.subr.bf16.mxu0 0
      %2295 = vmatpush1.bf16.xpose.msra.mxu0 0
      %2296 = vmatprep.subr.bf16.mxu0 0
      %2297 = vmatpush1.bf16.xpose.msra.mxu0 0
      %2298 = vmatprep.subr.bf16.mxu0 0
      %2299 = vmatpush1.bf16.xpose.msra.mxu0 0
      %2300 = vmatprep.subr.bf16.mxu0 0
      %2301 = vmatpush1.bf16.xpose.msra.mxu0 0
      %2302 = vmatprep.subr.bf16.mxu0 0
      %2303 = vmatpush1.bf16.xpose.msra.mxu0 0
      %2304 = vmatprep.subr.bf16.mxu0 0
      %2305 = vmatpush1.bf16.xpose.msra.mxu0 0
      %2306 = vmatprep.subr.bf16.mxu0 0
      %2307 = vmatpush1.bf16.xpose.msra.mxu0 %v2290
      %2308 = vmatprep.subr.bf16.mxu0 0
      %2309 = vmatpush2.bf16.xpose.msra.mxu0 0
      %2310 = vmatprep.subr.bf16.mxu0 0
      %2311 = vmatpush2.bf16.xpose.msra.mxu0 0
      %2312 = vmatprep.subr.bf16.mxu0 0
      %2313 = vmatpush2.bf16.xpose.msra.mxu0 0
      %2314 = vmatprep.subr.bf16.mxu0 0
      %2315 = vmatpush2.bf16.xpose.msra.mxu0 0
      %2316 = vmatprep.subr.bf16.mxu0 0
      %2317 = vmatpush2.bf16.xpose.msra.mxu0 0
      %2318 = vmatprep.subr.bf16.mxu0 0
      %2319 = vmatpush2.bf16.xpose.msra.mxu0 0
      %2320 = vmatprep.subr.bf16.mxu0 0
      %2321 = vmatpush2.bf16.xpose.msra.mxu0 0
      %2322 = vmatprep.subr.bf16.mxu0 0
      %2323 = vmatpush2.bf16.xpose.msra.mxu0 0
      %2324 = vmatprep.mubr.bf16.mxu0 0
      %2325 = vmatmul.mubr.bf16.gmra.mxu0 %v2287
      %v2326 = vpop.f32.mrf.mxu0
      %v2327 = vadd.f32 0.0, %v2326
      %v2328 = vpop.f32.mrf.mxu0
      %v2329 = vpop.f32.mrf.mxu0
      %v2330 = vpop.f32.mrf.mxu0
      %2331 = vdwg.mxu0
      %2332 = vrot.lane.b32.xlu0 %v852, 32
      %v2333 = vpop.permute.xlu0 %2332
      %v2334 = vrot.slane %v2333, 1
      %2335 = vrot.lane.b32.xlu0 %v1432, 32
      %v2336 = vpop.permute.xlu0 %2335
      %v2338 = vsel %vm855, %v2336, 0
      %v2341 = vsel %vm855, %v2334, 0
      %2343 = vmatprep.subr.bf16.mxu0 0
      %2344 = vmatpush1.bf16.xpose.msra.mxu0 0
      %2345 = vmatprep.subr.bf16.mxu0 0
      %2346 = vmatpush1.bf16.xpose.msra.mxu0 0
      %2347 = vmatprep.subr.bf16.mxu0 0
      %2348 = vmatpush1.bf16.xpose.msra.mxu0 0
      %2349 = vmatprep.subr.bf16.mxu0 0
      %2350 = vmatpush1.bf16.xpose.msra.mxu0 0
      %2351 = vmatprep.subr.bf16.mxu0 0
      %2352 = vmatpush1.bf16.xpose.msra.mxu0 0
      %2353 = vmatprep.subr.bf16.mxu0 0
      %2354 = vmatpush1.bf16.xpose.msra.mxu0 0
      %2355 = vmatprep.subr.bf16.mxu0 0
      %2356 = vmatpush1.bf16.xpose.msra.mxu0 0
      %2357 = vmatprep.subr.bf16.mxu0 0
      %2358 = vmatpush1.bf16.xpose.msra.mxu0 %v2341
      %2359 = vmatprep.subr.bf16.mxu0 0
      %2360 = vmatpush2.bf16.xpose.msra.mxu0 0
      %2361 = vmatprep.subr.bf16.mxu0 0
      %2362 = vmatpush2.bf16.xpose.msra.mxu0 0
      %2363 = vmatprep.subr.bf16.mxu0 0
      %2364 = vmatpush2.bf16.xpose.msra.mxu0 0
      %2365 = vmatprep.subr.bf16.mxu0 0
      %2366 = vmatpush2.bf16.xpose.msra.mxu0 0
      %2367 = vmatprep.subr.bf16.mxu0 0
      %2368 = vmatpush2.bf16.xpose.msra.mxu0 0
      %2369 = vmatprep.subr.bf16.mxu0 0
      %2370 = vmatpush2.bf16.xpose.msra.mxu0 0
      %2371 = vmatprep.subr.bf16.mxu0 0
      %2372 = vmatpush2.bf16.xpose.msra.mxu0 0
      %2373 = vmatprep.subr.bf16.mxu0 0
      %2374 = vmatpush2.bf16.xpose.msra.mxu0 0
      %2375 = vmatprep.mubr.bf16.mxu0 0
      %2376 = vmatmul.mubr.bf16.gmra.mxu0 %v2338
      %v2377 = vpop.f32.mrf.mxu0
      %v2378 = vadd.f32 0.0, %v2377
      %v2379 = vpop.f32.mrf.mxu0
      %v2380 = vpop.f32.mrf.mxu0
      %v2381 = vpop.f32.mrf.mxu0
      %2382 = vdwg.mxu0
      %2383 = vrot.lane.b32.xlu0 %v853, 32
      %v2384 = vpop.permute.xlu0 %2383
      %v2385 = vrot.slane %v2384, 1
      %2386 = vrot.lane.b32.xlu0 %v1497, 32
      %v2387 = vpop.permute.xlu0 %2386
      %v2389 = vsel %vm855, %v2387, 0
      %v2392 = vsel %vm855, %v2385, 0
      %2394 = vmatprep.subr.bf16.mxu0 0
      %2395 = vmatpush1.bf16.xpose.msra.mxu0 0
      %2396 = vmatprep.subr.bf16.mxu0 0
      %2397 = vmatpush1.bf16.xpose.msra.mxu0 0
      %2398 = vmatprep.subr.bf16.mxu0 0
      %2399 = vmatpush1.bf16.xpose.msra.mxu0 0
      %2400 = vmatprep.subr.bf16.mxu0 0
      %2401 = vmatpush1.bf16.xpose.msra.mxu0 0
      %2402 = vmatprep.subr.bf16.mxu0 0
      %2403 = vmatpush1.bf16.xpose.msra.mxu0 0
      %2404 = vmatprep.subr.bf16.mxu0 0
      %2405 = vmatpush1.bf16.xpose.msra.mxu0 0
      %2406 = vmatprep.subr.bf16.mxu0 0
      %2407 = vmatpush1.bf16.xpose.msra.mxu0 0
      %2408 = vmatprep.subr.bf16.mxu0 0
      %2409 = vmatpush1.bf16.xpose.msra.mxu0 %v2392
      %2410 = vmatprep.subr.bf16.mxu0 0
      %2411 = vmatpush2.bf16.xpose.msra.mxu0 0
      %2412 = vmatprep.subr.bf16.mxu0 0
      %2413 = vmatpush2.bf16.xpose.msra.mxu0 0
      %2414 = vmatprep.subr.bf16.mxu0 0
      %2415 = vmatpush2.bf16.xpose.msra.mxu0 0
      %2416 = vmatprep.subr.bf16.mxu0 0
      %2417 = vmatpush2.bf16.xpose.msra.mxu0 0
      %2418 = vmatprep.subr.bf16.mxu0 0
      %2419 = vmatpush2.bf16.xpose.msra.mxu0 0
      %2420 = vmatprep.subr.bf16.mxu0 0
      %2421 = vmatpush2.bf16.xpose.msra.mxu0 0
      %2422 = vmatprep.subr.bf16.mxu0 0
      %2423 = vmatpush2.bf16.xpose.msra.mxu0 0
      %2424 = vmatprep.subr.bf16.mxu0 0
      %2425 = vmatpush2.bf16.xpose.msra.mxu0 0
      %2426 = vmatprep.mubr.bf16.mxu0 0
      %2427 = vmatmul.mubr.bf16.gmra.mxu0 %v2389
      %v2428 = vpop.f32.mrf.mxu0
      %v2429 = vadd.f32 0.0, %v2428
      %v2430 = vpop.f32.mrf.mxu0
      %v2431 = vpop.f32.mrf.mxu0
      %v2432 = vpop.f32.mrf.mxu0
      %2433 = vdwg.mxu0
      %v2434 = vmul.f32 %v2276, 0.17677669
      %v2435 = vmul.f32 %v2327, 0.17677669
      %v2436 = vmul.f32 %v2378, 0.17677669
      %v2437 = vmul.f32 %v2429, 0.17677669
      %v2438 = vsel %vm1047, %v2434, -inf
      %2439 = vmax.xlane.f32.xlu0 %v2438
      %v2440 = vpop.xlane.xlu0 %2439
      %v2441 = vsel %vm1047, %v2435, -inf
      %2442 = vmax.xlane.f32.xlu0 %v2441
      %v2443 = vpop.xlane.xlu0 %2442
      %v2444 = vsel %vm1047, %v2436, -inf
      %2445 = vmax.xlane.f32.xlu0 %v2444
      %v2446 = vpop.xlane.xlu0 %2445
      %v2447 = vsel %vm1047, %v2437, -inf
      %2448 = vmax.xlane.f32.xlu0 %v2447
      %v2449 = vpop.xlane.xlu0 %2448
      %v2450 = vsub.f32 %v2434, %v2440
      %v2451 = vsub.f32 %v2435, %v2443
      %v2452 = vsub.f32 %v2436, %v2446
      %v2453 = vsub.f32 %v2437, %v2449
      %v2454 = vmul.f32 %v2450, 1.442695
      %v2455 = vpow.pop %v2454
      %v2456 = vmul.f32 %v2451, 1.442695
      %v2457 = vpow.pop %v2456
      %v2458 = vmul.f32 %v2452, 1.442695
      %v2459 = vpow.pop %v2458
      %v2460 = vmul.f32 %v2453, 1.442695
      %v2461 = vpow.pop %v2460
      %v2462 = vsel %vm1047, %v2455, 0.0
      %2463 = vadd.xlane.f32.xlu0 %v2462
      %v2464 = vpop.xlane.xlu0 %2463
      %v2465 = vsel %vm1047, %v2457, 0.0
      %2466 = vadd.xlane.f32.xlu0 %v2465
      %v2467 = vpop.xlane.xlu0 %2466
      %v2468 = vsel %vm1047, %v2459, 0.0
      %2469 = vadd.xlane.f32.xlu0 %v2468
      %v2470 = vpop.xlane.xlu0 %2469
      %v2471 = vsel %vm1047, %v2461, 0.0
      %2472 = vadd.xlane.f32.xlu0 %v2471
      %v2473 = vpop.xlane.xlu0 %2472
      %v2474 = vrcp.pop %v2464
      %v2475 = vmul.f32 %v2455, %v2474
      %v2476 = vrcp.pop %v2467
      %v2477 = vmul.f32 %v2457, %v2476
      %v2478 = vrcp.pop %v2470
      %v2479 = vmul.f32 %v2459, %v2478
      %v2480 = vrcp.pop %v2473
      %v2481 = vmul.f32 %v2461, %v2480
      %v2482 = vpack.c.bf16 %v2475, %v2475
      %v2483 = vpack.c.bf16 %v2477, %v2477
      %v2484 = vpack.c.bf16 %v2479, %v2479
      %v2485 = vpack.c.bf16 %v2481, %v2481
      %v2486 = vrot.slane %v2231, 2
      %v2488 = vsel %vm1097, %v2482, 0
      %v2491 = vsel %vm1101, %v2486, 0
      %2493 = vmatprep.subr.bf16.mxu0 0
      %2494 = vmatpush1.bf16.msra.mxu0 0
      %2495 = vmatprep.subr.bf16.mxu0 0
      %2496 = vmatpush1.bf16.msra.mxu0 0
      %2497 = vmatprep.subr.bf16.mxu0 0
      %2498 = vmatpush1.bf16.msra.mxu0 0
      %2499 = vmatprep.subr.bf16.mxu0 0
      %2500 = vmatpush1.bf16.msra.mxu0 0
      %2501 = vmatprep.subr.bf16.mxu0 0
      %2502 = vmatpush1.bf16.msra.mxu0 0
      %2503 = vmatprep.subr.bf16.mxu0 0
      %2504 = vmatpush1.bf16.msra.mxu0 0
      %2505 = vmatprep.subr.bf16.mxu0 0
      %2506 = vmatpush1.bf16.msra.mxu0 0
      %2507 = vmatprep.subr.bf16.mxu0 0
      %2508 = vmatpush1.bf16.msra.mxu0 %v2491
      %2509 = vmatprep.subr.bf16.mxu0 0
      %2510 = vmatpush2.bf16.msra.mxu0 0
      %2511 = vmatprep.subr.bf16.mxu0 0
      %2512 = vmatpush2.bf16.msra.mxu0 0
      %2513 = vmatprep.subr.bf16.mxu0 0
      %2514 = vmatpush2.bf16.msra.mxu0 0
      %2515 = vmatprep.subr.bf16.mxu0 0
      %2516 = vmatpush2.bf16.msra.mxu0 0
      %2517 = vmatprep.subr.bf16.mxu0 0
      %2518 = vmatpush2.bf16.msra.mxu0 0
      %2519 = vmatprep.subr.bf16.mxu0 0
      %2520 = vmatpush2.bf16.msra.mxu0 0
      %2521 = vmatprep.subr.bf16.mxu0 0
      %2522 = vmatpush2.bf16.msra.mxu0 0
      %2523 = vmatprep.subr.bf16.mxu0 0
      %2524 = vmatpush2.bf16.msra.mxu0 0
      %2525 = vmatprep.mubr.bf16.mxu0 0
      %2526 = vmatmul.mubr.bf16.gmra.mxu0 %v2488
      %v2527 = vpop.f32.mrf.mxu0
      %v2528 = vadd.f32 0.0, %v2527
      %v2529 = vpop.f32.mrf.mxu0
      %v2530 = vpop.f32.mrf.mxu0
      %v2531 = vpop.f32.mrf.mxu0
      %2532 = vdwg.mxu0
      %v2533 = vrot.slane %v2282, 2
      %v2535 = vsel %vm1097, %v2483, 0
      %v2538 = vsel %vm1101, %v2533, 0
      %2540 = vmatprep.subr.bf16.mxu0 0
      %2541 = vmatpush1.bf16.msra.mxu0 0
      %2542 = vmatprep.subr.bf16.mxu0 0
      %2543 = vmatpush1.bf16.msra.mxu0 0
      %2544 = vmatprep.subr.bf16.mxu0 0
      %2545 = vmatpush1.bf16.msra.mxu0 0
      %2546 = vmatprep.subr.bf16.mxu0 0
      %2547 = vmatpush1.bf16.msra.mxu0 0
      %2548 = vmatprep.subr.bf16.mxu0 0
      %2549 = vmatpush1.bf16.msra.mxu0 0
      %2550 = vmatprep.subr.bf16.mxu0 0
      %2551 = vmatpush1.bf16.msra.mxu0 0
      %2552 = vmatprep.subr.bf16.mxu0 0
      %2553 = vmatpush1.bf16.msra.mxu0 0
      %2554 = vmatprep.subr.bf16.mxu0 0
      %2555 = vmatpush1.bf16.msra.mxu0 %v2538
      %2556 = vmatprep.subr.bf16.mxu0 0
      %2557 = vmatpush2.bf16.msra.mxu0 0
      %2558 = vmatprep.subr.bf16.mxu0 0
      %2559 = vmatpush2.bf16.msra.mxu0 0
      %2560 = vmatprep.subr.bf16.mxu0 0
      %2561 = vmatpush2.bf16.msra.mxu0 0
      %2562 = vmatprep.subr.bf16.mxu0 0
      %2563 = vmatpush2.bf16.msra.mxu0 0
      %2564 = vmatprep.subr.bf16.mxu0 0
      %2565 = vmatpush2.bf16.msra.mxu0 0
      %2566 = vmatprep.subr.bf16.mxu0 0
      %2567 = vmatpush2.bf16.msra.mxu0 0
      %2568 = vmatprep.subr.bf16.mxu0 0
      %2569 = vmatpush2.bf16.msra.mxu0 0
      %2570 = vmatprep.subr.bf16.mxu0 0
      %2571 = vmatpush2.bf16.msra.mxu0 0
      %2572 = vmatprep.mubr.bf16.mxu0 0
      %2573 = vmatmul.mubr.bf16.gmra.mxu0 %v2535
      %v2574 = vpop.f32.mrf.mxu0
      %v2575 = vadd.f32 0.0, %v2574
      %v2576 = vpop.f32.mrf.mxu0
      %v2577 = vpop.f32.mrf.mxu0
      %v2578 = vpop.f32.mrf.mxu0
      %2579 = vdwg.mxu0
      %v2580 = vrot.slane %v2333, 2
      %v2582 = vsel %vm1097, %v2484, 0
      %v2585 = vsel %vm1101, %v2580, 0
      %2587 = vmatprep.subr.bf16.mxu0 0
      %2588 = vmatpush1.bf16.msra.mxu0 0
      %2589 = vmatprep.subr.bf16.mxu0 0
      %2590 = vmatpush1.bf16.msra.mxu0 0
      %2591 = vmatprep.subr.bf16.mxu0 0
      %2592 = vmatpush1.bf16.msra.mxu0 0
      %2593 = vmatprep.subr.bf16.mxu0 0
      %2594 = vmatpush1.bf16.msra.mxu0 0
      %2595 = vmatprep.subr.bf16.mxu0 0
      %2596 = vmatpush1.bf16.msra.mxu0 0
      %2597 = vmatprep.subr.bf16.mxu0 0
      %2598 = vmatpush1.bf16.msra.mxu0 0
      %2599 = vmatprep.subr.bf16.mxu0 0
      %2600 = vmatpush1.bf16.msra.mxu0 0
      %2601 = vmatprep.subr.bf16.mxu0 0
      %2602 = vmatpush1.bf16.msra.mxu0 %v2585
      %2603 = vmatprep.subr.bf16.mxu0 0
      %2604 = vmatpush2.bf16.msra.mxu0 0
      %2605 = vmatprep.subr.bf16.mxu0 0
      %2606 = vmatpush2.bf16.msra.mxu0 0
      %2607 = vmatprep.subr.bf16.mxu0 0
      %2608 = vmatpush2.bf16.msra.mxu0 0
      %2609 = vmatprep.subr.bf16.mxu0 0
      %2610 = vmatpush2.bf16.msra.mxu0 0
      %2611 = vmatprep.subr.bf16.mxu0 0
      %2612 = vmatpush2.bf16.msra.mxu0 0
      %2613 = vmatprep.subr.bf16.mxu0 0
      %2614 = vmatpush2.bf16.msra.mxu0 0
      %2615 = vmatprep.subr.bf16.mxu0 0
      %2616 = vmatpush2.bf16.msra.mxu0 0
      %2617 = vmatprep.subr.bf16.mxu0 0
      %2618 = vmatpush2.bf16.msra.mxu0 0
      %2619 = vmatprep.mubr.bf16.mxu0 0
      %2620 = vmatmul.mubr.bf16.gmra.mxu0 %v2582
      %v2621 = vpop.f32.mrf.mxu0
      %v2622 = vadd.f32 0.0, %v2621
      %v2623 = vpop.f32.mrf.mxu0
      %v2624 = vpop.f32.mrf.mxu0
      %v2625 = vpop.f32.mrf.mxu0
      %2626 = vdwg.mxu0
      %v2627 = vrot.slane %v2384, 2
      %v2629 = vsel %vm1097, %v2485, 0
      %v2632 = vsel %vm1101, %v2627, 0
      %2634 = vmatprep.subr.bf16.mxu0 0
      %2635 = vmatpush1.bf16.msra.mxu0 0
      %2636 = vmatprep.subr.bf16.mxu0 0
      %2637 = vmatpush1.bf16.msra.mxu0 0
      %2638 = vmatprep.subr.bf16.mxu0 0
      %2639 = vmatpush1.bf16.msra.mxu0 0
      %2640 = vmatprep.subr.bf16.mxu0 0
      %2641 = vmatpush1.bf16.msra.mxu0 0
      %2642 = vmatprep.subr.bf16.mxu0 0
      %2643 = vmatpush1.bf16.msra.mxu0 0
      %2644 = vmatprep.subr.bf16.mxu0 0
      %2645 = vmatpush1.bf16.msra.mxu0 0
      %2646 = vmatprep.subr.bf16.mxu0 0
      %2647 = vmatpush1.bf16.msra.mxu0 0
      %2648 = vmatprep.subr.bf16.mxu0 0
      %2649 = vmatpush1.bf16.msra.mxu0 %v2632
      %2650 = vmatprep.subr.bf16.mxu0 0
      %2651 = vmatpush2.bf16.msra.mxu0 0
      %2652 = vmatprep.subr.bf16.mxu0 0
      %2653 = vmatpush2.bf16.msra.mxu0 0
      %2654 = vmatprep.subr.bf16.mxu0 0
      %2655 = vmatpush2.bf16.msra.mxu0 0
      %2656 = vmatprep.subr.bf16.mxu0 0
      %2657 = vmatpush2.bf16.msra.mxu0 0
      %2658 = vmatprep.subr.bf16.mxu0 0
      %2659 = vmatpush2.bf16.msra.mxu0 0
      %2660 = vmatprep.subr.bf16.mxu0 0
      %2661 = vmatpush2.bf16.msra.mxu0 0
      %2662 = vmatprep.subr.bf16.mxu0 0
      %2663 = vmatpush2.bf16.msra.mxu0 0
      %2664 = vmatprep.subr.bf16.mxu0 0
      %2665 = vmatpush2.bf16.msra.mxu0 0
      %2666 = vmatprep.mubr.bf16.mxu0 0
      %2667 = vmatmul.mubr.bf16.gmra.mxu0 %v2629
      %v2668 = vpop.f32.mrf.mxu0
      %v2669 = vadd.f32 0.0, %v2668
      %v2670 = vpop.f32.mrf.mxu0
      %v2671 = vpop.f32.mrf.mxu0
      %v2672 = vpop.f32.mrf.mxu0
      %2673 = vdwg.mxu0
      %2678 = vrot.lane.b32.xlu0 %v1640, 32
      %v2679 = vpop.permute.xlu0 %2678
      %2680 = vrot.lane.b32.xlu0 %v1687, 32
      %v2681 = vpop.permute.xlu0 %2680
      %2682 = vrot.lane.b32.xlu0 %v1734, 32
      %v2683 = vpop.permute.xlu0 %2682
      %2684 = vrot.lane.b32.xlu0 %v1781, 32
      %v2685 = vpop.permute.xlu0 %2684
      %2694 = vrot.lane.b32.xlu0 %v2084, 64
      %v2695 = vpop.permute.xlu0 %2694
      %2696 = vrot.lane.b32.xlu0 %v2131, 64
      %v2697 = vpop.permute.xlu0 %2696
      %2698 = vrot.lane.b32.xlu0 %v2178, 64
      %v2699 = vpop.permute.xlu0 %2698
      %2700 = vrot.lane.b32.xlu0 %v2225, 64
      %v2701 = vpop.permute.xlu0 %2700
      %2710 = vrot.lane.b32.xlu0 %v2528, 96
      %v2711 = vpop.permute.xlu0 %2710
      %2712 = vrot.lane.b32.xlu0 %v2575, 96
      %v2713 = vpop.permute.xlu0 %2712
      %2714 = vrot.lane.b32.xlu0 %v2622, 96
      %v2715 = vpop.permute.xlu0 %2714
      %2716 = vrot.lane.b32.xlu0 %v2669, 96
      %v2717 = vpop.permute.xlu0 %2716
      %v2722 = vsel %vm855, %v1140, %v2679
      %v2723 = vsel %vm855, %v1187, %v2681
      %v2724 = vsel %vm855, %v1234, %v2683
      %v2725 = vsel %vm855, %v1281, %v2685
      %vm2726 = vcmask 523264
      %v2727 = vsel %vm2726, %v2722, %v2695
      %v2728 = vsel %vm2726, %v2723, %v2697
      %v2729 = vsel %vm2726, %v2724, %v2699
      %v2730 = vsel %vm2726, %v2725, %v2701
      %vm2731 = vcmask 785408
      %v2732 = vsel %vm2731, %v2727, %v2711
      %v2733 = vsel %vm2731, %v2728, %v2713
      %v2734 = vsel %vm2731, %v2729, %v2715
      %v2735 = vsel %vm2731, %v2730, %v2717
      %v2740 = vcombine.low %v2732, %v2733
      %v2741 = vcombine.low %v2734, %v2735
      %v2743 = vunpack.c.l.s4 1983009808
      %v2744 = vunpack.c.0.s8 %v2743
      %v2745 = vlaneseq
      %v2746 = vshrl.u32 %v2745, 7
      %v2747 = vsub.s32 %v2744, %v2746
      %v2748 = vrot.slane %v2740, %v2747
      %v2750 = vunpack.c.l.s4 1983009808
      %v2751 = vunpack.c.0.s8 %v2750
      %v2752 = vlaneseq
      %v2753 = vshrl.u32 %v2752, 7
      %v2754 = vsub.s32 %v2751, %v2753
      %v2755 = vrot.slane %v2741, %v2754
      %v2756 = vcombine.low %v2748, %v2755
      %v2758 = vpack.c.bf16 %v2756, %v2756
      %v2759 = vld [vmem:[%s5] sm:$0xf]
      %v2760 = vld [vmem:[%s5 + $0x4] sm:$0xf]
      %v2761 = vld [vmem:[%s5 + $0x8] sm:$0xf]
      %v2762 = vld [vmem:[%s5 + $0xc] sm:$0xf]
      %v2763 = vld [vmem:[%s5 + $0x10] sm:$0xf]
      %v2764 = vld [vmem:[%s5 + $0x14] sm:$0xf]
      %v2765 = vld [vmem:[%s5 + $0x18] sm:$0xf]
      %v2766 = vld [vmem:[%s5 + $0x1c] sm:$0xf]
      %v2767 = vld [vmem:[%s5 + $0x20] sm:$0xf]
      %v2768 = vld [vmem:[%s5 + $0x24] sm:$0xf]
      %v2769 = vld [vmem:[%s5 + $0x28] sm:$0xf]
      %v2770 = vld [vmem:[%s5 + $0x2c] sm:$0xf]
      %v2771 = vld [vmem:[%s5 + $0x30] sm:$0xf]
      %v2772 = vld [vmem:[%s5 + $0x34] sm:$0xf]
      %v2773 = vld [vmem:[%s5 + $0x38] sm:$0xf]
      %v2774 = vld [vmem:[%s5 + $0x3c] sm:$0xf]
      %v2775 = vld [vmem:[%s6] sm:$0x1]
      %v2777 = vlaneseq
      %v2778 = vshrl.u32 %v2777, 7
      %v2779 = vsub.s32 0, %v2778
      %v2780 = vrot.slane %v2775, %v2779
      %v2798 = vunpack.c.l.b16 %v2759
      %v2799 = vunpack.c.l.b16 %v2760
      %v2800 = vunpack.c.l.b16 %v2761
      %v2801 = vunpack.c.l.b16 %v2762
      %v2802 = vunpack.c.l.b16 %v2763
      %v2803 = vunpack.c.l.b16 %v2764
      %v2804 = vunpack.c.l.b16 %v2765
      %v2805 = vunpack.c.l.b16 %v2766
      %v2806 = vunpack.c.l.b16 %v2767
      %v2807 = vunpack.c.l.b16 %v2768
      %v2808 = vunpack.c.l.b16 %v2769
      %v2809 = vunpack.c.l.b16 %v2770
      %v2810 = vunpack.c.l.b16 %v2771
      %v2811 = vunpack.c.l.b16 %v2772
      %v2812 = vunpack.c.l.b16 %v2773
      %v2813 = vunpack.c.l.b16 %v2774
      %v2814 = vpack.c.b16 %v2799, %v2798
      %v2815 = vpack.c.b16 %v2801, %v2800
      %v2816 = vpack.c.b16 %v2803, %v2802
      %v2817 = vpack.c.b16 %v2805, %v2804
      %v2818 = vpack.c.b16 %v2807, %v2806
      %v2819 = vpack.c.b16 %v2809, %v2808
      %v2820 = vpack.c.b16 %v2811, %v2810
      %v2821 = vpack.c.b16 %v2813, %v2812
      %2830 = vmatprep.subr.bf16.mxu0 0
      %2831 = vmatpush1.bf16.msra.mxu0 %v2821
      %2832 = vmatprep.subr.bf16.mxu0 0
      %2833 = vmatpush1.bf16.msra.mxu0 %v2820
      %2834 = vmatprep.subr.bf16.mxu0 0
      %2835 = vmatpush1.bf16.msra.mxu0 %v2819
      %2836 = vmatprep.subr.bf16.mxu0 0
      %2837 = vmatpush1.bf16.msra.mxu0 %v2818
      %2838 = vmatprep.subr.bf16.mxu0 0
      %2839 = vmatpush1.bf16.msra.mxu0 %v2817
      %2840 = vmatprep.subr.bf16.mxu0 0
      %2841 = vmatpush1.bf16.msra.mxu0 %v2816
      %2842 = vmatprep.subr.bf16.mxu0 0
      %2843 = vmatpush1.bf16.msra.mxu0 %v2815
      %2844 = vmatprep.subr.bf16.mxu0 0
      %2845 = vmatpush1.bf16.msra.mxu0 %v2814
      %2846 = vmatprep.subr.bf16.mxu0 0
      %2847 = vmatpush2.bf16.msra.mxu0 0
      %2848 = vmatprep.subr.bf16.mxu0 0
      %2849 = vmatpush2.bf16.msra.mxu0 0
      %2850 = vmatprep.subr.bf16.mxu0 0
      %2851 = vmatpush2.bf16.msra.mxu0 0
      %2852 = vmatprep.subr.bf16.mxu0 0
      %2853 = vmatpush2.bf16.msra.mxu0 0
      %2854 = vmatprep.subr.bf16.mxu0 0
      %2855 = vmatpush2.bf16.msra.mxu0 0
      %2856 = vmatprep.subr.bf16.mxu0 0
      %2857 = vmatpush2.bf16.msra.mxu0 0
      %2858 = vmatprep.subr.bf16.mxu0 0
      %2859 = vmatpush2.bf16.msra.mxu0 0
      %2860 = vmatprep.subr.bf16.mxu0 0
      %2861 = vmatpush2.bf16.msra.mxu0 0
      %2862 = vmatprep.mubr.bf16.mxu0 0
      %2863 = vmatmul.mubr.bf16.gmra.mxu0 %v2758
      %v2864 = vpop.f32.mrf.mxu0
      %v2865 = vadd.f32 %v2780, %v2864
      %v2866 = vpop.f32.mrf.mxu0
      %v2867 = vpop.f32.mrf.mxu0
      %v2868 = vpop.f32.mrf.mxu0
      %2869 = vdwg.mxu0
      %v2870 = vpack.c.bf16 %v2865, %v2865
      %v2871 = vld [vmem:[%s7] sm:$0xf]
      %v2872 = vld [vmem:[%s7 + $0x4] sm:$0xf]
      %v2873 = vld [vmem:[%s7 + $0x8] sm:$0xf]
      %v2874 = vld [vmem:[%s7 + $0xc] sm:$0xf]
      %v2875 = vld [vmem:[%s7 + $0x10] sm:$0xf]
      %v2876 = vld [vmem:[%s7 + $0x14] sm:$0xf]
      %v2877 = vld [vmem:[%s7 + $0x18] sm:$0xf]
      %v2878 = vld [vmem:[%s7 + $0x1c] sm:$0xf]
      %v2879 = vld [vmem:[%s7 + $0x20] sm:$0xf]
      %v2880 = vld [vmem:[%s7 + $0x24] sm:$0xf]
      %v2881 = vld [vmem:[%s7 + $0x28] sm:$0xf]
      %v2882 = vld [vmem:[%s7 + $0x2c] sm:$0xf]
      %v2883 = vld [vmem:[%s7 + $0x30] sm:$0xf]
      %v2884 = vld [vmem:[%s7 + $0x34] sm:$0xf]
      %v2885 = vld [vmem:[%s7 + $0x38] sm:$0xf]
      %v2886 = vld [vmem:[%s7 + $0x3c] sm:$0xf]
      %v2887 = vld [vmem:[%s8] sm:$0x1]
      %v2889 = vlaneseq
      %v2890 = vshrl.u32 %v2889, 7
      %v2891 = vsub.s32 0, %v2890
      %v2892 = vrot.slane %v2887, %v2891
      %v2910 = vunpack.c.l.b16 %v2871
      %v2911 = vunpack.c.l.b16 %v2872
      %v2912 = vunpack.c.l.b16 %v2873
      %v2913 = vunpack.c.l.b16 %v2874
      %v2914 = vunpack.c.l.b16 %v2875
      %v2915 = vunpack.c.l.b16 %v2876
      %v2916 = vunpack.c.l.b16 %v2877
      %v2917 = vunpack.c.l.b16 %v2878
      %v2918 = vunpack.c.l.b16 %v2879
      %v2919 = vunpack.c.l.b16 %v2880
      %v2920 = vunpack.c.l.b16 %v2881
      %v2921 = vunpack.c.l.b16 %v2882
      %v2922 = vunpack.c.l.b16 %v2883
      %v2923 = vunpack.c.l.b16 %v2884
      %v2924 = vunpack.c.l.b16 %v2885
      %v2925 = vunpack.c.l.b16 %v2886
      %v2926 = vpack.c.b16 %v2911, %v2910
      %v2927 = vpack.c.b16 %v2913, %v2912
      %v2928 = vpack.c.b16 %v2915, %v2914
      %v2929 = vpack.c.b16 %v2917, %v2916
      %v2930 = vpack.c.b16 %v2919, %v2918
      %v2931 = vpack.c.b16 %v2921, %v2920
      %v2932 = vpack.c.b16 %v2923, %v2922
      %v2933 = vpack.c.b16 %v2925, %v2924
      %2942 = vmatprep.subr.bf16.mxu0 0
      %2943 = vmatpush1.bf16.msra.mxu0 %v2933
      %2944 = vmatprep.subr.bf16.mxu0 0
      %2945 = vmatpush1.bf16.msra.mxu0 %v2932
      %2946 = vmatprep.subr.bf16.mxu0 0
      %2947 = vmatpush1.bf16.msra.mxu0 %v2931
      %2948 = vmatprep.subr.bf16.mxu0 0
      %2949 = vmatpush1.bf16.msra.mxu0 %v2930
      %2950 = vmatprep.subr.bf16.mxu0 0
      %2951 = vmatpush1.bf16.msra.mxu0 %v2929
      %2952 = vmatprep.subr.bf16.mxu0 0
      %2953 = vmatpush1.bf16.msra.mxu0 %v2928
      %2954 = vmatprep.subr.bf16.mxu0 0
      %2955 = vmatpush1.bf16.msra.mxu0 %v2927
      %2956 = vmatprep.subr.bf16.mxu0 0
      %2957 = vmatpush1.bf16.msra.mxu0 %v2926
      %2958 = vmatprep.subr.bf16.mxu0 0
      %2959 = vmatpush2.bf16.msra.mxu0 0
      %2960 = vmatprep.subr.bf16.mxu0 0
      %2961 = vmatpush2.bf16.msra.mxu0 0
      %2962 = vmatprep.subr.bf16.mxu0 0
      %2963 = vmatpush2.bf16.msra.mxu0 0
      %2964 = vmatprep.subr.bf16.mxu0 0
      %2965 = vmatpush2.bf16.msra.mxu0 0
      %2966 = vmatprep.subr.bf16.mxu0 0
      %2967 = vmatpush2.bf16.msra.mxu0 0
      %2968 = vmatprep.subr.bf16.mxu0 0
      %2969 = vmatpush2.bf16.msra.mxu0 0
      %2970 = vmatprep.subr.bf16.mxu0 0
      %2971 = vmatpush2.bf16.msra.mxu0 0
      %2972 = vmatprep.subr.bf16.mxu0 0
      %2973 = vmatpush2.bf16.msra.mxu0 0
      %2974 = vmatprep.mubr.bf16.mxu0 0
      %2975 = vmatmul.mubr.bf16.gmra.mxu0 %v2870
      %v2976 = vpop.f32.mrf.mxu0
      %v2977 = vadd.f32 %v2892, %v2976
      %v2978 = vpop.f32.mrf.mxu0
      %v2979 = vpop.f32.mrf.mxu0
      %v2980 = vpop.f32.mrf.mxu0
      %2981 = vdwg.mxu0
      %v2982 = vadd.f32 %v2977, %v363
      %v2984 = vcombine.high %v2982, %v2982
      %v2986 = vunpack.c.l.s4 1983009808
      %v2987 = vunpack.c.0.s8 %v2986
      %v2988 = vlaneseq
      %v2989 = vshrl.u32 %v2988, 7
      %v2990 = vsub.s32 %v2987, %v2989
      %v2991 = vrot.slane %v2982, %v2990
      %v2993 = vunpack.c.l.s4 1983009808
      %v2994 = vunpack.c.0.s8 %v2993
      %v2995 = vlaneseq
      %v2996 = vshrl.u32 %v2995, 7
      %v2997 = vsub.s32 %v2994, %v2996
      %v2998 = vrot.slane %v2984, %v2997
      %v2999 = vcombine.high %v2991, %v2991
      %v3000 = vcombine.high %v2998, %v2998
      %3005 = vst [vmem:[%s334] sm:$0x3] %v2991
      %3006 = vst [vmem:[%s334 + $0x2] sm:$0x3] %v2999
      %3007 = vst [vmem:[%s334 + $0x4] sm:$0x3] %v2998
      %3008 = vst [vmem:[%s334 + $0x6] sm:$0x3] %v3000
      %s3009 = smul.u32 4, %s20
      %p3010 = scmp.lt.s32.totalorder %s3009, 7
      %s3011 = scalar_select %p3010, %s3009, 7
      %s3012 = smul.addr %s3011, 2
      %s3013 = scalar_lea.vmem %s9, %s3012
      // Predicated region
      $region57: #{deepfake_timesformer_forward.9} parent=55 // pred_check
        %p3014 = pneg %p232
      $region58: #{deepfake_timesformer_forward.9} parent=55 // pred_check_branch
        %3016 = sbr.rel (%p3014) target = $region60
      $region59: #{deepfake_timesformer_forward.9} parent=55 // pred_region
        %s3017 = smul.u32 4, %s20
      $region60: #{deepfake_timesformer_forward.9} parent=55 // pred_fallthru
        _
    $region56: #{deepfake_timesformer_forward.9} parent=5 // pred_fallthru
      _
    %p3018 = scmp.le.s32.totalorder 2, %s15
    // Predicated region
    $region61: #{deepfake_timesformer_forward.9} parent=5 // pred_check
      %p3019 = pneg %p3018
    $region62: #{deepfake_timesformer_forward.9} parent=5 // pred_check_branch
      %3021 = sbr.rel (%p3019) target = $region64
    $region63: #{deepfake_timesformer_forward.9} parent=5 // pred_region
      %s3022 = ssub.s32 %s15, 2
      // Predicated region
      $region65: #{deepfake_timesformer_forward.9} parent=63 // pred_check
        %p3023 = pneg %p238
      $region66: #{deepfake_timesformer_forward.9} parent=63 // pred_check_branch
        %3025 = sbr.rel (%p3023) target = $region68
      $region67: #{deepfake_timesformer_forward.9} parent=63 // pred_region
        %s3026 = smul.u32 4, %s21
        %p3027 = scmp.lt.s32.totalorder %s3026, 7
        %s3028 = scalar_select %p3027, %s3026, 7
        %s3029 = smul.addr %s3028, 2
        %s3030 = scalar_lea.vmem %s9, %s3029
      $region68: #{deepfake_timesformer_forward.9} parent=63 // pred_fallthru
        _
    $region64: #{deepfake_timesformer_forward.9} parent=5 // pred_fallthru
      _
  $region6: #{deepfake_timesformer_forward.9} parent=0 // loop_footer
    %s19 = sadd.s32 1, %s15
  $region7: #{deepfake_timesformer_forward.9} parent=0 // loop_footer_branch
    %14 = sbr.rel target = $region3
  $region8: #{deepfake_timesformer_forward.9} parent=0 // loop_exit
    _

// kernel: deepfake_timesformer_forward.10
$region0: #{deepfake_timesformer_forward.10}
  #allocation0 [shape = 'u32[]', space=smem, size = 0x4, offset = 0x4, fixed_abs, tag = 'smem constant byte address 0x4 - core index']
  #allocation1 [shape = 'u32[144,128]{1,0:T(1,128)}', space=vmem, size = 0x12000, scoped, tag = 'internal scratch']
  %s0 = inlined_call_operand.vmem [shape: f32[4,5,128], index: 0, kind: input, shape index: {}]
  %s1 = inlined_call_operand.vmem [shape: f32[1,128], index: 1, kind: input, shape index: {}]
  %s2 = inlined_call_operand.vmem [shape: f32[1,128], index: 2, kind: input, shape index: {}]
  %s3 = inlined_call_operand.vmem [shape: bf16[128,384], index: 3, kind: input, shape index: {}]
  %s4 = inlined_call_operand.vmem [shape: f32[1,384], index: 4, kind: input, shape index: {}]
  %s5 = inlined_call_operand.vmem [shape: bf16[128,128], index: 5, kind: input, shape index: {}]
  %s6 = inlined_call_operand.vmem [shape: f32[1,128], index: 6, kind: input, shape index: {}]
  %s7 = inlined_call_operand.vmem [shape: f32[4,5,128], index: 7, kind: output, shape index: {}]
  %s8 = sld [smem:[#allocation0]]
  $region61: #{deepfake_timesformer_forward.10} parent=0
    _
  %s10 = ssub.s32 1, %s8
  %s11 = scalar_select 0, %s10, %s8
  loop: start=0, step=1, limit=4
  $region2: #{deepfake_timesformer_forward.10} parent=0 // loop_pre_header
    _
  $region3: #{deepfake_timesformer_forward.10} parent=0 // loop_header
    %s13 = sphi 0, %s17
    %p14 = scmp.ge.s32.totalorder %s13, 4
    %s23 = sphi 0, %s25
    %s26 = sphi 0, %s23
    %s27 = sphi 0, %s26
    %s43 = sphi 0, %s27
    %s47 = sphi 0, %s47
    %s49 = sphi 0, %s47
    %s50 = sphi 0, %s49
    %s64 = sphi 0, %s50
    %s68 = sphi 0, %s68
    %s70 = sphi 0, %s68
    %s71 = sphi 0, %s70
    %s85 = sphi 0, %s71
    %s89 = sphi 0, %s89
    %s91 = sphi 0, %s89
    %s92 = sphi 0, %s91
    %s106 = sphi 0, %s92
    %s110 = sphi 0, %s110
    %s112 = sphi 0, %s110
    %s113 = sphi 0, %s112
    %s127 = sphi 0, %s113
    %s131 = sphi 0, %s131
    %s133 = sphi 0, %s131
    %s134 = sphi 0, %s133
    %s148 = sphi 0, %s134
    %s152 = sphi 0, %s152
    %s154 = sphi 0, %s152
    %s155 = sphi 0, %s154
    %s169 = sphi 0, %s155
    %s175 = sphi 0, %s177
    %s178 = sphi 0, %s175
    %s179 = sphi 0, %s178
    %s195 = sphi 0, %s179
  $region4: #{deepfake_timesformer_forward.10} parent=0 // loop_header_branch
    %16 = sbr.rel (%p14) target = $region8
  $region5: #{deepfake_timesformer_forward.10} parent=0 // loop_body
    %s18 = ssub.s32 %s13, 1
    %s19 = ssub.s32 %s13, 2
    %s20 = sadd.s32 %s13, 1
    %s21 = ssub.s32 %s13, %s20
    %p22 = scmp.eq.s32.totalorder %s21, 0
    %s24 = sadd.s32 %s23, 1
    %s25 = scalar_select %p22, %s23, %s24
    %p28 = pneg %p22
    %p29 = scmp.eq.s32.totalorder %s13, 1
    %p30 = por %p28, %p29
    %p31 = scmp.ne.s32.totalorder %s23, %s26
    %p32 = scmp.eq.s32.totalorder %s13, 0
    %p33 = por %p31, %p32
    %p34 = scmp.ne.s32.totalorder %s23, %s26
    %p35 = scmp.eq.s32.totalorder %s18, 1
    %p36 = por %p34, %p35
    %p37 = scmp.ne.s32.totalorder %s26, %s27
    %p38 = scmp.eq.s32.totalorder %s18, 0
    %p39 = por %p37, %p38
    %p40 = scmp.ne.s32.totalorder %s26, %s27
    %p41 = scmp.eq.s32.totalorder %s19, 1
    %p42 = por %p40, %p41
    %p44 = scmp.ne.s32.totalorder %s27, %s43
    %p45 = scmp.eq.s32.totalorder %s19, 0
    %p46 = por %p44, %p45
    %s48 = sadd.s32 %s47, 1
    %p51 = scmp.eq.s32.totalorder %s13, 1
    %p52 = scmp.ne.s32.totalorder %s47, %s49
    %p53 = scmp.eq.s32.totalorder %s13, 0
    %p54 = por %p52, %p53
    %p55 = scmp.ne.s32.totalorder %s47, %s49
    %p56 = scmp.eq.s32.totalorder %s18, 1
    %p57 = por %p55, %p56
    %p58 = scmp.ne.s32.totalorder %s49, %s50
    %p59 = scmp.eq.s32.totalorder %s18, 0
    %p60 = por %p58, %p59
    %p61 = scmp.ne.s32.totalorder %s49, %s50
    %p62 = scmp.eq.s32.totalorder %s19, 1
    %p63 = por %p61, %p62
    %p65 = scmp.ne.s32.totalorder %s50, %s64
    %p66 = scmp.eq.s32.totalorder %s19, 0
    %p67 = por %p65, %p66
    %s69 = sadd.s32 %s68, 1
    %p72 = scmp.eq.s32.totalorder %s13, 1
    %p73 = scmp.ne.s32.totalorder %s68, %s70
    %p74 = scmp.eq.s32.totalorder %s13, 0
    %p75 = por %p73, %p74
    %p76 = scmp.ne.s32.totalorder %s68, %s70
    %p77 = scmp.eq.s32.totalorder %s18, 1
    %p78 = por %p76, %p77
    %p79 = scmp.ne.s32.totalorder %s70, %s71
    %p80 = scmp.eq.s32.totalorder %s18, 0
    %p81 = por %p79, %p80
    %p82 = scmp.ne.s32.totalorder %s70, %s71
    %p83 = scmp.eq.s32.totalorder %s19, 1
    %p84 = por %p82, %p83
    %p86 = scmp.ne.s32.totalorder %s71, %s85
    %p87 = scmp.eq.s32.totalorder %s19, 0
    %p88 = por %p86, %p87
    %s90 = sadd.s32 %s89, 1
    %p93 = scmp.eq.s32.totalorder %s13, 1
    %p94 = scmp.ne.s32.totalorder %s89, %s91
    %p95 = scmp.eq.s32.totalorder %s13, 0
    %p96 = por %p94, %p95
    %p97 = scmp.ne.s32.totalorder %s89, %s91
    %p98 = scmp.eq.s32.totalorder %s18, 1
    %p99 = por %p97, %p98
    %p100 = scmp.ne.s32.totalorder %s91, %s92
    %p101 = scmp.eq.s32.totalorder %s18, 0
    %p102 = por %p100, %p101
    %p103 = scmp.ne.s32.totalorder %s91, %s92
    %p104 = scmp.eq.s32.totalorder %s19, 1
    %p105 = por %p103, %p104
    %p107 = scmp.ne.s32.totalorder %s92, %s106
    %p108 = scmp.eq.s32.totalorder %s19, 0
    %p109 = por %p107, %p108
    %s111 = sadd.s32 %s110, 1
    %p114 = scmp.eq.s32.totalorder %s13, 1
    %p115 = scmp.ne.s32.totalorder %s110, %s112
    %p116 = scmp.eq.s32.totalorder %s13, 0
    %p117 = por %p115, %p116
    %p118 = scmp.ne.s32.totalorder %s110, %s112
    %p119 = scmp.eq.s32.totalorder %s18, 1
    %p120 = por %p118, %p119
    %p121 = scmp.ne.s32.totalorder %s112, %s113
    %p122 = scmp.eq.s32.totalorder %s18, 0
    %p123 = por %p121, %p122
    %p124 = scmp.ne.s32.totalorder %s112, %s113
    %p125 = scmp.eq.s32.totalorder %s19, 1
    %p126 = por %p124, %p125
    %p128 = scmp.ne.s32.totalorder %s113, %s127
    %p129 = scmp.eq.s32.totalorder %s19, 0
    %p130 = por %p128, %p129
    %s132 = sadd.s32 %s131, 1
    %p135 = scmp.eq.s32.totalorder %s13, 1
    %p136 = scmp.ne.s32.totalorder %s131, %s133
    %p137 = scmp.eq.s32.totalorder %s13, 0
    %p138 = por %p136, %p137
    %p139 = scmp.ne.s32.totalorder %s131, %s133
    %p140 = scmp.eq.s32.totalorder %s18, 1
    %p141 = por %p139, %p140
    %p142 = scmp.ne.s32.totalorder %s133, %s134
    %p143 = scmp.eq.s32.totalorder %s18, 0
    %p144 = por %p142, %p143
    %p145 = scmp.ne.s32.totalorder %s133, %s134
    %p146 = scmp.eq.s32.totalorder %s19, 1
    %p147 = por %p145, %p146
    %p149 = scmp.ne.s32.totalorder %s134, %s148
    %p150 = scmp.eq.s32.totalorder %s19, 0
    %p151 = por %p149, %p150
    %s153 = sadd.s32 %s152, 1
    %p156 = scmp.eq.s32.totalorder %s13, 1
    %p157 = scmp.ne.s32.totalorder %s152, %s154
    %p158 = scmp.eq.s32.totalorder %s13, 0
    %p159 = por %p157, %p158
    %p160 = scmp.ne.s32.totalorder %s152, %s154
    %p161 = scmp.eq.s32.totalorder %s18, 1
    %p162 = por %p160, %p161
    %p163 = scmp.ne.s32.totalorder %s154, %s155
    %p164 = scmp.eq.s32.totalorder %s18, 0
    %p165 = por %p163, %p164
    %p166 = scmp.ne.s32.totalorder %s154, %s155
    %p167 = scmp.eq.s32.totalorder %s19, 1
    %p168 = por %p166, %p167
    %p170 = scmp.ne.s32.totalorder %s155, %s169
    %p171 = scmp.eq.s32.totalorder %s19, 0
    %p172 = por %p170, %p171
    %s173 = ssub.s32 %s13, %s20
    %p174 = scmp.eq.s32.totalorder %s173, 0
    %s176 = sadd.s32 %s175, 1
    %s177 = scalar_select %p174, %s175, %s176
    %p180 = pneg %p174
    %p181 = scmp.eq.s32.totalorder %s13, 1
    %p182 = por %p180, %p181
    %p183 = scmp.ne.s32.totalorder %s175, %s178
    %p184 = scmp.eq.s32.totalorder %s13, 0
    %p185 = por %p183, %p184
    %p186 = scmp.ne.s32.totalorder %s175, %s178
    %p187 = scmp.eq.s32.totalorder %s18, 1
    %p188 = por %p186, %p187
    %p189 = scmp.ne.s32.totalorder %s178, %s179
    %p190 = scmp.eq.s32.totalorder %s18, 0
    %p191 = por %p189, %p190
    %p192 = scmp.ne.s32.totalorder %s178, %s179
    %p193 = scmp.eq.s32.totalorder %s19, 1
    %p194 = por %p192, %p193
    %p196 = scmp.ne.s32.totalorder %s179, %s195
    %p197 = scmp.eq.s32.totalorder %s19, 0
    %p198 = por %p196, %p197
    %p199 = scmp.le.s32.totalorder 1, %s13
    %p200 = scmp.lt.s32.totalorder %s13, 3
    %p201 = pnand %p199, %p200
    %p202 = pneg %p201
    // Predicated region
    $region9: #{deepfake_timesformer_forward.10} parent=5 // pred_check
      _
    $region10: #{deepfake_timesformer_forward.10} parent=5 // pred_check_branch
      %204 = sbr.rel (%p201) target = $region12
    $region11: #{deepfake_timesformer_forward.10} parent=5 // pred_region
      %s205 = ssub.s32 %s13, 1
      // Predicated region
      $region13: #{deepfake_timesformer_forward.10} parent=11 // pred_check
        %p206 = pneg %p60
      $region14: #{deepfake_timesformer_forward.10} parent=11 // pred_check_branch
        %208 = sbr.rel (%p206) target = $region16
      $region15: #{deepfake_timesformer_forward.10} parent=11 // pred_region
        _
      $region16: #{deepfake_timesformer_forward.10} parent=11 // pred_fallthru
        _
      // Predicated region
      $region17: #{deepfake_timesformer_forward.10} parent=11 // pred_check
        %p209 = pneg %p81
      $region18: #{deepfake_timesformer_forward.10} parent=11 // pred_check_branch
        %211 = sbr.rel (%p209) target = $region20
      $region19: #{deepfake_timesformer_forward.10} parent=11 // pred_region
        _
      $region20: #{deepfake_timesformer_forward.10} parent=11 // pred_fallthru
        _
      // Predicated region
      $region21: #{deepfake_timesformer_forward.10} parent=11 // pred_check
        %p212 = pneg %p102
      $region22: #{deepfake_timesformer_forward.10} parent=11 // pred_check_branch
        %214 = sbr.rel (%p212) target = $region24
      $region23: #{deepfake_timesformer_forward.10} parent=11 // pred_region
        _
      $region24: #{deepfake_timesformer_forward.10} parent=11 // pred_fallthru
        _
      // Predicated region
      $region25: #{deepfake_timesformer_forward.10} parent=11 // pred_check
        %p215 = pneg %p123
      $region26: #{deepfake_timesformer_forward.10} parent=11 // pred_check_branch
        %217 = sbr.rel (%p215) target = $region28
      $region27: #{deepfake_timesformer_forward.10} parent=11 // pred_region
        _
      $region28: #{deepfake_timesformer_forward.10} parent=11 // pred_fallthru
        _
      // Predicated region
      $region29: #{deepfake_timesformer_forward.10} parent=11 // pred_check
        %p218 = pneg %p144
      $region30: #{deepfake_timesformer_forward.10} parent=11 // pred_check_branch
        %220 = sbr.rel (%p218) target = $region32
      $region31: #{deepfake_timesformer_forward.10} parent=11 // pred_region
        _
      $region32: #{deepfake_timesformer_forward.10} parent=11 // pred_fallthru
        _
      // Predicated region
      $region33: #{deepfake_timesformer_forward.10} parent=11 // pred_check
        %p221 = pneg %p165
      $region34: #{deepfake_timesformer_forward.10} parent=11 // pred_check_branch
        %223 = sbr.rel (%p221) target = $region36
      $region35: #{deepfake_timesformer_forward.10} parent=11 // pred_region
        _
      $region36: #{deepfake_timesformer_forward.10} parent=11 // pred_fallthru
        _
    $region12: #{deepfake_timesformer_forward.10} parent=5 // pred_fallthru
      _
    %p224 = scmp.lt.s32.totalorder %s13, 2
    // Predicated region
    $region37: #{deepfake_timesformer_forward.10} parent=5 // pred_check
      %p225 = pneg %p224
    $region38: #{deepfake_timesformer_forward.10} parent=5 // pred_check_branch
      %227 = sbr.rel (%p225) target = $region40
    $region39: #{deepfake_timesformer_forward.10} parent=5 // pred_region
      // Predicated region
      $region41: #{deepfake_timesformer_forward.10} parent=39 // pred_check
        %p228 = pneg %p33
      $region42: #{deepfake_timesformer_forward.10} parent=39 // pred_check_branch
        %230 = sbr.rel (%p228) target = $region44
      $region43: #{deepfake_timesformer_forward.10} parent=39 // pred_region
        %s231 = smul.u32 2, %s13
        %p232 = scmp.lt.s32.totalorder %s231, 3
        %s233 = scalar_select %p232, %s231, 3
        %s234 = smul.addr %s233, 8
        %s235 = scalar_lea.vmem %s0, %s234
        %s236 = smul.u32 2, %s13
      $region44: #{deepfake_timesformer_forward.10} parent=39 // pred_fallthru
        _
    $region40: #{deepfake_timesformer_forward.10} parent=5 // pred_fallthru
      _
    %p237 = scmp.le.s32.totalorder 1, %s13
    %p238 = scmp.lt.s32.totalorder %s13, 3
    %p239 = pnand %p237, %p238
    %p240 = pneg %p239
    // Predicated region
    $region45: #{deepfake_timesformer_forward.10} parent=5 // pred_check
      _
    $region46: #{deepfake_timesformer_forward.10} parent=5 // pred_check_branch
      %242 = sbr.rel (%p239) target = $region48
    $region47: #{deepfake_timesformer_forward.10} parent=5 // pred_region
      %s243 = ssub.s32 %s13, 1
      %s244 = smul.u32 2, %s18
      %p245 = scmp.lt.s32.totalorder %s244, 3
      %s246 = scalar_select %p245, %s244, 3
      %s247 = smul.addr %s246, 8
      %s248 = scalar_lea.vmem %s0, %s247
      %p249 = pneg %p39
      %p250 = pneg %p36
      %p251 = pneg %p60
      %p252 = pneg %p57
      %p253 = pneg %p81
      %p254 = pneg %p78
      %p255 = pneg %p102
      %p256 = pneg %p99
      %p257 = pneg %p123
      %p258 = pneg %p120
      %p259 = pneg %p144
      %p260 = pneg %p141
      %p261 = pneg %p165
      %p262 = pneg %p162
      %p263 = pneg %p191
      %p264 = pneg %p188
      %s265 = smul.u32 2, %s18
      %p266 = scmp.lt.s32.totalorder %s265, 3
      %s267 = scalar_select %p266, %s265, 3
      %s268 = smul.addr %s267, 8
      %s269 = scalar_lea.vmem %s7, %s268
      %s270 = smul.u32 2, %s18
      %p271 = scmp.lt.s32.totalorder %s270, 3
      %s272 = scalar_select %p271, %s270, 3
      %s273 = smul.addr %s272, 8
      %s274 = scalar_lea.vmem %s0, %s273
      %s275 = smul.u32 2, %s18
      %s276 = smul.u32 2, %s18
      %p277 = scmp.lt.s32.totalorder %s276, 3
      %s278 = scalar_select %p277, %s276, 3
      %s279 = smul.addr %s278, 8
      %s280 = scalar_lea.vmem %s7, %s279
      %s281 = smul.u32 2, %s18
      %v283 = vld [vmem:[%s274] sm:$0x1f]
      %v284 = vld [vmem:[%s274 + $0x8] sm:$0x1f]
      %v287 = vcombine.high %v283, %v283
      %v289 = vunpack.c.l.s4 1966171168
      %v290 = vunpack.c.0.s8 %v289
      %v291 = vlaneseq
      %v292 = vshrl.u32 %v291, 7
      %v293 = vsub.s32 %v290, %v292
      %v294 = vrot.slane %v283, %v293
      %v296 = vunpack.c.l.s4 1966171168
      %v297 = vunpack.c.0.s8 %v296
      %v298 = vlaneseq
      %v299 = vshrl.u32 %v298, 7
      %v300 = vsub.s32 %v297, %v299
      %v301 = vrot.slane %v287, %v300
      %v302 = vcombine.high %v294, %v294
      %v304 = vunpack.c.l.s4 1966171168
      %v305 = vunpack.c.0.s8 %v304
      %v306 = vlaneseq
      %v307 = vshrl.u32 %v306, 7
      %v308 = vsub.s32 %v305, %v307
      %v309 = vrot.slane %v294, %v308
      %v311 = vunpack.c.l.s4 1966171168
      %v312 = vunpack.c.0.s8 %v311
      %v313 = vlaneseq
      %v314 = vshrl.u32 %v313, 7
      %v315 = vsub.s32 %v312, %v314
      %v316 = vrot.slane %v301, %v315
      %v318 = vunpack.c.l.s4 1966171168
      %v319 = vunpack.c.0.s8 %v318
      %v320 = vlaneseq
      %v321 = vshrl.u32 %v320, 7
      %v322 = vsub.s32 %v319, %v321
      %v323 = vrot.slane %v302, %v322
      %v324 = vcombine.high %v309, %v309
      %v325 = vcombine.high %v323, %v323
      %v326 = vcombine.high %v284, %v284
      %v328 = vunpack.c.l.s4 1966171168
      %v329 = vunpack.c.0.s8 %v328
      %v330 = vlaneseq
      %v331 = vshrl.u32 %v330, 7
      %v332 = vsub.s32 %v329, %v331
      %v333 = vrot.slane %v284, %v332
      %v335 = vunpack.c.l.s4 1966171168
      %v336 = vunpack.c.0.s8 %v335
      %v337 = vlaneseq
      %v338 = vshrl.u32 %v337, 7
      %v339 = vsub.s32 %v336, %v338
      %v340 = vrot.slane %v326, %v339
      %v341 = vcombine.high %v333, %v333
      %v343 = vunpack.c.l.s4 1966171168
      %v344 = vunpack.c.0.s8 %v343
      %v345 = vlaneseq
      %v346 = vshrl.u32 %v345, 7
      %v347 = vsub.s32 %v344, %v346
      %v348 = vrot.slane %v333, %v347
      %v350 = vunpack.c.l.s4 1966171168
      %v351 = vunpack.c.0.s8 %v350
      %v352 = vlaneseq
      %v353 = vshrl.u32 %v352, 7
      %v354 = vsub.s32 %v351, %v353
      %v355 = vrot.slane %v340, %v354
      %v357 = vunpack.c.l.s4 1966171168
      %v358 = vunpack.c.0.s8 %v357
      %v359 = vlaneseq
      %v360 = vshrl.u32 %v359, 7
      %v361 = vsub.s32 %v358, %v360
      %v362 = vrot.slane %v341, %v361
      %v363 = vcombine.high %v348, %v348
      %v364 = vcombine.high %v362, %v362
      %v375 = vld [vmem:[%s1] sm:$0x1]
      %v376 = vld [vmem:[%s2] sm:$0x1]
      %v377 = vcombine.low %v309, %v323
      %v378 = vcombine.low %v324, %v325
      %v379 = vcombine.low %v316, %v348
      %v380 = vcombine.low %v362, %v363
      %v382 = vunpack.c.l.s4 1966171168
      %v383 = vunpack.c.0.s8 %v382
      %v384 = vlaneseq
      %v385 = vshrl.u32 %v384, 7
      %v386 = vsub.s32 %v383, %v385
      %v387 = vrot.slane %v377, %v386
      %v389 = vunpack.c.l.s4 1966171168
      %v390 = vunpack.c.0.s8 %v389
      %v391 = vlaneseq
      %v392 = vshrl.u32 %v391, 7
      %v393 = vsub.s32 %v390, %v392
      %v394 = vrot.slane %v378, %v393
      %v396 = vunpack.c.l.s4 1966171168
      %v397 = vunpack.c.0.s8 %v396
      %v398 = vlaneseq
      %v399 = vshrl.u32 %v398, 7
      %v400 = vsub.s32 %v397, %v399
      %v401 = vrot.slane %v379, %v400
      %v403 = vunpack.c.l.s4 1966171168
      %v404 = vunpack.c.0.s8 %v403
      %v405 = vlaneseq
      %v406 = vshrl.u32 %v405, 7
      %v407 = vsub.s32 %v404, %v406
      %v408 = vrot.slane %v380, %v407
      %v409 = vcombine.low %v387, %v394
      %v410 = vcombine.low %v401, %v408
      %v412 = vunpack.c.l.s4 1966171168
      %v413 = vunpack.c.0.s8 %v412
      %v414 = vlaneseq
      %v415 = vshrl.u32 %v414, 7
      %v416 = vsub.s32 %v413, %v415
      %v417 = vrot.slane %v409, %v416
      %v419 = vunpack.c.l.s4 1966171168
      %v420 = vunpack.c.0.s8 %v419
      %v421 = vlaneseq
      %v422 = vshrl.u32 %v421, 7
      %v423 = vsub.s32 %v420, %v422
      %v424 = vrot.slane %v410, %v423
      %v425 = vcombine.low %v417, %v424
      %v426 = vcombine.low %v364, %v355
      %v428 = vunpack.c.l.s4 1966171168
      %v429 = vunpack.c.0.s8 %v428
      %v430 = vlaneseq
      %v431 = vshrl.u32 %v430, 7
      %v432 = vsub.s32 %v429, %v431
      %v433 = vrot.slane %v426, %v432
      %v435 = vunpack.c.l.s4 1966171168
      %v436 = vunpack.c.0.s8 %v435
      %v437 = vlaneseq
      %v438 = vshrl.u32 %v437, 7
      %v439 = vsub.s32 %v436, %v438
      %v440 = vrot.slane %v433, %v439
      %443 = vadd.xlane.f32.xlu0 %v425
      %v444 = vpop.xlane.xlu0 %443
      %vm445 = vcmask 1041408
      %v446 = vsel %vm445, %v440, 0.0
      %447 = vadd.xlane.f32.xlu0 %v446
      %v448 = vpop.xlane.xlu0 %447
      %v449 = vrcp.pop 128.0
      %v450 = vmul.f32 %v444, %v449
      %v451 = vmul.f32 %v448, %v449
      %v454 = vlaneseq
      %v455 = vshrl.u32 %v454, 7
      %v456 = vsub.s32 0, %v455
      %v457 = vrot.slane %v450, %v456
      %v458 = vlaneseq
      %v459 = vshrl.u32 %v458, 7
      %v460 = vsub.s32 1, %v459
      %v461 = vrot.slane %v450, %v460
      %v462 = vlaneseq
      %v463 = vshrl.u32 %v462, 7
      %v464 = vsub.s32 2, %v463
      %v465 = vrot.slane %v450, %v464
      %v466 = vlaneseq
      %v467 = vshrl.u32 %v466, 7
      %v468 = vsub.s32 3, %v467
      %v469 = vrot.slane %v450, %v468
      %v470 = vlaneseq
      %v471 = vshrl.u32 %v470, 7
      %v472 = vsub.s32 4, %v471
      %v473 = vrot.slane %v450, %v472
      %v474 = vlaneseq
      %v475 = vshrl.u32 %v474, 7
      %v476 = vsub.s32 5, %v475
      %v477 = vrot.slane %v450, %v476
      %v478 = vlaneseq
      %v479 = vshrl.u32 %v478, 7
      %v480 = vsub.s32 6, %v479
      %v481 = vrot.slane %v450, %v480
      %v482 = vlaneseq
      %v483 = vshrl.u32 %v482, 7
      %v484 = vsub.s32 7, %v483
      %v485 = vrot.slane %v450, %v484
      %v486 = vlaneseq
      %v487 = vshrl.u32 %v486, 7
      %v488 = vsub.s32 0, %v487
      %v489 = vrot.slane %v451, %v488
      %v490 = vlaneseq
      %v491 = vshrl.u32 %v490, 7
      %v492 = vsub.s32 1, %v491
      %v493 = vrot.slane %v451, %v492
      %v504 = vsub.f32 %v309, %v457
      %v505 = vsub.f32 %v323, %v461
      %v506 = vsub.f32 %v324, %v465
      %v507 = vsub.f32 %v325, %v469
      %v508 = vsub.f32 %v316, %v473
      %v509 = vsub.f32 %v348, %v477
      %v510 = vsub.f32 %v362, %v481
      %v511 = vsub.f32 %v363, %v485
      %v512 = vsub.f32 %v364, %v489
      %v513 = vsub.f32 %v355, %v493
      %v514 = vmul.f32 %v504, %v504
      %v515 = vmul.f32 %v505, %v505
      %v516 = vmul.f32 %v506, %v506
      %v517 = vmul.f32 %v507, %v507
      %v518 = vmul.f32 %v508, %v508
      %v519 = vmul.f32 %v509, %v509
      %v520 = vmul.f32 %v510, %v510
      %v521 = vmul.f32 %v511, %v511
      %v522 = vmul.f32 %v512, %v512
      %v523 = vmul.f32 %v513, %v513
      %v534 = vcombine.low %v514, %v515
      %v535 = vcombine.low %v516, %v517
      %v536 = vcombine.low %v518, %v519
      %v537 = vcombine.low %v520, %v521
      %v539 = vunpack.c.l.s4 1966171168
      %v540 = vunpack.c.0.s8 %v539
      %v541 = vlaneseq
      %v542 = vshrl.u32 %v541, 7
      %v543 = vsub.s32 %v540, %v542
      %v544 = vrot.slane %v534, %v543
      %v546 = vunpack.c.l.s4 1966171168
      %v547 = vunpack.c.0.s8 %v546
      %v548 = vlaneseq
      %v549 = vshrl.u32 %v548, 7
      %v550 = vsub.s32 %v547, %v549
      %v551 = vrot.slane %v535, %v550
      %v553 = vunpack.c.l.s4 1966171168
      %v554 = vunpack.c.0.s8 %v553
      %v555 = vlaneseq
      %v556 = vshrl.u32 %v555, 7
      %v557 = vsub.s32 %v554, %v556
      %v558 = vrot.slane %v536, %v557
      %v560 = vunpack.c.l.s4 1966171168
      %v561 = vunpack.c.0.s8 %v560
      %v562 = vlaneseq
      %v563 = vshrl.u32 %v562, 7
      %v564 = vsub.s32 %v561, %v563
      %v565 = vrot.slane %v537, %v564
      %v566 = vcombine.low %v544, %v551
      %v567 = vcombine.low %v558, %v565
      %v569 = vunpack.c.l.s4 1966171168
      %v570 = vunpack.c.0.s8 %v569
      %v571 = vlaneseq
      %v572 = vshrl.u32 %v571, 7
      %v573 = vsub.s32 %v570, %v572
      %v574 = vrot.slane %v566, %v573
      %v576 = vunpack.c.l.s4 1966171168
      %v577 = vunpack.c.0.s8 %v576
      %v578 = vlaneseq
      %v579 = vshrl.u32 %v578, 7
      %v580 = vsub.s32 %v577, %v579
      %v581 = vrot.slane %v567, %v580
      %v582 = vcombine.low %v574, %v581
      %v583 = vcombine.low %v522, %v523
      %v585 = vunpack.c.l.s4 1966171168
      %v586 = vunpack.c.0.s8 %v585
      %v587 = vlaneseq
      %v588 = vshrl.u32 %v587, 7
      %v589 = vsub.s32 %v586, %v588
      %v590 = vrot.slane %v583, %v589
      %v592 = vunpack.c.l.s4 1966171168
      %v593 = vunpack.c.0.s8 %v592
      %v594 = vlaneseq
      %v595 = vshrl.u32 %v594, 7
      %v596 = vsub.s32 %v593, %v595
      %v597 = vrot.slane %v590, %v596
      %600 = vadd.xlane.f32.xlu0 %v582
      %v601 = vpop.xlane.xlu0 %600
      %v602 = vsel %vm445, %v597, 0.0
      %603 = vadd.xlane.f32.xlu0 %v602
      %v604 = vpop.xlane.xlu0 %603
      %v605 = vmul.f32 %v601, %v449
      %v606 = vmul.f32 %v604, %v449
      %v607 = vadd.f32 %v605, 1e-06
      %v608 = vadd.f32 %v606, 1e-06
      %v609 = vrsqrt.pop %v607
      %v610 = vrsqrt.pop %v608
      %v613 = vlaneseq
      %v614 = vshrl.u32 %v613, 7
      %v615 = vsub.s32 0, %v614
      %v616 = vrot.slane %v609, %v615
      %v617 = vlaneseq
      %v618 = vshrl.u32 %v617, 7
      %v619 = vsub.s32 1, %v618
      %v620 = vrot.slane %v609, %v619
      %v621 = vlaneseq
      %v622 = vshrl.u32 %v621, 7
      %v623 = vsub.s32 2, %v622
      %v624 = vrot.slane %v609, %v623
      %v625 = vlaneseq
      %v626 = vshrl.u32 %v625, 7
      %v627 = vsub.s32 3, %v626
      %v628 = vrot.slane %v609, %v627
      %v629 = vlaneseq
      %v630 = vshrl.u32 %v629, 7
      %v631 = vsub.s32 4, %v630
      %v632 = vrot.slane %v609, %v631
      %v633 = vlaneseq
      %v634 = vshrl.u32 %v633, 7
      %v635 = vsub.s32 5, %v634
      %v636 = vrot.slane %v609, %v635
      %v637 = vlaneseq
      %v638 = vshrl.u32 %v637, 7
      %v639 = vsub.s32 6, %v638
      %v640 = vrot.slane %v609, %v639
      %v641 = vlaneseq
      %v642 = vshrl.u32 %v641, 7
      %v643 = vsub.s32 7, %v642
      %v644 = vrot.slane %v609, %v643
      %v645 = vlaneseq
      %v646 = vshrl.u32 %v645, 7
      %v647 = vsub.s32 0, %v646
      %v648 = vrot.slane %v610, %v647
      %v649 = vlaneseq
      %v650 = vshrl.u32 %v649, 7
      %v651 = vsub.s32 1, %v650
      %v652 = vrot.slane %v610, %v651
      %v663 = vmul.f32 %v504, %v616
      %v664 = vmul.f32 %v505, %v620
      %v665 = vmul.f32 %v506, %v624
      %v666 = vmul.f32 %v507, %v628
      %v667 = vmul.f32 %v508, %v632
      %v668 = vmul.f32 %v509, %v636
      %v669 = vmul.f32 %v510, %v640
      %v670 = vmul.f32 %v511, %v644
      %v671 = vmul.f32 %v512, %v648
      %v672 = vmul.f32 %v513, %v652
      %v674 = vlaneseq
      %v675 = vshrl.u32 %v674, 7
      %v676 = vsub.s32 0, %v675
      %v677 = vrot.slane %v375, %v676
      %v678 = vcombine.high %v677, %v677
      %v680 = vunpack.c.l.s4 1966171168
      %v681 = vunpack.c.0.s8 %v680
      %v682 = vlaneseq
      %v683 = vshrl.u32 %v682, 7
      %v684 = vsub.s32 %v681, %v683
      %v685 = vrot.slane %v677, %v684
      %v687 = vunpack.c.l.s4 1966171168
      %v688 = vunpack.c.0.s8 %v687
      %v689 = vlaneseq
      %v690 = vshrl.u32 %v689, 7
      %v691 = vsub.s32 %v688, %v690
      %v692 = vrot.slane %v678, %v691
      %v693 = vcombine.high %v685, %v685
      %v694 = vcombine.high %v692, %v692
      %v696 = vunpack.c.l.s4 1966171168
      %v697 = vunpack.c.0.s8 %v696
      %v698 = vlaneseq
      %v699 = vshrl.u32 %v698, 7
      %v700 = vsub.s32 %v697, %v699
      %v701 = vrot.slane %v685, %v700
      %v703 = vunpack.c.l.s4 1966171168
      %v704 = vunpack.c.0.s8 %v703
      %v705 = vlaneseq
      %v706 = vshrl.u32 %v705, 7
      %v707 = vsub.s32 %v704, %v706
      %v708 = vrot.slane %v692, %v707
      %v710 = vunpack.c.l.s4 1966171168
      %v711 = vunpack.c.0.s8 %v710
      %v712 = vlaneseq
      %v713 = vshrl.u32 %v712, 7
      %v714 = vsub.s32 %v711, %v713
      %v715 = vrot.slane %v693, %v714
      %v717 = vunpack.c.l.s4 1966171168
      %v718 = vunpack.c.0.s8 %v717
      %v719 = vlaneseq
      %v720 = vshrl.u32 %v719, 7
      %v721 = vsub.s32 %v718, %v720
      %v722 = vrot.slane %v694, %v721
      %v723 = vcombine.high %v701, %v701
      %v724 = vcombine.high %v708, %v708
      %v725 = vcombine.high %v715, %v715
      %v726 = vcombine.high %v722, %v722
      %v735 = vmul.f32 %v663, %v701
      %v736 = vmul.f32 %v664, %v715
      %v737 = vmul.f32 %v665, %v723
      %v738 = vmul.f32 %v666, %v725
      %v739 = vmul.f32 %v667, %v708
      %v740 = vmul.f32 %v668, %v722
      %v741 = vmul.f32 %v669, %v724
      %v742 = vmul.f32 %v670, %v726
      %v743 = vmul.f32 %v671, %v701
      %v744 = vmul.f32 %v672, %v715
      %v746 = vlaneseq
      %v747 = vshrl.u32 %v746, 7
      %v748 = vsub.s32 0, %v747
      %v749 = vrot.slane %v376, %v748
      %v750 = vcombine.high %v749, %v749
      %v752 = vunpack.c.l.s4 1966171168
      %v753 = vunpack.c.0.s8 %v752
      %v754 = vlaneseq
      %v755 = vshrl.u32 %v754, 7
      %v756 = vsub.s32 %v753, %v755
      %v757 = vrot.slane %v749, %v756
      %v759 = vunpack.c.l.s4 1966171168
      %v760 = vunpack.c.0.s8 %v759
      %v761 = vlaneseq
      %v762 = vshrl.u32 %v761, 7
      %v763 = vsub.s32 %v760, %v762
      %v764 = vrot.slane %v750, %v763
      %v765 = vcombine.high %v757, %v757
      %v766 = vcombine.high %v764, %v764
      %v768 = vunpack.c.l.s4 1966171168
      %v769 = vunpack.c.0.s8 %v768
      %v770 = vlaneseq
      %v771 = vshrl.u32 %v770, 7
      %v772 = vsub.s32 %v769, %v771
      %v773 = vrot.slane %v757, %v772
      %v775 = vunpack.c.l.s4 1966171168
      %v776 = vunpack.c.0.s8 %v775
      %v777 = vlaneseq
      %v778 = vshrl.u32 %v777, 7
      %v779 = vsub.s32 %v776, %v778
      %v780 = vrot.slane %v764, %v779
      %v782 = vunpack.c.l.s4 1966171168
      %v783 = vunpack.c.0.s8 %v782
      %v784 = vlaneseq
      %v785 = vshrl.u32 %v784, 7
      %v786 = vsub.s32 %v783, %v785
      %v787 = vrot.slane %v765, %v786
      %v789 = vunpack.c.l.s4 1966171168
      %v790 = vunpack.c.0.s8 %v789
      %v791 = vlaneseq
      %v792 = vshrl.u32 %v791, 7
      %v793 = vsub.s32 %v790, %v792
      %v794 = vrot.slane %v766, %v793
      %v795 = vcombine.high %v773, %v773
      %v796 = vcombine.high %v780, %v780
      %v797 = vcombine.high %v787, %v787
      %v798 = vcombine.high %v794, %v794
      %v807 = vadd.f32 %v735, %v773
      %v808 = vadd.f32 %v736, %v787
      %v809 = vadd.f32 %v737, %v795
      %v810 = vadd.f32 %v738, %v797
      %v811 = vadd.f32 %v739, %v780
      %v812 = vadd.f32 %v740, %v794
      %v813 = vadd.f32 %v741, %v796
      %v814 = vadd.f32 %v742, %v798
      %v815 = vadd.f32 %v743, %v773
      %v816 = vadd.f32 %v744, %v787
      %v827 = vcombine.low %v807, %v808
      %v828 = vcombine.low %v809, %v810
      %v829 = vcombine.low %v811, %v812
      %v830 = vcombine.low %v813, %v814
      %v832 = vunpack.c.l.s4 1966171168
      %v833 = vunpack.c.0.s8 %v832
      %v834 = vlaneseq
      %v835 = vshrl.u32 %v834, 7
      %v836 = vsub.s32 %v833, %v835
      %v837 = vrot.slane %v827, %v836
      %v839 = vunpack.c.l.s4 1966171168
      %v840 = vunpack.c.0.s8 %v839
      %v841 = vlaneseq
      %v842 = vshrl.u32 %v841, 7
      %v843 = vsub.s32 %v840, %v842
      %v844 = vrot.slane %v828, %v843
      %v846 = vunpack.c.l.s4 1966171168
      %v847 = vunpack.c.0.s8 %v846
      %v848 = vlaneseq
      %v849 = vshrl.u32 %v848, 7
      %v850 = vsub.s32 %v847, %v849
      %v851 = vrot.slane %v829, %v850
      %v853 = vunpack.c.l.s4 1966171168
      %v854 = vunpack.c.0.s8 %v853
      %v855 = vlaneseq
      %v856 = vshrl.u32 %v855, 7
      %v857 = vsub.s32 %v854, %v856
      %v858 = vrot.slane %v830, %v857
      %v859 = vcombine.low %v837, %v844
      %v860 = vcombine.low %v851, %v858
      %v862 = vunpack.c.l.s4 1966171168
      %v863 = vunpack.c.0.s8 %v862
      %v864 = vlaneseq
      %v865 = vshrl.u32 %v864, 7
      %v866 = vsub.s32 %v863, %v865
      %v867 = vrot.slane %v859, %v866
      %v869 = vunpack.c.l.s4 1966171168
      %v870 = vunpack.c.0.s8 %v869
      %v871 = vlaneseq
      %v872 = vshrl.u32 %v871, 7
      %v873 = vsub.s32 %v870, %v872
      %v874 = vrot.slane %v860, %v873
      %v875 = vcombine.low %v867, %v874
      %v876 = vcombine.low %v815, %v816
      %v878 = vunpack.c.l.s4 1966171168
      %v879 = vunpack.c.0.s8 %v878
      %v880 = vlaneseq
      %v881 = vshrl.u32 %v880, 7
      %v882 = vsub.s32 %v879, %v881
      %v883 = vrot.slane %v876, %v882
      %v885 = vunpack.c.l.s4 1966171168
      %v886 = vunpack.c.0.s8 %v885
      %v887 = vlaneseq
      %v888 = vshrl.u32 %v887, 7
      %v889 = vsub.s32 %v886, %v888
      %v890 = vrot.slane %v883, %v889
      %v893 = vpack.c.bf16 %v890, %v875
      %v894 = vld [vmem:[%s3] sm:$0xff]
      %v895 = vld [vmem:[%s3 + $0x8] sm:$0xf]
      %v896 = vld [vmem:[%s3 + $0xc] sm:$0xff]
      %v897 = vld [vmem:[%s3 + $0x14] sm:$0xf]
      %v898 = vld [vmem:[%s3 + $0x18] sm:$0xff]
      %v899 = vld [vmem:[%s3 + $0x20] sm:$0xf]
      %v900 = vld [vmem:[%s3 + $0x24] sm:$0xff]
      %v901 = vld [vmem:[%s3 + $0x2c] sm:$0xf]
      %v902 = vld [vmem:[%s3 + $0x30] sm:$0xff]
      %v903 = vld [vmem:[%s3 + $0x38] sm:$0xf]
      %v904 = vld [vmem:[%s3 + $0x3c] sm:$0xff]
      %v905 = vld [vmem:[%s3 + $0x44] sm:$0xf]
      %v906 = vld [vmem:[%s3 + $0x48] sm:$0xff]
      %v907 = vld [vmem:[%s3 + $0x50] sm:$0xf]
      %v908 = vld [vmem:[%s3 + $0x54] sm:$0xff]
      %v909 = vld [vmem:[%s3 + $0x5c] sm:$0xf]
      %v910 = vld [vmem:[%s3 + $0x60] sm:$0xff]
      %v911 = vld [vmem:[%s3 + $0x68] sm:$0xf]
      %v912 = vld [vmem:[%s3 + $0x6c] sm:$0xff]
      %v913 = vld [vmem:[%s3 + $0x74] sm:$0xf]
      %v914 = vld [vmem:[%s3 + $0x78] sm:$0xff]
      %v915 = vld [vmem:[%s3 + $0x80] sm:$0xf]
      %v916 = vld [vmem:[%s3 + $0x84] sm:$0xff]
      %v917 = vld [vmem:[%s3 + $0x8c] sm:$0xf]
      %v918 = vld [vmem:[%s3 + $0x90] sm:$0xff]
      %v919 = vld [vmem:[%s3 + $0x98] sm:$0xf]
      %v920 = vld [vmem:[%s3 + $0x9c] sm:$0xff]
      %v921 = vld [vmem:[%s3 + $0xa4] sm:$0xf]
      %v922 = vld [vmem:[%s3 + $0xa8] sm:$0xff]
      %v923 = vld [vmem:[%s3 + $0xb0] sm:$0xf]
      %v924 = vld [vmem:[%s3 + $0xb4] sm:$0xff]
      %v925 = vld [vmem:[%s3 + $0xbc] sm:$0xf]
      %v926 = vld [vmem:[%s4] sm:$0x7]
      %v928 = vlaneseq
      %v929 = vshrl.u32 %v928, 7
      %v930 = vsub.s32 0, %v929
      %v931 = vrot.slane %v926, %v930
      %v932 = vlaneseq
      %v933 = vshrl.u32 %v932, 7
      %v934 = vsub.s32 1, %v933
      %v935 = vrot.slane %v926, %v934
      %v936 = vlaneseq
      %v937 = vshrl.u32 %v936, 7
      %v938 = vsub.s32 2, %v937
      %v939 = vrot.slane %v926, %v938
      %v975 = vunpack.c.l.b16 %v894
      %v976 = vunpack.c.h.b16 %v894
      %v977 = vunpack.c.l.b16 %v895
      %v978 = vunpack.c.l.b16 %v896
      %v979 = vunpack.c.h.b16 %v896
      %v980 = vunpack.c.l.b16 %v897
      %v981 = vunpack.c.l.b16 %v898
      %v982 = vunpack.c.h.b16 %v898
      %v983 = vunpack.c.l.b16 %v899
      %v984 = vunpack.c.l.b16 %v900
      %v985 = vunpack.c.h.b16 %v900
      %v986 = vunpack.c.l.b16 %v901
      %v987 = vunpack.c.l.b16 %v902
      %v988 = vunpack.c.h.b16 %v902
      %v989 = vunpack.c.l.b16 %v903
      %v990 = vunpack.c.l.b16 %v904
      %v991 = vunpack.c.h.b16 %v904
      %v992 = vunpack.c.l.b16 %v905
      %v993 = vunpack.c.l.b16 %v906
      %v994 = vunpack.c.h.b16 %v906
      %v995 = vunpack.c.l.b16 %v907
      %v996 = vunpack.c.l.b16 %v908
      %v997 = vunpack.c.h.b16 %v908
      %v998 = vunpack.c.l.b16 %v909
      %v999 = vunpack.c.l.b16 %v910
      %v1000 = vunpack.c.h.b16 %v910
      %v1001 = vunpack.c.l.b16 %v911
      %v1002 = vunpack.c.l.b16 %v912
      %v1003 = vunpack.c.h.b16 %v912
      %v1004 = vunpack.c.l.b16 %v913
      %v1005 = vunpack.c.l.b16 %v914
      %v1006 = vunpack.c.h.b16 %v914
      %v1007 = vunpack.c.l.b16 %v915
      %v1008 = vunpack.c.l.b16 %v916
      %v1009 = vunpack.c.h.b16 %v916
      %v1010 = vunpack.c.l.b16 %v917
      %v1011 = vunpack.c.l.b16 %v918
      %v1012 = vunpack.c.h.b16 %v918
      %v1013 = vunpack.c.l.b16 %v919
      %v1014 = vunpack.c.l.b16 %v920
      %v1015 = vunpack.c.h.b16 %v920
      %v1016 = vunpack.c.l.b16 %v921
      %v1017 = vunpack.c.l.b16 %v922
      %v1018 = vunpack.c.h.b16 %v922
      %v1019 = vunpack.c.l.b16 %v923
      %v1020 = vunpack.c.l.b16 %v924
      %v1021 = vunpack.c.h.b16 %v924
      %v1022 = vunpack.c.l.b16 %v925
      %v1023 = vpack.c.b16 %v978, %v975
      %v1024 = vpack.c.b16 %v979, %v976
      %v1025 = vpack.c.b16 %v980, %v977
      %v1026 = vpack.c.b16 %v984, %v981
      %v1027 = vpack.c.b16 %v985, %v982
      %v1028 = vpack.c.b16 %v986, %v983
      %v1029 = vpack.c.b16 %v990, %v987
      %v1030 = vpack.c.b16 %v991, %v988
      %v1031 = vpack.c.b16 %v992, %v989
      %v1032 = vpack.c.b16 %v996, %v993
      %v1033 = vpack.c.b16 %v997, %v994
      %v1034 = vpack.c.b16 %v998, %v995
      %v1035 = vpack.c.b16 %v1002, %v999
      %v1036 = vpack.c.b16 %v1003, %v1000
      %v1037 = vpack.c.b16 %v1004, %v1001
      %v1038 = vpack.c.b16 %v1008, %v1005
      %v1039 = vpack.c.b16 %v1009, %v1006
      %v1040 = vpack.c.b16 %v1010, %v1007
      %v1041 = vpack.c.b16 %v1014, %v1011
      %v1042 = vpack.c.b16 %v1015, %v1012
      %v1043 = vpack.c.b16 %v1016, %v1013
      %v1044 = vpack.c.b16 %v1020, %v1017
      %v1045 = vpack.c.b16 %v1021, %v1018
      %v1046 = vpack.c.b16 %v1022, %v1019
      %1071 = vmatprep.subr.bf16.mxu0 %v1045
      %1072 = vmatpush1.bf16.msra.mxu0 %v1044
      %1073 = vmatprep.subr.bf16.mxu0 %v1042
      %1074 = vmatpush1.bf16.msra.mxu0 %v1041
      %1075 = vmatprep.subr.bf16.mxu0 %v1039
      %1076 = vmatpush1.bf16.msra.mxu0 %v1038
      %1077 = vmatprep.subr.bf16.mxu0 %v1036
      %1078 = vmatpush1.bf16.msra.mxu0 %v1035
      %1079 = vmatprep.subr.bf16.mxu0 %v1033
      %1080 = vmatpush1.bf16.msra.mxu0 %v1032
      %1081 = vmatprep.subr.bf16.mxu0 %v1030
      %1082 = vmatpush1.bf16.msra.mxu0 %v1029
      %1083 = vmatprep.subr.bf16.mxu0 %v1027
      %1084 = vmatpush1.bf16.msra.mxu0 %v1026
      %1085 = vmatprep.subr.bf16.mxu0 %v1024
      %1086 = vmatpush1.bf16.msra.mxu0 %v1023
      %1087 = vmatprep.subr.bf16.mxu0 0
      %1088 = vmatpush2.bf16.msra.mxu0 0
      %1089 = vmatprep.subr.bf16.mxu0 0
      %1090 = vmatpush2.bf16.msra.mxu0 0
      %1091 = vmatprep.subr.bf16.mxu0 0
      %1092 = vmatpush2.bf16.msra.mxu0 0
      %1093 = vmatprep.subr.bf16.mxu0 0
      %1094 = vmatpush2.bf16.msra.mxu0 0
      %1095 = vmatprep.subr.bf16.mxu0 0
      %1096 = vmatpush2.bf16.msra.mxu0 0
      %1097 = vmatprep.subr.bf16.mxu0 0
      %1098 = vmatpush2.bf16.msra.mxu0 0
      %1099 = vmatprep.subr.bf16.mxu0 0
      %1100 = vmatpush2.bf16.msra.mxu0 0
      %1101 = vmatprep.subr.bf16.mxu0 0
      %1102 = vmatpush2.bf16.msra.mxu0 0
      %1103 = vmatprep.mubr.bf16.mxu0 0
      %1104 = vmatmul.mubr.bf16.gmra.mxu0 %v893
      %v1105 = vpop.f32.mrf.mxu0
      %v1106 = vadd.f32 %v931, %v1105
      %v1107 = vpop.f32.mrf.mxu0
      %v1108 = vadd.f32 %v935, %v1107
      %v1109 = vpop.f32.mrf.mxu0
      %v1110 = vadd.f32 %v931, %v1109
      %v1111 = vpop.f32.mrf.mxu0
      %v1112 = vadd.f32 %v935, %v1111
      %1113 = vdwg.mxu0
      %1114 = vmatprep.subr.bf16.mxu0 0
      %1115 = vmatpush1.bf16.msra.mxu0 %v1046
      %1116 = vmatprep.subr.bf16.mxu0 0
      %1117 = vmatpush1.bf16.msra.mxu0 %v1043
      %1118 = vmatprep.subr.bf16.mxu0 0
      %1119 = vmatpush1.bf16.msra.mxu0 %v1040
      %1120 = vmatprep.subr.bf16.mxu0 0
      %1121 = vmatpush1.bf16.msra.mxu0 %v1037
      %1122 = vmatprep.subr.bf16.mxu0 0
      %1123 = vmatpush1.bf16.msra.mxu0 %v1034
      %1124 = vmatprep.subr.bf16.mxu0 0
      %1125 = vmatpush1.bf16.msra.mxu0 %v1031
      %1126 = vmatprep.subr.bf16.mxu0 0
      %1127 = vmatpush1.bf16.msra.mxu0 %v1028
      %1128 = vmatprep.subr.bf16.mxu0 0
      %1129 = vmatpush1.bf16.msra.mxu0 %v1025
      %1130 = vmatprep.subr.bf16.mxu0 0
      %1131 = vmatpush2.bf16.msra.mxu0 0
      %1132 = vmatprep.subr.bf16.mxu0 0
      %1133 = vmatpush2.bf16.msra.mxu0 0
      %1134 = vmatprep.subr.bf16.mxu0 0
      %1135 = vmatpush2.bf16.msra.mxu0 0
      %1136 = vmatprep.subr.bf16.mxu0 0
      %1137 = vmatpush2.bf16.msra.mxu0 0
      %1138 = vmatprep.subr.bf16.mxu0 0
      %1139 = vmatpush2.bf16.msra.mxu0 0
      %1140 = vmatprep.subr.bf16.mxu0 0
      %1141 = vmatpush2.bf16.msra.mxu0 0
      %1142 = vmatprep.subr.bf16.mxu0 0
      %1143 = vmatpush2.bf16.msra.mxu0 0
      %1144 = vmatprep.subr.bf16.mxu0 0
      %1145 = vmatpush2.bf16.msra.mxu0 0
      %1146 = vmatprep.mubr.bf16.mxu0 0
      %1147 = vmatmul.mubr.bf16.gmra.mxu0 %v893
      %v1148 = vpop.f32.mrf.mxu0
      %v1149 = vadd.f32 %v939, %v1148
      %v1150 = vpop.f32.mrf.mxu0
      %v1151 = vpop.f32.mrf.mxu0
      %v1152 = vadd.f32 %v939, %v1151
      %v1153 = vpop.f32.mrf.mxu0
      %1154 = vdwg.mxu0
      %v1155 = vpack.c.bf16 %v1110, %v1106
      %v1156 = vpack.c.bf16 %v1112, %v1108
      %v1157 = vpack.c.bf16 %v1152, %v1149
      %v1161 = vcombine.low %v1155, %v1156
      %v1162 = vcombine.high %v1155, %v1156
      %v1163 = vcombine.high %v1157, %v1157
      %v1165 = vunpack.c.l.s4 1966171168
      %v1166 = vunpack.c.0.s8 %v1165
      %v1167 = vlaneseq
      %v1168 = vshrl.u32 %v1167, 7
      %v1169 = vsub.s32 %v1166, %v1168
      %v1170 = vrot.slane %v1161, %v1169
      %v1172 = vunpack.c.l.s4 1966171168
      %v1173 = vunpack.c.0.s8 %v1172
      %v1174 = vlaneseq
      %v1175 = vshrl.u32 %v1174, 7
      %v1176 = vsub.s32 %v1173, %v1175
      %v1177 = vrot.slane %v1162, %v1176
      %v1179 = vunpack.c.l.s4 1966171168
      %v1180 = vunpack.c.0.s8 %v1179
      %v1181 = vlaneseq
      %v1182 = vshrl.u32 %v1181, 7
      %v1183 = vsub.s32 %v1180, %v1182
      %v1184 = vrot.slane %v1157, %v1183
      %v1186 = vunpack.c.l.s4 1966171168
      %v1187 = vunpack.c.0.s8 %v1186
      %v1188 = vlaneseq
      %v1189 = vshrl.u32 %v1188, 7
      %v1190 = vsub.s32 %v1187, %v1189
      %v1191 = vrot.slane %v1163, %v1190
      %v1192 = vcombine.low %v1170, %v1184
      %v1193 = vcombine.high %v1170, %v1184
      %v1194 = vcombine.low %v1177, %v1191
      %v1196 = vunpack.c.l.s4 1966171168
      %v1197 = vunpack.c.0.s8 %v1196
      %v1198 = vlaneseq
      %v1199 = vshrl.u32 %v1198, 7
      %v1200 = vsub.s32 %v1197, %v1199
      %v1201 = vrot.slane %v1192, %v1200
      %v1203 = vunpack.c.l.s4 1966171168
      %v1204 = vunpack.c.0.s8 %v1203
      %v1205 = vlaneseq
      %v1206 = vshrl.u32 %v1205, 7
      %v1207 = vsub.s32 %v1204, %v1206
      %v1208 = vrot.slane %v1194, %v1207
      %v1210 = vunpack.c.l.s4 1966171168
      %v1211 = vunpack.c.0.s8 %v1210
      %v1212 = vlaneseq
      %v1213 = vshrl.u32 %v1212, 7
      %v1214 = vsub.s32 %v1211, %v1213
      %v1215 = vrot.slane %v1193, %v1214
      %v1216 = vcombine.high %v1201, %v1201
      %v1217 = vcombine.high %v1215, %v1215
      %v1218 = vunpack.i.l.s16 %v1201
      %v1219 = vunpack.i.h.s16 %v1201
      %v1220 = vunpack.i.l.s16 %v1215
      %v1221 = vunpack.i.h.s16 %v1215
      %v1222 = vunpack.i.l.s16 %v1216
      %v1223 = vunpack.i.h.s16 %v1216
      %v1224 = vunpack.i.l.s16 %v1217
      %v1225 = vunpack.i.h.s16 %v1217
      %v1226 = vunpack.i.l.s16 %v1208
      %v1227 = vunpack.i.h.s16 %v1208
      %v1228 = vpack.i.b16 %v1219, %v1218
      %v1229 = vpack.i.b16 %v1221, %v1220
      %v1231 = vcombine.low %v1228, %v1229
      %v1233 = vunpack.c.l.s4 1966171168
      %v1234 = vunpack.c.0.s8 %v1233
      %v1235 = vlaneseq
      %v1236 = vshrl.u32 %v1235, 7
      %v1237 = vsub.s32 %v1234, %v1236
      %v1238 = vrot.slane %v1231, %v1237
      %v1240 = vunpack.c.l.s4 1966171168
      %v1241 = vunpack.c.0.s8 %v1240
      %v1242 = vlaneseq
      %v1243 = vshrl.u32 %v1242, 7
      %v1244 = vsub.s32 %v1241, %v1243
      %v1245 = vrot.slane %v1222, %v1244
      %v1246 = vcombine.low %v1238, %v1245
      %v1248 = vunpack.c.l.s4 1966171168
      %v1249 = vunpack.c.0.s8 %v1248
      %v1250 = vlaneseq
      %v1251 = vshrl.u32 %v1250, 7
      %v1252 = vsub.s32 %v1249, %v1251
      %v1253 = vrot.slane %v1246, %v1252
      %v1254 = vcombine.high %v1238, %v1245
      %v1256 = vunpack.c.l.s4 1966171168
      %v1257 = vunpack.c.0.s8 %v1256
      %v1258 = vlaneseq
      %v1259 = vshrl.u32 %v1258, 7
      %v1260 = vsub.s32 %v1257, %v1259
      %v1261 = vrot.slane %v1254, %v1260
      %vm1262 = vcmask 261120
      %v1264 = vsel %vm1262, %v1253, 0
      %v1267 = vsel %vm1262, %v1261, 0
      %1269 = vmatprep.subr.bf16.mxu0 0
      %1270 = vmatpush1.bf16.xpose.msra.mxu0 0
      %1271 = vmatprep.subr.bf16.mxu0 0
      %1272 = vmatpush1.bf16.xpose.msra.mxu0 0
      %1273 = vmatprep.subr.bf16.mxu0 0
      %1274 = vmatpush1.bf16.xpose.msra.mxu0 0
      %1275 = vmatprep.subr.bf16.mxu0 0
      %1276 = vmatpush1.bf16.xpose.msra.mxu0 0
      %1277 = vmatprep.subr.bf16.mxu0 0
      %1278 = vmatpush1.bf16.xpose.msra.mxu0 0
      %1279 = vmatprep.subr.bf16.mxu0 0
      %1280 = vmatpush1.bf16.xpose.msra.mxu0 0
      %1281 = vmatprep.subr.bf16.mxu0 0
      %1282 = vmatpush1.bf16.xpose.msra.mxu0 0
      %1283 = vmatprep.subr.bf16.mxu0 0
      %1284 = vmatpush1.bf16.xpose.msra.mxu0 %v1267
      %1285 = vmatprep.subr.bf16.mxu0 0
      %1286 = vmatpush2.bf16.xpose.msra.mxu0 0
      %1287 = vmatprep.subr.bf16.mxu0 0
      %1288 = vmatpush2.bf16.xpose.msra.mxu0 0
      %1289 = vmatprep.subr.bf16.mxu0 0
      %1290 = vmatpush2.bf16.xpose.msra.mxu0 0
      %1291 = vmatprep.subr.bf16.mxu0 0
      %1292 = vmatpush2.bf16.xpose.msra.mxu0 0
      %1293 = vmatprep.subr.bf16.mxu0 0
      %1294 = vmatpush2.bf16.xpose.msra.mxu0 0
      %1295 = vmatprep.subr.bf16.mxu0 0
      %1296 = vmatpush2.bf16.xpose.msra.mxu0 0
      %1297 = vmatprep.subr.bf16.mxu0 0
      %1298 = vmatpush2.bf16.xpose.msra.mxu0 0
      %1299 = vmatprep.subr.bf16.mxu0 0
      %1300 = vmatpush2.bf16.xpose.msra.mxu0 0
      %1301 = vmatprep.mubr.bf16.mxu0 0
      %1302 = vmatmul.mubr.bf16.gmra.mxu0 %v1264
      %v1303 = vpop.f32.mrf.mxu0
      %v1304 = vadd.f32 0.0, %v1303
      %v1305 = vpop.f32.mrf.mxu0
      %v1306 = vpop.f32.mrf.mxu0
      %v1307 = vpop.f32.mrf.mxu0
      %1308 = vdwg.mxu0
      %v1309 = vpack.i.b16 %v1224, %v1223
      %v1310 = vpack.i.b16 %v1226, %v1225
      %v1312 = vcombine.low %v1309, %v1310
      %v1314 = vunpack.c.l.s4 1966171168
      %v1315 = vunpack.c.0.s8 %v1314
      %v1316 = vlaneseq
      %v1317 = vshrl.u32 %v1316, 7
      %v1318 = vsub.s32 %v1315, %v1317
      %v1319 = vrot.slane %v1312, %v1318
      %v1321 = vunpack.c.l.s4 1966171168
      %v1322 = vunpack.c.0.s8 %v1321
      %v1323 = vlaneseq
      %v1324 = vshrl.u32 %v1323, 7
      %v1325 = vsub.s32 %v1322, %v1324
      %v1326 = vrot.slane %v1227, %v1325
      %v1327 = vcombine.low %v1319, %v1326
      %v1329 = vunpack.c.l.s4 1966171168
      %v1330 = vunpack.c.0.s8 %v1329
      %v1331 = vlaneseq
      %v1332 = vshrl.u32 %v1331, 7
      %v1333 = vsub.s32 %v1330, %v1332
      %v1334 = vrot.slane %v1327, %v1333
      %v1335 = vcombine.high %v1319, %v1326
      %v1337 = vunpack.c.l.s4 1966171168
      %v1338 = vunpack.c.0.s8 %v1337
      %v1339 = vlaneseq
      %v1340 = vshrl.u32 %v1339, 7
      %v1341 = vsub.s32 %v1338, %v1340
      %v1342 = vrot.slane %v1335, %v1341
      %v1344 = vsel %vm1262, %v1334, 0
      %v1347 = vsel %vm1262, %v1342, 0
      %1349 = vmatprep.subr.bf16.mxu0 0
      %1350 = vmatpush1.bf16.xpose.msra.mxu0 0
      %1351 = vmatprep.subr.bf16.mxu0 0
      %1352 = vmatpush1.bf16.xpose.msra.mxu0 0
      %1353 = vmatprep.subr.bf16.mxu0 0
      %1354 = vmatpush1.bf16.xpose.msra.mxu0 0
      %1355 = vmatprep.subr.bf16.mxu0 0
      %1356 = vmatpush1.bf16.xpose.msra.mxu0 0
      %1357 = vmatprep.subr.bf16.mxu0 0
      %1358 = vmatpush1.bf16.xpose.msra.mxu0 0
      %1359 = vmatprep.subr.bf16.mxu0 0
      %1360 = vmatpush1.bf16.xpose.msra.mxu0 0
      %1361 = vmatprep.subr.bf16.mxu0 0
      %1362 = vmatpush1.bf16.xpose.msra.mxu0 0
      %1363 = vmatprep.subr.bf16.mxu0 0
      %1364 = vmatpush1.bf16.xpose.msra.mxu0 %v1347
      %1365 = vmatprep.subr.bf16.mxu0 0
      %1366 = vmatpush2.bf16.xpose.msra.mxu0 0
      %1367 = vmatprep.subr.bf16.mxu0 0
      %1368 = vmatpush2.bf16.xpose.msra.mxu0 0
      %1369 = vmatprep.subr.bf16.mxu0 0
      %1370 = vmatpush2.bf16.xpose.msra.mxu0 0
      %1371 = vmatprep.subr.bf16.mxu0 0
      %1372 = vmatpush2.bf16.xpose.msra.mxu0 0
      %1373 = vmatprep.subr.bf16.mxu0 0
      %1374 = vmatpush2.bf16.xpose.msra.mxu0 0
      %1375 = vmatprep.subr.bf16.mxu0 0
      %1376 = vmatpush2.bf16.xpose.msra.mxu0 0
      %1377 = vmatprep.subr.bf16.mxu0 0
      %1378 = vmatpush2.bf16.xpose.msra.mxu0 0
      %1379 = vmatprep.subr.bf16.mxu0 0
      %1380 = vmatpush2.bf16.xpose.msra.mxu0 0
      %1381 = vmatprep.mubr.bf16.mxu0 0
      %1382 = vmatmul.mubr.bf16.gmra.mxu0 %v1344
      %v1383 = vpop.f32.mrf.mxu0
      %v1384 = vadd.f32 0.0, %v1383
      %v1385 = vpop.f32.mrf.mxu0
      %v1386 = vpop.f32.mrf.mxu0
      %v1387 = vpop.f32.mrf.mxu0
      %1388 = vdwg.mxu0
      %v1389 = vmul.f32 %v1304, 0.17677669
      %v1390 = vmul.f32 %v1384, 0.17677669
      %vm1391 = vcmask 36864
      %v1392 = vsel %vm1391, %v1389, -inf
      %1393 = vmax.xlane.f32.xlu0 %v1392
      %v1394 = vpop.xlane.xlu0 %1393
      %v1395 = vsel %vm1391, %v1390, -inf
      %1396 = vmax.xlane.f32.xlu0 %v1395
      %v1397 = vpop.xlane.xlu0 %1396
      %v1398 = vsub.f32 %v1389, %v1394
      %v1399 = vsub.f32 %v1390, %v1397
      %v1400 = vmul.f32 %v1398, 1.442695
      %v1401 = vpow.pop %v1400
      %v1402 = vmul.f32 %v1399, 1.442695
      %v1403 = vpow.pop %v1402
      %v1404 = vsel %vm1391, %v1401, 0.0
      %1405 = vadd.xlane.f32.xlu0 %v1404
      %v1406 = vpop.xlane.xlu0 %1405
      %v1407 = vsel %vm1391, %v1403, 0.0
      %1408 = vadd.xlane.f32.xlu0 %v1407
      %v1409 = vpop.xlane.xlu0 %1408
      %v1410 = vrcp.pop %v1406
      %v1411 = vmul.f32 %v1401, %v1410
      %v1412 = vrcp.pop %v1409
      %v1413 = vmul.f32 %v1403, %v1412
      %v1414 = vpack.c.bf16 %v1411, %v1411
      %v1415 = vpack.c.bf16 %v1413, %v1413
      %v1416 = vrot.slane %v1228, 2
      %v1417 = vrot.slane %v1229, 2
      %v1418 = vrot.slane %v1222, 2
      %v1419 = vunpack.i.l.s16 %v1416
      %v1420 = vunpack.i.h.s16 %v1416
      %v1421 = vunpack.i.l.s16 %v1417
      %v1422 = vunpack.i.h.s16 %v1417
      %v1423 = vunpack.i.l.s16 %v1418
      %v1424 = vpack.i.b16 %v1420, %v1419
      %v1425 = vpack.i.b16 %v1422, %v1421
      %v1427 = vcombine.low %v1424, %v1425
      %v1429 = vunpack.c.l.s4 1966171168
      %v1430 = vunpack.c.0.s8 %v1429
      %v1431 = vlaneseq
      %v1432 = vshrl.u32 %v1431, 7
      %v1433 = vsub.s32 %v1430, %v1432
      %v1434 = vrot.slane %v1427, %v1433
      %v1436 = vunpack.c.l.s4 1966171168
      %v1437 = vunpack.c.0.s8 %v1436
      %v1438 = vlaneseq
      %v1439 = vshrl.u32 %v1438, 7
      %v1440 = vsub.s32 %v1437, %v1439
      %v1441 = vrot.slane %v1423, %v1440
      %v1442 = vcombine.low %v1434, %v1441
      %v1444 = vunpack.c.l.s4 1966171168
      %v1445 = vunpack.c.0.s8 %v1444
      %v1446 = vlaneseq
      %v1447 = vshrl.u32 %v1446, 7
      %v1448 = vsub.s32 %v1445, %v1447
      %v1449 = vrot.slane %v1442, %v1448
      %vm1450 = vcmask 39936
      %v1452 = vsel %vm1450, %v1414, 0
      %vm1454 = vcmask 1042432
      %v1455 = vsel %vm445, 4294967295, 65535
      %v1456 = vsel %vm1454, %v1455, 0
      %v1458 = vand.u32 %v1449, %v1456
      %1460 = vmatprep.subr.bf16.mxu0 0
      %1461 = vmatpush1.bf16.msra.mxu0 0
      %1462 = vmatprep.subr.bf16.mxu0 0
      %1463 = vmatpush1.bf16.msra.mxu0 0
      %1464 = vmatprep.subr.bf16.mxu0 0
      %1465 = vmatpush1.bf16.msra.mxu0 0
      %1466 = vmatprep.subr.bf16.mxu0 0
      %1467 = vmatpush1.bf16.msra.mxu0 0
      %1468 = vmatprep.subr.bf16.mxu0 0
      %1469 = vmatpush1.bf16.msra.mxu0 0
      %1470 = vmatprep.subr.bf16.mxu0 0
      %1471 = vmatpush1.bf16.msra.mxu0 0
      %1472 = vmatprep.subr.bf16.mxu0 0
      %1473 = vmatpush1.bf16.msra.mxu0 0
      %1474 = vmatprep.subr.bf16.mxu0 0
      %1475 = vmatpush1.bf16.msra.mxu0 %v1458
      %1476 = vmatprep.subr.bf16.mxu0 0
      %1477 = vmatpush2.bf16.msra.mxu0 0
      %1478 = vmatprep.subr.bf16.mxu0 0
      %1479 = vmatpush2.bf16.msra.mxu0 0
      %1480 = vmatprep.subr.bf16.mxu0 0
      %1481 = vmatpush2.bf16.msra.mxu0 0
      %1482 = vmatprep.subr.bf16.mxu0 0
      %1483 = vmatpush2.bf16.msra.mxu0 0
      %1484 = vmatprep.subr.bf16.mxu0 0
      %1485 = vmatpush2.bf16.msra.mxu0 0
      %1486 = vmatprep.subr.bf16.mxu0 0
      %1487 = vmatpush2.bf16.msra.mxu0 0
      %1488 = vmatprep.subr.bf16.mxu0 0
      %1489 = vmatpush2.bf16.msra.mxu0 0
      %1490 = vmatprep.subr.bf16.mxu0 0
      %1491 = vmatpush2.bf16.msra.mxu0 0
      %1492 = vmatprep.mubr.bf16.mxu0 0
      %1493 = vmatmul.mubr.bf16.gmra.mxu0 %v1452
      %v1494 = vpop.f32.mrf.mxu0
      %v1495 = vadd.f32 0.0, %v1494
      %v1496 = vpop.f32.mrf.mxu0
      %v1497 = vpop.f32.mrf.mxu0
      %v1498 = vpop.f32.mrf.mxu0
      %1499 = vdwg.mxu0
      %v1500 = vrot.slane %v1309, 2
      %v1501 = vrot.slane %v1310, 2
      %v1502 = vrot.slane %v1227, 2
      %v1503 = vunpack.i.l.s16 %v1500
      %v1504 = vunpack.i.h.s16 %v1500
      %v1505 = vunpack.i.l.s16 %v1501
      %v1506 = vunpack.i.h.s16 %v1501
      %v1507 = vunpack.i.l.s16 %v1502
      %v1508 = vpack.i.b16 %v1504, %v1503
      %v1509 = vpack.i.b16 %v1506, %v1505
      %v1511 = vcombine.low %v1508, %v1509
      %v1513 = vunpack.c.l.s4 1966171168
      %v1514 = vunpack.c.0.s8 %v1513
      %v1515 = vlaneseq
      %v1516 = vshrl.u32 %v1515, 7
      %v1517 = vsub.s32 %v1514, %v1516
      %v1518 = vrot.slane %v1511, %v1517
      %v1520 = vunpack.c.l.s4 1966171168
      %v1521 = vunpack.c.0.s8 %v1520
      %v1522 = vlaneseq
      %v1523 = vshrl.u32 %v1522, 7
      %v1524 = vsub.s32 %v1521, %v1523
      %v1525 = vrot.slane %v1507, %v1524
      %v1526 = vcombine.low %v1518, %v1525
      %v1528 = vunpack.c.l.s4 1966171168
      %v1529 = vunpack.c.0.s8 %v1528
      %v1530 = vlaneseq
      %v1531 = vshrl.u32 %v1530, 7
      %v1532 = vsub.s32 %v1529, %v1531
      %v1533 = vrot.slane %v1526, %v1532
      %v1535 = vsel %vm1450, %v1415, 0
      %v1538 = vand.u32 %v1533, %v1456
      %1540 = vmatprep.subr.bf16.mxu0 0
      %1541 = vmatpush1.bf16.msra.mxu0 0
      %1542 = vmatprep.subr.bf16.mxu0 0
      %1543 = vmatpush1.bf16.msra.mxu0 0
      %1544 = vmatprep.subr.bf16.mxu0 0
      %1545 = vmatpush1.bf16.msra.mxu0 0
      %1546 = vmatprep.subr.bf16.mxu0 0
      %1547 = vmatpush1.bf16.msra.mxu0 0
      %1548 = vmatprep.subr.bf16.mxu0 0
      %1549 = vmatpush1.bf16.msra.mxu0 0
      %1550 = vmatprep.subr.bf16.mxu0 0
      %1551 = vmatpush1.bf16.msra.mxu0 0
      %1552 = vmatprep.subr.bf16.mxu0 0
      %1553 = vmatpush1.bf16.msra.mxu0 0
      %1554 = vmatprep.subr.bf16.mxu0 0
      %1555 = vmatpush1.bf16.msra.mxu0 %v1538
      %1556 = vmatprep.subr.bf16.mxu0 0
      %1557 = vmatpush2.bf16.msra.mxu0 0
      %1558 = vmatprep.subr.bf16.mxu0 0
      %1559 = vmatpush2.bf16.msra.mxu0 0
      %1560 = vmatprep.subr.bf16.mxu0 0
      %1561 = vmatpush2.bf16.msra.mxu0 0
      %1562 = vmatprep.subr.bf16.mxu0 0
      %1563 = vmatpush2.bf16.msra.mxu0 0
      %1564 = vmatprep.subr.bf16.mxu0 0
      %1565 = vmatpush2.bf16.msra.mxu0 0
      %1566 = vmatprep.subr.bf16.mxu0 0
      %1567 = vmatpush2.bf16.msra.mxu0 0
      %1568 = vmatprep.subr.bf16.mxu0 0
      %1569 = vmatpush2.bf16.msra.mxu0 0
      %1570 = vmatprep.subr.bf16.mxu0 0
      %1571 = vmatpush2.bf16.msra.mxu0 0
      %1572 = vmatprep.mubr.bf16.mxu0 0
      %1573 = vmatmul.mubr.bf16.gmra.mxu0 %v1535
      %v1574 = vpop.f32.mrf.mxu0
      %v1575 = vadd.f32 0.0, %v1574
      %v1576 = vpop.f32.mrf.mxu0
      %v1577 = vpop.f32.mrf.mxu0
      %v1578 = vpop.f32.mrf.mxu0
      %1579 = vdwg.mxu0
      %1580 = vrot.lane.b32.xlu0 %v1253, 96
      %v1581 = vpop.permute.xlu0 %1580
      %1582 = vrot.lane.b32.xlu0 %v1261, 96
      %v1583 = vpop.permute.xlu0 %1582
      %v1585 = vsel %vm1262, %v1581, 0
      %v1588 = vsel %vm1262, %v1583, 0
      %1590 = vmatprep.subr.bf16.mxu0 0
      %1591 = vmatpush1.bf16.xpose.msra.mxu0 0
      %1592 = vmatprep.subr.bf16.mxu0 0
      %1593 = vmatpush1.bf16.xpose.msra.mxu0 0
      %1594 = vmatprep.subr.bf16.mxu0 0
      %1595 = vmatpush1.bf16.xpose.msra.mxu0 0
      %1596 = vmatprep.subr.bf16.mxu0 0
      %1597 = vmatpush1.bf16.xpose.msra.mxu0 0
      %1598 = vmatprep.subr.bf16.mxu0 0
      %1599 = vmatpush1.bf16.xpose.msra.mxu0 0
      %1600 = vmatprep.subr.bf16.mxu0 0
      %1601 = vmatpush1.bf16.xpose.msra.mxu0 0
      %1602 = vmatprep.subr.bf16.mxu0 0
      %1603 = vmatpush1.bf16.xpose.msra.mxu0 0
      %1604 = vmatprep.subr.bf16.mxu0 0
      %1605 = vmatpush1.bf16.xpose.msra.mxu0 %v1588
      %1606 = vmatprep.subr.bf16.mxu0 0
      %1607 = vmatpush2.bf16.xpose.msra.mxu0 0
      %1608 = vmatprep.subr.bf16.mxu0 0
      %1609 = vmatpush2.bf16.xpose.msra.mxu0 0
      %1610 = vmatprep.subr.bf16.mxu0 0
      %1611 = vmatpush2.bf16.xpose.msra.mxu0 0
      %1612 = vmatprep.subr.bf16.mxu0 0
      %1613 = vmatpush2.bf16.xpose.msra.mxu0 0
      %1614 = vmatprep.subr.bf16.mxu0 0
      %1615 = vmatpush2.bf16.xpose.msra.mxu0 0
      %1616 = vmatprep.subr.bf16.mxu0 0
      %1617 = vmatpush2.bf16.xpose.msra.mxu0 0
      %1618 = vmatprep.subr.bf16.mxu0 0
      %1619 = vmatpush2.bf16.xpose.msra.mxu0 0
      %1620 = vmatprep.subr.bf16.mxu0 0
      %1621 = vmatpush2.bf16.xpose.msra.mxu0 0
      %1622 = vmatprep.mubr.bf16.mxu0 0
      %1623 = vmatmul.mubr.bf16.gmra.mxu0 %v1585
      %v1624 = vpop.f32.mrf.mxu0
      %v1625 = vadd.f32 0.0, %v1624
      %v1626 = vpop.f32.mrf.mxu0
      %v1627 = vpop.f32.mrf.mxu0
      %v1628 = vpop.f32.mrf.mxu0
      %1629 = vdwg.mxu0
      %1630 = vrot.lane.b32.xlu0 %v1334, 96
      %v1631 = vpop.permute.xlu0 %1630
      %1632 = vrot.lane.b32.xlu0 %v1342, 96
      %v1633 = vpop.permute.xlu0 %1632
      %v1635 = vsel %vm1262, %v1631, 0
      %v1638 = vsel %vm1262, %v1633, 0
      %1640 = vmatprep.subr.bf16.mxu0 0
      %1641 = vmatpush1.bf16.xpose.msra.mxu0 0
      %1642 = vmatprep.subr.bf16.mxu0 0
      %1643 = vmatpush1.bf16.xpose.msra.mxu0 0
      %1644 = vmatprep.subr.bf16.mxu0 0
      %1645 = vmatpush1.bf16.xpose.msra.mxu0 0
      %1646 = vmatprep.subr.bf16.mxu0 0
      %1647 = vmatpush1.bf16.xpose.msra.mxu0 0
      %1648 = vmatprep.subr.bf16.mxu0 0
      %1649 = vmatpush1.bf16.xpose.msra.mxu0 0
      %1650 = vmatprep.subr.bf16.mxu0 0
      %1651 = vmatpush1.bf16.xpose.msra.mxu0 0
      %1652 = vmatprep.subr.bf16.mxu0 0
      %1653 = vmatpush1.bf16.xpose.msra.mxu0 0
      %1654 = vmatprep.subr.bf16.mxu0 0
      %1655 = vmatpush1.bf16.xpose.msra.mxu0 %v1638
      %1656 = vmatprep.subr.bf16.mxu0 0
      %1657 = vmatpush2.bf16.xpose.msra.mxu0 0
      %1658 = vmatprep.subr.bf16.mxu0 0
      %1659 = vmatpush2.bf16.xpose.msra.mxu0 0
      %1660 = vmatprep.subr.bf16.mxu0 0
      %1661 = vmatpush2.bf16.xpose.msra.mxu0 0
      %1662 = vmatprep.subr.bf16.mxu0 0
      %1663 = vmatpush2.bf16.xpose.msra.mxu0 0
      %1664 = vmatprep.subr.bf16.mxu0 0
      %1665 = vmatpush2.bf16.xpose.msra.mxu0 0
      %1666 = vmatprep.subr.bf16.mxu0 0
      %1667 = vmatpush2.bf16.xpose.msra.mxu0 0
      %1668 = vmatprep.subr.bf16.mxu0 0
      %1669 = vmatpush2.bf16.xpose.msra.mxu0 0
      %1670 = vmatprep.subr.bf16.mxu0 0
      %1671 = vmatpush2.bf16.xpose.msra.mxu0 0
      %1672 = vmatprep.mubr.bf16.mxu0 0
      %1673 = vmatmul.mubr.bf16.gmra.mxu0 %v1635
      %v1674 = vpop.f32.mrf.mxu0
      %v1675 = vadd.f32 0.0, %v1674
      %v1676 = vpop.f32.mrf.mxu0
      %v1677 = vpop.f32.mrf.mxu0
      %v1678 = vpop.f32.mrf.mxu0
      %1679 = vdwg.mxu0
      %v1680 = vmul.f32 %v1625, 0.17677669
      %v1681 = vmul.f32 %v1675, 0.17677669
      %v1682 = vsel %vm1391, %v1680, -inf
      %1683 = vmax.xlane.f32.xlu0 %v1682
      %v1684 = vpop.xlane.xlu0 %1683
      %v1685 = vsel %vm1391, %v1681, -inf
      %1686 = vmax.xlane.f32.xlu0 %v1685
      %v1687 = vpop.xlane.xlu0 %1686
      %v1688 = vsub.f32 %v1680, %v1684
      %v1689 = vsub.f32 %v1681, %v1687
      %v1690 = vmul.f32 %v1688, 1.442695
      %v1691 = vpow.pop %v1690
      %v1692 = vmul.f32 %v1689, 1.442695
      %v1693 = vpow.pop %v1692
      %v1694 = vsel %vm1391, %v1691, 0.0
      %1695 = vadd.xlane.f32.xlu0 %v1694
      %v1696 = vpop.xlane.xlu0 %1695
      %v1697 = vsel %vm1391, %v1693, 0.0
      %1698 = vadd.xlane.f32.xlu0 %v1697
      %v1699 = vpop.xlane.xlu0 %1698
      %v1700 = vrcp.pop %v1696
      %v1701 = vmul.f32 %v1691, %v1700
      %v1702 = vrcp.pop %v1699
      %v1703 = vmul.f32 %v1693, %v1702
      %v1704 = vpack.c.bf16 %v1701, %v1701
      %v1705 = vpack.c.bf16 %v1703, %v1703
      %1706 = vrot.lane.b32.xlu0 %v1228, 96
      %v1707 = vpop.permute.xlu0 %1706
      %1708 = vrot.lane.b32.xlu0 %v1229, 96
      %v1709 = vpop.permute.xlu0 %1708
      %1710 = vrot.lane.b32.xlu0 %v1222, 96
      %v1711 = vpop.permute.xlu0 %1710
      %v1712 = vrot.slane %v1707, 2
      %v1713 = vrot.slane %v1709, 2
      %v1714 = vrot.slane %v1711, 2
      %v1715 = vunpack.i.l.s16 %v1712
      %v1716 = vunpack.i.h.s16 %v1712
      %v1717 = vunpack.i.l.s16 %v1713
      %v1718 = vunpack.i.h.s16 %v1713
      %v1719 = vunpack.i.l.s16 %v1714
      %v1720 = vpack.i.b16 %v1716, %v1715
      %v1721 = vpack.i.b16 %v1718, %v1717
      %v1723 = vcombine.low %v1720, %v1721
      %v1725 = vunpack.c.l.s4 1966171168
      %v1726 = vunpack.c.0.s8 %v1725
      %v1727 = vlaneseq
      %v1728 = vshrl.u32 %v1727, 7
      %v1729 = vsub.s32 %v1726, %v1728
      %v1730 = vrot.slane %v1723, %v1729
      %v1732 = vunpack.c.l.s4 1966171168
      %v1733 = vunpack.c.0.s8 %v1732
      %v1734 = vlaneseq
      %v1735 = vshrl.u32 %v1734, 7
      %v1736 = vsub.s32 %v1733, %v1735
      %v1737 = vrot.slane %v1719, %v1736
      %v1738 = vcombine.low %v1730, %v1737
      %v1740 = vunpack.c.l.s4 1966171168
      %v1741 = vunpack.c.0.s8 %v1740
      %v1742 = vlaneseq
      %v1743 = vshrl.u32 %v1742, 7
      %v1744 = vsub.s32 %v1741, %v1743
      %v1745 = vrot.slane %v1738, %v1744
      %v1747 = vsel %vm1450, %v1704, 0
      %v1750 = vand.u32 %v1745, %v1456
      %1752 = vmatprep.subr.bf16.mxu0 0
      %1753 = vmatpush1.bf16.msra.mxu0 0
      %1754 = vmatprep.subr.bf16.mxu0 0
      %1755 = vmatpush1.bf16.msra.mxu0 0
      %1756 = vmatprep.subr.bf16.mxu0 0
      %1757 = vmatpush1.bf16.msra.mxu0 0
      %1758 = vmatprep.subr.bf16.mxu0 0
      %1759 = vmatpush1.bf16.msra.mxu0 0
      %1760 = vmatprep.subr.bf16.mxu0 0
      %1761 = vmatpush1.bf16.msra.mxu0 0
      %1762 = vmatprep.subr.bf16.mxu0 0
      %1763 = vmatpush1.bf16.msra.mxu0 0
      %1764 = vmatprep.subr.bf16.mxu0 0
      %1765 = vmatpush1.bf16.msra.mxu0 0
      %1766 = vmatprep.subr.bf16.mxu0 0
      %1767 = vmatpush1.bf16.msra.mxu0 %v1750
      %1768 = vmatprep.subr.bf16.mxu0 0
      %1769 = vmatpush2.bf16.msra.mxu0 0
      %1770 = vmatprep.subr.bf16.mxu0 0
      %1771 = vmatpush2.bf16.msra.mxu0 0
      %1772 = vmatprep.subr.bf16.mxu0 0
      %1773 = vmatpush2.bf16.msra.mxu0 0
      %1774 = vmatprep.subr.bf16.mxu0 0
      %1775 = vmatpush2.bf16.msra.mxu0 0
      %1776 = vmatprep.subr.bf16.mxu0 0
      %1777 = vmatpush2.bf16.msra.mxu0 0
      %1778 = vmatprep.subr.bf16.mxu0 0
      %1779 = vmatpush2.bf16.msra.mxu0 0
      %1780 = vmatprep.subr.bf16.mxu0 0
      %1781 = vmatpush2.bf16.msra.mxu0 0
      %1782 = vmatprep.subr.bf16.mxu0 0
      %1783 = vmatpush2.bf16.msra.mxu0 0
      %1784 = vmatprep.mubr.bf16.mxu0 0
      %1785 = vmatmul.mubr.bf16.gmra.mxu0 %v1747
      %v1786 = vpop.f32.mrf.mxu0
      %v1787 = vadd.f32 0.0, %v1786
      %v1788 = vpop.f32.mrf.mxu0
      %v1789 = vpop.f32.mrf.mxu0
      %v1790 = vpop.f32.mrf.mxu0
      %1791 = vdwg.mxu0
      %1792 = vrot.lane.b32.xlu0 %v1309, 96
      %v1793 = vpop.permute.xlu0 %1792
      %1794 = vrot.lane.b32.xlu0 %v1310, 96
      %v1795 = vpop.permute.xlu0 %1794
      %1796 = vrot.lane.b32.xlu0 %v1227, 96
      %v1797 = vpop.permute.xlu0 %1796
      %v1798 = vrot.slane %v1793, 2
      %v1799 = vrot.slane %v1795, 2
      %v1800 = vrot.slane %v1797, 2
      %v1801 = vunpack.i.l.s16 %v1798
      %v1802 = vunpack.i.h.s16 %v1798
      %v1803 = vunpack.i.l.s16 %v1799
      %v1804 = vunpack.i.h.s16 %v1799
      %v1805 = vunpack.i.l.s16 %v1800
      %v1806 = vpack.i.b16 %v1802, %v1801
      %v1807 = vpack.i.b16 %v1804, %v1803
      %v1809 = vcombine.low %v1806, %v1807
      %v1811 = vunpack.c.l.s4 1966171168
      %v1812 = vunpack.c.0.s8 %v1811
      %v1813 = vlaneseq
      %v1814 = vshrl.u32 %v1813, 7
      %v1815 = vsub.s32 %v1812, %v1814
      %v1816 = vrot.slane %v1809, %v1815
      %v1818 = vunpack.c.l.s4 1966171168
      %v1819 = vunpack.c.0.s8 %v1818
      %v1820 = vlaneseq
      %v1821 = vshrl.u32 %v1820, 7
      %v1822 = vsub.s32 %v1819, %v1821
      %v1823 = vrot.slane %v1805, %v1822
      %v1824 = vcombine.low %v1816, %v1823
      %v1826 = vunpack.c.l.s4 1966171168
      %v1827 = vunpack.c.0.s8 %v1826
      %v1828 = vlaneseq
      %v1829 = vshrl.u32 %v1828, 7
      %v1830 = vsub.s32 %v1827, %v1829
      %v1831 = vrot.slane %v1824, %v1830
      %v1833 = vsel %vm1450, %v1705, 0
      %v1836 = vand.u32 %v1831, %v1456
      %1838 = vmatprep.subr.bf16.mxu0 0
      %1839 = vmatpush1.bf16.msra.mxu0 0
      %1840 = vmatprep.subr.bf16.mxu0 0
      %1841 = vmatpush1.bf16.msra.mxu0 0
      %1842 = vmatprep.subr.bf16.mxu0 0
      %1843 = vmatpush1.bf16.msra.mxu0 0
      %1844 = vmatprep.subr.bf16.mxu0 0
      %1845 = vmatpush1.bf16.msra.mxu0 0
      %1846 = vmatprep.subr.bf16.mxu0 0
      %1847 = vmatpush1.bf16.msra.mxu0 0
      %1848 = vmatprep.subr.bf16.mxu0 0
      %1849 = vmatpush1.bf16.msra.mxu0 0
      %1850 = vmatprep.subr.bf16.mxu0 0
      %1851 = vmatpush1.bf16.msra.mxu0 0
      %1852 = vmatprep.subr.bf16.mxu0 0
      %1853 = vmatpush1.bf16.msra.mxu0 %v1836
      %1854 = vmatprep.subr.bf16.mxu0 0
      %1855 = vmatpush2.bf16.msra.mxu0 0
      %1856 = vmatprep.subr.bf16.mxu0 0
      %1857 = vmatpush2.bf16.msra.mxu0 0
      %1858 = vmatprep.subr.bf16.mxu0 0
      %1859 = vmatpush2.bf16.msra.mxu0 0
      %1860 = vmatprep.subr.bf16.mxu0 0
      %1861 = vmatpush2.bf16.msra.mxu0 0
      %1862 = vmatprep.subr.bf16.mxu0 0
      %1863 = vmatpush2.bf16.msra.mxu0 0
      %1864 = vmatprep.subr.bf16.mxu0 0
      %1865 = vmatpush2.bf16.msra.mxu0 0
      %1866 = vmatprep.subr.bf16.mxu0 0
      %1867 = vmatpush2.bf16.msra.mxu0 0
      %1868 = vmatprep.subr.bf16.mxu0 0
      %1869 = vmatpush2.bf16.msra.mxu0 0
      %1870 = vmatprep.mubr.bf16.mxu0 0
      %1871 = vmatmul.mubr.bf16.gmra.mxu0 %v1833
      %v1872 = vpop.f32.mrf.mxu0
      %v1873 = vadd.f32 0.0, %v1872
      %v1874 = vpop.f32.mrf.mxu0
      %v1875 = vpop.f32.mrf.mxu0
      %v1876 = vpop.f32.mrf.mxu0
      %1877 = vdwg.mxu0
      %1878 = vrot.lane.b32.xlu0 %v1253, 64
      %v1879 = vpop.permute.xlu0 %1878
      %1880 = vrot.lane.b32.xlu0 %v1261, 64
      %v1881 = vpop.permute.xlu0 %1880
      %v1883 = vsel %vm1262, %v1879, 0
      %v1886 = vsel %vm1262, %v1881, 0
      %1888 = vmatprep.subr.bf16.mxu0 0
      %1889 = vmatpush1.bf16.xpose.msra.mxu0 0
      %1890 = vmatprep.subr.bf16.mxu0 0
      %1891 = vmatpush1.bf16.xpose.msra.mxu0 0
      %1892 = vmatprep.subr.bf16.mxu0 0
      %1893 = vmatpush1.bf16.xpose.msra.mxu0 0
      %1894 = vmatprep.subr.bf16.mxu0 0
      %1895 = vmatpush1.bf16.xpose.msra.mxu0 0
      %1896 = vmatprep.subr.bf16.mxu0 0
      %1897 = vmatpush1.bf16.xpose.msra.mxu0 0
      %1898 = vmatprep.subr.bf16.mxu0 0
      %1899 = vmatpush1.bf16.xpose.msra.mxu0 0
      %1900 = vmatprep.subr.bf16.mxu0 0
      %1901 = vmatpush1.bf16.xpose.msra.mxu0 0
      %1902 = vmatprep.subr.bf16.mxu0 0
      %1903 = vmatpush1.bf16.xpose.msra.mxu0 %v1886
      %1904 = vmatprep.subr.bf16.mxu0 0
      %1905 = vmatpush2.bf16.xpose.msra.mxu0 0
      %1906 = vmatprep.subr.bf16.mxu0 0
      %1907 = vmatpush2.bf16.xpose.msra.mxu0 0
      %1908 = vmatprep.subr.bf16.mxu0 0
      %1909 = vmatpush2.bf16.xpose.msra.mxu0 0
      %1910 = vmatprep.subr.bf16.mxu0 0
      %1911 = vmatpush2.bf16.xpose.msra.mxu0 0
      %1912 = vmatprep.subr.bf16.mxu0 0
      %1913 = vmatpush2.bf16.xpose.msra.mxu0 0
      %1914 = vmatprep.subr.bf16.mxu0 0
      %1915 = vmatpush2.bf16.xpose.msra.mxu0 0
      %1916 = vmatprep.subr.bf16.mxu0 0
      %1917 = vmatpush2.bf16.xpose.msra.mxu0 0
      %1918 = vmatprep.subr.bf16.mxu0 0
      %1919 = vmatpush2.bf16.xpose.msra.mxu0 0
      %1920 = vmatprep.mubr.bf16.mxu0 0
      %1921 = vmatmul.mubr.bf16.gmra.mxu0 %v1883
      %v1922 = vpop.f32.mrf.mxu0
      %v1923 = vadd.f32 0.0, %v1922
      %v1924 = vpop.f32.mrf.mxu0
      %v1925 = vpop.f32.mrf.mxu0
      %v1926 = vpop.f32.mrf.mxu0
      %1927 = vdwg.mxu0
      %1928 = vrot.lane.b32.xlu0 %v1334, 64
      %v1929 = vpop.permute.xlu0 %1928
      %1930 = vrot.lane.b32.xlu0 %v1342, 64
      %v1931 = vpop.permute.xlu0 %1930
      %v1933 = vsel %vm1262, %v1929, 0
      %v1936 = vsel %vm1262, %v1931, 0
      %1938 = vmatprep.subr.bf16.mxu0 0
      %1939 = vmatpush1.bf16.xpose.msra.mxu0 0
      %1940 = vmatprep.subr.bf16.mxu0 0
      %1941 = vmatpush1.bf16.xpose.msra.mxu0 0
      %1942 = vmatprep.subr.bf16.mxu0 0
      %1943 = vmatpush1.bf16.xpose.msra.mxu0 0
      %1944 = vmatprep.subr.bf16.mxu0 0
      %1945 = vmatpush1.bf16.xpose.msra.mxu0 0
      %1946 = vmatprep.subr.bf16.mxu0 0
      %1947 = vmatpush1.bf16.xpose.msra.mxu0 0
      %1948 = vmatprep.subr.bf16.mxu0 0
      %1949 = vmatpush1.bf16.xpose.msra.mxu0 0
      %1950 = vmatprep.subr.bf16.mxu0 0
      %1951 = vmatpush1.bf16.xpose.msra.mxu0 0
      %1952 = vmatprep.subr.bf16.mxu0 0
      %1953 = vmatpush1.bf16.xpose.msra.mxu0 %v1936
      %1954 = vmatprep.subr.bf16.mxu0 0
      %1955 = vmatpush2.bf16.xpose.msra.mxu0 0
      %1956 = vmatprep.subr.bf16.mxu0 0
      %1957 = vmatpush2.bf16.xpose.msra.mxu0 0
      %1958 = vmatprep.subr.bf16.mxu0 0
      %1959 = vmatpush2.bf16.xpose.msra.mxu0 0
      %1960 = vmatprep.subr.bf16.mxu0 0
      %1961 = vmatpush2.bf16.xpose.msra.mxu0 0
      %1962 = vmatprep.subr.bf16.mxu0 0
      %1963 = vmatpush2.bf16.xpose.msra.mxu0 0
      %1964 = vmatprep.subr.bf16.mxu0 0
      %1965 = vmatpush2.bf16.xpose.msra.mxu0 0
      %1966 = vmatprep.subr.bf16.mxu0 0
      %1967 = vmatpush2.bf16.xpose.msra.mxu0 0
      %1968 = vmatprep.subr.bf16.mxu0 0
      %1969 = vmatpush2.bf16.xpose.msra.mxu0 0
      %1970 = vmatprep.mubr.bf16.mxu0 0
      %1971 = vmatmul.mubr.bf16.gmra.mxu0 %v1933
      %v1972 = vpop.f32.mrf.mxu0
      %v1973 = vadd.f32 0.0, %v1972
      %v1974 = vpop.f32.mrf.mxu0
      %v1975 = vpop.f32.mrf.mxu0
      %v1976 = vpop.f32.mrf.mxu0
      %1977 = vdwg.mxu0
      %v1978 = vmul.f32 %v1923, 0.17677669
      %v1979 = vmul.f32 %v1973, 0.17677669
      %v1980 = vsel %vm1391, %v1978, -inf
      %1981 = vmax.xlane.f32.xlu0 %v1980
      %v1982 = vpop.xlane.xlu0 %1981
      %v1983 = vsel %vm1391, %v1979, -inf
      %1984 = vmax.xlane.f32.xlu0 %v1983
      %v1985 = vpop.xlane.xlu0 %1984
      %v1986 = vsub.f32 %v1978, %v1982
      %v1987 = vsub.f32 %v1979, %v1985
      %v1988 = vmul.f32 %v1986, 1.442695
      %v1989 = vpow.pop %v1988
      %v1990 = vmul.f32 %v1987, 1.442695
      %v1991 = vpow.pop %v1990
      %v1992 = vsel %vm1391, %v1989, 0.0
      %1993 = vadd.xlane.f32.xlu0 %v1992
      %v1994 = vpop.xlane.xlu0 %1993
      %v1995 = vsel %vm1391, %v1991, 0.0
      %1996 = vadd.xlane.f32.xlu0 %v1995
      %v1997 = vpop.xlane.xlu0 %1996
      %v1998 = vrcp.pop %v1994
      %v1999 = vmul.f32 %v1989, %v1998
      %v2000 = vrcp.pop %v1997
      %v2001 = vmul.f32 %v1991, %v2000
      %v2002 = vpack.c.bf16 %v1999, %v1999
      %v2003 = vpack.c.bf16 %v2001, %v2001
      %2004 = vrot.lane.b32.xlu0 %v1228, 64
      %v2005 = vpop.permute.xlu0 %2004
      %2006 = vrot.lane.b32.xlu0 %v1229, 64
      %v2007 = vpop.permute.xlu0 %2006
      %2008 = vrot.lane.b32.xlu0 %v1222, 64
      %v2009 = vpop.permute.xlu0 %2008
      %v2010 = vrot.slane %v2005, 2
      %v2011 = vrot.slane %v2007, 2
      %v2012 = vrot.slane %v2009, 2
      %v2013 = vunpack.i.l.s16 %v2010
      %v2014 = vunpack.i.h.s16 %v2010
      %v2015 = vunpack.i.l.s16 %v2011
      %v2016 = vunpack.i.h.s16 %v2011
      %v2017 = vunpack.i.l.s16 %v2012
      %v2018 = vpack.i.b16 %v2014, %v2013
      %v2019 = vpack.i.b16 %v2016, %v2015
      %v2021 = vcombine.low %v2018, %v2019
      %v2023 = vunpack.c.l.s4 1966171168
      %v2024 = vunpack.c.0.s8 %v2023
      %v2025 = vlaneseq
      %v2026 = vshrl.u32 %v2025, 7
      %v2027 = vsub.s32 %v2024, %v2026
      %v2028 = vrot.slane %v2021, %v2027
      %v2030 = vunpack.c.l.s4 1966171168
      %v2031 = vunpack.c.0.s8 %v2030
      %v2032 = vlaneseq
      %v2033 = vshrl.u32 %v2032, 7
      %v2034 = vsub.s32 %v2031, %v2033
      %v2035 = vrot.slane %v2017, %v2034
      %v2036 = vcombine.low %v2028, %v2035
      %v2038 = vunpack.c.l.s4 1966171168
      %v2039 = vunpack.c.0.s8 %v2038
      %v2040 = vlaneseq
      %v2041 = vshrl.u32 %v2040, 7
      %v2042 = vsub.s32 %v2039, %v2041
      %v2043 = vrot.slane %v2036, %v2042
      %v2045 = vsel %vm1450, %v2002, 0
      %v2048 = vand.u32 %v2043, %v1456
      %2050 = vmatprep.subr.bf16.mxu0 0
      %2051 = vmatpush1.bf16.msra.mxu0 0
      %2052 = vmatprep.subr.bf16.mxu0 0
      %2053 = vmatpush1.bf16.msra.mxu0 0
      %2054 = vmatprep.subr.bf16.mxu0 0
      %2055 = vmatpush1.bf16.msra.mxu0 0
      %2056 = vmatprep.subr.bf16.mxu0 0
      %2057 = vmatpush1.bf16.msra.mxu0 0
      %2058 = vmatprep.subr.bf16.mxu0 0
      %2059 = vmatpush1.bf16.msra.mxu0 0
      %2060 = vmatprep.subr.bf16.mxu0 0
      %2061 = vmatpush1.bf16.msra.mxu0 0
      %2062 = vmatprep.subr.bf16.mxu0 0
      %2063 = vmatpush1.bf16.msra.mxu0 0
      %2064 = vmatprep.subr.bf16.mxu0 0
      %2065 = vmatpush1.bf16.msra.mxu0 %v2048
      %2066 = vmatprep.subr.bf16.mxu0 0
      %2067 = vmatpush2.bf16.msra.mxu0 0
      %2068 = vmatprep.subr.bf16.mxu0 0
      %2069 = vmatpush2.bf16.msra.mxu0 0
      %2070 = vmatprep.subr.bf16.mxu0 0
      %2071 = vmatpush2.bf16.msra.mxu0 0
      %2072 = vmatprep.subr.bf16.mxu0 0
      %2073 = vmatpush2.bf16.msra.mxu0 0
      %2074 = vmatprep.subr.bf16.mxu0 0
      %2075 = vmatpush2.bf16.msra.mxu0 0
      %2076 = vmatprep.subr.bf16.mxu0 0
      %2077 = vmatpush2.bf16.msra.mxu0 0
      %2078 = vmatprep.subr.bf16.mxu0 0
      %2079 = vmatpush2.bf16.msra.mxu0 0
      %2080 = vmatprep.subr.bf16.mxu0 0
      %2081 = vmatpush2.bf16.msra.mxu0 0
      %2082 = vmatprep.mubr.bf16.mxu0 0
      %2083 = vmatmul.mubr.bf16.gmra.mxu0 %v2045
      %v2084 = vpop.f32.mrf.mxu0
      %v2085 = vadd.f32 0.0, %v2084
      %v2086 = vpop.f32.mrf.mxu0
      %v2087 = vpop.f32.mrf.mxu0
      %v2088 = vpop.f32.mrf.mxu0
      %2089 = vdwg.mxu0
      %2090 = vrot.lane.b32.xlu0 %v1309, 64
      %v2091 = vpop.permute.xlu0 %2090
      %2092 = vrot.lane.b32.xlu0 %v1310, 64
      %v2093 = vpop.permute.xlu0 %2092
      %2094 = vrot.lane.b32.xlu0 %v1227, 64
      %v2095 = vpop.permute.xlu0 %2094
      %v2096 = vrot.slane %v2091, 2
      %v2097 = vrot.slane %v2093, 2
      %v2098 = vrot.slane %v2095, 2
      %v2099 = vunpack.i.l.s16 %v2096
      %v2100 = vunpack.i.h.s16 %v2096
      %v2101 = vunpack.i.l.s16 %v2097
      %v2102 = vunpack.i.h.s16 %v2097
      %v2103 = vunpack.i.l.s16 %v2098
      %v2104 = vpack.i.b16 %v2100, %v2099
      %v2105 = vpack.i.b16 %v2102, %v2101
      %v2107 = vcombine.low %v2104, %v2105
      %v2109 = vunpack.c.l.s4 1966171168
      %v2110 = vunpack.c.0.s8 %v2109
      %v2111 = vlaneseq
      %v2112 = vshrl.u32 %v2111, 7
      %v2113 = vsub.s32 %v2110, %v2112
      %v2114 = vrot.slane %v2107, %v2113
      %v2116 = vunpack.c.l.s4 1966171168
      %v2117 = vunpack.c.0.s8 %v2116
      %v2118 = vlaneseq
      %v2119 = vshrl.u32 %v2118, 7
      %v2120 = vsub.s32 %v2117, %v2119
      %v2121 = vrot.slane %v2103, %v2120
      %v2122 = vcombine.low %v2114, %v2121
      %v2124 = vunpack.c.l.s4 1966171168
      %v2125 = vunpack.c.0.s8 %v2124
      %v2126 = vlaneseq
      %v2127 = vshrl.u32 %v2126, 7
      %v2128 = vsub.s32 %v2125, %v2127
      %v2129 = vrot.slane %v2122, %v2128
      %v2131 = vsel %vm1450, %v2003, 0
      %v2134 = vand.u32 %v2129, %v1456
      %2136 = vmatprep.subr.bf16.mxu0 0
      %2137 = vmatpush1.bf16.msra.mxu0 0
      %2138 = vmatprep.subr.bf16.mxu0 0
      %2139 = vmatpush1.bf16.msra.mxu0 0
      %2140 = vmatprep.subr.bf16.mxu0 0
      %2141 = vmatpush1.bf16.msra.mxu0 0
      %2142 = vmatprep.subr.bf16.mxu0 0
      %2143 = vmatpush1.bf16.msra.mxu0 0
      %2144 = vmatprep.subr.bf16.mxu0 0
      %2145 = vmatpush1.bf16.msra.mxu0 0
      %2146 = vmatprep.subr.bf16.mxu0 0
      %2147 = vmatpush1.bf16.msra.mxu0 0
      %2148 = vmatprep.subr.bf16.mxu0 0
      %2149 = vmatpush1.bf16.msra.mxu0 0
      %2150 = vmatprep.subr.bf16.mxu0 0
      %2151 = vmatpush1.bf16.msra.mxu0 %v2134
      %2152 = vmatprep.subr.bf16.mxu0 0
      %2153 = vmatpush2.bf16.msra.mxu0 0
      %2154 = vmatprep.subr.bf16.mxu0 0
      %2155 = vmatpush2.bf16.msra.mxu0 0
      %2156 = vmatprep.subr.bf16.mxu0 0
      %2157 = vmatpush2.bf16.msra.mxu0 0
      %2158 = vmatprep.subr.bf16.mxu0 0
      %2159 = vmatpush2.bf16.msra.mxu0 0
      %2160 = vmatprep.subr.bf16.mxu0 0
      %2161 = vmatpush2.bf16.msra.mxu0 0
      %2162 = vmatprep.subr.bf16.mxu0 0
      %2163 = vmatpush2.bf16.msra.mxu0 0
      %2164 = vmatprep.subr.bf16.mxu0 0
      %2165 = vmatpush2.bf16.msra.mxu0 0
      %2166 = vmatprep.subr.bf16.mxu0 0
      %2167 = vmatpush2.bf16.msra.mxu0 0
      %2168 = vmatprep.mubr.bf16.mxu0 0
      %2169 = vmatmul.mubr.bf16.gmra.mxu0 %v2131
      %v2170 = vpop.f32.mrf.mxu0
      %v2171 = vadd.f32 0.0, %v2170
      %v2172 = vpop.f32.mrf.mxu0
      %v2173 = vpop.f32.mrf.mxu0
      %v2174 = vpop.f32.mrf.mxu0
      %2175 = vdwg.mxu0
      %2176 = vrot.lane.b32.xlu0 %v1253, 32
      %v2177 = vpop.permute.xlu0 %2176
      %2178 = vrot.lane.b32.xlu0 %v1261, 32
      %v2179 = vpop.permute.xlu0 %2178
      %v2181 = vsel %vm1262, %v2177, 0
      %v2184 = vsel %vm1262, %v2179, 0
      %2186 = vmatprep.subr.bf16.mxu0 0
      %2187 = vmatpush1.bf16.xpose.msra.mxu0 0
      %2188 = vmatprep.subr.bf16.mxu0 0
      %2189 = vmatpush1.bf16.xpose.msra.mxu0 0
      %2190 = vmatprep.subr.bf16.mxu0 0
      %2191 = vmatpush1.bf16.xpose.msra.mxu0 0
      %2192 = vmatprep.subr.bf16.mxu0 0
      %2193 = vmatpush1.bf16.xpose.msra.mxu0 0
      %2194 = vmatprep.subr.bf16.mxu0 0
      %2195 = vmatpush1.bf16.xpose.msra.mxu0 0
      %2196 = vmatprep.subr.bf16.mxu0 0
      %2197 = vmatpush1.bf16.xpose.msra.mxu0 0
      %2198 = vmatprep.subr.bf16.mxu0 0
      %2199 = vmatpush1.bf16.xpose.msra.mxu0 0
      %2200 = vmatprep.subr.bf16.mxu0 0
      %2201 = vmatpush1.bf16.xpose.msra.mxu0 %v2184
      %2202 = vmatprep.subr.bf16.mxu0 0
      %2203 = vmatpush2.bf16.xpose.msra.mxu0 0
      %2204 = vmatprep.subr.bf16.mxu0 0
      %2205 = vmatpush2.bf16.xpose.msra.mxu0 0
      %2206 = vmatprep.subr.bf16.mxu0 0
      %2207 = vmatpush2.bf16.xpose.msra.mxu0 0
      %2208 = vmatprep.subr.bf16.mxu0 0
      %2209 = vmatpush2.bf16.xpose.msra.mxu0 0
      %2210 = vmatprep.subr.bf16.mxu0 0
      %2211 = vmatpush2.bf16.xpose.msra.mxu0 0
      %2212 = vmatprep.subr.bf16.mxu0 0
      %2213 = vmatpush2.bf16.xpose.msra.mxu0 0
      %2214 = vmatprep.subr.bf16.mxu0 0
      %2215 = vmatpush2.bf16.xpose.msra.mxu0 0
      %2216 = vmatprep.subr.bf16.mxu0 0
      %2217 = vmatpush2.bf16.xpose.msra.mxu0 0
      %2218 = vmatprep.mubr.bf16.mxu0 0
      %2219 = vmatmul.mubr.bf16.gmra.mxu0 %v2181
      %v2220 = vpop.f32.mrf.mxu0
      %v2221 = vadd.f32 0.0, %v2220
      %v2222 = vpop.f32.mrf.mxu0
      %v2223 = vpop.f32.mrf.mxu0
      %v2224 = vpop.f32.mrf.mxu0
      %2225 = vdwg.mxu0
      %2226 = vrot.lane.b32.xlu0 %v1334, 32
      %v2227 = vpop.permute.xlu0 %2226
      %2228 = vrot.lane.b32.xlu0 %v1342, 32
      %v2229 = vpop.permute.xlu0 %2228
      %v2231 = vsel %vm1262, %v2227, 0
      %v2234 = vsel %vm1262, %v2229, 0
      %2236 = vmatprep.subr.bf16.mxu0 0
      %2237 = vmatpush1.bf16.xpose.msra.mxu0 0
      %2238 = vmatprep.subr.bf16.mxu0 0
      %2239 = vmatpush1.bf16.xpose.msra.mxu0 0
      %2240 = vmatprep.subr.bf16.mxu0 0
      %2241 = vmatpush1.bf16.xpose.msra.mxu0 0
      %2242 = vmatprep.subr.bf16.mxu0 0
      %2243 = vmatpush1.bf16.xpose.msra.mxu0 0
      %2244 = vmatprep.subr.bf16.mxu0 0
      %2245 = vmatpush1.bf16.xpose.msra.mxu0 0
      %2246 = vmatprep.subr.bf16.mxu0 0
      %2247 = vmatpush1.bf16.xpose.msra.mxu0 0
      %2248 = vmatprep.subr.bf16.mxu0 0
      %2249 = vmatpush1.bf16.xpose.msra.mxu0 0
      %2250 = vmatprep.subr.bf16.mxu0 0
      %2251 = vmatpush1.bf16.xpose.msra.mxu0 %v2234
      %2252 = vmatprep.subr.bf16.mxu0 0
      %2253 = vmatpush2.bf16.xpose.msra.mxu0 0
      %2254 = vmatprep.subr.bf16.mxu0 0
      %2255 = vmatpush2.bf16.xpose.msra.mxu0 0
      %2256 = vmatprep.subr.bf16.mxu0 0
      %2257 = vmatpush2.bf16.xpose.msra.mxu0 0
      %2258 = vmatprep.subr.bf16.mxu0 0
      %2259 = vmatpush2.bf16.xpose.msra.mxu0 0
      %2260 = vmatprep.subr.bf16.mxu0 0
      %2261 = vmatpush2.bf16.xpose.msra.mxu0 0
      %2262 = vmatprep.subr.bf16.mxu0 0
      %2263 = vmatpush2.bf16.xpose.msra.mxu0 0
      %2264 = vmatprep.subr.bf16.mxu0 0
      %2265 = vmatpush2.bf16.xpose.msra.mxu0 0
      %2266 = vmatprep.subr.bf16.mxu0 0
      %2267 = vmatpush2.bf16.xpose.msra.mxu0 0
      %2268 = vmatprep.mubr.bf16.mxu0 0
      %2269 = vmatmul.mubr.bf16.gmra.mxu0 %v2231
      %v2270 = vpop.f32.mrf.mxu0
      %v2271 = vadd.f32 0.0, %v2270
      %v2272 = vpop.f32.mrf.mxu0
      %v2273 = vpop.f32.mrf.mxu0
      %v2274 = vpop.f32.mrf.mxu0
      %2275 = vdwg.mxu0
      %v2276 = vmul.f32 %v2221, 0.17677669
      %v2277 = vmul.f32 %v2271, 0.17677669
      %v2278 = vsel %vm1391, %v2276, -inf
      %2279 = vmax.xlane.f32.xlu0 %v2278
      %v2280 = vpop.xlane.xlu0 %2279
      %v2281 = vsel %vm1391, %v2277, -inf
      %2282 = vmax.xlane.f32.xlu0 %v2281
      %v2283 = vpop.xlane.xlu0 %2282
      %v2284 = vsub.f32 %v2276, %v2280
      %v2285 = vsub.f32 %v2277, %v2283
      %v2286 = vmul.f32 %v2284, 1.442695
      %v2287 = vpow.pop %v2286
      %v2288 = vmul.f32 %v2285, 1.442695
      %v2289 = vpow.pop %v2288
      %v2290 = vsel %vm1391, %v2287, 0.0
      %2291 = vadd.xlane.f32.xlu0 %v2290
      %v2292 = vpop.xlane.xlu0 %2291
      %v2293 = vsel %vm1391, %v2289, 0.0
      %2294 = vadd.xlane.f32.xlu0 %v2293
      %v2295 = vpop.xlane.xlu0 %2294
      %v2296 = vrcp.pop %v2292
      %v2297 = vmul.f32 %v2287, %v2296
      %v2298 = vrcp.pop %v2295
      %v2299 = vmul.f32 %v2289, %v2298
      %v2300 = vpack.c.bf16 %v2297, %v2297
      %v2301 = vpack.c.bf16 %v2299, %v2299
      %2302 = vrot.lane.b32.xlu0 %v1228, 32
      %v2303 = vpop.permute.xlu0 %2302
      %2304 = vrot.lane.b32.xlu0 %v1229, 32
      %v2305 = vpop.permute.xlu0 %2304
      %2306 = vrot.lane.b32.xlu0 %v1222, 32
      %v2307 = vpop.permute.xlu0 %2306
      %v2308 = vrot.slane %v2303, 2
      %v2309 = vrot.slane %v2305, 2
      %v2310 = vrot.slane %v2307, 2
      %v2311 = vunpack.i.l.s16 %v2308
      %v2312 = vunpack.i.h.s16 %v2308
      %v2313 = vunpack.i.l.s16 %v2309
      %v2314 = vunpack.i.h.s16 %v2309
      %v2315 = vunpack.i.l.s16 %v2310
      %v2316 = vpack.i.b16 %v2312, %v2311
      %v2317 = vpack.i.b16 %v2314, %v2313
      %v2319 = vcombine.low %v2316, %v2317
      %v2321 = vunpack.c.l.s4 1966171168
      %v2322 = vunpack.c.0.s8 %v2321
      %v2323 = vlaneseq
      %v2324 = vshrl.u32 %v2323, 7
      %v2325 = vsub.s32 %v2322, %v2324
      %v2326 = vrot.slane %v2319, %v2325
      %v2328 = vunpack.c.l.s4 1966171168
      %v2329 = vunpack.c.0.s8 %v2328
      %v2330 = vlaneseq
      %v2331 = vshrl.u32 %v2330, 7
      %v2332 = vsub.s32 %v2329, %v2331
      %v2333 = vrot.slane %v2315, %v2332
      %v2334 = vcombine.low %v2326, %v2333
      %v2336 = vunpack.c.l.s4 1966171168
      %v2337 = vunpack.c.0.s8 %v2336
      %v2338 = vlaneseq
      %v2339 = vshrl.u32 %v2338, 7
      %v2340 = vsub.s32 %v2337, %v2339
      %v2341 = vrot.slane %v2334, %v2340
      %v2343 = vsel %vm1450, %v2300, 0
      %v2346 = vand.u32 %v2341, %v1456
      %2348 = vmatprep.subr.bf16.mxu0 0
      %2349 = vmatpush1.bf16.msra.mxu0 0
      %2350 = vmatprep.subr.bf16.mxu0 0
      %2351 = vmatpush1.bf16.msra.mxu0 0
      %2352 = vmatprep.subr.bf16.mxu0 0
      %2353 = vmatpush1.bf16.msra.mxu0 0
      %2354 = vmatprep.subr.bf16.mxu0 0
      %2355 = vmatpush1.bf16.msra.mxu0 0
      %2356 = vmatprep.subr.bf16.mxu0 0
      %2357 = vmatpush1.bf16.msra.mxu0 0
      %2358 = vmatprep.subr.bf16.mxu0 0
      %2359 = vmatpush1.bf16.msra.mxu0 0
      %2360 = vmatprep.subr.bf16.mxu0 0
      %2361 = vmatpush1.bf16.msra.mxu0 0
      %2362 = vmatprep.subr.bf16.mxu0 0
      %2363 = vmatpush1.bf16.msra.mxu0 %v2346
      %2364 = vmatprep.subr.bf16.mxu0 0
      %2365 = vmatpush2.bf16.msra.mxu0 0
      %2366 = vmatprep.subr.bf16.mxu0 0
      %2367 = vmatpush2.bf16.msra.mxu0 0
      %2368 = vmatprep.subr.bf16.mxu0 0
      %2369 = vmatpush2.bf16.msra.mxu0 0
      %2370 = vmatprep.subr.bf16.mxu0 0
      %2371 = vmatpush2.bf16.msra.mxu0 0
      %2372 = vmatprep.subr.bf16.mxu0 0
      %2373 = vmatpush2.bf16.msra.mxu0 0
      %2374 = vmatprep.subr.bf16.mxu0 0
      %2375 = vmatpush2.bf16.msra.mxu0 0
      %2376 = vmatprep.subr.bf16.mxu0 0
      %2377 = vmatpush2.bf16.msra.mxu0 0
      %2378 = vmatprep.subr.bf16.mxu0 0
      %2379 = vmatpush2.bf16.msra.mxu0 0
      %2380 = vmatprep.mubr.bf16.mxu0 0
      %2381 = vmatmul.mubr.bf16.gmra.mxu0 %v2343
      %v2382 = vpop.f32.mrf.mxu0
      %v2383 = vadd.f32 0.0, %v2382
      %v2384 = vpop.f32.mrf.mxu0
      %v2385 = vpop.f32.mrf.mxu0
      %v2386 = vpop.f32.mrf.mxu0
      %2387 = vdwg.mxu0
      %2388 = vrot.lane.b32.xlu0 %v1309, 32
      %v2389 = vpop.permute.xlu0 %2388
      %2390 = vrot.lane.b32.xlu0 %v1310, 32
      %v2391 = vpop.permute.xlu0 %2390
      %2392 = vrot.lane.b32.xlu0 %v1227, 32
      %v2393 = vpop.permute.xlu0 %2392
      %v2394 = vrot.slane %v2389, 2
      %v2395 = vrot.slane %v2391, 2
      %v2396 = vrot.slane %v2393, 2
      %v2397 = vunpack.i.l.s16 %v2394
      %v2398 = vunpack.i.h.s16 %v2394
      %v2399 = vunpack.i.l.s16 %v2395
      %v2400 = vunpack.i.h.s16 %v2395
      %v2401 = vunpack.i.l.s16 %v2396
      %v2402 = vpack.i.b16 %v2398, %v2397
      %v2403 = vpack.i.b16 %v2400, %v2399
      %v2405 = vcombine.low %v2402, %v2403
      %v2407 = vunpack.c.l.s4 1966171168
      %v2408 = vunpack.c.0.s8 %v2407
      %v2409 = vlaneseq
      %v2410 = vshrl.u32 %v2409, 7
      %v2411 = vsub.s32 %v2408, %v2410
      %v2412 = vrot.slane %v2405, %v2411
      %v2414 = vunpack.c.l.s4 1966171168
      %v2415 = vunpack.c.0.s8 %v2414
      %v2416 = vlaneseq
      %v2417 = vshrl.u32 %v2416, 7
      %v2418 = vsub.s32 %v2415, %v2417
      %v2419 = vrot.slane %v2401, %v2418
      %v2420 = vcombine.low %v2412, %v2419
      %v2422 = vunpack.c.l.s4 1966171168
      %v2423 = vunpack.c.0.s8 %v2422
      %v2424 = vlaneseq
      %v2425 = vshrl.u32 %v2424, 7
      %v2426 = vsub.s32 %v2423, %v2425
      %v2427 = vrot.slane %v2420, %v2426
      %v2429 = vsel %vm1450, %v2301, 0
      %v2432 = vand.u32 %v2427, %v1456
      %2434 = vmatprep.subr.bf16.mxu0 0
      %2435 = vmatpush1.bf16.msra.mxu0 0
      %2436 = vmatprep.subr.bf16.mxu0 0
      %2437 = vmatpush1.bf16.msra.mxu0 0
      %2438 = vmatprep.subr.bf16.mxu0 0
      %2439 = vmatpush1.bf16.msra.mxu0 0
      %2440 = vmatprep.subr.bf16.mxu0 0
      %2441 = vmatpush1.bf16.msra.mxu0 0
      %2442 = vmatprep.subr.bf16.mxu0 0
      %2443 = vmatpush1.bf16.msra.mxu0 0
      %2444 = vmatprep.subr.bf16.mxu0 0
      %2445 = vmatpush1.bf16.msra.mxu0 0
      %2446 = vmatprep.subr.bf16.mxu0 0
      %2447 = vmatpush1.bf16.msra.mxu0 0
      %2448 = vmatprep.subr.bf16.mxu0 0
      %2449 = vmatpush1.bf16.msra.mxu0 %v2432
      %2450 = vmatprep.subr.bf16.mxu0 0
      %2451 = vmatpush2.bf16.msra.mxu0 0
      %2452 = vmatprep.subr.bf16.mxu0 0
      %2453 = vmatpush2.bf16.msra.mxu0 0
      %2454 = vmatprep.subr.bf16.mxu0 0
      %2455 = vmatpush2.bf16.msra.mxu0 0
      %2456 = vmatprep.subr.bf16.mxu0 0
      %2457 = vmatpush2.bf16.msra.mxu0 0
      %2458 = vmatprep.subr.bf16.mxu0 0
      %2459 = vmatpush2.bf16.msra.mxu0 0
      %2460 = vmatprep.subr.bf16.mxu0 0
      %2461 = vmatpush2.bf16.msra.mxu0 0
      %2462 = vmatprep.subr.bf16.mxu0 0
      %2463 = vmatpush2.bf16.msra.mxu0 0
      %2464 = vmatprep.subr.bf16.mxu0 0
      %2465 = vmatpush2.bf16.msra.mxu0 0
      %2466 = vmatprep.mubr.bf16.mxu0 0
      %2467 = vmatmul.mubr.bf16.gmra.mxu0 %v2429
      %v2468 = vpop.f32.mrf.mxu0
      %v2469 = vadd.f32 0.0, %v2468
      %v2470 = vpop.f32.mrf.mxu0
      %v2471 = vpop.f32.mrf.mxu0
      %v2472 = vpop.f32.mrf.mxu0
      %2473 = vdwg.mxu0
      %2476 = vrot.lane.b32.xlu0 %v1787, 32
      %v2477 = vpop.permute.xlu0 %2476
      %2478 = vrot.lane.b32.xlu0 %v1873, 32
      %v2479 = vpop.permute.xlu0 %2478
      %2484 = vrot.lane.b32.xlu0 %v2085, 64
      %v2485 = vpop.permute.xlu0 %2484
      %2486 = vrot.lane.b32.xlu0 %v2171, 64
      %v2487 = vpop.permute.xlu0 %2486
      %2492 = vrot.lane.b32.xlu0 %v2383, 96
      %v2493 = vpop.permute.xlu0 %2492
      %2494 = vrot.lane.b32.xlu0 %v2469, 96
      %v2495 = vpop.permute.xlu0 %2494
      %v2498 = vsel %vm1262, %v1495, %v2477
      %v2499 = vsel %vm1262, %v1575, %v2479
      %vm2500 = vcmask 523264
      %v2501 = vsel %vm2500, %v2498, %v2485
      %v2502 = vsel %vm2500, %v2499, %v2487
      %vm2503 = vcmask 785408
      %v2504 = vsel %vm2503, %v2501, %v2493
      %v2505 = vsel %vm2503, %v2502, %v2495
      %v2508 = vcombine.high %v2504, %v2504
      %v2510 = vunpack.c.l.s4 1966171168
      %v2511 = vunpack.c.0.s8 %v2510
      %v2512 = vlaneseq
      %v2513 = vshrl.u32 %v2512, 7
      %v2514 = vsub.s32 %v2511, %v2513
      %v2515 = vrot.slane %v2504, %v2514
      %v2517 = vunpack.c.l.s4 1966171168
      %v2518 = vunpack.c.0.s8 %v2517
      %v2519 = vlaneseq
      %v2520 = vshrl.u32 %v2519, 7
      %v2521 = vsub.s32 %v2518, %v2520
      %v2522 = vrot.slane %v2508, %v2521
      %v2523 = vcombine.high %v2515, %v2515
      %v2525 = vunpack.c.l.s4 1966171168
      %v2526 = vunpack.c.0.s8 %v2525
      %v2527 = vlaneseq
      %v2528 = vshrl.u32 %v2527, 7
      %v2529 = vsub.s32 %v2526, %v2528
      %v2530 = vrot.slane %v2515, %v2529
      %v2532 = vunpack.c.l.s4 1966171168
      %v2533 = vunpack.c.0.s8 %v2532
      %v2534 = vlaneseq
      %v2535 = vshrl.u32 %v2534, 7
      %v2536 = vsub.s32 %v2533, %v2535
      %v2537 = vrot.slane %v2522, %v2536
      %v2539 = vunpack.c.l.s4 1966171168
      %v2540 = vunpack.c.0.s8 %v2539
      %v2541 = vlaneseq
      %v2542 = vshrl.u32 %v2541, 7
      %v2543 = vsub.s32 %v2540, %v2542
      %v2544 = vrot.slane %v2523, %v2543
      %v2545 = vcombine.high %v2530, %v2530
      %v2546 = vcombine.high %v2544, %v2544
      %v2547 = vcombine.high %v2505, %v2505
      %v2549 = vunpack.c.l.s4 1966171168
      %v2550 = vunpack.c.0.s8 %v2549
      %v2551 = vlaneseq
      %v2552 = vshrl.u32 %v2551, 7
      %v2553 = vsub.s32 %v2550, %v2552
      %v2554 = vrot.slane %v2505, %v2553
      %v2556 = vunpack.c.l.s4 1966171168
      %v2557 = vunpack.c.0.s8 %v2556
      %v2558 = vlaneseq
      %v2559 = vshrl.u32 %v2558, 7
      %v2560 = vsub.s32 %v2557, %v2559
      %v2561 = vrot.slane %v2547, %v2560
      %v2562 = vcombine.high %v2554, %v2554
      %v2564 = vunpack.c.l.s4 1966171168
      %v2565 = vunpack.c.0.s8 %v2564
      %v2566 = vlaneseq
      %v2567 = vshrl.u32 %v2566, 7
      %v2568 = vsub.s32 %v2565, %v2567
      %v2569 = vrot.slane %v2554, %v2568
      %v2571 = vunpack.c.l.s4 1966171168
      %v2572 = vunpack.c.0.s8 %v2571
      %v2573 = vlaneseq
      %v2574 = vshrl.u32 %v2573, 7
      %v2575 = vsub.s32 %v2572, %v2574
      %v2576 = vrot.slane %v2561, %v2575
      %v2578 = vunpack.c.l.s4 1966171168
      %v2579 = vunpack.c.0.s8 %v2578
      %v2580 = vlaneseq
      %v2581 = vshrl.u32 %v2580, 7
      %v2582 = vsub.s32 %v2579, %v2581
      %v2583 = vrot.slane %v2562, %v2582
      %v2584 = vcombine.high %v2569, %v2569
      %v2585 = vcombine.high %v2583, %v2583
      %v2586 = vcombine.low %v2530, %v2544
      %v2587 = vcombine.low %v2545, %v2546
      %v2588 = vcombine.low %v2537, %v2569
      %v2589 = vcombine.low %v2583, %v2584
      %v2591 = vunpack.c.l.s4 1966171168
      %v2592 = vunpack.c.0.s8 %v2591
      %v2593 = vlaneseq
      %v2594 = vshrl.u32 %v2593, 7
      %v2595 = vsub.s32 %v2592, %v2594
      %v2596 = vrot.slane %v2586, %v2595
      %v2598 = vunpack.c.l.s4 1966171168
      %v2599 = vunpack.c.0.s8 %v2598
      %v2600 = vlaneseq
      %v2601 = vshrl.u32 %v2600, 7
      %v2602 = vsub.s32 %v2599, %v2601
      %v2603 = vrot.slane %v2587, %v2602
      %v2605 = vunpack.c.l.s4 1966171168
      %v2606 = vunpack.c.0.s8 %v2605
      %v2607 = vlaneseq
      %v2608 = vshrl.u32 %v2607, 7
      %v2609 = vsub.s32 %v2606, %v2608
      %v2610 = vrot.slane %v2588, %v2609
      %v2612 = vunpack.c.l.s4 1966171168
      %v2613 = vunpack.c.0.s8 %v2612
      %v2614 = vlaneseq
      %v2615 = vshrl.u32 %v2614, 7
      %v2616 = vsub.s32 %v2613, %v2615
      %v2617 = vrot.slane %v2589, %v2616
      %v2618 = vcombine.low %v2596, %v2603
      %v2619 = vcombine.low %v2610, %v2617
      %v2621 = vunpack.c.l.s4 1966171168
      %v2622 = vunpack.c.0.s8 %v2621
      %v2623 = vlaneseq
      %v2624 = vshrl.u32 %v2623, 7
      %v2625 = vsub.s32 %v2622, %v2624
      %v2626 = vrot.slane %v2618, %v2625
      %v2628 = vunpack.c.l.s4 1966171168
      %v2629 = vunpack.c.0.s8 %v2628
      %v2630 = vlaneseq
      %v2631 = vshrl.u32 %v2630, 7
      %v2632 = vsub.s32 %v2629, %v2631
      %v2633 = vrot.slane %v2619, %v2632
      %v2634 = vcombine.low %v2626, %v2633
      %v2635 = vcombine.low %v2585, %v2576
      %v2637 = vunpack.c.l.s4 1966171168
      %v2638 = vunpack.c.0.s8 %v2637
      %v2639 = vlaneseq
      %v2640 = vshrl.u32 %v2639, 7
      %v2641 = vsub.s32 %v2638, %v2640
      %v2642 = vrot.slane %v2635, %v2641
      %v2644 = vunpack.c.l.s4 1966171168
      %v2645 = vunpack.c.0.s8 %v2644
      %v2646 = vlaneseq
      %v2647 = vshrl.u32 %v2646, 7
      %v2648 = vsub.s32 %v2645, %v2647
      %v2649 = vrot.slane %v2642, %v2648
      %v2652 = vpack.c.bf16 %v2649, %v2634
      %v2653 = vld [vmem:[%s5] sm:$0xf]
      %v2654 = vld [vmem:[%s5 + $0x4] sm:$0xf]
      %v2655 = vld [vmem:[%s5 + $0x8] sm:$0xf]
      %v2656 = vld [vmem:[%s5 + $0xc] sm:$0xf]
      %v2657 = vld [vmem:[%s5 + $0x10] sm:$0xf]
      %v2658 = vld [vmem:[%s5 + $0x14] sm:$0xf]
      %v2659 = vld [vmem:[%s5 + $0x18] sm:$0xf]
      %v2660 = vld [vmem:[%s5 + $0x1c] sm:$0xf]
      %v2661 = vld [vmem:[%s5 + $0x20] sm:$0xf]
      %v2662 = vld [vmem:[%s5 + $0x24] sm:$0xf]
      %v2663 = vld [vmem:[%s5 + $0x28] sm:$0xf]
      %v2664 = vld [vmem:[%s5 + $0x2c] sm:$0xf]
      %v2665 = vld [vmem:[%s5 + $0x30] sm:$0xf]
      %v2666 = vld [vmem:[%s5 + $0x34] sm:$0xf]
      %v2667 = vld [vmem:[%s5 + $0x38] sm:$0xf]
      %v2668 = vld [vmem:[%s5 + $0x3c] sm:$0xf]
      %v2669 = vld [vmem:[%s6] sm:$0x1]
      %v2671 = vlaneseq
      %v2672 = vshrl.u32 %v2671, 7
      %v2673 = vsub.s32 0, %v2672
      %v2674 = vrot.slane %v2669, %v2673
      %v2692 = vunpack.c.l.b16 %v2653
      %v2693 = vunpack.c.l.b16 %v2654
      %v2694 = vunpack.c.l.b16 %v2655
      %v2695 = vunpack.c.l.b16 %v2656
      %v2696 = vunpack.c.l.b16 %v2657
      %v2697 = vunpack.c.l.b16 %v2658
      %v2698 = vunpack.c.l.b16 %v2659
      %v2699 = vunpack.c.l.b16 %v2660
      %v2700 = vunpack.c.l.b16 %v2661
      %v2701 = vunpack.c.l.b16 %v2662
      %v2702 = vunpack.c.l.b16 %v2663
      %v2703 = vunpack.c.l.b16 %v2664
      %v2704 = vunpack.c.l.b16 %v2665
      %v2705 = vunpack.c.l.b16 %v2666
      %v2706 = vunpack.c.l.b16 %v2667
      %v2707 = vunpack.c.l.b16 %v2668
      %v2708 = vpack.c.b16 %v2693, %v2692
      %v2709 = vpack.c.b16 %v2695, %v2694
      %v2710 = vpack.c.b16 %v2697, %v2696
      %v2711 = vpack.c.b16 %v2699, %v2698
      %v2712 = vpack.c.b16 %v2701, %v2700
      %v2713 = vpack.c.b16 %v2703, %v2702
      %v2714 = vpack.c.b16 %v2705, %v2704
      %v2715 = vpack.c.b16 %v2707, %v2706
      %2724 = vmatprep.subr.bf16.mxu0 0
      %2725 = vmatpush1.bf16.msra.mxu0 %v2715
      %2726 = vmatprep.subr.bf16.mxu0 0
      %2727 = vmatpush1.bf16.msra.mxu0 %v2714
      %2728 = vmatprep.subr.bf16.mxu0 0
      %2729 = vmatpush1.bf16.msra.mxu0 %v2713
      %2730 = vmatprep.subr.bf16.mxu0 0
      %2731 = vmatpush1.bf16.msra.mxu0 %v2712
      %2732 = vmatprep.subr.bf16.mxu0 0
      %2733 = vmatpush1.bf16.msra.mxu0 %v2711
      %2734 = vmatprep.subr.bf16.mxu0 0
      %2735 = vmatpush1.bf16.msra.mxu0 %v2710
      %2736 = vmatprep.subr.bf16.mxu0 0
      %2737 = vmatpush1.bf16.msra.mxu0 %v2709
      %2738 = vmatprep.subr.bf16.mxu0 0
      %2739 = vmatpush1.bf16.msra.mxu0 %v2708
      %2740 = vmatprep.subr.bf16.mxu0 0
      %2741 = vmatpush2.bf16.msra.mxu0 0
      %2742 = vmatprep.subr.bf16.mxu0 0
      %2743 = vmatpush2.bf16.msra.mxu0 0
      %2744 = vmatprep.subr.bf16.mxu0 0
      %2745 = vmatpush2.bf16.msra.mxu0 0
      %2746 = vmatprep.subr.bf16.mxu0 0
      %2747 = vmatpush2.bf16.msra.mxu0 0
      %2748 = vmatprep.subr.bf16.mxu0 0
      %2749 = vmatpush2.bf16.msra.mxu0 0
      %2750 = vmatprep.subr.bf16.mxu0 0
      %2751 = vmatpush2.bf16.msra.mxu0 0
      %2752 = vmatprep.subr.bf16.mxu0 0
      %2753 = vmatpush2.bf16.msra.mxu0 0
      %2754 = vmatprep.subr.bf16.mxu0 0
      %2755 = vmatpush2.bf16.msra.mxu0 0
      %2756 = vmatprep.mubr.bf16.mxu0 0
      %2757 = vmatmul.mubr.bf16.gmra.mxu0 %v2652
      %v2758 = vpop.f32.mrf.mxu0
      %v2759 = vadd.f32 %v2674, %v2758
      %v2760 = vpop.f32.mrf.mxu0
      %v2761 = vpop.f32.mrf.mxu0
      %v2762 = vadd.f32 %v2674, %v2761
      %v2763 = vpop.f32.mrf.mxu0
      %2764 = vdwg.mxu0
      %v2767 = vcombine.high %v2759, %v2759
      %v2769 = vunpack.c.l.s4 1966171168
      %v2770 = vunpack.c.0.s8 %v2769
      %v2771 = vlaneseq
      %v2772 = vshrl.u32 %v2771, 7
      %v2773 = vsub.s32 %v2770, %v2772
      %v2774 = vrot.slane %v2759, %v2773
      %v2776 = vunpack.c.l.s4 1966171168
      %v2777 = vunpack.c.0.s8 %v2776
      %v2778 = vlaneseq
      %v2779 = vshrl.u32 %v2778, 7
      %v2780 = vsub.s32 %v2777, %v2779
      %v2781 = vrot.slane %v2767, %v2780
      %v2782 = vcombine.high %v2774, %v2774
      %v2783 = vcombine.high %v2781, %v2781
      %v2785 = vunpack.c.l.s4 1966171168
      %v2786 = vunpack.c.0.s8 %v2785
      %v2787 = vlaneseq
      %v2788 = vshrl.u32 %v2787, 7
      %v2789 = vsub.s32 %v2786, %v2788
      %v2790 = vrot.slane %v2774, %v2789
      %v2792 = vunpack.c.l.s4 1966171168
      %v2793 = vunpack.c.0.s8 %v2792
      %v2794 = vlaneseq
      %v2795 = vshrl.u32 %v2794, 7
      %v2796 = vsub.s32 %v2793, %v2795
      %v2797 = vrot.slane %v2781, %v2796
      %v2799 = vunpack.c.l.s4 1966171168
      %v2800 = vunpack.c.0.s8 %v2799
      %v2801 = vlaneseq
      %v2802 = vshrl.u32 %v2801, 7
      %v2803 = vsub.s32 %v2800, %v2802
      %v2804 = vrot.slane %v2782, %v2803
      %v2806 = vunpack.c.l.s4 1966171168
      %v2807 = vunpack.c.0.s8 %v2806
      %v2808 = vlaneseq
      %v2809 = vshrl.u32 %v2808, 7
      %v2810 = vsub.s32 %v2807, %v2809
      %v2811 = vrot.slane %v2783, %v2810
      %v2812 = vcombine.high %v2790, %v2790
      %v2813 = vcombine.high %v2797, %v2797
      %v2814 = vcombine.high %v2804, %v2804
      %v2815 = vcombine.high %v2811, %v2811
      %v2817 = vunpack.c.l.s4 1966171168
      %v2818 = vunpack.c.0.s8 %v2817
      %v2819 = vlaneseq
      %v2820 = vshrl.u32 %v2819, 7
      %v2821 = vsub.s32 %v2818, %v2820
      %v2822 = vrot.slane %v2762, %v2821
      %v2823 = vcombine.high %v2822, %v2822
      %v2825 = vunpack.c.l.s4 1966171168
      %v2826 = vunpack.c.0.s8 %v2825
      %v2827 = vlaneseq
      %v2828 = vshrl.u32 %v2827, 7
      %v2829 = vsub.s32 %v2826, %v2828
      %v2830 = vrot.slane %v2822, %v2829
      %v2832 = vunpack.c.l.s4 1966171168
      %v2833 = vunpack.c.0.s8 %v2832
      %v2834 = vlaneseq
      %v2835 = vshrl.u32 %v2834, 7
      %v2836 = vsub.s32 %v2833, %v2835
      %v2837 = vrot.slane %v2823, %v2836
      %v2838 = vcombine.low %v2790, %v2804
      %v2839 = vcombine.low %v2812, %v2814
      %v2841 = vunpack.c.l.s4 1966171168
      %v2842 = vunpack.c.0.s8 %v2841
      %v2843 = vlaneseq
      %v2844 = vshrl.u32 %v2843, 7
      %v2845 = vsub.s32 %v2842, %v2844
      %v2846 = vrot.slane %v2838, %v2845
      %v2848 = vunpack.c.l.s4 1966171168
      %v2849 = vunpack.c.0.s8 %v2848
      %v2850 = vlaneseq
      %v2851 = vshrl.u32 %v2850, 7
      %v2852 = vsub.s32 %v2849, %v2851
      %v2853 = vrot.slane %v2839, %v2852
      %v2855 = vunpack.c.l.s4 1966171168
      %v2856 = vunpack.c.0.s8 %v2855
      %v2857 = vlaneseq
      %v2858 = vshrl.u32 %v2857, 7
      %v2859 = vsub.s32 %v2856, %v2858
      %v2860 = vrot.slane %v2797, %v2859
      %v2861 = vcombine.low %v2846, %v2853
      %v2863 = vunpack.c.l.s4 1966171168
      %v2864 = vunpack.c.0.s8 %v2863
      %v2865 = vlaneseq
      %v2866 = vshrl.u32 %v2865, 7
      %v2867 = vsub.s32 %v2864, %v2866
      %v2868 = vrot.slane %v2861, %v2867
      %v2870 = vunpack.c.l.s4 1966171168
      %v2871 = vunpack.c.0.s8 %v2870
      %v2872 = vlaneseq
      %v2873 = vshrl.u32 %v2872, 7
      %v2874 = vsub.s32 %v2871, %v2873
      %v2875 = vrot.slane %v2860, %v2874
      %v2876 = vcombine.low %v2868, %v2875
      %v2877 = vcombine.low %v2811, %v2813
      %v2878 = vcombine.low %v2815, %v2830
      %v2880 = vunpack.c.l.s4 1966171168
      %v2881 = vunpack.c.0.s8 %v2880
      %v2882 = vlaneseq
      %v2883 = vshrl.u32 %v2882, 7
      %v2884 = vsub.s32 %v2881, %v2883
      %v2885 = vrot.slane %v2877, %v2884
      %v2887 = vunpack.c.l.s4 1966171168
      %v2888 = vunpack.c.0.s8 %v2887
      %v2889 = vlaneseq
      %v2890 = vshrl.u32 %v2889, 7
      %v2891 = vsub.s32 %v2888, %v2890
      %v2892 = vrot.slane %v2878, %v2891
      %v2894 = vunpack.c.l.s4 1966171168
      %v2895 = vunpack.c.0.s8 %v2894
      %v2896 = vlaneseq
      %v2897 = vshrl.u32 %v2896, 7
      %v2898 = vsub.s32 %v2895, %v2897
      %v2899 = vrot.slane %v2837, %v2898
      %v2900 = vcombine.low %v2885, %v2892
      %v2902 = vunpack.c.l.s4 1966171168
      %v2903 = vunpack.c.0.s8 %v2902
      %v2904 = vlaneseq
      %v2905 = vshrl.u32 %v2904, 7
      %v2906 = vsub.s32 %v2903, %v2905
      %v2907 = vrot.slane %v2900, %v2906
      %v2909 = vunpack.c.l.s4 1966171168
      %v2910 = vunpack.c.0.s8 %v2909
      %v2911 = vlaneseq
      %v2912 = vshrl.u32 %v2911, 7
      %v2913 = vsub.s32 %v2910, %v2912
      %v2914 = vrot.slane %v2899, %v2913
      %v2915 = vcombine.low %v2907, %v2914
      %2918 = vst [vmem:[%s280] sm:$0x1f] %v2876
      %2919 = vst [vmem:[%s280 + $0x8] sm:$0x1f] %v2915
      %s2920 = smul.u32 2, %s18
      %p2921 = scmp.lt.s32.totalorder %s2920, 3
      %s2922 = scalar_select %p2921, %s2920, 3
      %s2923 = smul.addr %s2922, 8
      %s2924 = scalar_lea.vmem %s7, %s2923
      // Predicated region
      $region49: #{deepfake_timesformer_forward.10} parent=47 // pred_check
        %p2925 = pneg %p188
      $region50: #{deepfake_timesformer_forward.10} parent=47 // pred_check_branch
        %2927 = sbr.rel (%p2925) target = $region52
      $region51: #{deepfake_timesformer_forward.10} parent=47 // pred_region
        %s2928 = smul.u32 2, %s18
      $region52: #{deepfake_timesformer_forward.10} parent=47 // pred_fallthru
        _
    $region48: #{deepfake_timesformer_forward.10} parent=5 // pred_fallthru
      _
    %p2929 = scmp.le.s32.totalorder 2, %s13
    // Predicated region
    $region53: #{deepfake_timesformer_forward.10} parent=5 // pred_check
      %p2930 = pneg %p2929
    $region54: #{deepfake_timesformer_forward.10} parent=5 // pred_check_branch
      %2932 = sbr.rel (%p2930) target = $region56
    $region55: #{deepfake_timesformer_forward.10} parent=5 // pred_region
      %s2933 = ssub.s32 %s13, 2
      // Predicated region
      $region57: #{deepfake_timesformer_forward.10} parent=55 // pred_check
        %p2934 = pneg %p194
      $region58: #{deepfake_timesformer_forward.10} parent=55 // pred_check_branch
        %2936 = sbr.rel (%p2934) target = $region60
      $region59: #{deepfake_timesformer_forward.10} parent=55 // pred_region
        %s2937 = smul.u32 2, %s19
        %p2938 = scmp.lt.s32.totalorder %s2937, 3
        %s2939 = scalar_select %p2938, %s2937, 3
        %s2940 = smul.addr %s2939, 8
        %s2941 = scalar_lea.vmem %s7, %s2940
      $region60: #{deepfake_timesformer_forward.10} parent=55 // pred_fallthru
        _
    $region56: #{deepfake_timesformer_forward.10} parent=5 // pred_fallthru
      _
  $region6: #{deepfake_timesformer_forward.10} parent=0 // loop_footer
    %s17 = sadd.s32 1, %s13
  $region7: #{deepfake_timesformer_forward.10} parent=0 // loop_footer_branch
    %12 = sbr.rel target = $region3
  $region8: #{deepfake_timesformer_forward.10} parent=0 // loop_exit
    _

// kernel: deepfake_timesformer_forward.15
$region0: #{deepfake_timesformer_forward.15}
  #allocation0 [shape = 'u32[]', space=smem, size = 0x4, offset = 0x4, fixed_abs, tag = 'smem constant byte address 0x4 - core index']
  #allocation1 [shape = 'u32[144,128]{1,0:T(1,128)}', space=vmem, size = 0x12000, scoped, tag = 'internal scratch']
  %s0 = inlined_call_operand.vmem [shape: f32[2,9,128], index: 0, kind: input, shape index: {}]
  %s1 = inlined_call_operand.vmem [shape: f32[1,128], index: 1, kind: input, shape index: {}]
  %s2 = inlined_call_operand.vmem [shape: f32[1,128], index: 2, kind: input, shape index: {}]
  %s3 = inlined_call_operand.vmem [shape: bf16[128,2], index: 3, kind: input, shape index: {}]
  %s4 = inlined_call_operand.vmem [shape: f32[1,2], index: 4, kind: input, shape index: {}]
  %s5 = inlined_call_operand.hbm [shape: f32[2,2], index: 5, kind: output, shape index: {}]
  %s6 = sld [smem:[#allocation0]]
  $region30: #{deepfake_timesformer_forward.15} parent=0
    _
  %s8 = ssub.s32 1, %s6
  %s9 = scalar_select 0, %s8, %s6
  $region1: #{deepfake_timesformer_forward.15} parent=0
    #allocation2 [shape = 'u8[1024]{0}', space=vmem, size = 0x400, scoped, tag = 'output window, operand 0, single buffered']
    #allocation3 [shape = 's32[1]{0}', space=sflag, size = 0x4, scoped, tag = 'scoped memory for deepfake_timesformer_forward.15']
    %10 = vsyncpa [#allocation3], 0
    // Predicated region
    $region2: #{deepfake_timesformer_forward.15} parent=1 // pred_check
      _
    $region3: #{deepfake_timesformer_forward.15} parent=1 // pred_check_branch
      %12 = sbr.rel (0) target = $region5
    $region4: #{deepfake_timesformer_forward.15} parent=1 // pred_region
      _
    $region5: #{deepfake_timesformer_forward.15} parent=1 // pred_fallthru
      _
    // Predicated region
    $region6: #{deepfake_timesformer_forward.15} parent=1 // pred_check
      _
    $region7: #{deepfake_timesformer_forward.15} parent=1 // pred_check_branch
      %14 = sbr.rel (0) target = $region9
    $region8: #{deepfake_timesformer_forward.15} parent=1 // pred_region
      _
    $region9: #{deepfake_timesformer_forward.15} parent=1 // pred_fallthru
      _
    // Predicated region
    $region10: #{deepfake_timesformer_forward.15} parent=1 // pred_check
      _
    $region11: #{deepfake_timesformer_forward.15} parent=1 // pred_check_branch
      %16 = sbr.rel (0) target = $region13
    $region12: #{deepfake_timesformer_forward.15} parent=1 // pred_region
      _
    $region13: #{deepfake_timesformer_forward.15} parent=1 // pred_fallthru
      _
    // Predicated region
    $region14: #{deepfake_timesformer_forward.15} parent=1 // pred_check
      _
    $region15: #{deepfake_timesformer_forward.15} parent=1 // pred_check_branch
      %18 = sbr.rel (0) target = $region17
    $region16: #{deepfake_timesformer_forward.15} parent=1 // pred_region
      _
    $region17: #{deepfake_timesformer_forward.15} parent=1 // pred_fallthru
      _
    // Predicated region
    $region18: #{deepfake_timesformer_forward.15} parent=1 // pred_check
      _
    $region19: #{deepfake_timesformer_forward.15} parent=1 // pred_check_branch
      %20 = sbr.rel (0) target = $region21
    $region20: #{deepfake_timesformer_forward.15} parent=1 // pred_region
      _
    $region21: #{deepfake_timesformer_forward.15} parent=1 // pred_fallthru
      _
    %v22 = vld [vmem:[%s0] sm:$0xff]
    %v23 = vld [vmem:[%s0 + $0x8] sm:$0x1]
    %v24 = vld [vmem:[%s0 + $0x10] sm:$0xff]
    %v25 = vld [vmem:[%s0 + $0x18] sm:$0x1]
    %v30 = vcombine.high %v22, %v22
    %v32 = vunpack.c.l.s4 1966171168
    %v33 = vunpack.c.0.s8 %v32
    %v34 = vlaneseq
    %v35 = vshrl.u32 %v34, 7
    %v36 = vsub.s32 %v33, %v35
    %v37 = vrot.slane %v22, %v36
    %v39 = vunpack.c.l.s4 1966171168
    %v40 = vunpack.c.0.s8 %v39
    %v41 = vlaneseq
    %v42 = vshrl.u32 %v41, 7
    %v43 = vsub.s32 %v40, %v42
    %v44 = vrot.slane %v30, %v43
    %v45 = vcombine.high %v37, %v37
    %v46 = vcombine.high %v44, %v44
    %v48 = vunpack.c.l.s4 1966171168
    %v49 = vunpack.c.0.s8 %v48
    %v50 = vlaneseq
    %v51 = vshrl.u32 %v50, 7
    %v52 = vsub.s32 %v49, %v51
    %v53 = vrot.slane %v37, %v52
    %v55 = vunpack.c.l.s4 1966171168
    %v56 = vunpack.c.0.s8 %v55
    %v57 = vlaneseq
    %v58 = vshrl.u32 %v57, 7
    %v59 = vsub.s32 %v56, %v58
    %v60 = vrot.slane %v44, %v59
    %v62 = vunpack.c.l.s4 1966171168
    %v63 = vunpack.c.0.s8 %v62
    %v64 = vlaneseq
    %v65 = vshrl.u32 %v64, 7
    %v66 = vsub.s32 %v63, %v65
    %v67 = vrot.slane %v45, %v66
    %v69 = vunpack.c.l.s4 1966171168
    %v70 = vunpack.c.0.s8 %v69
    %v71 = vlaneseq
    %v72 = vshrl.u32 %v71, 7
    %v73 = vsub.s32 %v70, %v72
    %v74 = vrot.slane %v46, %v73
    %v75 = vcombine.high %v53, %v53
    %v76 = vcombine.high %v60, %v60
    %v77 = vcombine.high %v67, %v67
    %v78 = vcombine.high %v74, %v74
    %v80 = vunpack.c.l.s4 1966171168
    %v81 = vunpack.c.0.s8 %v80
    %v82 = vlaneseq
    %v83 = vshrl.u32 %v82, 7
    %v84 = vsub.s32 %v81, %v83
    %v85 = vrot.slane %v23, %v84
    %v87 = vunpack.c.l.s4 1966171168
    %v88 = vunpack.c.0.s8 %v87
    %v89 = vlaneseq
    %v90 = vshrl.u32 %v89, 7
    %v91 = vsub.s32 %v88, %v90
    %v92 = vrot.slane %v85, %v91
    %v93 = vcombine.high %v24, %v24
    %v95 = vunpack.c.l.s4 1966171168
    %v96 = vunpack.c.0.s8 %v95
    %v97 = vlaneseq
    %v98 = vshrl.u32 %v97, 7
    %v99 = vsub.s32 %v96, %v98
    %v100 = vrot.slane %v24, %v99
    %v102 = vunpack.c.l.s4 1966171168
    %v103 = vunpack.c.0.s8 %v102
    %v104 = vlaneseq
    %v105 = vshrl.u32 %v104, 7
    %v106 = vsub.s32 %v103, %v105
    %v107 = vrot.slane %v93, %v106
    %v108 = vcombine.high %v100, %v100
    %v109 = vcombine.high %v107, %v107
    %v111 = vunpack.c.l.s4 1966171168
    %v112 = vunpack.c.0.s8 %v111
    %v113 = vlaneseq
    %v114 = vshrl.u32 %v113, 7
    %v115 = vsub.s32 %v112, %v114
    %v116 = vrot.slane %v100, %v115
    %v118 = vunpack.c.l.s4 1966171168
    %v119 = vunpack.c.0.s8 %v118
    %v120 = vlaneseq
    %v121 = vshrl.u32 %v120, 7
    %v122 = vsub.s32 %v119, %v121
    %v123 = vrot.slane %v107, %v122
    %v125 = vunpack.c.l.s4 1966171168
    %v126 = vunpack.c.0.s8 %v125
    %v127 = vlaneseq
    %v128 = vshrl.u32 %v127, 7
    %v129 = vsub.s32 %v126, %v128
    %v130 = vrot.slane %v108, %v129
    %v132 = vunpack.c.l.s4 1966171168
    %v133 = vunpack.c.0.s8 %v132
    %v134 = vlaneseq
    %v135 = vshrl.u32 %v134, 7
    %v136 = vsub.s32 %v133, %v135
    %v137 = vrot.slane %v109, %v136
    %v138 = vcombine.high %v116, %v116
    %v139 = vcombine.high %v123, %v123
    %v140 = vcombine.high %v130, %v130
    %v141 = vcombine.high %v137, %v137
    %v143 = vunpack.c.l.s4 1966171168
    %v144 = vunpack.c.0.s8 %v143
    %v145 = vlaneseq
    %v146 = vshrl.u32 %v145, 7
    %v147 = vsub.s32 %v144, %v146
    %v148 = vrot.slane %v25, %v147
    %v150 = vunpack.c.l.s4 1966171168
    %v151 = vunpack.c.0.s8 %v150
    %v152 = vlaneseq
    %v153 = vshrl.u32 %v152, 7
    %v154 = vsub.s32 %v151, %v153
    %v155 = vrot.slane %v148, %v154
    %v174 = vld [vmem:[%s1] sm:$0x1]
    %v175 = vld [vmem:[%s2] sm:$0x1]
    %v176 = vcombine.low %v53, %v67
    %v177 = vcombine.low %v75, %v77
    %v178 = vcombine.low %v60, %v74
    %v179 = vcombine.low %v76, %v78
    %v181 = vunpack.c.l.s4 1966171168
    %v182 = vunpack.c.0.s8 %v181
    %v183 = vlaneseq
    %v184 = vshrl.u32 %v183, 7
    %v185 = vsub.s32 %v182, %v184
    %v186 = vrot.slane %v176, %v185
    %v188 = vunpack.c.l.s4 1966171168
    %v189 = vunpack.c.0.s8 %v188
    %v190 = vlaneseq
    %v191 = vshrl.u32 %v190, 7
    %v192 = vsub.s32 %v189, %v191
    %v193 = vrot.slane %v177, %v192
    %v195 = vunpack.c.l.s4 1966171168
    %v196 = vunpack.c.0.s8 %v195
    %v197 = vlaneseq
    %v198 = vshrl.u32 %v197, 7
    %v199 = vsub.s32 %v196, %v198
    %v200 = vrot.slane %v178, %v199
    %v202 = vunpack.c.l.s4 1966171168
    %v203 = vunpack.c.0.s8 %v202
    %v204 = vlaneseq
    %v205 = vshrl.u32 %v204, 7
    %v206 = vsub.s32 %v203, %v205
    %v207 = vrot.slane %v179, %v206
    %v208 = vcombine.low %v186, %v193
    %v209 = vcombine.low %v200, %v207
    %v211 = vunpack.c.l.s4 1966171168
    %v212 = vunpack.c.0.s8 %v211
    %v213 = vlaneseq
    %v214 = vshrl.u32 %v213, 7
    %v215 = vsub.s32 %v212, %v214
    %v216 = vrot.slane %v208, %v215
    %v218 = vunpack.c.l.s4 1966171168
    %v219 = vunpack.c.0.s8 %v218
    %v220 = vlaneseq
    %v221 = vshrl.u32 %v220, 7
    %v222 = vsub.s32 %v219, %v221
    %v223 = vrot.slane %v209, %v222
    %v224 = vcombine.low %v216, %v223
    %v225 = vcombine.low %v92, %v116
    %v226 = vcombine.low %v130, %v138
    %v227 = vcombine.low %v140, %v123
    %v228 = vcombine.low %v137, %v139
    %v230 = vunpack.c.l.s4 1966171168
    %v231 = vunpack.c.0.s8 %v230
    %v232 = vlaneseq
    %v233 = vshrl.u32 %v232, 7
    %v234 = vsub.s32 %v231, %v233
    %v235 = vrot.slane %v225, %v234
    %v237 = vunpack.c.l.s4 1966171168
    %v238 = vunpack.c.0.s8 %v237
    %v239 = vlaneseq
    %v240 = vshrl.u32 %v239, 7
    %v241 = vsub.s32 %v238, %v240
    %v242 = vrot.slane %v226, %v241
    %v244 = vunpack.c.l.s4 1966171168
    %v245 = vunpack.c.0.s8 %v244
    %v246 = vlaneseq
    %v247 = vshrl.u32 %v246, 7
    %v248 = vsub.s32 %v245, %v247
    %v249 = vrot.slane %v227, %v248
    %v251 = vunpack.c.l.s4 1966171168
    %v252 = vunpack.c.0.s8 %v251
    %v253 = vlaneseq
    %v254 = vshrl.u32 %v253, 7
    %v255 = vsub.s32 %v252, %v254
    %v256 = vrot.slane %v228, %v255
    %v257 = vcombine.low %v235, %v242
    %v258 = vcombine.low %v249, %v256
    %v260 = vunpack.c.l.s4 1966171168
    %v261 = vunpack.c.0.s8 %v260
    %v262 = vlaneseq
    %v263 = vshrl.u32 %v262, 7
    %v264 = vsub.s32 %v261, %v263
    %v265 = vrot.slane %v257, %v264
    %v267 = vunpack.c.l.s4 1966171168
    %v268 = vunpack.c.0.s8 %v267
    %v269 = vlaneseq
    %v270 = vshrl.u32 %v269, 7
    %v271 = vsub.s32 %v268, %v270
    %v272 = vrot.slane %v258, %v271
    %v273 = vcombine.low %v265, %v272
    %v274 = vcombine.low %v141, %v155
    %v276 = vunpack.c.l.s4 1966171168
    %v277 = vunpack.c.0.s8 %v276
    %v278 = vlaneseq
    %v279 = vshrl.u32 %v278, 7
    %v280 = vsub.s32 %v277, %v279
    %v281 = vrot.slane %v274, %v280
    %v283 = vunpack.c.l.s4 1966171168
    %v284 = vunpack.c.0.s8 %v283
    %v285 = vlaneseq
    %v286 = vshrl.u32 %v285, 7
    %v287 = vsub.s32 %v284, %v286
    %v288 = vrot.slane %v281, %v287
    %292 = vadd.xlane.f32.xlu0 %v224
    %v293 = vpop.xlane.xlu0 %292
    %294 = vadd.xlane.f32.xlu0 %v273
    %v295 = vpop.xlane.xlu0 %294
    %vm296 = vcmask 1041408
    %v297 = vsel %vm296, %v288, 0.0
    %298 = vadd.xlane.f32.xlu0 %v297
    %v299 = vpop.xlane.xlu0 %298
    %v300 = vrcp.pop 128.0
    %v301 = vmul.f32 %v293, %v300
    %v302 = vmul.f32 %v295, %v300
    %v303 = vmul.f32 %v299, %v300
    %v307 = vlaneseq
    %v308 = vshrl.u32 %v307, 7
    %v309 = vsub.s32 0, %v308
    %v310 = vrot.slane %v301, %v309
    %v311 = vlaneseq
    %v312 = vshrl.u32 %v311, 7
    %v313 = vsub.s32 1, %v312
    %v314 = vrot.slane %v301, %v313
    %v315 = vlaneseq
    %v316 = vshrl.u32 %v315, 7
    %v317 = vsub.s32 2, %v316
    %v318 = vrot.slane %v301, %v317
    %v319 = vlaneseq
    %v320 = vshrl.u32 %v319, 7
    %v321 = vsub.s32 3, %v320
    %v322 = vrot.slane %v301, %v321
    %v323 = vlaneseq
    %v324 = vshrl.u32 %v323, 7
    %v325 = vsub.s32 4, %v324
    %v326 = vrot.slane %v301, %v325
    %v327 = vlaneseq
    %v328 = vshrl.u32 %v327, 7
    %v329 = vsub.s32 5, %v328
    %v330 = vrot.slane %v301, %v329
    %v331 = vlaneseq
    %v332 = vshrl.u32 %v331, 7
    %v333 = vsub.s32 6, %v332
    %v334 = vrot.slane %v301, %v333
    %v335 = vlaneseq
    %v336 = vshrl.u32 %v335, 7
    %v337 = vsub.s32 7, %v336
    %v338 = vrot.slane %v301, %v337
    %v339 = vlaneseq
    %v340 = vshrl.u32 %v339, 7
    %v341 = vsub.s32 0, %v340
    %v342 = vrot.slane %v302, %v341
    %v343 = vlaneseq
    %v344 = vshrl.u32 %v343, 7
    %v345 = vsub.s32 1, %v344
    %v346 = vrot.slane %v302, %v345
    %v347 = vlaneseq
    %v348 = vshrl.u32 %v347, 7
    %v349 = vsub.s32 2, %v348
    %v350 = vrot.slane %v302, %v349
    %v351 = vlaneseq
    %v352 = vshrl.u32 %v351, 7
    %v353 = vsub.s32 3, %v352
    %v354 = vrot.slane %v302, %v353
    %v355 = vlaneseq
    %v356 = vshrl.u32 %v355, 7
    %v357 = vsub.s32 4, %v356
    %v358 = vrot.slane %v302, %v357
    %v359 = vlaneseq
    %v360 = vshrl.u32 %v359, 7
    %v361 = vsub.s32 5, %v360
    %v362 = vrot.slane %v302, %v361
    %v363 = vlaneseq
    %v364 = vshrl.u32 %v363, 7
    %v365 = vsub.s32 6, %v364
    %v366 = vrot.slane %v302, %v365
    %v367 = vlaneseq
    %v368 = vshrl.u32 %v367, 7
    %v369 = vsub.s32 7, %v368
    %v370 = vrot.slane %v302, %v369
    %v371 = vlaneseq
    %v372 = vshrl.u32 %v371, 7
    %v373 = vsub.s32 0, %v372
    %v374 = vrot.slane %v303, %v373
    %v375 = vlaneseq
    %v376 = vshrl.u32 %v375, 7
    %v377 = vsub.s32 1, %v376
    %v378 = vrot.slane %v303, %v377
    %v397 = vsub.f32 %v53, %v310
    %v398 = vsub.f32 %v67, %v314
    %v399 = vsub.f32 %v75, %v318
    %v400 = vsub.f32 %v77, %v322
    %v401 = vsub.f32 %v60, %v326
    %v402 = vsub.f32 %v74, %v330
    %v403 = vsub.f32 %v76, %v334
    %v404 = vsub.f32 %v78, %v338
    %v405 = vsub.f32 %v92, %v342
    %v406 = vsub.f32 %v116, %v346
    %v407 = vsub.f32 %v130, %v350
    %v408 = vsub.f32 %v138, %v354
    %v409 = vsub.f32 %v140, %v358
    %v410 = vsub.f32 %v123, %v362
    %v411 = vsub.f32 %v137, %v366
    %v412 = vsub.f32 %v139, %v370
    %v413 = vsub.f32 %v141, %v374
    %v414 = vsub.f32 %v155, %v378
    %v415 = vmul.f32 %v397, %v397
    %v416 = vmul.f32 %v398, %v398
    %v417 = vmul.f32 %v399, %v399
    %v418 = vmul.f32 %v400, %v400
    %v419 = vmul.f32 %v401, %v401
    %v420 = vmul.f32 %v402, %v402
    %v421 = vmul.f32 %v403, %v403
    %v422 = vmul.f32 %v404, %v404
    %v423 = vmul.f32 %v405, %v405
    %v424 = vmul.f32 %v406, %v406
    %v425 = vmul.f32 %v407, %v407
    %v426 = vmul.f32 %v408, %v408
    %v427 = vmul.f32 %v409, %v409
    %v428 = vmul.f32 %v410, %v410
    %v429 = vmul.f32 %v411, %v411
    %v430 = vmul.f32 %v412, %v412
    %v431 = vmul.f32 %v413, %v413
    %v432 = vmul.f32 %v414, %v414
    %v451 = vcombine.low %v415, %v416
    %v452 = vcombine.low %v417, %v418
    %v453 = vcombine.low %v419, %v420
    %v454 = vcombine.low %v421, %v422
    %v456 = vunpack.c.l.s4 1966171168
    %v457 = vunpack.c.0.s8 %v456
    %v458 = vlaneseq
    %v459 = vshrl.u32 %v458, 7
    %v460 = vsub.s32 %v457, %v459
    %v461 = vrot.slane %v451, %v460
    %v463 = vunpack.c.l.s4 1966171168
    %v464 = vunpack.c.0.s8 %v463
    %v465 = vlaneseq
    %v466 = vshrl.u32 %v465, 7
    %v467 = vsub.s32 %v464, %v466
    %v468 = vrot.slane %v452, %v467
    %v470 = vunpack.c.l.s4 1966171168
    %v471 = vunpack.c.0.s8 %v470
    %v472 = vlaneseq
    %v473 = vshrl.u32 %v472, 7
    %v474 = vsub.s32 %v471, %v473
    %v475 = vrot.slane %v453, %v474
    %v477 = vunpack.c.l.s4 1966171168
    %v478 = vunpack.c.0.s8 %v477
    %v479 = vlaneseq
    %v480 = vshrl.u32 %v479, 7
    %v481 = vsub.s32 %v478, %v480
    %v482 = vrot.slane %v454, %v481
    %v483 = vcombine.low %v461, %v468
    %v484 = vcombine.low %v475, %v482
    %v486 = vunpack.c.l.s4 1966171168
    %v487 = vunpack.c.0.s8 %v486
    %v488 = vlaneseq
    %v489 = vshrl.u32 %v488, 7
    %v490 = vsub.s32 %v487, %v489
    %v491 = vrot.slane %v483, %v490
    %v493 = vunpack.c.l.s4 1966171168
    %v494 = vunpack.c.0.s8 %v493
    %v495 = vlaneseq
    %v496 = vshrl.u32 %v495, 7
    %v497 = vsub.s32 %v494, %v496
    %v498 = vrot.slane %v484, %v497
    %v499 = vcombine.low %v491, %v498
    %v500 = vcombine.low %v423, %v424
    %v501 = vcombine.low %v425, %v426
    %v502 = vcombine.low %v427, %v428
    %v503 = vcombine.low %v429, %v430
    %v505 = vunpack.c.l.s4 1966171168
    %v506 = vunpack.c.0.s8 %v505
    %v507 = vlaneseq
    %v508 = vshrl.u32 %v507, 7
    %v509 = vsub.s32 %v506, %v508
    %v510 = vrot.slane %v500, %v509
    %v512 = vunpack.c.l.s4 1966171168
    %v513 = vunpack.c.0.s8 %v512
    %v514 = vlaneseq
    %v515 = vshrl.u32 %v514, 7
    %v516 = vsub.s32 %v513, %v515
    %v517 = vrot.slane %v501, %v516
    %v519 = vunpack.c.l.s4 1966171168
    %v520 = vunpack.c.0.s8 %v519
    %v521 = vlaneseq
    %v522 = vshrl.u32 %v521, 7
    %v523 = vsub.s32 %v520, %v522
    %v524 = vrot.slane %v502, %v523
    %v526 = vunpack.c.l.s4 1966171168
    %v527 = vunpack.c.0.s8 %v526
    %v528 = vlaneseq
    %v529 = vshrl.u32 %v528, 7
    %v530 = vsub.s32 %v527, %v529
    %v531 = vrot.slane %v503, %v530
    %v532 = vcombine.low %v510, %v517
    %v533 = vcombine.low %v524, %v531
    %v535 = vunpack.c.l.s4 1966171168
    %v536 = vunpack.c.0.s8 %v535
    %v537 = vlaneseq
    %v538 = vshrl.u32 %v537, 7
    %v539 = vsub.s32 %v536, %v538
    %v540 = vrot.slane %v532, %v539
    %v542 = vunpack.c.l.s4 1966171168
    %v543 = vunpack.c.0.s8 %v542
    %v544 = vlaneseq
    %v545 = vshrl.u32 %v544, 7
    %v546 = vsub.s32 %v543, %v545
    %v547 = vrot.slane %v533, %v546
    %v548 = vcombine.low %v540, %v547
    %v549 = vcombine.low %v431, %v432
    %v551 = vunpack.c.l.s4 1966171168
    %v552 = vunpack.c.0.s8 %v551
    %v553 = vlaneseq
    %v554 = vshrl.u32 %v553, 7
    %v555 = vsub.s32 %v552, %v554
    %v556 = vrot.slane %v549, %v555
    %v558 = vunpack.c.l.s4 1966171168
    %v559 = vunpack.c.0.s8 %v558
    %v560 = vlaneseq
    %v561 = vshrl.u32 %v560, 7
    %v562 = vsub.s32 %v559, %v561
    %v563 = vrot.slane %v556, %v562
    %567 = vadd.xlane.f32.xlu0 %v499
    %v568 = vpop.xlane.xlu0 %567
    %569 = vadd.xlane.f32.xlu0 %v548
    %v570 = vpop.xlane.xlu0 %569
    %v571 = vsel %vm296, %v563, 0.0
    %572 = vadd.xlane.f32.xlu0 %v571
    %v573 = vpop.xlane.xlu0 %572
    %v574 = vmul.f32 %v568, %v300
    %v575 = vmul.f32 %v570, %v300
    %v576 = vmul.f32 %v573, %v300
    %v577 = vadd.f32 %v574, 1e-06
    %v578 = vadd.f32 %v575, 1e-06
    %v579 = vadd.f32 %v576, 1e-06
    %v580 = vrsqrt.pop %v577
    %v581 = vrsqrt.pop %v578
    %v582 = vrsqrt.pop %v579
    %v586 = vlaneseq
    %v587 = vshrl.u32 %v586, 7
    %v588 = vsub.s32 0, %v587
    %v589 = vrot.slane %v580, %v588
    %v590 = vlaneseq
    %v591 = vshrl.u32 %v590, 7
    %v592 = vsub.s32 1, %v591
    %v593 = vrot.slane %v580, %v592
    %v594 = vlaneseq
    %v595 = vshrl.u32 %v594, 7
    %v596 = vsub.s32 2, %v595
    %v597 = vrot.slane %v580, %v596
    %v598 = vlaneseq
    %v599 = vshrl.u32 %v598, 7
    %v600 = vsub.s32 3, %v599
    %v601 = vrot.slane %v580, %v600
    %v602 = vlaneseq
    %v603 = vshrl.u32 %v602, 7
    %v604 = vsub.s32 4, %v603
    %v605 = vrot.slane %v580, %v604
    %v606 = vlaneseq
    %v607 = vshrl.u32 %v606, 7
    %v608 = vsub.s32 5, %v607
    %v609 = vrot.slane %v580, %v608
    %v610 = vlaneseq
    %v611 = vshrl.u32 %v610, 7
    %v612 = vsub.s32 6, %v611
    %v613 = vrot.slane %v580, %v612
    %v614 = vlaneseq
    %v615 = vshrl.u32 %v614, 7
    %v616 = vsub.s32 7, %v615
    %v617 = vrot.slane %v580, %v616
    %v618 = vlaneseq
    %v619 = vshrl.u32 %v618, 7
    %v620 = vsub.s32 0, %v619
    %v621 = vrot.slane %v581, %v620
    %v622 = vlaneseq
    %v623 = vshrl.u32 %v622, 7
    %v624 = vsub.s32 1, %v623
    %v625 = vrot.slane %v581, %v624
    %v626 = vlaneseq
    %v627 = vshrl.u32 %v626, 7
    %v628 = vsub.s32 2, %v627
    %v629 = vrot.slane %v581, %v628
    %v630 = vlaneseq
    %v631 = vshrl.u32 %v630, 7
    %v632 = vsub.s32 3, %v631
    %v633 = vrot.slane %v581, %v632
    %v634 = vlaneseq
    %v635 = vshrl.u32 %v634, 7
    %v636 = vsub.s32 4, %v635
    %v637 = vrot.slane %v581, %v636
    %v638 = vlaneseq
    %v639 = vshrl.u32 %v638, 7
    %v640 = vsub.s32 5, %v639
    %v641 = vrot.slane %v581, %v640
    %v642 = vlaneseq
    %v643 = vshrl.u32 %v642, 7
    %v644 = vsub.s32 6, %v643
    %v645 = vrot.slane %v581, %v644
    %v646 = vlaneseq
    %v647 = vshrl.u32 %v646, 7
    %v648 = vsub.s32 7, %v647
    %v649 = vrot.slane %v581, %v648
    %v650 = vlaneseq
    %v651 = vshrl.u32 %v650, 7
    %v652 = vsub.s32 0, %v651
    %v653 = vrot.slane %v582, %v652
    %v654 = vlaneseq
    %v655 = vshrl.u32 %v654, 7
    %v656 = vsub.s32 1, %v655
    %v657 = vrot.slane %v582, %v656
    %v676 = vmul.f32 %v397, %v589
    %v677 = vmul.f32 %v398, %v593
    %v678 = vmul.f32 %v399, %v597
    %v679 = vmul.f32 %v400, %v601
    %v680 = vmul.f32 %v401, %v605
    %v681 = vmul.f32 %v402, %v609
    %v682 = vmul.f32 %v403, %v613
    %v683 = vmul.f32 %v404, %v617
    %v684 = vmul.f32 %v405, %v621
    %v685 = vmul.f32 %v406, %v625
    %v686 = vmul.f32 %v407, %v629
    %v687 = vmul.f32 %v408, %v633
    %v688 = vmul.f32 %v409, %v637
    %v689 = vmul.f32 %v410, %v641
    %v690 = vmul.f32 %v411, %v645
    %v691 = vmul.f32 %v412, %v649
    %v692 = vmul.f32 %v413, %v653
    %v693 = vmul.f32 %v414, %v657
    %v695 = vlaneseq
    %v696 = vshrl.u32 %v695, 7
    %v697 = vsub.s32 0, %v696
    %v698 = vrot.slane %v174, %v697
    %v699 = vcombine.high %v698, %v698
    %v701 = vunpack.c.l.s4 1966171168
    %v702 = vunpack.c.0.s8 %v701
    %v703 = vlaneseq
    %v704 = vshrl.u32 %v703, 7
    %v705 = vsub.s32 %v702, %v704
    %v706 = vrot.slane %v698, %v705
    %v708 = vunpack.c.l.s4 1966171168
    %v709 = vunpack.c.0.s8 %v708
    %v710 = vlaneseq
    %v711 = vshrl.u32 %v710, 7
    %v712 = vsub.s32 %v709, %v711
    %v713 = vrot.slane %v699, %v712
    %v714 = vcombine.high %v706, %v706
    %v715 = vcombine.high %v713, %v713
    %v717 = vunpack.c.l.s4 1966171168
    %v718 = vunpack.c.0.s8 %v717
    %v719 = vlaneseq
    %v720 = vshrl.u32 %v719, 7
    %v721 = vsub.s32 %v718, %v720
    %v722 = vrot.slane %v706, %v721
    %v724 = vunpack.c.l.s4 1966171168
    %v725 = vunpack.c.0.s8 %v724
    %v726 = vlaneseq
    %v727 = vshrl.u32 %v726, 7
    %v728 = vsub.s32 %v725, %v727
    %v729 = vrot.slane %v713, %v728
    %v731 = vunpack.c.l.s4 1966171168
    %v732 = vunpack.c.0.s8 %v731
    %v733 = vlaneseq
    %v734 = vshrl.u32 %v733, 7
    %v735 = vsub.s32 %v732, %v734
    %v736 = vrot.slane %v714, %v735
    %v738 = vunpack.c.l.s4 1966171168
    %v739 = vunpack.c.0.s8 %v738
    %v740 = vlaneseq
    %v741 = vshrl.u32 %v740, 7
    %v742 = vsub.s32 %v739, %v741
    %v743 = vrot.slane %v715, %v742
    %v744 = vcombine.high %v722, %v722
    %v745 = vcombine.high %v729, %v729
    %v746 = vcombine.high %v736, %v736
    %v747 = vcombine.high %v743, %v743
    %v756 = vmul.f32 %v676, %v722
    %v757 = vmul.f32 %v677, %v736
    %v758 = vmul.f32 %v678, %v744
    %v759 = vmul.f32 %v679, %v746
    %v760 = vmul.f32 %v680, %v729
    %v761 = vmul.f32 %v681, %v743
    %v762 = vmul.f32 %v682, %v745
    %v763 = vmul.f32 %v683, %v747
    %v764 = vmul.f32 %v684, %v722
    %v765 = vmul.f32 %v685, %v736
    %v766 = vmul.f32 %v686, %v744
    %v767 = vmul.f32 %v687, %v746
    %v768 = vmul.f32 %v688, %v729
    %v769 = vmul.f32 %v689, %v743
    %v770 = vmul.f32 %v690, %v745
    %v771 = vmul.f32 %v691, %v747
    %v772 = vmul.f32 %v692, %v722
    %v773 = vmul.f32 %v693, %v736
    %v775 = vlaneseq
    %v776 = vshrl.u32 %v775, 7
    %v777 = vsub.s32 0, %v776
    %v778 = vrot.slane %v175, %v777
    %v779 = vcombine.high %v778, %v778
    %v781 = vunpack.c.l.s4 1966171168
    %v782 = vunpack.c.0.s8 %v781
    %v783 = vlaneseq
    %v784 = vshrl.u32 %v783, 7
    %v785 = vsub.s32 %v782, %v784
    %v786 = vrot.slane %v778, %v785
    %v788 = vunpack.c.l.s4 1966171168
    %v789 = vunpack.c.0.s8 %v788
    %v790 = vlaneseq
    %v791 = vshrl.u32 %v790, 7
    %v792 = vsub.s32 %v789, %v791
    %v793 = vrot.slane %v779, %v792
    %v794 = vcombine.high %v786, %v786
    %v795 = vcombine.high %v793, %v793
    %v797 = vunpack.c.l.s4 1966171168
    %v798 = vunpack.c.0.s8 %v797
    %v799 = vlaneseq
    %v800 = vshrl.u32 %v799, 7
    %v801 = vsub.s32 %v798, %v800
    %v802 = vrot.slane %v786, %v801
    %v804 = vunpack.c.l.s4 1966171168
    %v805 = vunpack.c.0.s8 %v804
    %v806 = vlaneseq
    %v807 = vshrl.u32 %v806, 7
    %v808 = vsub.s32 %v805, %v807
    %v809 = vrot.slane %v793, %v808
    %v811 = vunpack.c.l.s4 1966171168
    %v812 = vunpack.c.0.s8 %v811
    %v813 = vlaneseq
    %v814 = vshrl.u32 %v813, 7
    %v815 = vsub.s32 %v812, %v814
    %v816 = vrot.slane %v794, %v815
    %v818 = vunpack.c.l.s4 1966171168
    %v819 = vunpack.c.0.s8 %v818
    %v820 = vlaneseq
    %v821 = vshrl.u32 %v820, 7
    %v822 = vsub.s32 %v819, %v821
    %v823 = vrot.slane %v795, %v822
    %v824 = vcombine.high %v802, %v802
    %v825 = vcombine.high %v809, %v809
    %v826 = vcombine.high %v816, %v816
    %v827 = vcombine.high %v823, %v823
    %v836 = vadd.f32 %v756, %v802
    %v837 = vadd.f32 %v757, %v816
    %v838 = vadd.f32 %v758, %v824
    %v839 = vadd.f32 %v759, %v826
    %v840 = vadd.f32 %v760, %v809
    %v841 = vadd.f32 %v761, %v823
    %v842 = vadd.f32 %v762, %v825
    %v843 = vadd.f32 %v763, %v827
    %v844 = vadd.f32 %v764, %v802
    %v845 = vadd.f32 %v765, %v816
    %v846 = vadd.f32 %v766, %v824
    %v847 = vadd.f32 %v767, %v826
    %v848 = vadd.f32 %v768, %v809
    %v849 = vadd.f32 %v769, %v823
    %v850 = vadd.f32 %v770, %v825
    %v851 = vadd.f32 %v771, %v827
    %v852 = vadd.f32 %v772, %v802
    %v853 = vadd.f32 %v773, %v816
    %v872 = vcombine.low %v836, %v837
    %v873 = vcombine.low %v838, %v839
    %v874 = vcombine.low %v840, %v841
    %v875 = vcombine.low %v842, %v843
    %v877 = vunpack.c.l.s4 1966171168
    %v878 = vunpack.c.0.s8 %v877
    %v879 = vlaneseq
    %v880 = vshrl.u32 %v879, 7
    %v881 = vsub.s32 %v878, %v880
    %v882 = vrot.slane %v872, %v881
    %v884 = vunpack.c.l.s4 1966171168
    %v885 = vunpack.c.0.s8 %v884
    %v886 = vlaneseq
    %v887 = vshrl.u32 %v886, 7
    %v888 = vsub.s32 %v885, %v887
    %v889 = vrot.slane %v873, %v888
    %v891 = vunpack.c.l.s4 1966171168
    %v892 = vunpack.c.0.s8 %v891
    %v893 = vlaneseq
    %v894 = vshrl.u32 %v893, 7
    %v895 = vsub.s32 %v892, %v894
    %v896 = vrot.slane %v874, %v895
    %v898 = vunpack.c.l.s4 1966171168
    %v899 = vunpack.c.0.s8 %v898
    %v900 = vlaneseq
    %v901 = vshrl.u32 %v900, 7
    %v902 = vsub.s32 %v899, %v901
    %v903 = vrot.slane %v875, %v902
    %v904 = vcombine.low %v882, %v889
    %v905 = vcombine.low %v896, %v903
    %v907 = vunpack.c.l.s4 1966171168
    %v908 = vunpack.c.0.s8 %v907
    %v909 = vlaneseq
    %v910 = vshrl.u32 %v909, 7
    %v911 = vsub.s32 %v908, %v910
    %v912 = vrot.slane %v904, %v911
    %v914 = vunpack.c.l.s4 1966171168
    %v915 = vunpack.c.0.s8 %v914
    %v916 = vlaneseq
    %v917 = vshrl.u32 %v916, 7
    %v918 = vsub.s32 %v915, %v917
    %v919 = vrot.slane %v905, %v918
    %v920 = vcombine.low %v912, %v919
    %v922 = vunpack.c.l.s4 1966171168
    %v923 = vunpack.c.0.s8 %v922
    %v924 = vlaneseq
    %v925 = vshrl.u32 %v924, 7
    %v926 = vsub.s32 %v923, %v925
    %v927 = vrot.slane %v844, %v926
    %v929 = vunpack.c.l.s4 1966171168
    %v930 = vunpack.c.0.s8 %v929
    %v931 = vlaneseq
    %v932 = vshrl.u32 %v931, 7
    %v933 = vsub.s32 %v930, %v932
    %v934 = vrot.slane %v927, %v933
    %v935 = vcombine.low %v845, %v846
    %v936 = vcombine.low %v847, %v848
    %v937 = vcombine.low %v849, %v850
    %v938 = vcombine.low %v851, %v852
    %v940 = vunpack.c.l.s4 1966171168
    %v941 = vunpack.c.0.s8 %v940
    %v942 = vlaneseq
    %v943 = vshrl.u32 %v942, 7
    %v944 = vsub.s32 %v941, %v943
    %v945 = vrot.slane %v935, %v944
    %v947 = vunpack.c.l.s4 1966171168
    %v948 = vunpack.c.0.s8 %v947
    %v949 = vlaneseq
    %v950 = vshrl.u32 %v949, 7
    %v951 = vsub.s32 %v948, %v950
    %v952 = vrot.slane %v936, %v951
    %v954 = vunpack.c.l.s4 1966171168
    %v955 = vunpack.c.0.s8 %v954
    %v956 = vlaneseq
    %v957 = vshrl.u32 %v956, 7
    %v958 = vsub.s32 %v955, %v957
    %v959 = vrot.slane %v937, %v958
    %v961 = vunpack.c.l.s4 1966171168
    %v962 = vunpack.c.0.s8 %v961
    %v963 = vlaneseq
    %v964 = vshrl.u32 %v963, 7
    %v965 = vsub.s32 %v962, %v964
    %v966 = vrot.slane %v938, %v965
    %v967 = vcombine.low %v945, %v952
    %v968 = vcombine.low %v959, %v966
    %v970 = vunpack.c.l.s4 1966171168
    %v971 = vunpack.c.0.s8 %v970
    %v972 = vlaneseq
    %v973 = vshrl.u32 %v972, 7
    %v974 = vsub.s32 %v971, %v973
    %v975 = vrot.slane %v967, %v974
    %v977 = vunpack.c.l.s4 1966171168
    %v978 = vunpack.c.0.s8 %v977
    %v979 = vlaneseq
    %v980 = vshrl.u32 %v979, 7
    %v981 = vsub.s32 %v978, %v980
    %v982 = vrot.slane %v968, %v981
    %v983 = vcombine.low %v975, %v982
    %v985 = vunpack.c.l.s4 1966171168
    %v986 = vunpack.c.0.s8 %v985
    %v987 = vlaneseq
    %v988 = vshrl.u32 %v987, 7
    %v989 = vsub.s32 %v986, %v988
    %v990 = vrot.slane %v853, %v989
    %v992 = vunpack.c.l.s4 1966171168
    %v993 = vunpack.c.0.s8 %v992
    %v994 = vlaneseq
    %v995 = vshrl.u32 %v994, 7
    %v996 = vsub.s32 %v993, %v995
    %v997 = vrot.slane %v990, %v996
    %vm1002 = vcmask 1040384
    %v1003 = vsel %vm1002, %v934, 0.0
    %v1004 = vadd.f32 %v920, %v1003
    %v1005 = vrot.slane %v1004, 4
    %v1006 = vadd.f32 %v1004, %v1005
    %v1007 = vrot.slane %v1006, 2
    %v1008 = vadd.f32 %v1006, %v1007
    %v1009 = vrot.slane %v1008, 1
    %v1010 = vadd.f32 %v1008, %v1009
    %v1011 = vsel %vm1002, %v997, 0.0
    %v1012 = vadd.f32 %v983, %v1011
    %v1013 = vrot.slane %v1012, 4
    %v1014 = vadd.f32 %v1012, %v1013
    %v1015 = vrot.slane %v1014, 2
    %v1016 = vadd.f32 %v1014, %v1015
    %v1017 = vrot.slane %v1016, 1
    %v1018 = vadd.f32 %v1016, %v1017
    %v1019 = vrcp.pop 9.0
    %v1020 = vmul.f32 %v1010, %v1019
    %v1021 = vmul.f32 %v1018, %v1019
    %v1022 = vpack.c.bf16 %v1020, %v1020
    %v1023 = vpack.c.bf16 %v1021, %v1021
    %v1024 = vld [vmem:[%s3] sm:$0xf]
    %v1025 = vld [vmem:[%s3 + $0x4] sm:$0xf]
    %v1026 = vld [vmem:[%s3 + $0x8] sm:$0xf]
    %v1027 = vld [vmem:[%s3 + $0xc] sm:$0xf]
    %v1028 = vld [vmem:[%s3 + $0x10] sm:$0xf]
    %v1029 = vld [vmem:[%s3 + $0x14] sm:$0xf]
    %v1030 = vld [vmem:[%s3 + $0x18] sm:$0xf]
    %v1031 = vld [vmem:[%s3 + $0x1c] sm:$0xf]
    %v1032 = vld [vmem:[%s3 + $0x20] sm:$0xf]
    %v1033 = vld [vmem:[%s3 + $0x24] sm:$0xf]
    %v1034 = vld [vmem:[%s3 + $0x28] sm:$0xf]
    %v1035 = vld [vmem:[%s3 + $0x2c] sm:$0xf]
    %v1036 = vld [vmem:[%s3 + $0x30] sm:$0xf]
    %v1037 = vld [vmem:[%s3 + $0x34] sm:$0xf]
    %v1038 = vld [vmem:[%s3 + $0x38] sm:$0xf]
    %v1039 = vld [vmem:[%s3 + $0x3c] sm:$0xf]
    %v1040 = vld [vmem:[%s4] sm:$0x1]
    %v1042 = vlaneseq
    %v1043 = vshrl.u32 %v1042, 7
    %v1044 = vsub.s32 0, %v1043
    %v1045 = vrot.slane %v1040, %v1044
    %v1049 = vunpack.c.l.b16 %v1022
    %v1050 = vunpack.c.l.b16 %v1023
    %vm1051 = vcmask 1041409
    %v1052 = vsel %vm1051, %v1050, %v1049
    %v1053 = vpack.c.b16 %v1052, %v1052
    %v1071 = vunpack.c.l.b16 %v1024
    %v1072 = vunpack.c.l.b16 %v1025
    %v1073 = vunpack.c.l.b16 %v1026
    %v1074 = vunpack.c.l.b16 %v1027
    %v1075 = vunpack.c.l.b16 %v1028
    %v1076 = vunpack.c.l.b16 %v1029
    %v1077 = vunpack.c.l.b16 %v1030
    %v1078 = vunpack.c.l.b16 %v1031
    %v1079 = vunpack.c.l.b16 %v1032
    %v1080 = vunpack.c.l.b16 %v1033
    %v1081 = vunpack.c.l.b16 %v1034
    %v1082 = vunpack.c.l.b16 %v1035
    %v1083 = vunpack.c.l.b16 %v1036
    %v1084 = vunpack.c.l.b16 %v1037
    %v1085 = vunpack.c.l.b16 %v1038
    %v1086 = vunpack.c.l.b16 %v1039
    %v1087 = vpack.c.b16 %v1072, %v1071
    %v1088 = vpack.c.b16 %v1074, %v1073
    %v1089 = vpack.c.b16 %v1076, %v1075
    %v1090 = vpack.c.b16 %v1078, %v1077
    %v1091 = vpack.c.b16 %v1080, %v1079
    %v1092 = vpack.c.b16 %v1082, %v1081
    %v1093 = vpack.c.b16 %v1084, %v1083
    %v1094 = vpack.c.b16 %v1086, %v1085
    %1103 = vmatprep.subr.bf16.mxu0 0
    %1104 = vmatpush1.bf16.msra.mxu0 %v1094
    %1105 = vmatprep.subr.bf16.mxu0 0
    %1106 = vmatpush1.bf16.msra.mxu0 %v1093
    %1107 = vmatprep.subr.bf16.mxu0 0
    %1108 = vmatpush1.bf16.msra.mxu0 %v1092
    %1109 = vmatprep.subr.bf16.mxu0 0
    %1110 = vmatpush1.bf16.msra.mxu0 %v1091
    %1111 = vmatprep.subr.bf16.mxu0 0
    %1112 = vmatpush1.bf16.msra.mxu0 %v1090
    %1113 = vmatprep.subr.bf16.mxu0 0
    %1114 = vmatpush1.bf16.msra.mxu0 %v1089
    %1115 = vmatprep.subr.bf16.mxu0 0
    %1116 = vmatpush1.bf16.msra.mxu0 %v1088
    %1117 = vmatprep.subr.bf16.mxu0 0
    %1118 = vmatpush1.bf16.msra.mxu0 %v1087
    %1119 = vmatprep.subr.bf16.mxu0 0
    %1120 = vmatpush2.bf16.msra.mxu0 0
    %1121 = vmatprep.subr.bf16.mxu0 0
    %1122 = vmatpush2.bf16.msra.mxu0 0
    %1123 = vmatprep.subr.bf16.mxu0 0
    %1124 = vmatpush2.bf16.msra.mxu0 0
    %1125 = vmatprep.subr.bf16.mxu0 0
    %1126 = vmatpush2.bf16.msra.mxu0 0
    %1127 = vmatprep.subr.bf16.mxu0 0
    %1128 = vmatpush2.bf16.msra.mxu0 0
    %1129 = vmatprep.subr.bf16.mxu0 0
    %1130 = vmatpush2.bf16.msra.mxu0 0
    %1131 = vmatprep.subr.bf16.mxu0 0
    %1132 = vmatpush2.bf16.msra.mxu0 0
    %1133 = vmatprep.subr.bf16.mxu0 0
    %1134 = vmatpush2.bf16.msra.mxu0 0
    %1135 = vmatprep.mubr.bf16.mxu0 0
    %1136 = vmatmul.mubr.bf16.gmra.mxu0 %v1053
    %v1137 = vpop.f32.mrf.mxu0
    %v1138 = vadd.f32 %v1045, %v1137
    %v1139 = vpop.f32.mrf.mxu0
    %v1140 = vpop.f32.mrf.mxu0
    %v1141 = vpop.f32.mrf.mxu0
    %1142 = vdwg.mxu0
    %vm1143 = vcmask 9216
    %1144 = vst.msk [vmem:[#allocation2] sm:$0x3] %vm1143, %v1138
    // Predicated region
    $region22: #{deepfake_timesformer_forward.15} parent=1 // pred_check
      _
    $region23: #{deepfake_timesformer_forward.15} parent=1 // pred_check_branch
      %1146 = sbr.rel (0) target = $region25
    $region24: #{deepfake_timesformer_forward.15} parent=1 // pred_region
      %s1148 = ssub.s32 32, 32
      %1149 = vsyncadd [#allocation3], %s1148
      %s1151 = sshll.u32 [#allocation2], 4
      %s1152 = int_to_ptr.vmem [resolvable:$true] %s1151
      %1154 = dma.vmem_to_hbm [thread:$0]  %s1152, 32, %s5, [#allocation3]
    $region25: #{deepfake_timesformer_forward.15} parent=1 // pred_fallthru
      _
    // Predicated region
    $region26: #{deepfake_timesformer_forward.15} parent=1 // pred_check
      _
    $region27: #{deepfake_timesformer_forward.15} parent=1 // pred_check_branch
      %1156 = sbr.rel (0) target = $region29
    $region28: #{deepfake_timesformer_forward.15} parent=1 // pred_region
      %1157 = dma.done [#allocation3], 32
    $region29: #{deepfake_timesformer_forward.15} parent=1 // pred_fallthru
      _
    %1158 = vsyncpa [#allocation3], 1

</llo_original>
